<compile_context>
chip_gen: v7x
topology: tpu7x:2x2x1
jax: 0.10.0
libtpu: 0.0.40
codegen_flags: <defaults>
</compile_context>

<pallas_src>
import functools
import math

import numpy as np
import jax
import jax.numpy as jnp
from jax.experimental import pallas as pl
from jax.experimental.pallas import tpu as pltpu

_BN_EPS = 1e-5  # torch.nn.BatchNorm2d default


# ----------------------------- the fused kernel ------------------------------

def cbam_kernel(x_ref, m9_ref, hm_ref, wm_ref,
                c1w_ref, bn1s_ref, bn1b_ref,
                c2w_ref, bn2s_ref, bn2b_ref,
                fc1_ref, fc2_ref, saw_ref,
                o_ref, *, H, W, num_blocks):
    N = H * W
    x = x_ref[...].astype(jnp.float32)                      # (C, N), n = h*W + w

    def conv3x3(inp, w_ref, blk):
        # 9 per-tap (C_out,C_in)x(C_in,N) MXU matmuls accumulated in f32.
        # Shifted taps = circular lane roll (XLU) * combined h/w validity mask,
        # so there is no padded temp, no unaligned slice, no (9C,N) im2col slab.
        acc = jnp.dot(w_ref[blk, 4], inp,                   # center tap: no roll/mask
                      preferred_element_type=jnp.float32)
        for t in range(9):
            if t == 4:
                continue
            sh, sw = t // 3 - 1, t % 3 - 1
            shift = (-(sh * W + sw)) % N                    # result[n] = inp[n + sh*W + sw]
            xs = pltpu.roll(inp, shift=shift, axis=1) * m9_ref[t]
            acc = acc + jnp.dot(w_ref[blk, t], xs,
                                preferred_element_type=jnp.float32)
        return acc

    for blk in range(num_blocks):
        residual = x

        # conv3x3 -> BN -> ReLU ; conv3x3 -> BN
        y = conv3x3(x, c1w_ref, blk)
        y = jnp.maximum(y * bn1s_ref[blk] + bn1b_ref[blk], 0.0)
        y = conv3x3(y, c2w_ref, blk)
        y = y * bn2s_ref[blk] + bn2b_ref[blk]

        # ---- channel attention: sigmoid(mlp(avg) + mlp(max)), mlp batched on (C,2) ----
        pooled = jnp.concatenate(
            [jnp.mean(y, axis=1, keepdims=True),
             jnp.max(y, axis=1, keepdims=True)], axis=1)             # (C, 2)
        hcc = jnp.maximum(
            jnp.dot(fc1_ref[blk], pooled, preferred_element_type=jnp.float32),
            0.0)                                                     # (Ch, 2)
        z = jnp.dot(fc2_ref[blk], hcc, preferred_element_type=jnp.float32)
        ca = jax.nn.sigmoid(z[:, 0:1] + z[:, 1:2])                   # (C, 1)
        y = y * ca

        # ---- spatial attention: sigmoid(conv7x7([mean_c ; max_c])) ----
        # Pack the 7 vertical shifts of each map into a sublane-dense (16,N)
        # slab (rows 0-6: mean shifts, 7: zero, 8-14: max shifts, 15: zero).
        avg_s = jnp.mean(y, axis=0, keepdims=True)                   # (1, N)
        max_s = jnp.max(y, axis=0, keepdims=True)                    # (1, N)
        zrow = jnp.zeros_like(avg_s)
        rows = []
        for src in (avg_s, max_s):
            for i in range(7):
                shift = ((3 - i) * W) % N                            # row i -> src[n + (i-3)*W]
                rows.append(src if shift == 0 else
                            pltpu.roll(src, shift=shift, axis=1))
            rows.append(zrow)
        S = jnp.concatenate(rows, axis=0) * hm_ref[...]              # (16, N), h-masked

        wcol = saw_ref[blk]                                          # (16, 8): col j = kw j
        acc = S * wcol[:, 3:4]                                       # sw = 0 tap (no mask needed)
        for j in range(7):
            if j == 3:
                continue
            sw = j - 3
            sr = pltpu.roll(S, shift=(-sw) % N, axis=1)
            acc = acc + sr * wcol[:, j:j + 1] * wm_ref[j]            # w-validity mask
        sa = jax.nn.sigmoid(jnp.sum(acc, axis=0, keepdims=True))     # (1, N) sublane reduce
        y = y * sa

        x = jnp.maximum(y + residual, 0.0)

    o_ref[...] = x.astype(o_ref.dtype)                               # full lane-dense store


# ----------------------------- pallas_call wrapper ---------------------------

def _const_spec(a):
    nd = a.ndim
    return pl.BlockSpec(a.shape, lambda b, _nd=nd: (0,) * _nd)


def cbam_forward(x_nchw, kparams, H, W):
    B, C, _, _ = x_nchw.shape
    N = H * W
    x = x_nchw.reshape(B, C, N)        # pure reshape: channels->sublanes, H*W->lanes
    (m9, hm16, wm16, c1w, bn1s, bn1b,
     c2w, bn2s, bn2b, fc1, fc2, saw) = kparams
    num_blocks = c1w.shape[0]

    kernel = functools.partial(cbam_kernel, H=H, W=W, num_blocks=num_blocks)
    args = (x, m9, hm16, wm16, c1w, bn1s, bn1b, c2w, bn2s, bn2b, fc1, fc2, saw)
    in_specs = [pl.BlockSpec((pl.Squeezed(), C, N), lambda b: (b, 0, 0))]
    in_specs += [_const_spec(a) for a in args[1:]]

    out = pl.pallas_call(
        kernel,
        out_shape=jax.ShapeDtypeStruct((B, C, N), x.dtype),
        grid_spec=pltpu.PrefetchScalarGridSpec(
            num_scalar_prefetch=0,
            grid=(B,),
            in_specs=in_specs,
            out_specs=pl.BlockSpec((pl.Squeezed(), C, N), lambda b: (b, 0, 0))),
        compiler_params=pltpu.CompilerParams(
            dimension_semantics=("parallel",)),   # B=2 -> one image per v7x TensorCore
    )(*args)
    return out.reshape(B, C, H, W)


# ----------------------------- masks & parameter packing ---------------------

def make_masks(H, W, C):
    """Precomputed validity masks (rolls are circular; masks zero wrapped lanes)."""
    N = H * W
    h_idx = np.arange(N) // W
    w_idx = np.arange(N) % W

    # combined h/w validity per 3x3 tap, pre-broadcast over channels: (9, C, N)
    m9 = np.zeros((9, N), np.float32)
    for t in range(9):
        sh, sw = t // 3 - 1, t % 3 - 1
        m9[t] = ((h_idx + sh >= 0) & (h_idx + sh < H) &
                 (w_idx + sw >= 0) & (w_idx + sw < W))
    m9c = np.broadcast_to(m9[:, None, :], (9, C, N)).copy()

    # vertical validity for the 7 kh shifts, packed to 8 rows (row 7 zero),
    # duplicated for the [mean ; max] halves of the (16, N) slab.
    hm = np.zeros((8, N), np.float32)
    for i in range(7):
        sh = i - 3
        hm[i] = ((h_idx + sh >= 0) & (h_idx + sh < H))
    hm16 = np.concatenate([hm, hm], axis=0)

    # horizontal validity for the 7 kw shifts, pre-broadcast to 16 sublanes.
    wm = np.zeros((7, N), np.float32)
    for j in range(7):
        sw = j - 3
        wm[j] = ((w_idx + sw >= 0) & (w_idx + sw < W))
    wm16 = np.broadcast_to(wm[:, None, :], (7, 16, N)).copy()

    return jnp.asarray(m9c), jnp.asarray(hm16), jnp.asarray(wm16)


def _u(key, shape, scale=1.0):
    return jax.random.uniform(key, shape, jnp.float32, -1.0, 1.0) * scale


def init_basic_block(key, c, ratio=16):
    ch = max(c // ratio, 1)
    ks = jax.random.split(key, 13)
    p = {}
    p['conv1'] = _u(ks[0], (c, c, 3, 3), 1.0 / math.sqrt(9 * c))   # OIHW
    p['conv2'] = _u(ks[1], (c, c, 3, 3), 1.0 / math.sqrt(9 * c))
    for name, k0 in (('bn1', 2), ('bn2', 6)):
        gamma = 1.0 + _u(ks[k0], (c,), 0.1)
        beta = _u(ks[k0 + 1], (c,), 0.1)
        mean = _u(ks[k0 + 2], (c,), 0.1)
        var = jax.random.uniform(ks[k0 + 3], (c,), jnp.float32, 0.5, 1.5)
        scale = gamma / jnp.sqrt(var + _BN_EPS)
        p[name + '_scale'] = scale                       # folded eval-mode BN
        p[name + '_bias'] = beta - mean * scale
    p['fc1'] = _u(ks[10], (ch, c), 1.0 / math.sqrt(c))   # ChannelAttention fc1
    p['fc2'] = _u(ks[11], (c, ch), 1.0 / math.sqrt(ch))  # ChannelAttention fc2
    p['sa'] = _u(ks[12], (1, 2, 7, 7), 1.0 / math.sqrt(2 * 49))  # SpatialAttention conv
    return p


def pack_params(blocks, H, W):
    c = blocks[0]['conv1'].shape[0]
    m9, hm16, wm16 = make_masks(H, W, c)

    def conv_taps(w):   # OIHW (c,c,3,3) -> (9, c_out, c_in), tap t = kh*3 + kw
        return jnp.transpose(w, (2, 3, 0, 1)).reshape(9, c, c)

    def sa_pack(w):     # (1,2,7,7) -> (16, 8): rows 0-6 mean-ch kh, 8-14 max-ch kh; col j = kw
        return jnp.pad(w[0], ((0, 0), (0, 1), (0, 1))).reshape(16, 8)

    return (
        m9, hm16, wm16,
        jnp.stack([conv_taps(b['conv1']) for b in blocks]),
        jnp.stack([b['bn1_scale'][:, None] for b in blocks]),
        jnp.stack([b['bn1_bias'][:, None] for b in blocks]),
        jnp.stack([conv_taps(b['conv2']) for b in blocks]),
        jnp.stack([b['bn2_scale'][:, None] for b in blocks]),
        jnp.stack([b['bn2_bias'][:, None] for b in blocks]),
        jnp.stack([b['fc1'] for b in blocks]),
        jnp.stack([b['fc2'] for b in blocks]),
        jnp.stack([sa_pack(b['sa']) for b in blocks]),
    )


# ----------------------------- pure-JAX reference ----------------------------

def _conv_ref(x, w, pad):
    return jax.lax.conv_general_dilated(
        x, w, window_strides=(1, 1), padding=[(pad, pad), (pad, pad)],
        dimension_numbers=('NCHW', 'OIHW', 'NCHW'),
        precision=jax.lax.Precision.HIGHEST)


def basic_block_ref(x, p):
    y = _conv_ref(x, p['conv1'], 1)
    y = y * p['bn1_scale'][None, :, None, None] + p['bn1_bias'][None, :, None, None]
    y = jnp.maximum(y, 0.0)
    y = _conv_ref(y, p['conv2'], 1)
    y = y * p['bn2_scale'][None, :, None, None] + p['bn2_bias'][None, :, None, None]

    def mlp(v):  # v: (B, C)
        h = jnp.maximum(jnp.einsum('hc,bc->bh', p['fc1'], v, precision='highest'), 0.0)
        return jnp.einsum('ch,bh->bc', p['fc2'], h, precision='highest')

    avg = jnp.mean(y, axis=(2, 3))
    mx = jnp.max(y, axis=(2, 3))
    ca = jax.nn.sigmoid(mlp(avg) + mlp(mx))
    y = y * ca[:, :, None, None]

    s = jnp.concatenate([jnp.mean(y, axis=1, keepdims=True),
                         jnp.max(y, axis=1, keepdims=True)], axis=1)
    sa = jax.nn.sigmoid(_conv_ref(s, p['sa'], 3))
    y = y * sa
    return jnp.maximum(y + x, 0.0)


def cbam_forward_ref(x, blocks):
    for p in blocks:
        x = basic_block_ref(x, p)
    return x


# ----------------------------- main -------------------------------------------

if __name__ == "__main__":
    # CBAM(args={'dim': 32, 'num_of_blocks': 2}) on a (2, 32, 16, 16) feature map
    B, C, H, W = 2, 32, 16, 16
    num_blocks = 2

    key = jax.random.PRNGKey(0)
    kx, kp = jax.random.split(key)
    x = jax.random.normal(kx, (B, C, H, W), jnp.float32)

    blocks = []
    for _ in range(num_blocks):
        kp, kb = jax.random.split(kp)
        blocks.append(init_basic_block(kb, C))

    kparams = pack_params(blocks, H, W)
    out = cbam_forward(x, kparams, H, W)
    out = jax.block_until_ready(out)

    ref = cbam_forward_ref(x, blocks)
    assert out.shape == x.shape and out.dtype == x.dtype
    max_err = float(jnp.max(jnp.abs(out - ref)))
    if not bool(jnp.allclose(out, ref, rtol=2e-3, atol=2e-3)):
        raise AssertionError(
            f"Pallas CBAM mismatch vs reference, max abs err {max_err}")

    print("KERNEL_OK")
</pallas_src>

<mosaic_0001>
module attributes {stable_mosaic.version = 11 : i64} {
  func.func @cbam_kernel(%arg0: i32, %arg1: memref<1x32x256xf32, #tpu.memory_space<vmem>>, %arg2: memref<9x32x256xf32, #tpu.memory_space<vmem>>, %arg3: memref<16x256xf32, #tpu.memory_space<vmem>>, %arg4: memref<7x16x256xf32, #tpu.memory_space<vmem>>, %arg5: memref<2x9x32x32xf32, #tpu.memory_space<vmem>>, %arg6: memref<2x32x1xf32, #tpu.memory_space<vmem>>, %arg7: memref<2x32x1xf32, #tpu.memory_space<vmem>>, %arg8: memref<2x9x32x32xf32, #tpu.memory_space<vmem>>, %arg9: memref<2x32x1xf32, #tpu.memory_space<vmem>>, %arg10: memref<2x32x1xf32, #tpu.memory_space<vmem>>, %arg11: memref<2x2x32xf32, #tpu.memory_space<vmem>>, %arg12: memref<2x32x2xf32, #tpu.memory_space<vmem>>, %arg13: memref<2x16x8xf32, #tpu.memory_space<vmem>>, %arg14: memref<1x32x256xf32, #tpu.memory_space<vmem>>) attributes {dimension_semantics = [#tpu.dimension_semantics<parallel>], iteration_bounds = array<i64: 2>, scalar_prefetch = 0 : i64, scratch_operands = 0 : i64, tpu.core_type = #tpu.core_type<tc>, window_params = [{transform_indices = @transform_0, window_bounds = array<i64: 1, 32, 256>}, {pipeline_mode = #tpu.pipeline_mode<synchronous>, transform_indices = @transform_1, window_bounds = array<i64: 9, 32, 256>}, {pipeline_mode = #tpu.pipeline_mode<synchronous>, transform_indices = @transform_2, window_bounds = array<i64: 16, 256>}, {pipeline_mode = #tpu.pipeline_mode<synchronous>, transform_indices = @transform_3, window_bounds = array<i64: 7, 16, 256>}, {pipeline_mode = #tpu.pipeline_mode<synchronous>, transform_indices = @transform_4, window_bounds = array<i64: 2, 9, 32, 32>}, {pipeline_mode = #tpu.pipeline_mode<synchronous>, transform_indices = @transform_5, window_bounds = array<i64: 2, 32, 1>}, {pipeline_mode = #tpu.pipeline_mode<synchronous>, transform_indices = @transform_6, window_bounds = array<i64: 2, 32, 1>}, {pipeline_mode = #tpu.pipeline_mode<synchronous>, transform_indices = @transform_7, window_bounds = array<i64: 2, 9, 32, 32>}, {pipeline_mode = #tpu.pipeline_mode<synchronous>, transform_indices = @transform_8, window_bounds = array<i64: 2, 32, 1>}, {pipeline_mode = #tpu.pipeline_mode<synchronous>, transform_indices = @transform_9, window_bounds = array<i64: 2, 32, 1>}, {pipeline_mode = #tpu.pipeline_mode<synchronous>, transform_indices = @transform_10, window_bounds = array<i64: 2, 2, 32>}, {pipeline_mode = #tpu.pipeline_mode<synchronous>, transform_indices = @transform_11, window_bounds = array<i64: 2, 32, 2>}, {pipeline_mode = #tpu.pipeline_mode<synchronous>, transform_indices = @transform_12, window_bounds = array<i64: 2, 16, 8>}, {transform_indices = @transform_13, window_bounds = array<i64: 1, 32, 256>}]} {
    %c0 = arith.constant 0 : index
    %c0_0 = arith.constant 0 : index
    %c0_1 = arith.constant 0 : index
    %0 = vector.load %arg1[%c0, %c0_0, %c0_1] : memref<1x32x256xf32, #tpu.memory_space<vmem>>, vector<1x32x256xf32>
    %1 = vector.shape_cast %0 : vector<1x32x256xf32> to vector<32x256xf32>
    %c0_2 = arith.constant 0 : index
    %c4 = arith.constant 4 : index
    %c0_3 = arith.constant 0 : index
    %c0_4 = arith.constant 0 : index
    %2 = vector.load %arg5[%c0_2, %c4, %c0_3, %c0_4] : memref<2x9x32x32xf32, #tpu.memory_space<vmem>>, vector<1x1x32x32xf32>
    %3 = vector.shape_cast %2 : vector<1x1x32x32xf32> to vector<32x32xf32>
    %cst = arith.constant dense<0.000000e+00> : vector<32x256xf32>
    %4 = tpu.matmul %3, %1, %cst {dimension_numbers = #tpu.dot_dimension_numbers<[1], [0], [0], [1], [0, 0, 1, 1], [], []>} : vector<32x32xf32>, vector<32x256xf32>, vector<32x256xf32> -> vector<32x256xf32>
    %c17_i32 = arith.constant 17 : i32
    %5 = tpu.dynamic_rotate %1 by %c17_i32 dim 1 : vector<32x256xf32>, i32 -> vector<32x256xf32>
    %c0_5 = arith.constant 0 : index
    %c0_6 = arith.constant 0 : index
    %c0_7 = arith.constant 0 : index
    %6 = vector.load %arg2[%c0_5, %c0_6, %c0_7] : memref<9x32x256xf32, #tpu.memory_space<vmem>>, vector<1x32x256xf32>
    %7 = vector.shape_cast %6 : vector<1x32x256xf32> to vector<32x256xf32>
    %8 = arith.mulf %5, %7 : vector<32x256xf32>
    %c0_8 = arith.constant 0 : index
    %c0_9 = arith.constant 0 : index
    %c0_10 = arith.constant 0 : index
    %c0_11 = arith.constant 0 : index
    %9 = vector.load %arg5[%c0_8, %c0_9, %c0_10, %c0_11] : memref<2x9x32x32xf32, #tpu.memory_space<vmem>>, vector<1x1x32x32xf32>
    %10 = vector.shape_cast %9 : vector<1x1x32x32xf32> to vector<32x32xf32>
    %cst_12 = arith.constant dense<0.000000e+00> : vector<32x256xf32>
    %11 = tpu.matmul %10, %8, %cst_12 {dimension_numbers = #tpu.dot_dimension_numbers<[1], [0], [0], [1], [0, 0, 1, 1], [], []>} : vector<32x32xf32>, vector<32x256xf32>, vector<32x256xf32> -> vector<32x256xf32>
    %12 = arith.addf %4, %11 : vector<32x256xf32>
    %c16_i32 = arith.constant 16 : i32
    %13 = tpu.dynamic_rotate %1 by %c16_i32 dim 1 : vector<32x256xf32>, i32 -> vector<32x256xf32>
    %c1 = arith.constant 1 : index
    %c0_13 = arith.constant 0 : index
    %c0_14 = arith.constant 0 : index
    %14 = vector.load %arg2[%c1, %c0_13, %c0_14] : memref<9x32x256xf32, #tpu.memory_space<vmem>>, vector<1x32x256xf32>
    %15 = vector.shape_cast %14 : vector<1x32x256xf32> to vector<32x256xf32>
    %16 = arith.mulf %13, %15 : vector<32x256xf32>
    %c0_15 = arith.constant 0 : index
    %c1_16 = arith.constant 1 : index
    %c0_17 = arith.constant 0 : index
    %c0_18 = arith.constant 0 : index
    %17 = vector.load %arg5[%c0_15, %c1_16, %c0_17, %c0_18] : memref<2x9x32x32xf32, #tpu.memory_space<vmem>>, vector<1x1x32x32xf32>
    %18 = vector.shape_cast %17 : vector<1x1x32x32xf32> to vector<32x32xf32>
    %cst_19 = arith.constant dense<0.000000e+00> : vector<32x256xf32>
    %19 = tpu.matmul %18, %16, %cst_19 {dimension_numbers = #tpu.dot_dimension_numbers<[1], [0], [0], [1], [0, 0, 1, 1], [], []>} : vector<32x32xf32>, vector<32x256xf32>, vector<32x256xf32> -> vector<32x256xf32>
    %20 = arith.addf %12, %19 : vector<32x256xf32>
    %c15_i32 = arith.constant 15 : i32
    %21 = tpu.dynamic_rotate %1 by %c15_i32 dim 1 : vector<32x256xf32>, i32 -> vector<32x256xf32>
    %c2 = arith.constant 2 : index
    %c0_20 = arith.constant 0 : index
    %c0_21 = arith.constant 0 : index
    %22 = vector.load %arg2[%c2, %c0_20, %c0_21] : memref<9x32x256xf32, #tpu.memory_space<vmem>>, vector<1x32x256xf32>
    %23 = vector.shape_cast %22 : vector<1x32x256xf32> to vector<32x256xf32>
    %24 = arith.mulf %21, %23 : vector<32x256xf32>
    %c0_22 = arith.constant 0 : index
    %c2_23 = arith.constant 2 : index
    %c0_24 = arith.constant 0 : index
    %c0_25 = arith.constant 0 : index
    %25 = vector.load %arg5[%c0_22, %c2_23, %c0_24, %c0_25] : memref<2x9x32x32xf32, #tpu.memory_space<vmem>>, vector<1x1x32x32xf32>
    %26 = vector.shape_cast %25 : vector<1x1x32x32xf32> to vector<32x32xf32>
    %cst_26 = arith.constant dense<0.000000e+00> : vector<32x256xf32>
    %27 = tpu.matmul %26, %24, %cst_26 {dimension_numbers = #tpu.dot_dimension_numbers<[1], [0], [0], [1], [0, 0, 1, 1], [], []>} : vector<32x32xf32>, vector<32x256xf32>, vector<32x256xf32> -> vector<32x256xf32>
    %28 = arith.addf %20, %27 : vector<32x256xf32>
    %c1_i32 = arith.constant 1 : i32
    %29 = tpu.dynamic_rotate %1 by %c1_i32 dim 1 : vector<32x256xf32>, i32 -> vector<32x256xf32>
    %c3 = arith.constant 3 : index
    %c0_27 = arith.constant 0 : index
    %c0_28 = arith.constant 0 : index
    %30 = vector.load %arg2[%c3, %c0_27, %c0_28] : memref<9x32x256xf32, #tpu.memory_space<vmem>>, vector<1x32x256xf32>
    %31 = vector.shape_cast %30 : vector<1x32x256xf32> to vector<32x256xf32>
    %32 = arith.mulf %29, %31 : vector<32x256xf32>
    %c0_29 = arith.constant 0 : index
    %c3_30 = arith.constant 3 : index
    %c0_31 = arith.constant 0 : index
    %c0_32 = arith.constant 0 : index
    %33 = vector.load %arg5[%c0_29, %c3_30, %c0_31, %c0_32] : memref<2x9x32x32xf32, #tpu.memory_space<vmem>>, vector<1x1x32x32xf32>
    %34 = vector.shape_cast %33 : vector<1x1x32x32xf32> to vector<32x32xf32>
    %cst_33 = arith.constant dense<0.000000e+00> : vector<32x256xf32>
    %35 = tpu.matmul %34, %32, %cst_33 {dimension_numbers = #tpu.dot_dimension_numbers<[1], [0], [0], [1], [0, 0, 1, 1], [], []>} : vector<32x32xf32>, vector<32x256xf32>, vector<32x256xf32> -> vector<32x256xf32>
    %36 = arith.addf %28, %35 : vector<32x256xf32>
    %c255_i32 = arith.constant 255 : i32
    %37 = tpu.dynamic_rotate %1 by %c255_i32 dim 1 : vector<32x256xf32>, i32 -> vector<32x256xf32>
    %c5 = arith.constant 5 : index
    %c0_34 = arith.constant 0 : index
    %c0_35 = arith.constant 0 : index
    %38 = vector.load %arg2[%c5, %c0_34, %c0_35] : memref<9x32x256xf32, #tpu.memory_space<vmem>>, vector<1x32x256xf32>
    %39 = vector.shape_cast %38 : vector<1x32x256xf32> to vector<32x256xf32>
    %40 = arith.mulf %37, %39 : vector<32x256xf32>
    %c0_36 = arith.constant 0 : index
    %c5_37 = arith.constant 5 : index
    %c0_38 = arith.constant 0 : index
    %c0_39 = arith.constant 0 : index
    %41 = vector.load %arg5[%c0_36, %c5_37, %c0_38, %c0_39] : memref<2x9x32x32xf32, #tpu.memory_space<vmem>>, vector<1x1x32x32xf32>
    %42 = vector.shape_cast %41 : vector<1x1x32x32xf32> to vector<32x32xf32>
    %cst_40 = arith.constant dense<0.000000e+00> : vector<32x256xf32>
    %43 = tpu.matmul %42, %40, %cst_40 {dimension_numbers = #tpu.dot_dimension_numbers<[1], [0], [0], [1], [0, 0, 1, 1], [], []>} : vector<32x32xf32>, vector<32x256xf32>, vector<32x256xf32> -> vector<32x256xf32>
    %44 = arith.addf %36, %43 : vector<32x256xf32>
    %c241_i32 = arith.constant 241 : i32
    %45 = tpu.dynamic_rotate %1 by %c241_i32 dim 1 : vector<32x256xf32>, i32 -> vector<32x256xf32>
    %c6 = arith.constant 6 : index
    %c0_41 = arith.constant 0 : index
    %c0_42 = arith.constant 0 : index
    %46 = vector.load %arg2[%c6, %c0_41, %c0_42] : memref<9x32x256xf32, #tpu.memory_space<vmem>>, vector<1x32x256xf32>
    %47 = vector.shape_cast %46 : vector<1x32x256xf32> to vector<32x256xf32>
    %48 = arith.mulf %45, %47 : vector<32x256xf32>
    %c0_43 = arith.constant 0 : index
    %c6_44 = arith.constant 6 : index
    %c0_45 = arith.constant 0 : index
    %c0_46 = arith.constant 0 : index
    %49 = vector.load %arg5[%c0_43, %c6_44, %c0_45, %c0_46] : memref<2x9x32x32xf32, #tpu.memory_space<vmem>>, vector<1x1x32x32xf32>
    %50 = vector.shape_cast %49 : vector<1x1x32x32xf32> to vector<32x32xf32>
    %cst_47 = arith.constant dense<0.000000e+00> : vector<32x256xf32>
    %51 = tpu.matmul %50, %48, %cst_47 {dimension_numbers = #tpu.dot_dimension_numbers<[1], [0], [0], [1], [0, 0, 1, 1], [], []>} : vector<32x32xf32>, vector<32x256xf32>, vector<32x256xf32> -> vector<32x256xf32>
    %52 = arith.addf %44, %51 : vector<32x256xf32>
    %c240_i32 = arith.constant 240 : i32
    %53 = tpu.dynamic_rotate %1 by %c240_i32 dim 1 : vector<32x256xf32>, i32 -> vector<32x256xf32>
    %c7 = arith.constant 7 : index
    %c0_48 = arith.constant 0 : index
    %c0_49 = arith.constant 0 : index
    %54 = vector.load %arg2[%c7, %c0_48, %c0_49] : memref<9x32x256xf32, #tpu.memory_space<vmem>>, vector<1x32x256xf32>
    %55 = vector.shape_cast %54 : vector<1x32x256xf32> to vector<32x256xf32>
    %56 = arith.mulf %53, %55 : vector<32x256xf32>
    %c0_50 = arith.constant 0 : index
    %c7_51 = arith.constant 7 : index
    %c0_52 = arith.constant 0 : index
    %c0_53 = arith.constant 0 : index
    %57 = vector.load %arg5[%c0_50, %c7_51, %c0_52, %c0_53] : memref<2x9x32x32xf32, #tpu.memory_space<vmem>>, vector<1x1x32x32xf32>
    %58 = vector.shape_cast %57 : vector<1x1x32x32xf32> to vector<32x32xf32>
    %cst_54 = arith.constant dense<0.000000e+00> : vector<32x256xf32>
    %59 = tpu.matmul %58, %56, %cst_54 {dimension_numbers = #tpu.dot_dimension_numbers<[1], [0], [0], [1], [0, 0, 1, 1], [], []>} : vector<32x32xf32>, vector<32x256xf32>, vector<32x256xf32> -> vector<32x256xf32>
    %60 = arith.addf %52, %59 : vector<32x256xf32>
    %c239_i32 = arith.constant 239 : i32
    %61 = tpu.dynamic_rotate %1 by %c239_i32 dim 1 : vector<32x256xf32>, i32 -> vector<32x256xf32>
    %c8 = arith.constant 8 : index
    %c0_55 = arith.constant 0 : index
    %c0_56 = arith.constant 0 : index
    %62 = vector.load %arg2[%c8, %c0_55, %c0_56] : memref<9x32x256xf32, #tpu.memory_space<vmem>>, vector<1x32x256xf32>
    %63 = vector.shape_cast %62 : vector<1x32x256xf32> to vector<32x256xf32>
    %64 = arith.mulf %61, %63 : vector<32x256xf32>
    %c0_57 = arith.constant 0 : index
    %c8_58 = arith.constant 8 : index
    %c0_59 = arith.constant 0 : index
    %c0_60 = arith.constant 0 : index
    %65 = vector.load %arg5[%c0_57, %c8_58, %c0_59, %c0_60] : memref<2x9x32x32xf32, #tpu.memory_space<vmem>>, vector<1x1x32x32xf32>
    %66 = vector.shape_cast %65 : vector<1x1x32x32xf32> to vector<32x32xf32>
    %cst_61 = arith.constant dense<0.000000e+00> : vector<32x256xf32>
    %67 = tpu.matmul %66, %64, %cst_61 {dimension_numbers = #tpu.dot_dimension_numbers<[1], [0], [0], [1], [0, 0, 1, 1], [], []>} : vector<32x32xf32>, vector<32x256xf32>, vector<32x256xf32> -> vector<32x256xf32>
    %68 = arith.addf %60, %67 : vector<32x256xf32>
    %c0_62 = arith.constant 0 : index
    %c0_63 = arith.constant 0 : index
    %c0_64 = arith.constant 0 : index
    %69 = vector.load %arg6[%c0_62, %c0_63, %c0_64] : memref<2x32x1xf32, #tpu.memory_space<vmem>>, vector<1x32x1xf32>
    %70 = vector.shape_cast %69 : vector<1x32x1xf32> to vector<32x1xf32>
    %71 = vector.broadcast %70 : vector<32x1xf32> to vector<32x256xf32>
    %72 = arith.mulf %68, %71 : vector<32x256xf32>
    %c0_65 = arith.constant 0 : index
    %c0_66 = arith.constant 0 : index
    %c0_67 = arith.constant 0 : index
    %73 = vector.load %arg7[%c0_65, %c0_66, %c0_67] : memref<2x32x1xf32, #tpu.memory_space<vmem>>, vector<1x32x1xf32>
    %74 = vector.shape_cast %73 : vector<1x32x1xf32> to vector<32x1xf32>
    %75 = vector.broadcast %74 : vector<32x1xf32> to vector<32x256xf32>
    %76 = arith.addf %72, %75 : vector<32x256xf32>
    %cst_68 = arith.constant 0.000000e+00 : f32
    %77 = vector.broadcast %cst_68 : f32 to vector<32x256xf32>
    %78 = arith.maximumf %76, %77 : vector<32x256xf32>
    %c0_69 = arith.constant 0 : index
    %c4_70 = arith.constant 4 : index
    %c0_71 = arith.constant 0 : index
    %c0_72 = arith.constant 0 : index
    %79 = vector.load %arg8[%c0_69, %c4_70, %c0_71, %c0_72] : memref<2x9x32x32xf32, #tpu.memory_space<vmem>>, vector<1x1x32x32xf32>
    %80 = vector.shape_cast %79 : vector<1x1x32x32xf32> to vector<32x32xf32>
    %cst_73 = arith.constant dense<0.000000e+00> : vector<32x256xf32>
    %81 = tpu.matmul %80, %78, %cst_73 {dimension_numbers = #tpu.dot_dimension_numbers<[1], [0], [0], [1], [0, 0, 1, 1], [], []>} : vector<32x32xf32>, vector<32x256xf32>, vector<32x256xf32> -> vector<32x256xf32>
    %c17_i32_74 = arith.constant 17 : i32
    %82 = tpu.dynamic_rotate %78 by %c17_i32_74 dim 1 : vector<32x256xf32>, i32 -> vector<32x256xf32>
    %c0_75 = arith.constant 0 : index
    %c0_76 = arith.constant 0 : index
    %c0_77 = arith.constant 0 : index
    %83 = vector.load %arg2[%c0_75, %c0_76, %c0_77] : memref<9x32x256xf32, #tpu.memory_space<vmem>>, vector<1x32x256xf32>
    %84 = vector.shape_cast %83 : vector<1x32x256xf32> to vector<32x256xf32>
    %85 = arith.mulf %82, %84 : vector<32x256xf32>
    %c0_78 = arith.constant 0 : index
    %c0_79 = arith.constant 0 : index
    %c0_80 = arith.constant 0 : index
    %c0_81 = arith.constant 0 : index
    %86 = vector.load %arg8[%c0_78, %c0_79, %c0_80, %c0_81] : memref<2x9x32x32xf32, #tpu.memory_space<vmem>>, vector<1x1x32x32xf32>
    %87 = vector.shape_cast %86 : vector<1x1x32x32xf32> to vector<32x32xf32>
    %cst_82 = arith.constant dense<0.000000e+00> : vector<32x256xf32>
    %88 = tpu.matmul %87, %85, %cst_82 {dimension_numbers = #tpu.dot_dimension_numbers<[1], [0], [0], [1], [0, 0, 1, 1], [], []>} : vector<32x32xf32>, vector<32x256xf32>, vector<32x256xf32> -> vector<32x256xf32>
    %89 = arith.addf %81, %88 : vector<32x256xf32>
    %c16_i32_83 = arith.constant 16 : i32
    %90 = tpu.dynamic_rotate %78 by %c16_i32_83 dim 1 : vector<32x256xf32>, i32 -> vector<32x256xf32>
    %c1_84 = arith.constant 1 : index
    %c0_85 = arith.constant 0 : index
    %c0_86 = arith.constant 0 : index
    %91 = vector.load %arg2[%c1_84, %c0_85, %c0_86] : memref<9x32x256xf32, #tpu.memory_space<vmem>>, vector<1x32x256xf32>
    %92 = vector.shape_cast %91 : vector<1x32x256xf32> to vector<32x256xf32>
    %93 = arith.mulf %90, %92 : vector<32x256xf32>
    %c0_87 = arith.constant 0 : index
    %c1_88 = arith.constant 1 : index
    %c0_89 = arith.constant 0 : index
    %c0_90 = arith.constant 0 : index
    %94 = vector.load %arg8[%c0_87, %c1_88, %c0_89, %c0_90] : memref<2x9x32x32xf32, #tpu.memory_space<vmem>>, vector<1x1x32x32xf32>
    %95 = vector.shape_cast %94 : vector<1x1x32x32xf32> to vector<32x32xf32>
    %cst_91 = arith.constant dense<0.000000e+00> : vector<32x256xf32>
    %96 = tpu.matmul %95, %93, %cst_91 {dimension_numbers = #tpu.dot_dimension_numbers<[1], [0], [0], [1], [0, 0, 1, 1], [], []>} : vector<32x32xf32>, vector<32x256xf32>, vector<32x256xf32> -> vector<32x256xf32>
    %97 = arith.addf %89, %96 : vector<32x256xf32>
    %c15_i32_92 = arith.constant 15 : i32
    %98 = tpu.dynamic_rotate %78 by %c15_i32_92 dim 1 : vector<32x256xf32>, i32 -> vector<32x256xf32>
    %c2_93 = arith.constant 2 : index
    %c0_94 = arith.constant 0 : index
    %c0_95 = arith.constant 0 : index
    %99 = vector.load %arg2[%c2_93, %c0_94, %c0_95] : memref<9x32x256xf32, #tpu.memory_space<vmem>>, vector<1x32x256xf32>
    %100 = vector.shape_cast %99 : vector<1x32x256xf32> to vector<32x256xf32>
    %101 = arith.mulf %98, %100 : vector<32x256xf32>
    %c0_96 = arith.constant 0 : index
    %c2_97 = arith.constant 2 : index
    %c0_98 = arith.constant 0 : index
    %c0_99 = arith.constant 0 : index
    %102 = vector.load %arg8[%c0_96, %c2_97, %c0_98, %c0_99] : memref<2x9x32x32xf32, #tpu.memory_space<vmem>>, vector<1x1x32x32xf32>
    %103 = vector.shape_cast %102 : vector<1x1x32x32xf32> to vector<32x32xf32>
    %cst_100 = arith.constant dense<0.000000e+00> : vector<32x256xf32>
    %104 = tpu.matmul %103, %101, %cst_100 {dimension_numbers = #tpu.dot_dimension_numbers<[1], [0], [0], [1], [0, 0, 1, 1], [], []>} : vector<32x32xf32>, vector<32x256xf32>, vector<32x256xf32> -> vector<32x256xf32>
    %105 = arith.addf %97, %104 : vector<32x256xf32>
    %c1_i32_101 = arith.constant 1 : i32
    %106 = tpu.dynamic_rotate %78 by %c1_i32_101 dim 1 : vector<32x256xf32>, i32 -> vector<32x256xf32>
    %c3_102 = arith.constant 3 : index
    %c0_103 = arith.constant 0 : index
    %c0_104 = arith.constant 0 : index
    %107 = vector.load %arg2[%c3_102, %c0_103, %c0_104] : memref<9x32x256xf32, #tpu.memory_space<vmem>>, vector<1x32x256xf32>
    %108 = vector.shape_cast %107 : vector<1x32x256xf32> to vector<32x256xf32>
    %109 = arith.mulf %106, %108 : vector<32x256xf32>
    %c0_105 = arith.constant 0 : index
    %c3_106 = arith.constant 3 : index
    %c0_107 = arith.constant 0 : index
    %c0_108 = arith.constant 0 : index
    %110 = vector.load %arg8[%c0_105, %c3_106, %c0_107, %c0_108] : memref<2x9x32x32xf32, #tpu.memory_space<vmem>>, vector<1x1x32x32xf32>
    %111 = vector.shape_cast %110 : vector<1x1x32x32xf32> to vector<32x32xf32>
    %cst_109 = arith.constant dense<0.000000e+00> : vector<32x256xf32>
    %112 = tpu.matmul %111, %109, %cst_109 {dimension_numbers = #tpu.dot_dimension_numbers<[1], [0], [0], [1], [0, 0, 1, 1], [], []>} : vector<32x32xf32>, vector<32x256xf32>, vector<32x256xf32> -> vector<32x256xf32>
    %113 = arith.addf %105, %112 : vector<32x256xf32>
    %c255_i32_110 = arith.constant 255 : i32
    %114 = tpu.dynamic_rotate %78 by %c255_i32_110 dim 1 : vector<32x256xf32>, i32 -> vector<32x256xf32>
    %c5_111 = arith.constant 5 : index
    %c0_112 = arith.constant 0 : index
    %c0_113 = arith.constant 0 : index
    %115 = vector.load %arg2[%c5_111, %c0_112, %c0_113] : memref<9x32x256xf32, #tpu.memory_space<vmem>>, vector<1x32x256xf32>
    %116 = vector.shape_cast %115 : vector<1x32x256xf32> to vector<32x256xf32>
    %117 = arith.mulf %114, %116 : vector<32x256xf32>
    %c0_114 = arith.constant 0 : index
    %c5_115 = arith.constant 5 : index
    %c0_116 = arith.constant 0 : index
    %c0_117 = arith.constant 0 : index
    %118 = vector.load %arg8[%c0_114, %c5_115, %c0_116, %c0_117] : memref<2x9x32x32xf32, #tpu.memory_space<vmem>>, vector<1x1x32x32xf32>
    %119 = vector.shape_cast %118 : vector<1x1x32x32xf32> to vector<32x32xf32>
    %cst_118 = arith.constant dense<0.000000e+00> : vector<32x256xf32>
    %120 = tpu.matmul %119, %117, %cst_118 {dimension_numbers = #tpu.dot_dimension_numbers<[1], [0], [0], [1], [0, 0, 1, 1], [], []>} : vector<32x32xf32>, vector<32x256xf32>, vector<32x256xf32> -> vector<32x256xf32>
    %121 = arith.addf %113, %120 : vector<32x256xf32>
    %c241_i32_119 = arith.constant 241 : i32
    %122 = tpu.dynamic_rotate %78 by %c241_i32_119 dim 1 : vector<32x256xf32>, i32 -> vector<32x256xf32>
    %c6_120 = arith.constant 6 : index
    %c0_121 = arith.constant 0 : index
    %c0_122 = arith.constant 0 : index
    %123 = vector.load %arg2[%c6_120, %c0_121, %c0_122] : memref<9x32x256xf32, #tpu.memory_space<vmem>>, vector<1x32x256xf32>
    %124 = vector.shape_cast %123 : vector<1x32x256xf32> to vector<32x256xf32>
    %125 = arith.mulf %122, %124 : vector<32x256xf32>
    %c0_123 = arith.constant 0 : index
    %c6_124 = arith.constant 6 : index
    %c0_125 = arith.constant 0 : index
    %c0_126 = arith.constant 0 : index
    %126 = vector.load %arg8[%c0_123, %c6_124, %c0_125, %c0_126] : memref<2x9x32x32xf32, #tpu.memory_space<vmem>>, vector<1x1x32x32xf32>
    %127 = vector.shape_cast %126 : vector<1x1x32x32xf32> to vector<32x32xf32>
    %cst_127 = arith.constant dense<0.000000e+00> : vector<32x256xf32>
    %128 = tpu.matmul %127, %125, %cst_127 {dimension_numbers = #tpu.dot_dimension_numbers<[1], [0], [0], [1], [0, 0, 1, 1], [], []>} : vector<32x32xf32>, vector<32x256xf32>, vector<32x256xf32> -> vector<32x256xf32>
    %129 = arith.addf %121, %128 : vector<32x256xf32>
    %c240_i32_128 = arith.constant 240 : i32
    %130 = tpu.dynamic_rotate %78 by %c240_i32_128 dim 1 : vector<32x256xf32>, i32 -> vector<32x256xf32>
    %c7_129 = arith.constant 7 : index
    %c0_130 = arith.constant 0 : index
    %c0_131 = arith.constant 0 : index
    %131 = vector.load %arg2[%c7_129, %c0_130, %c0_131] : memref<9x32x256xf32, #tpu.memory_space<vmem>>, vector<1x32x256xf32>
    %132 = vector.shape_cast %131 : vector<1x32x256xf32> to vector<32x256xf32>
    %133 = arith.mulf %130, %132 : vector<32x256xf32>
    %c0_132 = arith.constant 0 : index
    %c7_133 = arith.constant 7 : index
    %c0_134 = arith.constant 0 : index
    %c0_135 = arith.constant 0 : index
    %134 = vector.load %arg8[%c0_132, %c7_133, %c0_134, %c0_135] : memref<2x9x32x32xf32, #tpu.memory_space<vmem>>, vector<1x1x32x32xf32>
    %135 = vector.shape_cast %134 : vector<1x1x32x32xf32> to vector<32x32xf32>
    %cst_136 = arith.constant dense<0.000000e+00> : vector<32x256xf32>
    %136 = tpu.matmul %135, %133, %cst_136 {dimension_numbers = #tpu.dot_dimension_numbers<[1], [0], [0], [1], [0, 0, 1, 1], [], []>} : vector<32x32xf32>, vector<32x256xf32>, vector<32x256xf32> -> vector<32x256xf32>
    %137 = arith.addf %129, %136 : vector<32x256xf32>
    %c239_i32_137 = arith.constant 239 : i32
    %138 = tpu.dynamic_rotate %78 by %c239_i32_137 dim 1 : vector<32x256xf32>, i32 -> vector<32x256xf32>
    %c8_138 = arith.constant 8 : index
    %c0_139 = arith.constant 0 : index
    %c0_140 = arith.constant 0 : index
    %139 = vector.load %arg2[%c8_138, %c0_139, %c0_140] : memref<9x32x256xf32, #tpu.memory_space<vmem>>, vector<1x32x256xf32>
    %140 = vector.shape_cast %139 : vector<1x32x256xf32> to vector<32x256xf32>
    %141 = arith.mulf %138, %140 : vector<32x256xf32>
    %c0_141 = arith.constant 0 : index
    %c8_142 = arith.constant 8 : index
    %c0_143 = arith.constant 0 : index
    %c0_144 = arith.constant 0 : index
    %142 = vector.load %arg8[%c0_141, %c8_142, %c0_143, %c0_144] : memref<2x9x32x32xf32, #tpu.memory_space<vmem>>, vector<1x1x32x32xf32>
    %143 = vector.shape_cast %142 : vector<1x1x32x32xf32> to vector<32x32xf32>
    %cst_145 = arith.constant dense<0.000000e+00> : vector<32x256xf32>
    %144 = tpu.matmul %143, %141, %cst_145 {dimension_numbers = #tpu.dot_dimension_numbers<[1], [0], [0], [1], [0, 0, 1, 1], [], []>} : vector<32x32xf32>, vector<32x256xf32>, vector<32x256xf32> -> vector<32x256xf32>
    %145 = arith.addf %137, %144 : vector<32x256xf32>
    %c0_146 = arith.constant 0 : index
    %c0_147 = arith.constant 0 : index
    %c0_148 = arith.constant 0 : index
    %146 = vector.load %arg9[%c0_146, %c0_147, %c0_148] : memref<2x32x1xf32, #tpu.memory_space<vmem>>, vector<1x32x1xf32>
    %147 = vector.shape_cast %146 : vector<1x32x1xf32> to vector<32x1xf32>
    %148 = vector.broadcast %147 : vector<32x1xf32> to vector<32x256xf32>
    %149 = arith.mulf %145, %148 : vector<32x256xf32>
    %c0_149 = arith.constant 0 : index
    %c0_150 = arith.constant 0 : index
    %c0_151 = arith.constant 0 : index
    %150 = vector.load %arg10[%c0_149, %c0_150, %c0_151] : memref<2x32x1xf32, #tpu.memory_space<vmem>>, vector<1x32x1xf32>
    %151 = vector.shape_cast %150 : vector<1x32x1xf32> to vector<32x1xf32>
    %152 = vector.broadcast %151 : vector<32x1xf32> to vector<32x256xf32>
    %153 = arith.addf %149, %152 : vector<32x256xf32>
    %cst_152 = arith.constant dense<0.000000e+00> : vector<32xf32>
    %154 = vector.multi_reduction <add>, %153, %cst_152 [1] : vector<32x256xf32> to vector<32xf32>
    %155 = vector.shape_cast %154 : vector<32xf32> to vector<32x1xf32>
    %cst_153 = arith.constant 2.560000e+02 : f32
    %156 = vector.broadcast %cst_153 : f32 to vector<32x1xf32>
    %157 = arith.divf %155, %156 : vector<32x1xf32>
    %cst_154 = arith.constant dense<0xFF800000> : vector<32xf32>
    %158 = vector.multi_reduction <maximumf>, %153, %cst_154 [1] : vector<32x256xf32> to vector<32xf32>
    %159 = vector.shape_cast %158 : vector<32xf32> to vector<32x1xf32>
    %160 = tpu.concatenate %157, %159 in 1 : vector<32x1xf32>, vector<32x1xf32> -> vector<32x2xf32>
    %c0_155 = arith.constant 0 : index
    %c0_156 = arith.constant 0 : index
    %c0_157 = arith.constant 0 : index
    %161 = vector.load %arg11[%c0_155, %c0_156, %c0_157] : memref<2x2x32xf32, #tpu.memory_space<vmem>>, vector<1x2x32xf32>
    %162 = vector.shape_cast %161 : vector<1x2x32xf32> to vector<2x32xf32>
    %cst_158 = arith.constant dense<0.000000e+00> : vector<2x2xf32>
    %163 = tpu.matmul %162, %160, %cst_158 {dimension_numbers = #tpu.dot_dimension_numbers<[1], [0], [0], [1], [0, 0, 1, 1], [], []>} : vector<2x32xf32>, vector<32x2xf32>, vector<2x2xf32> -> vector<2x2xf32>
    %cst_159 = arith.constant 0.000000e+00 : f32
    %164 = vector.broadcast %cst_159 : f32 to vector<2x2xf32>
    %165 = arith.maximumf %163, %164 : vector<2x2xf32>
    %c0_160 = arith.constant 0 : index
    %c0_161 = arith.constant 0 : index
    %c0_162 = arith.constant 0 : index
    %166 = vector.load %arg12[%c0_160, %c0_161, %c0_162] : memref<2x32x2xf32, #tpu.memory_space<vmem>>, vector<1x32x2xf32>
    %167 = vector.shape_cast %166 : vector<1x32x2xf32> to vector<32x2xf32>
    %cst_163 = arith.constant dense<0.000000e+00> : vector<32x2xf32>
    %168 = tpu.matmul %167, %165, %cst_163 {dimension_numbers = #tpu.dot_dimension_numbers<[1], [0], [0], [1], [0, 0, 1, 1], [], []>} : vector<32x2xf32>, vector<2x2xf32>, vector<32x2xf32> -> vector<32x2xf32>
    %169 = vector.extract_strided_slice %168 {offsets = [0, 0], sizes = [32, 1], strides = [1, 1]} : vector<32x2xf32> to vector<32x1xf32>
    %170 = vector.extract_strided_slice %168 {offsets = [0, 1], sizes = [32, 1], strides = [1, 1]} : vector<32x2xf32> to vector<32x1xf32>
    %171 = arith.addf %169, %170 : vector<32x1xf32>
    %172 = arith.negf %171 : vector<32x1xf32>
    %173 = math.exp %172 : vector<32x1xf32>
    %cst_164 = arith.constant 1.000000e+00 : f32
    %174 = vector.broadcast %cst_164 : f32 to vector<32x1xf32>
    %175 = arith.addf %174, %173 : vector<32x1xf32>
    %176 = arith.divf %174, %175 : vector<32x1xf32>
    %177 = vector.broadcast %176 : vector<32x1xf32> to vector<32x256xf32>
    %178 = arith.mulf %153, %177 : vector<32x256xf32>
    %cst_165 = arith.constant dense<0.000000e+00> : vector<256xf32>
    %179 = vector.multi_reduction <add>, %178, %cst_165 [0] : vector<32x256xf32> to vector<256xf32>
    %180 = vector.shape_cast %179 : vector<256xf32> to vector<1x256xf32>
    %cst_166 = arith.constant 3.200000e+01 : f32
    %181 = vector.broadcast %cst_166 : f32 to vector<1x256xf32>
    %182 = arith.divf %180, %181 : vector<1x256xf32>
    %cst_167 = arith.constant dense<0xFF800000> : vector<256xf32>
    %183 = vector.multi_reduction <maximumf>, %178, %cst_167 [0] : vector<32x256xf32> to vector<256xf32>
    %184 = vector.shape_cast %183 : vector<256xf32> to vector<1x256xf32>
    %cst_168 = arith.constant 0.000000e+00 : f32
    %185 = vector.broadcast %cst_168 : f32 to vector<1x256xf32>
    %c48_i32 = arith.constant 48 : i32
    %186 = tpu.dynamic_rotate %182 by %c48_i32 dim 1 : vector<1x256xf32>, i32 -> vector<1x256xf32>
    %c32_i32 = arith.constant 32 : i32
    %187 = tpu.dynamic_rotate %182 by %c32_i32 dim 1 : vector<1x256xf32>, i32 -> vector<1x256xf32>
    %c16_i32_169 = arith.constant 16 : i32
    %188 = tpu.dynamic_rotate %182 by %c16_i32_169 dim 1 : vector<1x256xf32>, i32 -> vector<1x256xf32>
    %c240_i32_170 = arith.constant 240 : i32
    %189 = tpu.dynamic_rotate %182 by %c240_i32_170 dim 1 : vector<1x256xf32>, i32 -> vector<1x256xf32>
    %c224_i32 = arith.constant 224 : i32
    %190 = tpu.dynamic_rotate %182 by %c224_i32 dim 1 : vector<1x256xf32>, i32 -> vector<1x256xf32>
    %c208_i32 = arith.constant 208 : i32
    %191 = tpu.dynamic_rotate %182 by %c208_i32 dim 1 : vector<1x256xf32>, i32 -> vector<1x256xf32>
    %c48_i32_171 = arith.constant 48 : i32
    %192 = tpu.dynamic_rotate %184 by %c48_i32_171 dim 1 : vector<1x256xf32>, i32 -> vector<1x256xf32>
    %c32_i32_172 = arith.constant 32 : i32
    %193 = tpu.dynamic_rotate %184 by %c32_i32_172 dim 1 : vector<1x256xf32>, i32 -> vector<1x256xf32>
    %c16_i32_173 = arith.constant 16 : i32
    %194 = tpu.dynamic_rotate %184 by %c16_i32_173 dim 1 : vector<1x256xf32>, i32 -> vector<1x256xf32>
    %c240_i32_174 = arith.constant 240 : i32
    %195 = tpu.dynamic_rotate %184 by %c240_i32_174 dim 1 : vector<1x256xf32>, i32 -> vector<1x256xf32>
    %c224_i32_175 = arith.constant 224 : i32
    %196 = tpu.dynamic_rotate %184 by %c224_i32_175 dim 1 : vector<1x256xf32>, i32 -> vector<1x256xf32>
    %c208_i32_176 = arith.constant 208 : i32
    %197 = tpu.dynamic_rotate %184 by %c208_i32_176 dim 1 : vector<1x256xf32>, i32 -> vector<1x256xf32>
    %198 = tpu.concatenate %186, %187, %188, %182, %189, %190, %191, %185, %192, %193, %194, %184, %195, %196, %197, %185 in 0 : vector<1x256xf32>, vector<1x256xf32>, vector<1x256xf32>, vector<1x256xf32>, vector<1x256xf32>, vector<1x256xf32>, vector<1x256xf32>, vector<1x256xf32>, vector<1x256xf32>, vector<1x256xf32>, vector<1x256xf32>, vector<1x256xf32>, vector<1x256xf32>, vector<1x256xf32>, vector<1x256xf32>, vector<1x256xf32> -> vector<16x256xf32>
    %c0_177 = arith.constant 0 : index
    %c0_178 = arith.constant 0 : index
    %199 = vector.load %arg3[%c0_177, %c0_178] : memref<16x256xf32, #tpu.memory_space<vmem>>, vector<16x256xf32>
    %200 = arith.mulf %198, %199 : vector<16x256xf32>
    %c0_179 = arith.constant 0 : index
    %c0_180 = arith.constant 0 : index
    %c0_181 = arith.constant 0 : index
    %201 = vector.load %arg13[%c0_179, %c0_180, %c0_181] : memref<2x16x8xf32, #tpu.memory_space<vmem>>, vector<1x16x8xf32>
    %202 = vector.shape_cast %201 : vector<1x16x8xf32> to vector<16x8xf32>
    %203 = vector.extract_strided_slice %202 {offsets = [0, 3], sizes = [16, 1], strides = [1, 1]} : vector<16x8xf32> to vector<16x1xf32>
    %204 = vector.broadcast %203 : vector<16x1xf32> to vector<16x256xf32>
    %205 = arith.mulf %200, %204 : vector<16x256xf32>
    %c3_i32 = arith.constant 3 : i32
    %206 = tpu.dynamic_rotate %200 by %c3_i32 dim 1 : vector<16x256xf32>, i32 -> vector<16x256xf32>
    %207 = vector.extract_strided_slice %202 {offsets = [0, 0], sizes = [16, 1], strides = [1, 1]} : vector<16x8xf32> to vector<16x1xf32>
    %208 = vector.broadcast %207 : vector<16x1xf32> to vector<16x256xf32>
    %209 = arith.mulf %206, %208 : vector<16x256xf32>
    %c0_182 = arith.constant 0 : index
    %c0_183 = arith.constant 0 : index
    %c0_184 = arith.constant 0 : index
    %210 = vector.load %arg4[%c0_182, %c0_183, %c0_184] : memref<7x16x256xf32, #tpu.memory_space<vmem>>, vector<1x16x256xf32>
    %211 = vector.shape_cast %210 : vector<1x16x256xf32> to vector<16x256xf32>
    %212 = arith.mulf %209, %211 : vector<16x256xf32>
    %213 = arith.addf %205, %212 : vector<16x256xf32>
    %c2_i32 = arith.constant 2 : i32
    %214 = tpu.dynamic_rotate %200 by %c2_i32 dim 1 : vector<16x256xf32>, i32 -> vector<16x256xf32>
    %215 = vector.extract_strided_slice %202 {offsets = [0, 1], sizes = [16, 1], strides = [1, 1]} : vector<16x8xf32> to vector<16x1xf32>
    %216 = vector.broadcast %215 : vector<16x1xf32> to vector<16x256xf32>
    %217 = arith.mulf %214, %216 : vector<16x256xf32>
    %c1_185 = arith.constant 1 : index
    %c0_186 = arith.constant 0 : index
    %c0_187 = arith.constant 0 : index
    %218 = vector.load %arg4[%c1_185, %c0_186, %c0_187] : memref<7x16x256xf32, #tpu.memory_space<vmem>>, vector<1x16x256xf32>
    %219 = vector.shape_cast %218 : vector<1x16x256xf32> to vector<16x256xf32>
    %220 = arith.mulf %217, %219 : vector<16x256xf32>
    %221 = arith.addf %213, %220 : vector<16x256xf32>
    %c1_i32_188 = arith.constant 1 : i32
    %222 = tpu.dynamic_rotate %200 by %c1_i32_188 dim 1 : vector<16x256xf32>, i32 -> vector<16x256xf32>
    %223 = vector.extract_strided_slice %202 {offsets = [0, 2], sizes = [16, 1], strides = [1, 1]} : vector<16x8xf32> to vector<16x1xf32>
    %224 = vector.broadcast %223 : vector<16x1xf32> to vector<16x256xf32>
    %225 = arith.mulf %222, %224 : vector<16x256xf32>
    %c2_189 = arith.constant 2 : index
    %c0_190 = arith.constant 0 : index
    %c0_191 = arith.constant 0 : index
    %226 = vector.load %arg4[%c2_189, %c0_190, %c0_191] : memref<7x16x256xf32, #tpu.memory_space<vmem>>, vector<1x16x256xf32>
    %227 = vector.shape_cast %226 : vector<1x16x256xf32> to vector<16x256xf32>
    %228 = arith.mulf %225, %227 : vector<16x256xf32>
    %229 = arith.addf %221, %228 : vector<16x256xf32>
    %c255_i32_192 = arith.constant 255 : i32
    %230 = tpu.dynamic_rotate %200 by %c255_i32_192 dim 1 : vector<16x256xf32>, i32 -> vector<16x256xf32>
    %231 = vector.extract_strided_slice %202 {offsets = [0, 4], sizes = [16, 1], strides = [1, 1]} : vector<16x8xf32> to vector<16x1xf32>
    %232 = vector.broadcast %231 : vector<16x1xf32> to vector<16x256xf32>
    %233 = arith.mulf %230, %232 : vector<16x256xf32>
    %c4_193 = arith.constant 4 : index
    %c0_194 = arith.constant 0 : index
    %c0_195 = arith.constant 0 : index
    %234 = vector.load %arg4[%c4_193, %c0_194, %c0_195] : memref<7x16x256xf32, #tpu.memory_space<vmem>>, vector<1x16x256xf32>
    %235 = vector.shape_cast %234 : vector<1x16x256xf32> to vector<16x256xf32>
    %236 = arith.mulf %233, %235 : vector<16x256xf32>
    %237 = arith.addf %229, %236 : vector<16x256xf32>
    %c254_i32 = arith.constant 254 : i32
    %238 = tpu.dynamic_rotate %200 by %c254_i32 dim 1 : vector<16x256xf32>, i32 -> vector<16x256xf32>
    %239 = vector.extract_strided_slice %202 {offsets = [0, 5], sizes = [16, 1], strides = [1, 1]} : vector<16x8xf32> to vector<16x1xf32>
    %240 = vector.broadcast %239 : vector<16x1xf32> to vector<16x256xf32>
    %241 = arith.mulf %238, %240 : vector<16x256xf32>
    %c5_196 = arith.constant 5 : index
    %c0_197 = arith.constant 0 : index
    %c0_198 = arith.constant 0 : index
    %242 = vector.load %arg4[%c5_196, %c0_197, %c0_198] : memref<7x16x256xf32, #tpu.memory_space<vmem>>, vector<1x16x256xf32>
    %243 = vector.shape_cast %242 : vector<1x16x256xf32> to vector<16x256xf32>
    %244 = arith.mulf %241, %243 : vector<16x256xf32>
    %245 = arith.addf %237, %244 : vector<16x256xf32>
    %c253_i32 = arith.constant 253 : i32
    %246 = tpu.dynamic_rotate %200 by %c253_i32 dim 1 : vector<16x256xf32>, i32 -> vector<16x256xf32>
    %247 = vector.extract_strided_slice %202 {offsets = [0, 6], sizes = [16, 1], strides = [1, 1]} : vector<16x8xf32> to vector<16x1xf32>
    %248 = vector.broadcast %247 : vector<16x1xf32> to vector<16x256xf32>
    %249 = arith.mulf %246, %248 : vector<16x256xf32>
    %c6_199 = arith.constant 6 : index
    %c0_200 = arith.constant 0 : index
    %c0_201 = arith.constant 0 : index
    %250 = vector.load %arg4[%c6_199, %c0_200, %c0_201] : memref<7x16x256xf32, #tpu.memory_space<vmem>>, vector<1x16x256xf32>
    %251 = vector.shape_cast %250 : vector<1x16x256xf32> to vector<16x256xf32>
    %252 = arith.mulf %249, %251 : vector<16x256xf32>
    %253 = arith.addf %245, %252 : vector<16x256xf32>
    %cst_202 = arith.constant dense<0.000000e+00> : vector<256xf32>
    %254 = vector.multi_reduction <add>, %253, %cst_202 [0] : vector<16x256xf32> to vector<256xf32>
    %255 = vector.shape_cast %254 : vector<256xf32> to vector<1x256xf32>
    %256 = arith.negf %255 : vector<1x256xf32>
    %257 = math.exp %256 : vector<1x256xf32>
    %cst_203 = arith.constant 1.000000e+00 : f32
    %258 = vector.broadcast %cst_203 : f32 to vector<1x256xf32>
    %259 = arith.addf %258, %257 : vector<1x256xf32>
    %260 = arith.divf %258, %259 : vector<1x256xf32>
    %261 = vector.broadcast %260 : vector<1x256xf32> to vector<32x256xf32>
    %262 = arith.mulf %178, %261 : vector<32x256xf32>
    %263 = arith.addf %262, %1 : vector<32x256xf32>
    %cst_204 = arith.constant 0.000000e+00 : f32
    %264 = vector.broadcast %cst_204 : f32 to vector<32x256xf32>
    %265 = arith.maximumf %263, %264 : vector<32x256xf32>
    %c1_205 = arith.constant 1 : index
    %c4_206 = arith.constant 4 : index
    %c0_207 = arith.constant 0 : index
    %c0_208 = arith.constant 0 : index
    %266 = vector.load %arg5[%c1_205, %c4_206, %c0_207, %c0_208] : memref<2x9x32x32xf32, #tpu.memory_space<vmem>>, vector<1x1x32x32xf32>
    %267 = vector.shape_cast %266 : vector<1x1x32x32xf32> to vector<32x32xf32>
    %cst_209 = arith.constant dense<0.000000e+00> : vector<32x256xf32>
    %268 = tpu.matmul %267, %265, %cst_209 {dimension_numbers = #tpu.dot_dimension_numbers<[1], [0], [0], [1], [0, 0, 1, 1], [], []>} : vector<32x32xf32>, vector<32x256xf32>, vector<32x256xf32> -> vector<32x256xf32>
    %c17_i32_210 = arith.constant 17 : i32
    %269 = tpu.dynamic_rotate %265 by %c17_i32_210 dim 1 : vector<32x256xf32>, i32 -> vector<32x256xf32>
    %c0_211 = arith.constant 0 : index
    %c0_212 = arith.constant 0 : index
    %c0_213 = arith.constant 0 : index
    %270 = vector.load %arg2[%c0_211, %c0_212, %c0_213] : memref<9x32x256xf32, #tpu.memory_space<vmem>>, vector<1x32x256xf32>
    %271 = vector.shape_cast %270 : vector<1x32x256xf32> to vector<32x256xf32>
    %272 = arith.mulf %269, %271 : vector<32x256xf32>
    %c1_214 = arith.constant 1 : index
    %c0_215 = arith.constant 0 : index
    %c0_216 = arith.constant 0 : index
    %c0_217 = arith.constant 0 : index
    %273 = vector.load %arg5[%c1_214, %c0_215, %c0_216, %c0_217] : memref<2x9x32x32xf32, #tpu.memory_space<vmem>>, vector<1x1x32x32xf32>
    %274 = vector.shape_cast %273 : vector<1x1x32x32xf32> to vector<32x32xf32>
    %cst_218 = arith.constant dense<0.000000e+00> : vector<32x256xf32>
    %275 = tpu.matmul %274, %272, %cst_218 {dimension_numbers = #tpu.dot_dimension_numbers<[1], [0], [0], [1], [0, 0, 1, 1], [], []>} : vector<32x32xf32>, vector<32x256xf32>, vector<32x256xf32> -> vector<32x256xf32>
    %276 = arith.addf %268, %275 : vector<32x256xf32>
    %c16_i32_219 = arith.constant 16 : i32
    %277 = tpu.dynamic_rotate %265 by %c16_i32_219 dim 1 : vector<32x256xf32>, i32 -> vector<32x256xf32>
    %c1_220 = arith.constant 1 : index
    %c0_221 = arith.constant 0 : index
    %c0_222 = arith.constant 0 : index
    %278 = vector.load %arg2[%c1_220, %c0_221, %c0_222] : memref<9x32x256xf32, #tpu.memory_space<vmem>>, vector<1x32x256xf32>
    %279 = vector.shape_cast %278 : vector<1x32x256xf32> to vector<32x256xf32>
    %280 = arith.mulf %277, %279 : vector<32x256xf32>
    %c1_223 = arith.constant 1 : index
    %c1_224 = arith.constant 1 : index
    %c0_225 = arith.constant 0 : index
    %c0_226 = arith.constant 0 : index
    %281 = vector.load %arg5[%c1_223, %c1_224, %c0_225, %c0_226] : memref<2x9x32x32xf32, #tpu.memory_space<vmem>>, vector<1x1x32x32xf32>
    %282 = vector.shape_cast %281 : vector<1x1x32x32xf32> to vector<32x32xf32>
    %cst_227 = arith.constant dense<0.000000e+00> : vector<32x256xf32>
    %283 = tpu.matmul %282, %280, %cst_227 {dimension_numbers = #tpu.dot_dimension_numbers<[1], [0], [0], [1], [0, 0, 1, 1], [], []>} : vector<32x32xf32>, vector<32x256xf32>, vector<32x256xf32> -> vector<32x256xf32>
    %284 = arith.addf %276, %283 : vector<32x256xf32>
    %c15_i32_228 = arith.constant 15 : i32
    %285 = tpu.dynamic_rotate %265 by %c15_i32_228 dim 1 : vector<32x256xf32>, i32 -> vector<32x256xf32>
    %c2_229 = arith.constant 2 : index
    %c0_230 = arith.constant 0 : index
    %c0_231 = arith.constant 0 : index
    %286 = vector.load %arg2[%c2_229, %c0_230, %c0_231] : memref<9x32x256xf32, #tpu.memory_space<vmem>>, vector<1x32x256xf32>
    %287 = vector.shape_cast %286 : vector<1x32x256xf32> to vector<32x256xf32>
    %288 = arith.mulf %285, %287 : vector<32x256xf32>
    %c1_232 = arith.constant 1 : index
    %c2_233 = arith.constant 2 : index
    %c0_234 = arith.constant 0 : index
    %c0_235 = arith.constant 0 : index
    %289 = vector.load %arg5[%c1_232, %c2_233, %c0_234, %c0_235] : memref<2x9x32x32xf32, #tpu.memory_space<vmem>>, vector<1x1x32x32xf32>
    %290 = vector.shape_cast %289 : vector<1x1x32x32xf32> to vector<32x32xf32>
    %cst_236 = arith.constant dense<0.000000e+00> : vector<32x256xf32>
    %291 = tpu.matmul %290, %288, %cst_236 {dimension_numbers = #tpu.dot_dimension_numbers<[1], [0], [0], [1], [0, 0, 1, 1], [], []>} : vector<32x32xf32>, vector<32x256xf32>, vector<32x256xf32> -> vector<32x256xf32>
    %292 = arith.addf %284, %291 : vector<32x256xf32>
    %c1_i32_237 = arith.constant 1 : i32
    %293 = tpu.dynamic_rotate %265 by %c1_i32_237 dim 1 : vector<32x256xf32>, i32 -> vector<32x256xf32>
    %c3_238 = arith.constant 3 : index
    %c0_239 = arith.constant 0 : index
    %c0_240 = arith.constant 0 : index
    %294 = vector.load %arg2[%c3_238, %c0_239, %c0_240] : memref<9x32x256xf32, #tpu.memory_space<vmem>>, vector<1x32x256xf32>
    %295 = vector.shape_cast %294 : vector<1x32x256xf32> to vector<32x256xf32>
    %296 = arith.mulf %293, %295 : vector<32x256xf32>
    %c1_241 = arith.constant 1 : index
    %c3_242 = arith.constant 3 : index
    %c0_243 = arith.constant 0 : index
    %c0_244 = arith.constant 0 : index
    %297 = vector.load %arg5[%c1_241, %c3_242, %c0_243, %c0_244] : memref<2x9x32x32xf32, #tpu.memory_space<vmem>>, vector<1x1x32x32xf32>
    %298 = vector.shape_cast %297 : vector<1x1x32x32xf32> to vector<32x32xf32>
    %cst_245 = arith.constant dense<0.000000e+00> : vector<32x256xf32>
    %299 = tpu.matmul %298, %296, %cst_245 {dimension_numbers = #tpu.dot_dimension_numbers<[1], [0], [0], [1], [0, 0, 1, 1], [], []>} : vector<32x32xf32>, vector<32x256xf32>, vector<32x256xf32> -> vector<32x256xf32>
    %300 = arith.addf %292, %299 : vector<32x256xf32>
    %c255_i32_246 = arith.constant 255 : i32
    %301 = tpu.dynamic_rotate %265 by %c255_i32_246 dim 1 : vector<32x256xf32>, i32 -> vector<32x256xf32>
    %c5_247 = arith.constant 5 : index
    %c0_248 = arith.constant 0 : index
    %c0_249 = arith.constant 0 : index
    %302 = vector.load %arg2[%c5_247, %c0_248, %c0_249] : memref<9x32x256xf32, #tpu.memory_space<vmem>>, vector<1x32x256xf32>
    %303 = vector.shape_cast %302 : vector<1x32x256xf32> to vector<32x256xf32>
    %304 = arith.mulf %301, %303 : vector<32x256xf32>
    %c1_250 = arith.constant 1 : index
    %c5_251 = arith.constant 5 : index
    %c0_252 = arith.constant 0 : index
    %c0_253 = arith.constant 0 : index
    %305 = vector.load %arg5[%c1_250, %c5_251, %c0_252, %c0_253] : memref<2x9x32x32xf32, #tpu.memory_space<vmem>>, vector<1x1x32x32xf32>
    %306 = vector.shape_cast %305 : vector<1x1x32x32xf32> to vector<32x32xf32>
    %cst_254 = arith.constant dense<0.000000e+00> : vector<32x256xf32>
    %307 = tpu.matmul %306, %304, %cst_254 {dimension_numbers = #tpu.dot_dimension_numbers<[1], [0], [0], [1], [0, 0, 1, 1], [], []>} : vector<32x32xf32>, vector<32x256xf32>, vector<32x256xf32> -> vector<32x256xf32>
    %308 = arith.addf %300, %307 : vector<32x256xf32>
    %c241_i32_255 = arith.constant 241 : i32
    %309 = tpu.dynamic_rotate %265 by %c241_i32_255 dim 1 : vector<32x256xf32>, i32 -> vector<32x256xf32>
    %c6_256 = arith.constant 6 : index
    %c0_257 = arith.constant 0 : index
    %c0_258 = arith.constant 0 : index
    %310 = vector.load %arg2[%c6_256, %c0_257, %c0_258] : memref<9x32x256xf32, #tpu.memory_space<vmem>>, vector<1x32x256xf32>
    %311 = vector.shape_cast %310 : vector<1x32x256xf32> to vector<32x256xf32>
    %312 = arith.mulf %309, %311 : vector<32x256xf32>
    %c1_259 = arith.constant 1 : index
    %c6_260 = arith.constant 6 : index
    %c0_261 = arith.constant 0 : index
    %c0_262 = arith.constant 0 : index
    %313 = vector.load %arg5[%c1_259, %c6_260, %c0_261, %c0_262] : memref<2x9x32x32xf32, #tpu.memory_space<vmem>>, vector<1x1x32x32xf32>
    %314 = vector.shape_cast %313 : vector<1x1x32x32xf32> to vector<32x32xf32>
    %cst_263 = arith.constant dense<0.000000e+00> : vector<32x256xf32>
    %315 = tpu.matmul %314, %312, %cst_263 {dimension_numbers = #tpu.dot_dimension_numbers<[1], [0], [0], [1], [0, 0, 1, 1], [], []>} : vector<32x32xf32>, vector<32x256xf32>, vector<32x256xf32> -> vector<32x256xf32>
    %316 = arith.addf %308, %315 : vector<32x256xf32>
    %c240_i32_264 = arith.constant 240 : i32
    %317 = tpu.dynamic_rotate %265 by %c240_i32_264 dim 1 : vector<32x256xf32>, i32 -> vector<32x256xf32>
    %c7_265 = arith.constant 7 : index
    %c0_266 = arith.constant 0 : index
    %c0_267 = arith.constant 0 : index
    %318 = vector.load %arg2[%c7_265, %c0_266, %c0_267] : memref<9x32x256xf32, #tpu.memory_space<vmem>>, vector<1x32x256xf32>
    %319 = vector.shape_cast %318 : vector<1x32x256xf32> to vector<32x256xf32>
    %320 = arith.mulf %317, %319 : vector<32x256xf32>
    %c1_268 = arith.constant 1 : index
    %c7_269 = arith.constant 7 : index
    %c0_270 = arith.constant 0 : index
    %c0_271 = arith.constant 0 : index
    %321 = vector.load %arg5[%c1_268, %c7_269, %c0_270, %c0_271] : memref<2x9x32x32xf32, #tpu.memory_space<vmem>>, vector<1x1x32x32xf32>
    %322 = vector.shape_cast %321 : vector<1x1x32x32xf32> to vector<32x32xf32>
    %cst_272 = arith.constant dense<0.000000e+00> : vector<32x256xf32>
    %323 = tpu.matmul %322, %320, %cst_272 {dimension_numbers = #tpu.dot_dimension_numbers<[1], [0], [0], [1], [0, 0, 1, 1], [], []>} : vector<32x32xf32>, vector<32x256xf32>, vector<32x256xf32> -> vector<32x256xf32>
    %324 = arith.addf %316, %323 : vector<32x256xf32>
    %c239_i32_273 = arith.constant 239 : i32
    %325 = tpu.dynamic_rotate %265 by %c239_i32_273 dim 1 : vector<32x256xf32>, i32 -> vector<32x256xf32>
    %c8_274 = arith.constant 8 : index
    %c0_275 = arith.constant 0 : index
    %c0_276 = arith.constant 0 : index
    %326 = vector.load %arg2[%c8_274, %c0_275, %c0_276] : memref<9x32x256xf32, #tpu.memory_space<vmem>>, vector<1x32x256xf32>
    %327 = vector.shape_cast %326 : vector<1x32x256xf32> to vector<32x256xf32>
    %328 = arith.mulf %325, %327 : vector<32x256xf32>
    %c1_277 = arith.constant 1 : index
    %c8_278 = arith.constant 8 : index
    %c0_279 = arith.constant 0 : index
    %c0_280 = arith.constant 0 : index
    %329 = vector.load %arg5[%c1_277, %c8_278, %c0_279, %c0_280] : memref<2x9x32x32xf32, #tpu.memory_space<vmem>>, vector<1x1x32x32xf32>
    %330 = vector.shape_cast %329 : vector<1x1x32x32xf32> to vector<32x32xf32>
    %cst_281 = arith.constant dense<0.000000e+00> : vector<32x256xf32>
    %331 = tpu.matmul %330, %328, %cst_281 {dimension_numbers = #tpu.dot_dimension_numbers<[1], [0], [0], [1], [0, 0, 1, 1], [], []>} : vector<32x32xf32>, vector<32x256xf32>, vector<32x256xf32> -> vector<32x256xf32>
    %332 = arith.addf %324, %331 : vector<32x256xf32>
    %c1_282 = arith.constant 1 : index
    %c0_283 = arith.constant 0 : index
    %c0_284 = arith.constant 0 : index
    %333 = vector.load %arg6[%c1_282, %c0_283, %c0_284] : memref<2x32x1xf32, #tpu.memory_space<vmem>>, vector<1x32x1xf32>
    %334 = vector.shape_cast %333 : vector<1x32x1xf32> to vector<32x1xf32>
    %335 = vector.broadcast %334 : vector<32x1xf32> to vector<32x256xf32>
    %336 = arith.mulf %332, %335 : vector<32x256xf32>
    %c1_285 = arith.constant 1 : index
    %c0_286 = arith.constant 0 : index
    %c0_287 = arith.constant 0 : index
    %337 = vector.load %arg7[%c1_285, %c0_286, %c0_287] : memref<2x32x1xf32, #tpu.memory_space<vmem>>, vector<1x32x1xf32>
    %338 = vector.shape_cast %337 : vector<1x32x1xf32> to vector<32x1xf32>
    %339 = vector.broadcast %338 : vector<32x1xf32> to vector<32x256xf32>
    %340 = arith.addf %336, %339 : vector<32x256xf32>
    %cst_288 = arith.constant 0.000000e+00 : f32
    %341 = vector.broadcast %cst_288 : f32 to vector<32x256xf32>
    %342 = arith.maximumf %340, %341 : vector<32x256xf32>
    %c1_289 = arith.constant 1 : index
    %c4_290 = arith.constant 4 : index
    %c0_291 = arith.constant 0 : index
    %c0_292 = arith.constant 0 : index
    %343 = vector.load %arg8[%c1_289, %c4_290, %c0_291, %c0_292] : memref<2x9x32x32xf32, #tpu.memory_space<vmem>>, vector<1x1x32x32xf32>
    %344 = vector.shape_cast %343 : vector<1x1x32x32xf32> to vector<32x32xf32>
    %cst_293 = arith.constant dense<0.000000e+00> : vector<32x256xf32>
    %345 = tpu.matmul %344, %342, %cst_293 {dimension_numbers = #tpu.dot_dimension_numbers<[1], [0], [0], [1], [0, 0, 1, 1], [], []>} : vector<32x32xf32>, vector<32x256xf32>, vector<32x256xf32> -> vector<32x256xf32>
    %c17_i32_294 = arith.constant 17 : i32
    %346 = tpu.dynamic_rotate %342 by %c17_i32_294 dim 1 : vector<32x256xf32>, i32 -> vector<32x256xf32>
    %c0_295 = arith.constant 0 : index
    %c0_296 = arith.constant 0 : index
    %c0_297 = arith.constant 0 : index
    %347 = vector.load %arg2[%c0_295, %c0_296, %c0_297] : memref<9x32x256xf32, #tpu.memory_space<vmem>>, vector<1x32x256xf32>
    %348 = vector.shape_cast %347 : vector<1x32x256xf32> to vector<32x256xf32>
    %349 = arith.mulf %346, %348 : vector<32x256xf32>
    %c1_298 = arith.constant 1 : index
    %c0_299 = arith.constant 0 : index
    %c0_300 = arith.constant 0 : index
    %c0_301 = arith.constant 0 : index
    %350 = vector.load %arg8[%c1_298, %c0_299, %c0_300, %c0_301] : memref<2x9x32x32xf32, #tpu.memory_space<vmem>>, vector<1x1x32x32xf32>
    %351 = vector.shape_cast %350 : vector<1x1x32x32xf32> to vector<32x32xf32>
    %cst_302 = arith.constant dense<0.000000e+00> : vector<32x256xf32>
    %352 = tpu.matmul %351, %349, %cst_302 {dimension_numbers = #tpu.dot_dimension_numbers<[1], [0], [0], [1], [0, 0, 1, 1], [], []>} : vector<32x32xf32>, vector<32x256xf32>, vector<32x256xf32> -> vector<32x256xf32>
    %353 = arith.addf %345, %352 : vector<32x256xf32>
    %c16_i32_303 = arith.constant 16 : i32
    %354 = tpu.dynamic_rotate %342 by %c16_i32_303 dim 1 : vector<32x256xf32>, i32 -> vector<32x256xf32>
    %c1_304 = arith.constant 1 : index
    %c0_305 = arith.constant 0 : index
    %c0_306 = arith.constant 0 : index
    %355 = vector.load %arg2[%c1_304, %c0_305, %c0_306] : memref<9x32x256xf32, #tpu.memory_space<vmem>>, vector<1x32x256xf32>
    %356 = vector.shape_cast %355 : vector<1x32x256xf32> to vector<32x256xf32>
    %357 = arith.mulf %354, %356 : vector<32x256xf32>
    %c1_307 = arith.constant 1 : index
    %c1_308 = arith.constant 1 : index
    %c0_309 = arith.constant 0 : index
    %c0_310 = arith.constant 0 : index
    %358 = vector.load %arg8[%c1_307, %c1_308, %c0_309, %c0_310] : memref<2x9x32x32xf32, #tpu.memory_space<vmem>>, vector<1x1x32x32xf32>
    %359 = vector.shape_cast %358 : vector<1x1x32x32xf32> to vector<32x32xf32>
    %cst_311 = arith.constant dense<0.000000e+00> : vector<32x256xf32>
    %360 = tpu.matmul %359, %357, %cst_311 {dimension_numbers = #tpu.dot_dimension_numbers<[1], [0], [0], [1], [0, 0, 1, 1], [], []>} : vector<32x32xf32>, vector<32x256xf32>, vector<32x256xf32> -> vector<32x256xf32>
    %361 = arith.addf %353, %360 : vector<32x256xf32>
    %c15_i32_312 = arith.constant 15 : i32
    %362 = tpu.dynamic_rotate %342 by %c15_i32_312 dim 1 : vector<32x256xf32>, i32 -> vector<32x256xf32>
    %c2_313 = arith.constant 2 : index
    %c0_314 = arith.constant 0 : index
    %c0_315 = arith.constant 0 : index
    %363 = vector.load %arg2[%c2_313, %c0_314, %c0_315] : memref<9x32x256xf32, #tpu.memory_space<vmem>>, vector<1x32x256xf32>
    %364 = vector.shape_cast %363 : vector<1x32x256xf32> to vector<32x256xf32>
    %365 = arith.mulf %362, %364 : vector<32x256xf32>
    %c1_316 = arith.constant 1 : index
    %c2_317 = arith.constant 2 : index
    %c0_318 = arith.constant 0 : index
    %c0_319 = arith.constant 0 : index
    %366 = vector.load %arg8[%c1_316, %c2_317, %c0_318, %c0_319] : memref<2x9x32x32xf32, #tpu.memory_space<vmem>>, vector<1x1x32x32xf32>
    %367 = vector.shape_cast %366 : vector<1x1x32x32xf32> to vector<32x32xf32>
    %cst_320 = arith.constant dense<0.000000e+00> : vector<32x256xf32>
    %368 = tpu.matmul %367, %365, %cst_320 {dimension_numbers = #tpu.dot_dimension_numbers<[1], [0], [0], [1], [0, 0, 1, 1], [], []>} : vector<32x32xf32>, vector<32x256xf32>, vector<32x256xf32> -> vector<32x256xf32>
    %369 = arith.addf %361, %368 : vector<32x256xf32>
    %c1_i32_321 = arith.constant 1 : i32
    %370 = tpu.dynamic_rotate %342 by %c1_i32_321 dim 1 : vector<32x256xf32>, i32 -> vector<32x256xf32>
    %c3_322 = arith.constant 3 : index
    %c0_323 = arith.constant 0 : index
    %c0_324 = arith.constant 0 : index
    %371 = vector.load %arg2[%c3_322, %c0_323, %c0_324] : memref<9x32x256xf32, #tpu.memory_space<vmem>>, vector<1x32x256xf32>
    %372 = vector.shape_cast %371 : vector<1x32x256xf32> to vector<32x256xf32>
    %373 = arith.mulf %370, %372 : vector<32x256xf32>
    %c1_325 = arith.constant 1 : index
    %c3_326 = arith.constant 3 : index
    %c0_327 = arith.constant 0 : index
    %c0_328 = arith.constant 0 : index
    %374 = vector.load %arg8[%c1_325, %c3_326, %c0_327, %c0_328] : memref<2x9x32x32xf32, #tpu.memory_space<vmem>>, vector<1x1x32x32xf32>
    %375 = vector.shape_cast %374 : vector<1x1x32x32xf32> to vector<32x32xf32>
    %cst_329 = arith.constant dense<0.000000e+00> : vector<32x256xf32>
    %376 = tpu.matmul %375, %373, %cst_329 {dimension_numbers = #tpu.dot_dimension_numbers<[1], [0], [0], [1], [0, 0, 1, 1], [], []>} : vector<32x32xf32>, vector<32x256xf32>, vector<32x256xf32> -> vector<32x256xf32>
    %377 = arith.addf %369, %376 : vector<32x256xf32>
    %c255_i32_330 = arith.constant 255 : i32
    %378 = tpu.dynamic_rotate %342 by %c255_i32_330 dim 1 : vector<32x256xf32>, i32 -> vector<32x256xf32>
    %c5_331 = arith.constant 5 : index
    %c0_332 = arith.constant 0 : index
    %c0_333 = arith.constant 0 : index
    %379 = vector.load %arg2[%c5_331, %c0_332, %c0_333] : memref<9x32x256xf32, #tpu.memory_space<vmem>>, vector<1x32x256xf32>
    %380 = vector.shape_cast %379 : vector<1x32x256xf32> to vector<32x256xf32>
    %381 = arith.mulf %378, %380 : vector<32x256xf32>
    %c1_334 = arith.constant 1 : index
    %c5_335 = arith.constant 5 : index
    %c0_336 = arith.constant 0 : index
    %c0_337 = arith.constant 0 : index
    %382 = vector.load %arg8[%c1_334, %c5_335, %c0_336, %c0_337] : memref<2x9x32x32xf32, #tpu.memory_space<vmem>>, vector<1x1x32x32xf32>
    %383 = vector.shape_cast %382 : vector<1x1x32x32xf32> to vector<32x32xf32>
    %cst_338 = arith.constant dense<0.000000e+00> : vector<32x256xf32>
    %384 = tpu.matmul %383, %381, %cst_338 {dimension_numbers = #tpu.dot_dimension_numbers<[1], [0], [0], [1], [0, 0, 1, 1], [], []>} : vector<32x32xf32>, vector<32x256xf32>, vector<32x256xf32> -> vector<32x256xf32>
    %385 = arith.addf %377, %384 : vector<32x256xf32>
    %c241_i32_339 = arith.constant 241 : i32
    %386 = tpu.dynamic_rotate %342 by %c241_i32_339 dim 1 : vector<32x256xf32>, i32 -> vector<32x256xf32>
    %c6_340 = arith.constant 6 : index
    %c0_341 = arith.constant 0 : index
    %c0_342 = arith.constant 0 : index
    %387 = vector.load %arg2[%c6_340, %c0_341, %c0_342] : memref<9x32x256xf32, #tpu.memory_space<vmem>>, vector<1x32x256xf32>
    %388 = vector.shape_cast %387 : vector<1x32x256xf32> to vector<32x256xf32>
    %389 = arith.mulf %386, %388 : vector<32x256xf32>
    %c1_343 = arith.constant 1 : index
    %c6_344 = arith.constant 6 : index
    %c0_345 = arith.constant 0 : index
    %c0_346 = arith.constant 0 : index
    %390 = vector.load %arg8[%c1_343, %c6_344, %c0_345, %c0_346] : memref<2x9x32x32xf32, #tpu.memory_space<vmem>>, vector<1x1x32x32xf32>
    %391 = vector.shape_cast %390 : vector<1x1x32x32xf32> to vector<32x32xf32>
    %cst_347 = arith.constant dense<0.000000e+00> : vector<32x256xf32>
    %392 = tpu.matmul %391, %389, %cst_347 {dimension_numbers = #tpu.dot_dimension_numbers<[1], [0], [0], [1], [0, 0, 1, 1], [], []>} : vector<32x32xf32>, vector<32x256xf32>, vector<32x256xf32> -> vector<32x256xf32>
    %393 = arith.addf %385, %392 : vector<32x256xf32>
    %c240_i32_348 = arith.constant 240 : i32
    %394 = tpu.dynamic_rotate %342 by %c240_i32_348 dim 1 : vector<32x256xf32>, i32 -> vector<32x256xf32>
    %c7_349 = arith.constant 7 : index
    %c0_350 = arith.constant 0 : index
    %c0_351 = arith.constant 0 : index
    %395 = vector.load %arg2[%c7_349, %c0_350, %c0_351] : memref<9x32x256xf32, #tpu.memory_space<vmem>>, vector<1x32x256xf32>
    %396 = vector.shape_cast %395 : vector<1x32x256xf32> to vector<32x256xf32>
    %397 = arith.mulf %394, %396 : vector<32x256xf32>
    %c1_352 = arith.constant 1 : index
    %c7_353 = arith.constant 7 : index
    %c0_354 = arith.constant 0 : index
    %c0_355 = arith.constant 0 : index
    %398 = vector.load %arg8[%c1_352, %c7_353, %c0_354, %c0_355] : memref<2x9x32x32xf32, #tpu.memory_space<vmem>>, vector<1x1x32x32xf32>
    %399 = vector.shape_cast %398 : vector<1x1x32x32xf32> to vector<32x32xf32>
    %cst_356 = arith.constant dense<0.000000e+00> : vector<32x256xf32>
    %400 = tpu.matmul %399, %397, %cst_356 {dimension_numbers = #tpu.dot_dimension_numbers<[1], [0], [0], [1], [0, 0, 1, 1], [], []>} : vector<32x32xf32>, vector<32x256xf32>, vector<32x256xf32> -> vector<32x256xf32>
    %401 = arith.addf %393, %400 : vector<32x256xf32>
    %c239_i32_357 = arith.constant 239 : i32
    %402 = tpu.dynamic_rotate %342 by %c239_i32_357 dim 1 : vector<32x256xf32>, i32 -> vector<32x256xf32>
    %c8_358 = arith.constant 8 : index
    %c0_359 = arith.constant 0 : index
    %c0_360 = arith.constant 0 : index
    %403 = vector.load %arg2[%c8_358, %c0_359, %c0_360] : memref<9x32x256xf32, #tpu.memory_space<vmem>>, vector<1x32x256xf32>
    %404 = vector.shape_cast %403 : vector<1x32x256xf32> to vector<32x256xf32>
    %405 = arith.mulf %402, %404 : vector<32x256xf32>
    %c1_361 = arith.constant 1 : index
    %c8_362 = arith.constant 8 : index
    %c0_363 = arith.constant 0 : index
    %c0_364 = arith.constant 0 : index
    %406 = vector.load %arg8[%c1_361, %c8_362, %c0_363, %c0_364] : memref<2x9x32x32xf32, #tpu.memory_space<vmem>>, vector<1x1x32x32xf32>
    %407 = vector.shape_cast %406 : vector<1x1x32x32xf32> to vector<32x32xf32>
    %cst_365 = arith.constant dense<0.000000e+00> : vector<32x256xf32>
    %408 = tpu.matmul %407, %405, %cst_365 {dimension_numbers = #tpu.dot_dimension_numbers<[1], [0], [0], [1], [0, 0, 1, 1], [], []>} : vector<32x32xf32>, vector<32x256xf32>, vector<32x256xf32> -> vector<32x256xf32>
    %409 = arith.addf %401, %408 : vector<32x256xf32>
    %c1_366 = arith.constant 1 : index
    %c0_367 = arith.constant 0 : index
    %c0_368 = arith.constant 0 : index
    %410 = vector.load %arg9[%c1_366, %c0_367, %c0_368] : memref<2x32x1xf32, #tpu.memory_space<vmem>>, vector<1x32x1xf32>
    %411 = vector.shape_cast %410 : vector<1x32x1xf32> to vector<32x1xf32>
    %412 = vector.broadcast %411 : vector<32x1xf32> to vector<32x256xf32>
    %413 = arith.mulf %409, %412 : vector<32x256xf32>
    %c1_369 = arith.constant 1 : index
    %c0_370 = arith.constant 0 : index
    %c0_371 = arith.constant 0 : index
    %414 = vector.load %arg10[%c1_369, %c0_370, %c0_371] : memref<2x32x1xf32, #tpu.memory_space<vmem>>, vector<1x32x1xf32>
    %415 = vector.shape_cast %414 : vector<1x32x1xf32> to vector<32x1xf32>
    %416 = vector.broadcast %415 : vector<32x1xf32> to vector<32x256xf32>
    %417 = arith.addf %413, %416 : vector<32x256xf32>
    %cst_372 = arith.constant dense<0.000000e+00> : vector<32xf32>
    %418 = vector.multi_reduction <add>, %417, %cst_372 [1] : vector<32x256xf32> to vector<32xf32>
    %419 = vector.shape_cast %418 : vector<32xf32> to vector<32x1xf32>
    %cst_373 = arith.constant 2.560000e+02 : f32
    %420 = vector.broadcast %cst_373 : f32 to vector<32x1xf32>
    %421 = arith.divf %419, %420 : vector<32x1xf32>
    %cst_374 = arith.constant dense<0xFF800000> : vector<32xf32>
    %422 = vector.multi_reduction <maximumf>, %417, %cst_374 [1] : vector<32x256xf32> to vector<32xf32>
    %423 = vector.shape_cast %422 : vector<32xf32> to vector<32x1xf32>
    %424 = tpu.concatenate %421, %423 in 1 : vector<32x1xf32>, vector<32x1xf32> -> vector<32x2xf32>
    %c1_375 = arith.constant 1 : index
    %c0_376 = arith.constant 0 : index
    %c0_377 = arith.constant 0 : index
    %425 = vector.load %arg11[%c1_375, %c0_376, %c0_377] : memref<2x2x32xf32, #tpu.memory_space<vmem>>, vector<1x2x32xf32>
    %426 = vector.shape_cast %425 : vector<1x2x32xf32> to vector<2x32xf32>
    %cst_378 = arith.constant dense<0.000000e+00> : vector<2x2xf32>
    %427 = tpu.matmul %426, %424, %cst_378 {dimension_numbers = #tpu.dot_dimension_numbers<[1], [0], [0], [1], [0, 0, 1, 1], [], []>} : vector<2x32xf32>, vector<32x2xf32>, vector<2x2xf32> -> vector<2x2xf32>
    %cst_379 = arith.constant 0.000000e+00 : f32
    %428 = vector.broadcast %cst_379 : f32 to vector<2x2xf32>
    %429 = arith.maximumf %427, %428 : vector<2x2xf32>
    %c1_380 = arith.constant 1 : index
    %c0_381 = arith.constant 0 : index
    %c0_382 = arith.constant 0 : index
    %430 = vector.load %arg12[%c1_380, %c0_381, %c0_382] : memref<2x32x2xf32, #tpu.memory_space<vmem>>, vector<1x32x2xf32>
    %431 = vector.shape_cast %430 : vector<1x32x2xf32> to vector<32x2xf32>
    %cst_383 = arith.constant dense<0.000000e+00> : vector<32x2xf32>
    %432 = tpu.matmul %431, %429, %cst_383 {dimension_numbers = #tpu.dot_dimension_numbers<[1], [0], [0], [1], [0, 0, 1, 1], [], []>} : vector<32x2xf32>, vector<2x2xf32>, vector<32x2xf32> -> vector<32x2xf32>
    %433 = vector.extract_strided_slice %432 {offsets = [0, 0], sizes = [32, 1], strides = [1, 1]} : vector<32x2xf32> to vector<32x1xf32>
    %434 = vector.extract_strided_slice %432 {offsets = [0, 1], sizes = [32, 1], strides = [1, 1]} : vector<32x2xf32> to vector<32x1xf32>
    %435 = arith.addf %433, %434 : vector<32x1xf32>
    %436 = arith.negf %435 : vector<32x1xf32>
    %437 = math.exp %436 : vector<32x1xf32>
    %cst_384 = arith.constant 1.000000e+00 : f32
    %438 = vector.broadcast %cst_384 : f32 to vector<32x1xf32>
    %439 = arith.addf %438, %437 : vector<32x1xf32>
    %440 = arith.divf %438, %439 : vector<32x1xf32>
    %441 = vector.broadcast %440 : vector<32x1xf32> to vector<32x256xf32>
    %442 = arith.mulf %417, %441 : vector<32x256xf32>
    %cst_385 = arith.constant dense<0.000000e+00> : vector<256xf32>
    %443 = vector.multi_reduction <add>, %442, %cst_385 [0] : vector<32x256xf32> to vector<256xf32>
    %444 = vector.shape_cast %443 : vector<256xf32> to vector<1x256xf32>
    %cst_386 = arith.constant 3.200000e+01 : f32
    %445 = vector.broadcast %cst_386 : f32 to vector<1x256xf32>
    %446 = arith.divf %444, %445 : vector<1x256xf32>
    %cst_387 = arith.constant dense<0xFF800000> : vector<256xf32>
    %447 = vector.multi_reduction <maximumf>, %442, %cst_387 [0] : vector<32x256xf32> to vector<256xf32>
    %448 = vector.shape_cast %447 : vector<256xf32> to vector<1x256xf32>
    %cst_388 = arith.constant 0.000000e+00 : f32
    %449 = vector.broadcast %cst_388 : f32 to vector<1x256xf32>
    %c48_i32_389 = arith.constant 48 : i32
    %450 = tpu.dynamic_rotate %446 by %c48_i32_389 dim 1 : vector<1x256xf32>, i32 -> vector<1x256xf32>
    %c32_i32_390 = arith.constant 32 : i32
    %451 = tpu.dynamic_rotate %446 by %c32_i32_390 dim 1 : vector<1x256xf32>, i32 -> vector<1x256xf32>
    %c16_i32_391 = arith.constant 16 : i32
    %452 = tpu.dynamic_rotate %446 by %c16_i32_391 dim 1 : vector<1x256xf32>, i32 -> vector<1x256xf32>
    %c240_i32_392 = arith.constant 240 : i32
    %453 = tpu.dynamic_rotate %446 by %c240_i32_392 dim 1 : vector<1x256xf32>, i32 -> vector<1x256xf32>
    %c224_i32_393 = arith.constant 224 : i32
    %454 = tpu.dynamic_rotate %446 by %c224_i32_393 dim 1 : vector<1x256xf32>, i32 -> vector<1x256xf32>
    %c208_i32_394 = arith.constant 208 : i32
    %455 = tpu.dynamic_rotate %446 by %c208_i32_394 dim 1 : vector<1x256xf32>, i32 -> vector<1x256xf32>
    %c48_i32_395 = arith.constant 48 : i32
    %456 = tpu.dynamic_rotate %448 by %c48_i32_395 dim 1 : vector<1x256xf32>, i32 -> vector<1x256xf32>
    %c32_i32_396 = arith.constant 32 : i32
    %457 = tpu.dynamic_rotate %448 by %c32_i32_396 dim 1 : vector<1x256xf32>, i32 -> vector<1x256xf32>
    %c16_i32_397 = arith.constant 16 : i32
    %458 = tpu.dynamic_rotate %448 by %c16_i32_397 dim 1 : vector<1x256xf32>, i32 -> vector<1x256xf32>
    %c240_i32_398 = arith.constant 240 : i32
    %459 = tpu.dynamic_rotate %448 by %c240_i32_398 dim 1 : vector<1x256xf32>, i32 -> vector<1x256xf32>
    %c224_i32_399 = arith.constant 224 : i32
    %460 = tpu.dynamic_rotate %448 by %c224_i32_399 dim 1 : vector<1x256xf32>, i32 -> vector<1x256xf32>
    %c208_i32_400 = arith.constant 208 : i32
    %461 = tpu.dynamic_rotate %448 by %c208_i32_400 dim 1 : vector<1x256xf32>, i32 -> vector<1x256xf32>
    %462 = tpu.concatenate %450, %451, %452, %446, %453, %454, %455, %449, %456, %457, %458, %448, %459, %460, %461, %449 in 0 : vector<1x256xf32>, vector<1x256xf32>, vector<1x256xf32>, vector<1x256xf32>, vector<1x256xf32>, vector<1x256xf32>, vector<1x256xf32>, vector<1x256xf32>, vector<1x256xf32>, vector<1x256xf32>, vector<1x256xf32>, vector<1x256xf32>, vector<1x256xf32>, vector<1x256xf32>, vector<1x256xf32>, vector<1x256xf32> -> vector<16x256xf32>
    %c0_401 = arith.constant 0 : index
    %c0_402 = arith.constant 0 : index
    %463 = vector.load %arg3[%c0_401, %c0_402] : memref<16x256xf32, #tpu.memory_space<vmem>>, vector<16x256xf32>
    %464 = arith.mulf %462, %463 : vector<16x256xf32>
    %c1_403 = arith.constant 1 : index
    %c0_404 = arith.constant 0 : index
    %c0_405 = arith.constant 0 : index
    %465 = vector.load %arg13[%c1_403, %c0_404, %c0_405] : memref<2x16x8xf32, #tpu.memory_space<vmem>>, vector<1x16x8xf32>
    %466 = vector.shape_cast %465 : vector<1x16x8xf32> to vector<16x8xf32>
    %467 = vector.extract_strided_slice %466 {offsets = [0, 3], sizes = [16, 1], strides = [1, 1]} : vector<16x8xf32> to vector<16x1xf32>
    %468 = vector.broadcast %467 : vector<16x1xf32> to vector<16x256xf32>
    %469 = arith.mulf %464, %468 : vector<16x256xf32>
    %c3_i32_406 = arith.constant 3 : i32
    %470 = tpu.dynamic_rotate %464 by %c3_i32_406 dim 1 : vector<16x256xf32>, i32 -> vector<16x256xf32>
    %471 = vector.extract_strided_slice %466 {offsets = [0, 0], sizes = [16, 1], strides = [1, 1]} : vector<16x8xf32> to vector<16x1xf32>
    %472 = vector.broadcast %471 : vector<16x1xf32> to vector<16x256xf32>
    %473 = arith.mulf %470, %472 : vector<16x256xf32>
    %c0_407 = arith.constant 0 : index
    %c0_408 = arith.constant 0 : index
    %c0_409 = arith.constant 0 : index
    %474 = vector.load %arg4[%c0_407, %c0_408, %c0_409] : memref<7x16x256xf32, #tpu.memory_space<vmem>>, vector<1x16x256xf32>
    %475 = vector.shape_cast %474 : vector<1x16x256xf32> to vector<16x256xf32>
    %476 = arith.mulf %473, %475 : vector<16x256xf32>
    %477 = arith.addf %469, %476 : vector<16x256xf32>
    %c2_i32_410 = arith.constant 2 : i32
    %478 = tpu.dynamic_rotate %464 by %c2_i32_410 dim 1 : vector<16x256xf32>, i32 -> vector<16x256xf32>
    %479 = vector.extract_strided_slice %466 {offsets = [0, 1], sizes = [16, 1], strides = [1, 1]} : vector<16x8xf32> to vector<16x1xf32>
    %480 = vector.broadcast %479 : vector<16x1xf32> to vector<16x256xf32>
    %481 = arith.mulf %478, %480 : vector<16x256xf32>
    %c1_411 = arith.constant 1 : index
    %c0_412 = arith.constant 0 : index
    %c0_413 = arith.constant 0 : index
    %482 = vector.load %arg4[%c1_411, %c0_412, %c0_413] : memref<7x16x256xf32, #tpu.memory_space<vmem>>, vector<1x16x256xf32>
    %483 = vector.shape_cast %482 : vector<1x16x256xf32> to vector<16x256xf32>
    %484 = arith.mulf %481, %483 : vector<16x256xf32>
    %485 = arith.addf %477, %484 : vector<16x256xf32>
    %c1_i32_414 = arith.constant 1 : i32
    %486 = tpu.dynamic_rotate %464 by %c1_i32_414 dim 1 : vector<16x256xf32>, i32 -> vector<16x256xf32>
    %487 = vector.extract_strided_slice %466 {offsets = [0, 2], sizes = [16, 1], strides = [1, 1]} : vector<16x8xf32> to vector<16x1xf32>
    %488 = vector.broadcast %487 : vector<16x1xf32> to vector<16x256xf32>
    %489 = arith.mulf %486, %488 : vector<16x256xf32>
    %c2_415 = arith.constant 2 : index
    %c0_416 = arith.constant 0 : index
    %c0_417 = arith.constant 0 : index
    %490 = vector.load %arg4[%c2_415, %c0_416, %c0_417] : memref<7x16x256xf32, #tpu.memory_space<vmem>>, vector<1x16x256xf32>
    %491 = vector.shape_cast %490 : vector<1x16x256xf32> to vector<16x256xf32>
    %492 = arith.mulf %489, %491 : vector<16x256xf32>
    %493 = arith.addf %485, %492 : vector<16x256xf32>
    %c255_i32_418 = arith.constant 255 : i32
    %494 = tpu.dynamic_rotate %464 by %c255_i32_418 dim 1 : vector<16x256xf32>, i32 -> vector<16x256xf32>
    %495 = vector.extract_strided_slice %466 {offsets = [0, 4], sizes = [16, 1], strides = [1, 1]} : vector<16x8xf32> to vector<16x1xf32>
    %496 = vector.broadcast %495 : vector<16x1xf32> to vector<16x256xf32>
    %497 = arith.mulf %494, %496 : vector<16x256xf32>
    %c4_419 = arith.constant 4 : index
    %c0_420 = arith.constant 0 : index
    %c0_421 = arith.constant 0 : index
    %498 = vector.load %arg4[%c4_419, %c0_420, %c0_421] : memref<7x16x256xf32, #tpu.memory_space<vmem>>, vector<1x16x256xf32>
    %499 = vector.shape_cast %498 : vector<1x16x256xf32> to vector<16x256xf32>
    %500 = arith.mulf %497, %499 : vector<16x256xf32>
    %501 = arith.addf %493, %500 : vector<16x256xf32>
    %c254_i32_422 = arith.constant 254 : i32
    %502 = tpu.dynamic_rotate %464 by %c254_i32_422 dim 1 : vector<16x256xf32>, i32 -> vector<16x256xf32>
    %503 = vector.extract_strided_slice %466 {offsets = [0, 5], sizes = [16, 1], strides = [1, 1]} : vector<16x8xf32> to vector<16x1xf32>
    %504 = vector.broadcast %503 : vector<16x1xf32> to vector<16x256xf32>
    %505 = arith.mulf %502, %504 : vector<16x256xf32>
    %c5_423 = arith.constant 5 : index
    %c0_424 = arith.constant 0 : index
    %c0_425 = arith.constant 0 : index
    %506 = vector.load %arg4[%c5_423, %c0_424, %c0_425] : memref<7x16x256xf32, #tpu.memory_space<vmem>>, vector<1x16x256xf32>
    %507 = vector.shape_cast %506 : vector<1x16x256xf32> to vector<16x256xf32>
    %508 = arith.mulf %505, %507 : vector<16x256xf32>
    %509 = arith.addf %501, %508 : vector<16x256xf32>
    %c253_i32_426 = arith.constant 253 : i32
    %510 = tpu.dynamic_rotate %464 by %c253_i32_426 dim 1 : vector<16x256xf32>, i32 -> vector<16x256xf32>
    %511 = vector.extract_strided_slice %466 {offsets = [0, 6], sizes = [16, 1], strides = [1, 1]} : vector<16x8xf32> to vector<16x1xf32>
    %512 = vector.broadcast %511 : vector<16x1xf32> to vector<16x256xf32>
    %513 = arith.mulf %510, %512 : vector<16x256xf32>
    %c6_427 = arith.constant 6 : index
    %c0_428 = arith.constant 0 : index
    %c0_429 = arith.constant 0 : index
    %514 = vector.load %arg4[%c6_427, %c0_428, %c0_429] : memref<7x16x256xf32, #tpu.memory_space<vmem>>, vector<1x16x256xf32>
    %515 = vector.shape_cast %514 : vector<1x16x256xf32> to vector<16x256xf32>
    %516 = arith.mulf %513, %515 : vector<16x256xf32>
    %517 = arith.addf %509, %516 : vector<16x256xf32>
    %cst_430 = arith.constant dense<0.000000e+00> : vector<256xf32>
    %518 = vector.multi_reduction <add>, %517, %cst_430 [0] : vector<16x256xf32> to vector<256xf32>
    %519 = vector.shape_cast %518 : vector<256xf32> to vector<1x256xf32>
    %520 = arith.negf %519 : vector<1x256xf32>
    %521 = math.exp %520 : vector<1x256xf32>
    %cst_431 = arith.constant 1.000000e+00 : f32
    %522 = vector.broadcast %cst_431 : f32 to vector<1x256xf32>
    %523 = arith.addf %522, %521 : vector<1x256xf32>
    %524 = arith.divf %522, %523 : vector<1x256xf32>
    %525 = vector.broadcast %524 : vector<1x256xf32> to vector<32x256xf32>
    %526 = arith.mulf %442, %525 : vector<32x256xf32>
    %527 = arith.addf %526, %265 : vector<32x256xf32>
    %cst_432 = arith.constant 0.000000e+00 : f32
    %528 = vector.broadcast %cst_432 : f32 to vector<32x256xf32>
    %529 = arith.maximumf %527, %528 : vector<32x256xf32>
    %c0_433 = arith.constant 0 : index
    %c0_434 = arith.constant 0 : index
    %c0_435 = arith.constant 0 : index
    %530 = vector.load %arg14[%c0_433, %c0_434, %c0_435] : memref<1x32x256xf32, #tpu.memory_space<vmem>>, vector<1x32x256xf32>
    %531 = vector.shape_cast %530 : vector<1x32x256xf32> to vector<32x256xf32>
    %532 = vector.shape_cast %529 : vector<32x256xf32> to vector<1x32x256xf32>
    tpu.vector_store %arg14[%c0_433, %c0_434, %c0_435], %532 {strides = array<i32>} : memref<1x32x256xf32, #tpu.memory_space<vmem>>, vector<1x32x256xf32>,
    return
  }
  func.func @transform_0(%arg0: i32) -> (i32, i32, i32) {
    %c0_i32 = arith.constant 0 : i32
    %c0_i32_0 = arith.constant 0 : i32
    %c0_i32_1 = arith.constant 0 : i32
    return %arg0, %c0_i32, %c0_i32_0 : i32, i32, i32
  }
  func.func @transform_1(%arg0: i32) -> (i32, i32, i32) {
    %c0_i32 = arith.constant 0 : i32
    %c0_i32_0 = arith.constant 0 : i32
    %c0_i32_1 = arith.constant 0 : i32
    %c0_i32_2 = arith.constant 0 : i32
    return %c0_i32, %c0_i32_0, %c0_i32_1 : i32, i32, i32
  }
  func.func @transform_2(%arg0: i32) -> (i32, i32) {
    %c0_i32 = arith.constant 0 : i32
    %c0_i32_0 = arith.constant 0 : i32
    %c0_i32_1 = arith.constant 0 : i32
    return %c0_i32, %c0_i32_0 : i32, i32
  }
  func.func @transform_3(%arg0: i32) -> (i32, i32, i32) {
    %c0_i32 = arith.constant 0 : i32
    %c0_i32_0 = arith.constant 0 : i32
    %c0_i32_1 = arith.constant 0 : i32
    %c0_i32_2 = arith.constant 0 : i32
    return %c0_i32, %c0_i32_0, %c0_i32_1 : i32, i32, i32
  }
  func.func @transform_4(%arg0: i32) -> (i32, i32, i32, i32) {
    %c0_i32 = arith.constant 0 : i32
    %c0_i32_0 = arith.constant 0 : i32
    %c0_i32_1 = arith.constant 0 : i32
    %c0_i32_2 = arith.constant 0 : i32
    %c0_i32_3 = arith.constant 0 : i32
    return %c0_i32, %c0_i32_0, %c0_i32_1, %c0_i32_2 : i32, i32, i32, i32
  }
  func.func @transform_5(%arg0: i32) -> (i32, i32, i32) {
    %c0_i32 = arith.constant 0 : i32
    %c0_i32_0 = arith.constant 0 : i32
    %c0_i32_1 = arith.constant 0 : i32
    %c0_i32_2 = arith.constant 0 : i32
    return %c0_i32, %c0_i32_0, %c0_i32_1 : i32, i32, i32
  }
  func.func @transform_6(%arg0: i32) -> (i32, i32, i32) {
    %c0_i32 = arith.constant 0 : i32
    %c0_i32_0 = arith.constant 0 : i32
    %c0_i32_1 = arith.constant 0 : i32
    %c0_i32_2 = arith.constant 0 : i32
    return %c0_i32, %c0_i32_0, %c0_i32_1 : i32, i32, i32
  }
  func.func @transform_7(%arg0: i32) -> (i32, i32, i32, i32) {
    %c0_i32 = arith.constant 0 : i32
    %c0_i32_0 = arith.constant 0 : i32
    %c0_i32_1 = arith.constant 0 : i32
    %c0_i32_2 = arith.constant 0 : i32
    %c0_i32_3 = arith.constant 0 : i32
    return %c0_i32, %c0_i32_0, %c0_i32_1, %c0_i32_2 : i32, i32, i32, i32
  }
  func.func @transform_8(%arg0: i32) -> (i32, i32, i32) {
    %c0_i32 = arith.constant 0 : i32
    %c0_i32_0 = arith.constant 0 : i32
    %c0_i32_1 = arith.constant 0 : i32
    %c0_i32_2 = arith.constant 0 : i32
    return %c0_i32, %c0_i32_0, %c0_i32_1 : i32, i32, i32
  }
  func.func @transform_9(%arg0: i32) -> (i32, i32, i32) {
    %c0_i32 = arith.constant 0 : i32
    %c0_i32_0 = arith.constant 0 : i32
    %c0_i32_1 = arith.constant 0 : i32
    %c0_i32_2 = arith.constant 0 : i32
    return %c0_i32, %c0_i32_0, %c0_i32_1 : i32, i32, i32
  }
  func.func @transform_10(%arg0: i32) -> (i32, i32, i32) {
    %c0_i32 = arith.constant 0 : i32
    %c0_i32_0 = arith.constant 0 : i32
    %c0_i32_1 = arith.constant 0 : i32
    %c0_i32_2 = arith.constant 0 : i32
    return %c0_i32, %c0_i32_0, %c0_i32_1 : i32, i32, i32
  }
  func.func @transform_11(%arg0: i32) -> (i32, i32, i32) {
    %c0_i32 = arith.constant 0 : i32
    %c0_i32_0 = arith.constant 0 : i32
    %c0_i32_1 = arith.constant 0 : i32
    %c0_i32_2 = arith.constant 0 : i32
    return %c0_i32, %c0_i32_0, %c0_i32_1 : i32, i32, i32
  }
  func.func @transform_12(%arg0: i32) -> (i32, i32, i32) {
    %c0_i32 = arith.constant 0 : i32
    %c0_i32_0 = arith.constant 0 : i32
    %c0_i32_1 = arith.constant 0 : i32
    %c0_i32_2 = arith.constant 0 : i32
    return %c0_i32, %c0_i32_0, %c0_i32_1 : i32, i32, i32
  }
  func.func @transform_13(%arg0: i32) -> (i32, i32, i32) {
    %c0_i32 = arith.constant 0 : i32
    %c0_i32_0 = arith.constant 0 : i32
    %c0_i32_1 = arith.constant 0 : i32
    return %arg0, %c0_i32, %c0_i32_0 : i32, i32, i32
  }
}

</mosaic_0001>

<llo_original>
// kernel: tpu_custom_call.1
$region0: #{tpu_custom_call.1}
  #allocation0 [shape = 'u32[]', space=smem, size = 0x4, offset = 0x4, fixed_abs, tag = 'smem constant byte address 0x4 - core index']
  #allocation1 [shape = 'u32[144,128]{1,0:T(1,128)}', space=vmem, size = 0x12000, scoped, tag = 'internal scratch']
  %s0 = inlined_call_operand.vmem [shape: f32[2,32,256], index: 0, kind: input, shape index: {}]
  %s1 = inlined_call_operand.hbm [shape: f32[9,32,256], index: 1, kind: input, shape index: {}]
  %s2 = inlined_call_operand.vmem [shape: f32[16,256], index: 2, kind: input, shape index: {}]
  %s3 = inlined_call_operand.vmem [shape: f32[7,16,256], index: 3, kind: input, shape index: {}]
  %s4 = inlined_call_operand.hbm [shape: f32[2,9,32,32], index: 4, kind: input, shape index: {}]
  %s5 = inlined_call_operand.vmem [shape: f32[2,32,1], index: 5, kind: input, shape index: {}]
  %s6 = inlined_call_operand.vmem [shape: f32[2,32,1], index: 6, kind: input, shape index: {}]
  %s7 = inlined_call_operand.hbm [shape: f32[2,9,32,32], index: 7, kind: input, shape index: {}]
  %s8 = inlined_call_operand.vmem [shape: f32[2,32,1], index: 8, kind: input, shape index: {}]
  %s9 = inlined_call_operand.vmem [shape: f32[2,32,1], index: 9, kind: input, shape index: {}]
  %s10 = inlined_call_operand.vmem [shape: f32[2,2,32], index: 10, kind: input, shape index: {}]
  %s11 = inlined_call_operand.vmem [shape: f32[2,32,2], index: 11, kind: input, shape index: {}]
  %s12 = inlined_call_operand.vmem [shape: f32[2,16,8], index: 12, kind: input, shape index: {}]
  %s13 = inlined_call_operand.hbm [shape: f32[2,32,256], index: 13, kind: output, shape index: {}]
  %s14 = sld [smem:[#allocation0]]
  $region97: #{tpu_custom_call.1} parent=0
    _
  %s16 = ssub.s32 1, %s14
  %s17 = scalar_select 0, %s16, %s14
  $region1: #{tpu_custom_call.1} parent=0
    #allocation2 [shape = 'u8[294912]{0}', space=vmem, size = 0x48000, scoped, tag = 'input window, operand 1, single buffered']
    #allocation3 [shape = 's32[2]{0}', space=sflag, size = 0x8, scoped, tag = 'scoped memory for tpu_custom_call.1']
    #allocation4 [shape = 's32[2]{0}', space=sflag, size = 0x8, scoped, tag = 'scoped memory for tpu_custom_call.1']
    #allocation5 [shape = 'u8[294912]{0}', space=vmem, size = 0x48000, scoped, tag = 'input window, operand 4, single buffered']
    #allocation6 [shape = 's32[1]{0}', space=sflag, size = 0x4, scoped, tag = 'scoped memory for tpu_custom_call.1']
    #allocation7 [shape = 'u8[294912]{0}', space=vmem, size = 0x48000, scoped, tag = 'input window, operand 7, single buffered']
    #allocation8 [shape = 'u8[65536]{0}', space=vmem, size = 0x10000, scoped, tag = 'output window, operand 0']
    %18 = vsyncpa [#allocation3], 0
    %19 = vsyncpa [#allocation6], 0
    %20 = vsyncpa [#allocation4], 0
    %s21 = scalar_lea.sflag [#allocation4], 1
    %22 = vsyncpa %s21, 0
    loop: start=0, step=1, limit=4
    $region2: #{tpu_custom_call.1} parent=1 // loop_pre_header
      _
    $region3: #{tpu_custom_call.1} parent=1 // loop_header
      %s24 = sphi 0, %s28
      %p25 = scmp.ge.s32.totalorder %s24, 4
      %s34 = sphi 0, %s36
      %s37 = sphi 0, %s34
      %s38 = sphi 0, %s37
      %s54 = sphi 0, %s38
      %s58 = sphi 0, %s58
      %s60 = sphi 0, %s58
      %s61 = sphi 0, %s60
      %s75 = sphi 0, %s61
      %s79 = sphi 0, %s79
      %s81 = sphi 0, %s79
      %s82 = sphi 0, %s81
      %s96 = sphi 0, %s82
      %s100 = sphi 0, %s100
      %s102 = sphi 0, %s100
      %s103 = sphi 0, %s102
      %s117 = sphi 0, %s103
      %s121 = sphi 0, %s121
      %s123 = sphi 0, %s121
      %s124 = sphi 0, %s123
      %s138 = sphi 0, %s124
      %s142 = sphi 0, %s142
      %s144 = sphi 0, %s142
      %s145 = sphi 0, %s144
      %s159 = sphi 0, %s145
      %s163 = sphi 0, %s163
      %s165 = sphi 0, %s163
      %s166 = sphi 0, %s165
      %s180 = sphi 0, %s166
      %s184 = sphi 0, %s184
      %s186 = sphi 0, %s184
      %s187 = sphi 0, %s186
      %s201 = sphi 0, %s187
      %s205 = sphi 0, %s205
      %s207 = sphi 0, %s205
      %s208 = sphi 0, %s207
      %s222 = sphi 0, %s208
      %s226 = sphi 0, %s226
      %s228 = sphi 0, %s226
      %s229 = sphi 0, %s228
      %s243 = sphi 0, %s229
      %s247 = sphi 0, %s247
      %s249 = sphi 0, %s247
      %s250 = sphi 0, %s249
      %s264 = sphi 0, %s250
      %s268 = sphi 0, %s268
      %s270 = sphi 0, %s268
      %s271 = sphi 0, %s270
      %s285 = sphi 0, %s271
      %s289 = sphi 0, %s289
      %s291 = sphi 0, %s289
      %s292 = sphi 0, %s291
      %s306 = sphi 0, %s292
      %s312 = sphi 0, %s314
      %s315 = sphi 0, %s312
      %s316 = sphi 0, %s315
      %s332 = sphi 0, %s316
    $region4: #{tpu_custom_call.1} parent=1 // loop_header_branch
      %27 = sbr.rel (%p25) target = $region8
    $region5: #{tpu_custom_call.1} parent=1 // loop_body
      %s29 = ssub.s32 %s24, 1
      %s30 = ssub.s32 %s24, 2
      %s31 = sadd.s32 %s24, 1
      %s32 = ssub.s32 %s24, %s31
      %p33 = scmp.eq.s32.totalorder %s32, 0
      %s35 = sadd.s32 %s34, 1
      %s36 = scalar_select %p33, %s34, %s35
      %p39 = pneg %p33
      %p40 = scmp.eq.s32.totalorder %s24, 1
      %p41 = por %p39, %p40
      %p42 = scmp.ne.s32.totalorder %s34, %s37
      %p43 = scmp.eq.s32.totalorder %s24, 0
      %p44 = por %p42, %p43
      %p45 = scmp.ne.s32.totalorder %s34, %s37
      %p46 = scmp.eq.s32.totalorder %s29, 1
      %p47 = por %p45, %p46
      %p48 = scmp.ne.s32.totalorder %s37, %s38
      %p49 = scmp.eq.s32.totalorder %s29, 0
      %p50 = por %p48, %p49
      %p51 = scmp.ne.s32.totalorder %s37, %s38
      %p52 = scmp.eq.s32.totalorder %s30, 1
      %p53 = por %p51, %p52
      %p55 = scmp.ne.s32.totalorder %s38, %s54
      %p56 = scmp.eq.s32.totalorder %s30, 0
      %p57 = por %p55, %p56
      %s59 = sadd.s32 %s58, 1
      %p62 = scmp.eq.s32.totalorder %s24, 1
      %p63 = scmp.ne.s32.totalorder %s58, %s60
      %p64 = scmp.eq.s32.totalorder %s24, 0
      %p65 = por %p63, %p64
      %p66 = scmp.ne.s32.totalorder %s58, %s60
      %p67 = scmp.eq.s32.totalorder %s29, 1
      %p68 = por %p66, %p67
      %p69 = scmp.ne.s32.totalorder %s60, %s61
      %p70 = scmp.eq.s32.totalorder %s29, 0
      %p71 = por %p69, %p70
      %p72 = scmp.ne.s32.totalorder %s60, %s61
      %p73 = scmp.eq.s32.totalorder %s30, 1
      %p74 = por %p72, %p73
      %p76 = scmp.ne.s32.totalorder %s61, %s75
      %p77 = scmp.eq.s32.totalorder %s30, 0
      %p78 = por %p76, %p77
      %s80 = sadd.s32 %s79, 1
      %p83 = scmp.eq.s32.totalorder %s24, 1
      %p84 = scmp.ne.s32.totalorder %s79, %s81
      %p85 = scmp.eq.s32.totalorder %s24, 0
      %p86 = por %p84, %p85
      %p87 = scmp.ne.s32.totalorder %s79, %s81
      %p88 = scmp.eq.s32.totalorder %s29, 1
      %p89 = por %p87, %p88
      %p90 = scmp.ne.s32.totalorder %s81, %s82
      %p91 = scmp.eq.s32.totalorder %s29, 0
      %p92 = por %p90, %p91
      %p93 = scmp.ne.s32.totalorder %s81, %s82
      %p94 = scmp.eq.s32.totalorder %s30, 1
      %p95 = por %p93, %p94
      %p97 = scmp.ne.s32.totalorder %s82, %s96
      %p98 = scmp.eq.s32.totalorder %s30, 0
      %p99 = por %p97, %p98
      %s101 = sadd.s32 %s100, 1
      %p104 = scmp.eq.s32.totalorder %s24, 1
      %p105 = scmp.ne.s32.totalorder %s100, %s102
      %p106 = scmp.eq.s32.totalorder %s24, 0
      %p107 = por %p105, %p106
      %p108 = scmp.ne.s32.totalorder %s100, %s102
      %p109 = scmp.eq.s32.totalorder %s29, 1
      %p110 = por %p108, %p109
      %p111 = scmp.ne.s32.totalorder %s102, %s103
      %p112 = scmp.eq.s32.totalorder %s29, 0
      %p113 = por %p111, %p112
      %p114 = scmp.ne.s32.totalorder %s102, %s103
      %p115 = scmp.eq.s32.totalorder %s30, 1
      %p116 = por %p114, %p115
      %p118 = scmp.ne.s32.totalorder %s103, %s117
      %p119 = scmp.eq.s32.totalorder %s30, 0
      %p120 = por %p118, %p119
      %s122 = sadd.s32 %s121, 1
      %p125 = scmp.eq.s32.totalorder %s24, 1
      %p126 = scmp.ne.s32.totalorder %s121, %s123
      %p127 = scmp.eq.s32.totalorder %s24, 0
      %p128 = por %p126, %p127
      %p129 = scmp.ne.s32.totalorder %s121, %s123
      %p130 = scmp.eq.s32.totalorder %s29, 1
      %p131 = por %p129, %p130
      %p132 = scmp.ne.s32.totalorder %s123, %s124
      %p133 = scmp.eq.s32.totalorder %s29, 0
      %p134 = por %p132, %p133
      %p135 = scmp.ne.s32.totalorder %s123, %s124
      %p136 = scmp.eq.s32.totalorder %s30, 1
      %p137 = por %p135, %p136
      %p139 = scmp.ne.s32.totalorder %s124, %s138
      %p140 = scmp.eq.s32.totalorder %s30, 0
      %p141 = por %p139, %p140
      %s143 = sadd.s32 %s142, 1
      %p146 = scmp.eq.s32.totalorder %s24, 1
      %p147 = scmp.ne.s32.totalorder %s142, %s144
      %p148 = scmp.eq.s32.totalorder %s24, 0
      %p149 = por %p147, %p148
      %p150 = scmp.ne.s32.totalorder %s142, %s144
      %p151 = scmp.eq.s32.totalorder %s29, 1
      %p152 = por %p150, %p151
      %p153 = scmp.ne.s32.totalorder %s144, %s145
      %p154 = scmp.eq.s32.totalorder %s29, 0
      %p155 = por %p153, %p154
      %p156 = scmp.ne.s32.totalorder %s144, %s145
      %p157 = scmp.eq.s32.totalorder %s30, 1
      %p158 = por %p156, %p157
      %p160 = scmp.ne.s32.totalorder %s145, %s159
      %p161 = scmp.eq.s32.totalorder %s30, 0
      %p162 = por %p160, %p161
      %s164 = sadd.s32 %s163, 1
      %p167 = scmp.eq.s32.totalorder %s24, 1
      %p168 = scmp.ne.s32.totalorder %s163, %s165
      %p169 = scmp.eq.s32.totalorder %s24, 0
      %p170 = por %p168, %p169
      %p171 = scmp.ne.s32.totalorder %s163, %s165
      %p172 = scmp.eq.s32.totalorder %s29, 1
      %p173 = por %p171, %p172
      %p174 = scmp.ne.s32.totalorder %s165, %s166
      %p175 = scmp.eq.s32.totalorder %s29, 0
      %p176 = por %p174, %p175
      %p177 = scmp.ne.s32.totalorder %s165, %s166
      %p178 = scmp.eq.s32.totalorder %s30, 1
      %p179 = por %p177, %p178
      %p181 = scmp.ne.s32.totalorder %s166, %s180
      %p182 = scmp.eq.s32.totalorder %s30, 0
      %p183 = por %p181, %p182
      %s185 = sadd.s32 %s184, 1
      %p188 = scmp.eq.s32.totalorder %s24, 1
      %p189 = scmp.ne.s32.totalorder %s184, %s186
      %p190 = scmp.eq.s32.totalorder %s24, 0
      %p191 = por %p189, %p190
      %p192 = scmp.ne.s32.totalorder %s184, %s186
      %p193 = scmp.eq.s32.totalorder %s29, 1
      %p194 = por %p192, %p193
      %p195 = scmp.ne.s32.totalorder %s186, %s187
      %p196 = scmp.eq.s32.totalorder %s29, 0
      %p197 = por %p195, %p196
      %p198 = scmp.ne.s32.totalorder %s186, %s187
      %p199 = scmp.eq.s32.totalorder %s30, 1
      %p200 = por %p198, %p199
      %p202 = scmp.ne.s32.totalorder %s187, %s201
      %p203 = scmp.eq.s32.totalorder %s30, 0
      %p204 = por %p202, %p203
      %s206 = sadd.s32 %s205, 1
      %p209 = scmp.eq.s32.totalorder %s24, 1
      %p210 = scmp.ne.s32.totalorder %s205, %s207
      %p211 = scmp.eq.s32.totalorder %s24, 0
      %p212 = por %p210, %p211
      %p213 = scmp.ne.s32.totalorder %s205, %s207
      %p214 = scmp.eq.s32.totalorder %s29, 1
      %p215 = por %p213, %p214
      %p216 = scmp.ne.s32.totalorder %s207, %s208
      %p217 = scmp.eq.s32.totalorder %s29, 0
      %p218 = por %p216, %p217
      %p219 = scmp.ne.s32.totalorder %s207, %s208
      %p220 = scmp.eq.s32.totalorder %s30, 1
      %p221 = por %p219, %p220
      %p223 = scmp.ne.s32.totalorder %s208, %s222
      %p224 = scmp.eq.s32.totalorder %s30, 0
      %p225 = por %p223, %p224
      %s227 = sadd.s32 %s226, 1
      %p230 = scmp.eq.s32.totalorder %s24, 1
      %p231 = scmp.ne.s32.totalorder %s226, %s228
      %p232 = scmp.eq.s32.totalorder %s24, 0
      %p233 = por %p231, %p232
      %p234 = scmp.ne.s32.totalorder %s226, %s228
      %p235 = scmp.eq.s32.totalorder %s29, 1
      %p236 = por %p234, %p235
      %p237 = scmp.ne.s32.totalorder %s228, %s229
      %p238 = scmp.eq.s32.totalorder %s29, 0
      %p239 = por %p237, %p238
      %p240 = scmp.ne.s32.totalorder %s228, %s229
      %p241 = scmp.eq.s32.totalorder %s30, 1
      %p242 = por %p240, %p241
      %p244 = scmp.ne.s32.totalorder %s229, %s243
      %p245 = scmp.eq.s32.totalorder %s30, 0
      %p246 = por %p244, %p245
      %s248 = sadd.s32 %s247, 1
      %p251 = scmp.eq.s32.totalorder %s24, 1
      %p252 = scmp.ne.s32.totalorder %s247, %s249
      %p253 = scmp.eq.s32.totalorder %s24, 0
      %p254 = por %p252, %p253
      %p255 = scmp.ne.s32.totalorder %s247, %s249
      %p256 = scmp.eq.s32.totalorder %s29, 1
      %p257 = por %p255, %p256
      %p258 = scmp.ne.s32.totalorder %s249, %s250
      %p259 = scmp.eq.s32.totalorder %s29, 0
      %p260 = por %p258, %p259
      %p261 = scmp.ne.s32.totalorder %s249, %s250
      %p262 = scmp.eq.s32.totalorder %s30, 1
      %p263 = por %p261, %p262
      %p265 = scmp.ne.s32.totalorder %s250, %s264
      %p266 = scmp.eq.s32.totalorder %s30, 0
      %p267 = por %p265, %p266
      %s269 = sadd.s32 %s268, 1
      %p272 = scmp.eq.s32.totalorder %s24, 1
      %p273 = scmp.ne.s32.totalorder %s268, %s270
      %p274 = scmp.eq.s32.totalorder %s24, 0
      %p275 = por %p273, %p274
      %p276 = scmp.ne.s32.totalorder %s268, %s270
      %p277 = scmp.eq.s32.totalorder %s29, 1
      %p278 = por %p276, %p277
      %p279 = scmp.ne.s32.totalorder %s270, %s271
      %p280 = scmp.eq.s32.totalorder %s29, 0
      %p281 = por %p279, %p280
      %p282 = scmp.ne.s32.totalorder %s270, %s271
      %p283 = scmp.eq.s32.totalorder %s30, 1
      %p284 = por %p282, %p283
      %p286 = scmp.ne.s32.totalorder %s271, %s285
      %p287 = scmp.eq.s32.totalorder %s30, 0
      %p288 = por %p286, %p287
      %s290 = sadd.s32 %s289, 1
      %p293 = scmp.eq.s32.totalorder %s24, 1
      %p294 = scmp.ne.s32.totalorder %s289, %s291
      %p295 = scmp.eq.s32.totalorder %s24, 0
      %p296 = por %p294, %p295
      %p297 = scmp.ne.s32.totalorder %s289, %s291
      %p298 = scmp.eq.s32.totalorder %s29, 1
      %p299 = por %p297, %p298
      %p300 = scmp.ne.s32.totalorder %s291, %s292
      %p301 = scmp.eq.s32.totalorder %s29, 0
      %p302 = por %p300, %p301
      %p303 = scmp.ne.s32.totalorder %s291, %s292
      %p304 = scmp.eq.s32.totalorder %s30, 1
      %p305 = por %p303, %p304
      %p307 = scmp.ne.s32.totalorder %s292, %s306
      %p308 = scmp.eq.s32.totalorder %s30, 0
      %p309 = por %p307, %p308
      %s310 = ssub.s32 %s24, %s31
      %p311 = scmp.eq.s32.totalorder %s310, 0
      %s313 = sadd.s32 %s312, 1
      %s314 = scalar_select %p311, %s312, %s313
      %p317 = pneg %p311
      %p318 = scmp.eq.s32.totalorder %s24, 1
      %p319 = por %p317, %p318
      %p320 = scmp.ne.s32.totalorder %s312, %s315
      %p321 = scmp.eq.s32.totalorder %s24, 0
      %p322 = por %p320, %p321
      %p323 = scmp.ne.s32.totalorder %s312, %s315
      %p324 = scmp.eq.s32.totalorder %s29, 1
      %p325 = por %p323, %p324
      %p326 = scmp.ne.s32.totalorder %s315, %s316
      %p327 = scmp.eq.s32.totalorder %s29, 0
      %p328 = por %p326, %p327
      %p329 = scmp.ne.s32.totalorder %s315, %s316
      %p330 = scmp.eq.s32.totalorder %s30, 1
      %p331 = por %p329, %p330
      %p333 = scmp.ne.s32.totalorder %s316, %s332
      %p334 = scmp.eq.s32.totalorder %s30, 0
      %p335 = por %p333, %p334
      %p336 = scmp.le.s32.totalorder 1, %s24
      %p337 = scmp.lt.s32.totalorder %s24, 3
      %p338 = pnand %p336, %p337
      %p339 = pneg %p338
      // Predicated region
      $region9: #{tpu_custom_call.1} parent=5 // pred_check
        _
      $region10: #{tpu_custom_call.1} parent=5 // pred_check_branch
        %341 = sbr.rel (%p338) target = $region12
      $region11: #{tpu_custom_call.1} parent=5 // pred_region
        %s342 = ssub.s32 %s24, 1
        // Predicated region
        $region13: #{tpu_custom_call.1} parent=11 // pred_check
          %p343 = pneg %p71
        $region14: #{tpu_custom_call.1} parent=11 // pred_check_branch
          %345 = sbr.rel (%p343) target = $region16
        $region15: #{tpu_custom_call.1} parent=11 // pred_region
          %s347 = ssub.s32 9216, 9216
          %348 = vsyncadd [#allocation3], %s347
          %s349 = sshll.u32 [#allocation2], 4
          %s350 = int_to_ptr.vmem [resolvable:$true] %s349
          %355 = dma.hbm_to_vmem [thread:$0]  %s1, 9216, %s350, [#allocation3], 256, 256, 16
        $region16: #{tpu_custom_call.1} parent=11 // pred_fallthru
          _
        // Predicated region
        $region17: #{tpu_custom_call.1} parent=11 // pred_check
          %p356 = pneg %p92
        $region18: #{tpu_custom_call.1} parent=11 // pred_check_branch
          %358 = sbr.rel (%p356) target = $region20
        $region19: #{tpu_custom_call.1} parent=11 // pred_region
          _
        $region20: #{tpu_custom_call.1} parent=11 // pred_fallthru
          _
        // Predicated region
        $region21: #{tpu_custom_call.1} parent=11 // pred_check
          %p359 = pneg %p113
        $region22: #{tpu_custom_call.1} parent=11 // pred_check_branch
          %361 = sbr.rel (%p359) target = $region24
        $region23: #{tpu_custom_call.1} parent=11 // pred_region
          _
        $region24: #{tpu_custom_call.1} parent=11 // pred_fallthru
          _
        // Predicated region
        $region25: #{tpu_custom_call.1} parent=11 // pred_check
          %p362 = pneg %p134
        $region26: #{tpu_custom_call.1} parent=11 // pred_check_branch
          %364 = sbr.rel (%p362) target = $region28
        $region27: #{tpu_custom_call.1} parent=11 // pred_region
          %s366 = ssub.s32 9216, 9216
          %367 = vsyncadd [#allocation6], %s366
          %s368 = sshll.u32 [#allocation5], 4
          %s369 = int_to_ptr.vmem [resolvable:$true] %s368
          %374 = dma.hbm_to_vmem [thread:$0]  %s4, 9216, %s369, [#allocation6], 128, 128, 8
        $region28: #{tpu_custom_call.1} parent=11 // pred_fallthru
          _
        // Predicated region
        $region29: #{tpu_custom_call.1} parent=11 // pred_check
          %p375 = pneg %p155
        $region30: #{tpu_custom_call.1} parent=11 // pred_check_branch
          %377 = sbr.rel (%p375) target = $region32
        $region31: #{tpu_custom_call.1} parent=11 // pred_region
          _
        $region32: #{tpu_custom_call.1} parent=11 // pred_fallthru
          _
        // Predicated region
        $region33: #{tpu_custom_call.1} parent=11 // pred_check
          %p378 = pneg %p176
        $region34: #{tpu_custom_call.1} parent=11 // pred_check_branch
          %380 = sbr.rel (%p378) target = $region36
        $region35: #{tpu_custom_call.1} parent=11 // pred_region
          _
        $region36: #{tpu_custom_call.1} parent=11 // pred_fallthru
          _
        // Predicated region
        $region37: #{tpu_custom_call.1} parent=11 // pred_check
          %p381 = pneg %p197
        $region38: #{tpu_custom_call.1} parent=11 // pred_check_branch
          %383 = sbr.rel (%p381) target = $region40
        $region39: #{tpu_custom_call.1} parent=11 // pred_region
          %s385 = ssub.s32 9216, 9216
          %386 = vsyncadd [#allocation6], %s385
          %s387 = sshll.u32 [#allocation7], 4
          %s388 = int_to_ptr.vmem [resolvable:$true] %s387
          %393 = dma.hbm_to_vmem [thread:$0]  %s7, 9216, %s388, [#allocation6], 128, 128, 8
        $region40: #{tpu_custom_call.1} parent=11 // pred_fallthru
          _
        // Predicated region
        $region41: #{tpu_custom_call.1} parent=11 // pred_check
          %p394 = pneg %p218
        $region42: #{tpu_custom_call.1} parent=11 // pred_check_branch
          %396 = sbr.rel (%p394) target = $region44
        $region43: #{tpu_custom_call.1} parent=11 // pred_region
          _
        $region44: #{tpu_custom_call.1} parent=11 // pred_fallthru
          _
        // Predicated region
        $region45: #{tpu_custom_call.1} parent=11 // pred_check
          %p397 = pneg %p239
        $region46: #{tpu_custom_call.1} parent=11 // pred_check_branch
          %399 = sbr.rel (%p397) target = $region48
        $region47: #{tpu_custom_call.1} parent=11 // pred_region
          _
        $region48: #{tpu_custom_call.1} parent=11 // pred_fallthru
          _
        // Predicated region
        $region49: #{tpu_custom_call.1} parent=11 // pred_check
          %p400 = pneg %p260
        $region50: #{tpu_custom_call.1} parent=11 // pred_check_branch
          %402 = sbr.rel (%p400) target = $region52
        $region51: #{tpu_custom_call.1} parent=11 // pred_region
          _
        $region52: #{tpu_custom_call.1} parent=11 // pred_fallthru
          _
        // Predicated region
        $region53: #{tpu_custom_call.1} parent=11 // pred_check
          %p403 = pneg %p281
        $region54: #{tpu_custom_call.1} parent=11 // pred_check_branch
          %405 = sbr.rel (%p403) target = $region56
        $region55: #{tpu_custom_call.1} parent=11 // pred_region
          _
        $region56: #{tpu_custom_call.1} parent=11 // pred_fallthru
          _
        // Predicated region
        $region57: #{tpu_custom_call.1} parent=11 // pred_check
          %p406 = pneg %p302
        $region58: #{tpu_custom_call.1} parent=11 // pred_check_branch
          %408 = sbr.rel (%p406) target = $region60
        $region59: #{tpu_custom_call.1} parent=11 // pred_region
          _
        $region60: #{tpu_custom_call.1} parent=11 // pred_fallthru
          _
      $region12: #{tpu_custom_call.1} parent=5 // pred_fallthru
        _
      %p409 = scmp.lt.s32.totalorder %s24, 2
      // Predicated region
      $region61: #{tpu_custom_call.1} parent=5 // pred_check
        %p410 = pneg %p409
      $region62: #{tpu_custom_call.1} parent=5 // pred_check_branch
        %412 = sbr.rel (%p410) target = $region64
      $region63: #{tpu_custom_call.1} parent=5 // pred_region
        // Predicated region
        $region65: #{tpu_custom_call.1} parent=63 // pred_check
          %p413 = pneg %p44
        $region66: #{tpu_custom_call.1} parent=63 // pred_check_branch
          %415 = sbr.rel (%p413) target = $region68
        $region67: #{tpu_custom_call.1} parent=63 // pred_region
          %p416 = scmp.lt.s32.totalorder %s24, 1
          %s417 = scalar_select %p416, %s24, 1
          %s418 = smul.addr %s417, 8
          %s419 = smul.addr %s418, 8
          %s420 = scalar_lea.vmem %s0, %s419
        $region68: #{tpu_custom_call.1} parent=63 // pred_fallthru
          _
      $region64: #{tpu_custom_call.1} parent=5 // pred_fallthru
        _
      %p421 = scmp.le.s32.totalorder 1, %s24
      %p422 = scmp.lt.s32.totalorder %s24, 3
      %p423 = pnand %p421, %p422
      %p424 = pneg %p423
      // Predicated region
      $region69: #{tpu_custom_call.1} parent=5 // pred_check
        _
      $region70: #{tpu_custom_call.1} parent=5 // pred_check_branch
        %426 = sbr.rel (%p423) target = $region72
      $region71: #{tpu_custom_call.1} parent=5 // pred_region
        %s427 = ssub.s32 %s24, 1
        // Predicated region
        $region73: #{tpu_custom_call.1} parent=71 // pred_check
          %p428 = pneg %p71
        $region74: #{tpu_custom_call.1} parent=71 // pred_check_branch
          %430 = sbr.rel (%p428) target = $region76
        $region75: #{tpu_custom_call.1} parent=71 // pred_region
          %431 = dma.done [#allocation3], 9216
        $region76: #{tpu_custom_call.1} parent=71 // pred_fallthru
          _
        // Predicated region
        $region77: #{tpu_custom_call.1} parent=71 // pred_check
          %p432 = pneg %p134
        $region78: #{tpu_custom_call.1} parent=71 // pred_check_branch
          %434 = sbr.rel (%p432) target = $region80
        $region79: #{tpu_custom_call.1} parent=71 // pred_region
          %435 = dma.done [#allocation6], 9216
        $region80: #{tpu_custom_call.1} parent=71 // pred_fallthru
          _
        // Predicated region
        $region81: #{tpu_custom_call.1} parent=71 // pred_check
          %p436 = pneg %p197
        $region82: #{tpu_custom_call.1} parent=71 // pred_check_branch
          %438 = sbr.rel (%p436) target = $region84
        $region83: #{tpu_custom_call.1} parent=71 // pred_region
          %439 = dma.done [#allocation6], 9216
        $region84: #{tpu_custom_call.1} parent=71 // pred_fallthru
          _
        %p440 = scmp.lt.s32.totalorder %s29, 1
        %s441 = scalar_select %p440, %s29, 1
        %s442 = smul.addr %s441, 8
        %s443 = smul.addr %s442, 8
        %s444 = scalar_lea.vmem %s0, %s443
        %p445 = pneg %p50
        %p446 = pneg %p47
        %p447 = pneg %p71
        %p448 = pneg %p68
        %p449 = pneg %p92
        %p450 = pneg %p89
        %p451 = pneg %p113
        %p452 = pneg %p110
        %p453 = pneg %p134
        %p454 = pneg %p131
        %p455 = pneg %p155
        %p456 = pneg %p152
        %p457 = pneg %p176
        %p458 = pneg %p173
        %p459 = pneg %p197
        %p460 = pneg %p194
        %p461 = pneg %p218
        %p462 = pneg %p215
        %p463 = pneg %p239
        %p464 = pneg %p236
        %p465 = pneg %p260
        %p466 = pneg %p257
        %p467 = pneg %p281
        %p468 = pneg %p278
        %p469 = pneg %p302
        %p470 = pneg %p299
        %p471 = pneg %p328
        %p472 = pneg %p325
        %s473 = sand.u32 %s315, 1
        %s474 = scalar_lea.sflag [#allocation4], %s473
        %s475 = sand.u32 %s315, 1
        %s476 = smul.addr %s475, 64
        %s477 = scalar_lea.vmem [#allocation8], %s476
        %p478 = scmp.lt.s32.totalorder %s29, 1
        %s479 = scalar_select %p478, %s29, 1
        %s480 = smul.addr %s479, 8
        %s481 = smul.addr %s480, 8
        %s482 = scalar_lea.vmem %s0, %s481
        %v483 = vld [vmem:[%s482] sm:$0xff]
        %v484 = vld [vmem:[%s482 + $0x8] sm:$0xff]
        %v485 = vld [vmem:[%s482 + $0x10] sm:$0xff]
        %v486 = vld [vmem:[%s482 + $0x18] sm:$0xff]
        %v487 = vld [vmem:[%s482 + $0x20] sm:$0xff]
        %v488 = vld [vmem:[%s482 + $0x28] sm:$0xff]
        %v489 = vld [vmem:[%s482 + $0x30] sm:$0xff]
        %v490 = vld [vmem:[%s482 + $0x38] sm:$0xff]
        %s491 = scalar_lea.vmem [#allocation5], 128
        %v492 = vld [vmem:[%s491] sm:$0xff]
        %v493 = vld [vmem:[%s491 + $0x8] sm:$0xff]
        %v494 = vld [vmem:[%s491 + $0x10] sm:$0xff]
        %v495 = vld [vmem:[%s491 + $0x18] sm:$0xff]
        %496 = vrot.lane.b32.xlu0 %v483, 17
        %v497 = vpop.permute.xlu0 %496
        %498 = vrot.lane.b32.xlu0 %v485, 17
        %v499 = vpop.permute.xlu0 %498
        %500 = vrot.lane.b32.xlu0 %v487, 17
        %v501 = vpop.permute.xlu0 %500
        %502 = vrot.lane.b32.xlu0 %v489, 17
        %v503 = vpop.permute.xlu0 %502
        %504 = vrot.lane.b32.xlu0 %v484, 17
        %v505 = vpop.permute.xlu0 %504
        %506 = vrot.lane.b32.xlu0 %v486, 17
        %v507 = vpop.permute.xlu0 %506
        %508 = vrot.lane.b32.xlu0 %v488, 17
        %v509 = vpop.permute.xlu0 %508
        %510 = vrot.lane.b32.xlu0 %v490, 17
        %v511 = vpop.permute.xlu0 %510
        %v512 = vlaneseq
        %v513 = vand.u32 %v512, 127
        %vm514 = vcmp.lt.s32.totalorder %v513, 17
        %v515 = vsel %vm514, %v497, %v505
        %v516 = vsel %vm514, %v499, %v507
        %v517 = vsel %vm514, %v501, %v509
        %v518 = vsel %vm514, %v503, %v511
        %v519 = vsel %vm514, %v505, %v497
        %v520 = vsel %vm514, %v507, %v499
        %v521 = vsel %vm514, %v509, %v501
        %v522 = vsel %vm514, %v511, %v503
        %v523 = vld [vmem:[#allocation2] sm:$0xff]
        %v524 = vld [vmem:[#allocation2 + $0x8] sm:$0xff]
        %v525 = vld [vmem:[#allocation2 + $0x10] sm:$0xff]
        %v526 = vld [vmem:[#allocation2 + $0x18] sm:$0xff]
        %v527 = vld [vmem:[#allocation2 + $0x20] sm:$0xff]
        %v528 = vld [vmem:[#allocation2 + $0x28] sm:$0xff]
        %v529 = vld [vmem:[#allocation2 + $0x30] sm:$0xff]
        %v530 = vld [vmem:[#allocation2 + $0x38] sm:$0xff]
        %v531 = vmul.f32 %v519, %v523
        %v532 = vmul.f32 %v515, %v524
        %v533 = vmul.f32 %v520, %v525
        %v534 = vmul.f32 %v516, %v526
        %v535 = vmul.f32 %v521, %v527
        %v536 = vmul.f32 %v517, %v528
        %v537 = vmul.f32 %v522, %v529
        %v538 = vmul.f32 %v518, %v530
        %v539 = vld [vmem:[#allocation5] sm:$0xff]
        %v540 = vld [vmem:[#allocation5 + $0x8] sm:$0xff]
        %v541 = vld [vmem:[#allocation5 + $0x10] sm:$0xff]
        %v542 = vld [vmem:[#allocation5 + $0x18] sm:$0xff]
        %vm543 = vcmask 261120
        %v545 = vsel %vm543, %v539, 0
        %v548 = vsel %vm543, %v540, 0
        %v551 = vsel %vm543, %v541, 0
        %v554 = vsel %vm543, %v542, 0
        %556 = vmatprep.subr.mxu0 %v532
        %557 = vmatpush1.msra.mxu0 %v531
        %558 = vmatprep.subr.mxu0 %v534
        %559 = vmatpush1.msra.mxu0 %v533
        %560 = vmatprep.subr.mxu0 %v536
        %561 = vmatpush1.msra.mxu0 %v535
        %562 = vmatprep.subr.mxu0 %v538
        %563 = vmatpush1.msra.mxu0 %v537
        %564 = vmatprep.subr.mxu0 0.0
        %565 = vmatpush1.msra.mxu0 0.0
        %566 = vmatprep.subr.mxu0 0.0
        %567 = vmatpush1.msra.mxu0 0.0
        %568 = vmatprep.subr.mxu0 0.0
        %569 = vmatpush1.msra.mxu0 0.0
        %570 = vmatprep.subr.mxu0 0.0
        %571 = vmatpush1.msra.mxu0 0.0
        %572 = vmatprep.subr.mxu0 0.0
        %573 = vmatpush1.msra.mxu0 0.0
        %574 = vmatprep.subr.mxu0 0.0
        %575 = vmatpush1.msra.mxu0 0.0
        %576 = vmatprep.subr.mxu0 0.0
        %577 = vmatpush1.msra.mxu0 0.0
        %578 = vmatprep.subr.mxu0 0.0
        %579 = vmatpush1.msra.mxu0 0.0
        %580 = vmatprep.subr.mxu0 0.0
        %581 = vmatpush1.msra.mxu0 0.0
        %582 = vmatprep.subr.mxu0 0.0
        %583 = vmatpush1.msra.mxu0 0.0
        %584 = vmatprep.subr.mxu0 0.0
        %585 = vmatpush1.msra.mxu0 0.0
        %586 = vmatprep.subr.mxu0 0.0
        %587 = vmatpush1.msra.mxu0 0.0
        %588 = vmatprep.subr.mxu0 0.0
        %589 = vmatpush1.msra.mxu0 0.0
        %590 = vmatprep.subr.mxu0 0.0
        %591 = vmatpush1.msra.mxu0 0.0
        %592 = vmatprep.subr.mxu0 0.0
        %593 = vmatpush1.msra.mxu0 0.0
        %594 = vmatprep.subr.mxu0 0.0
        %595 = vmatpush1.msra.mxu0 0.0
        %596 = vmatprep.subr.mxu0 0.0
        %597 = vmatpush1.msra.mxu0 0.0
        %598 = vmatprep.subr.mxu0 0.0
        %599 = vmatpush1.msra.mxu0 0.0
        %600 = vmatprep.subr.mxu0 0.0
        %601 = vmatpush1.msra.mxu0 0.0
        %602 = vmatprep.subr.mxu0 0.0
        %603 = vmatpush1.msra.mxu0 0.0
        %604 = vmatprep.subr.mxu0 0.0
        %605 = vmatpush1.msra.mxu0 0.0
        %606 = vmatprep.subr.mxu0 0.0
        %607 = vmatpush1.msra.mxu0 0.0
        %608 = vmatprep.subr.mxu0 0.0
        %609 = vmatpush1.msra.mxu0 0.0
        %610 = vmatprep.subr.mxu0 0.0
        %611 = vmatpush1.msra.mxu0 0.0
        %612 = vmatprep.subr.mxu0 0.0
        %613 = vmatpush1.msra.mxu0 0.0
        %614 = vmatprep.subr.mxu0 0.0
        %615 = vmatpush1.msra.mxu0 0.0
        %616 = vmatprep.subr.mxu0 0.0
        %617 = vmatpush1.msra.mxu0 0.0
        %618 = vmatprep.subr.mxu0 0.0
        %619 = vmatpush1.msra.mxu0 0.0
        %620 = vmatprep.mubr.f32.mxu0 0.0
        %621 = vmatmul.mubr.f32.gmra.mrb[0].mxu0 %v545
        %v622 = vpop.f32.mrb[0].mxu0
        %v623 = vadd.f32 0.0, %v622
        %v624 = vpop.f32.mrb[0].mxu0
        %v625 = vadd.f32 0.0, %v624
        %626 = vmatprep.mubr.f32.mxu0 0.0
        %627 = vmatmul.mubr.f32.gmra.mrb[0].mxu0 %v548
        %v628 = vpop.f32.mrb[0].mxu0
        %v629 = vadd.f32 0.0, %v628
        %v630 = vpop.f32.mrb[0].mxu0
        %v631 = vadd.f32 0.0, %v630
        %632 = vmatprep.mubr.f32.mxu0 0.0
        %633 = vmatmul.mubr.f32.gmra.mrb[0].mxu0 %v551
        %v634 = vpop.f32.mrb[0].mxu0
        %v635 = vadd.f32 0.0, %v634
        %v636 = vpop.f32.mrb[0].mxu0
        %v637 = vadd.f32 0.0, %v636
        %638 = vmatprep.mubr.f32.mxu0 0.0
        %639 = vmatmul.mubr.f32.gmra.mrb[0].mxu0 %v554
        %v640 = vpop.f32.mrb[0].mxu0
        %v641 = vadd.f32 0.0, %v640
        %v642 = vpop.f32.mrb[0].mxu0
        %v643 = vadd.f32 0.0, %v642
        %644 = vdwg.mxu0
        %v646 = vsel %vm543, %v492, 0
        %v649 = vsel %vm543, %v493, 0
        %v652 = vsel %vm543, %v494, 0
        %v655 = vsel %vm543, %v495, 0
        %657 = vmatprep.subr.mxu0 %v484
        %658 = vmatpush1.msra.mxu0 %v483
        %659 = vmatprep.subr.mxu0 %v486
        %660 = vmatpush1.msra.mxu0 %v485
        %661 = vmatprep.subr.mxu0 %v488
        %662 = vmatpush1.msra.mxu0 %v487
        %663 = vmatprep.subr.mxu0 %v490
        %664 = vmatpush1.msra.mxu0 %v489
        %665 = vmatprep.subr.mxu0 0.0
        %666 = vmatpush1.msra.mxu0 0.0
        %667 = vmatprep.subr.mxu0 0.0
        %668 = vmatpush1.msra.mxu0 0.0
        %669 = vmatprep.subr.mxu0 0.0
        %670 = vmatpush1.msra.mxu0 0.0
        %671 = vmatprep.subr.mxu0 0.0
        %672 = vmatpush1.msra.mxu0 0.0
        %673 = vmatprep.subr.mxu0 0.0
        %674 = vmatpush1.msra.mxu0 0.0
        %675 = vmatprep.subr.mxu0 0.0
        %676 = vmatpush1.msra.mxu0 0.0
        %677 = vmatprep.subr.mxu0 0.0
        %678 = vmatpush1.msra.mxu0 0.0
        %679 = vmatprep.subr.mxu0 0.0
        %680 = vmatpush1.msra.mxu0 0.0
        %681 = vmatprep.subr.mxu0 0.0
        %682 = vmatpush1.msra.mxu0 0.0
        %683 = vmatprep.subr.mxu0 0.0
        %684 = vmatpush1.msra.mxu0 0.0
        %685 = vmatprep.subr.mxu0 0.0
        %686 = vmatpush1.msra.mxu0 0.0
        %687 = vmatprep.subr.mxu0 0.0
        %688 = vmatpush1.msra.mxu0 0.0
        %689 = vmatprep.subr.mxu0 0.0
        %690 = vmatpush1.msra.mxu0 0.0
        %691 = vmatprep.subr.mxu0 0.0
        %692 = vmatpush1.msra.mxu0 0.0
        %693 = vmatprep.subr.mxu0 0.0
        %694 = vmatpush1.msra.mxu0 0.0
        %695 = vmatprep.subr.mxu0 0.0
        %696 = vmatpush1.msra.mxu0 0.0
        %697 = vmatprep.subr.mxu0 0.0
        %698 = vmatpush1.msra.mxu0 0.0
        %699 = vmatprep.subr.mxu0 0.0
        %700 = vmatpush1.msra.mxu0 0.0
        %701 = vmatprep.subr.mxu0 0.0
        %702 = vmatpush1.msra.mxu0 0.0
        %703 = vmatprep.subr.mxu0 0.0
        %704 = vmatpush1.msra.mxu0 0.0
        %705 = vmatprep.subr.mxu0 0.0
        %706 = vmatpush1.msra.mxu0 0.0
        %707 = vmatprep.subr.mxu0 0.0
        %708 = vmatpush1.msra.mxu0 0.0
        %709 = vmatprep.subr.mxu0 0.0
        %710 = vmatpush1.msra.mxu0 0.0
        %711 = vmatprep.subr.mxu0 0.0
        %712 = vmatpush1.msra.mxu0 0.0
        %713 = vmatprep.subr.mxu0 0.0
        %714 = vmatpush1.msra.mxu0 0.0
        %715 = vmatprep.subr.mxu0 0.0
        %716 = vmatpush1.msra.mxu0 0.0
        %717 = vmatprep.subr.mxu0 0.0
        %718 = vmatpush1.msra.mxu0 0.0
        %719 = vmatprep.subr.mxu0 0.0
        %720 = vmatpush1.msra.mxu0 0.0
        %721 = vmatprep.mubr.f32.mxu0 0.0
        %722 = vmatmul.mubr.f32.gmra.mrb[0].mxu0 %v646
        %v723 = vpop.f32.mrb[0].mxu0
        %v724 = vadd.f32 %v623, %v723
        %v725 = vpop.f32.mrb[0].mxu0
        %v726 = vadd.f32 %v625, %v725
        %727 = vmatprep.mubr.f32.mxu0 0.0
        %728 = vmatmul.mubr.f32.gmra.mrb[0].mxu0 %v649
        %v729 = vpop.f32.mrb[0].mxu0
        %v730 = vadd.f32 %v629, %v729
        %v731 = vpop.f32.mrb[0].mxu0
        %v732 = vadd.f32 %v631, %v731
        %733 = vmatprep.mubr.f32.mxu0 0.0
        %734 = vmatmul.mubr.f32.gmra.mrb[0].mxu0 %v652
        %v735 = vpop.f32.mrb[0].mxu0
        %v736 = vadd.f32 %v635, %v735
        %v737 = vpop.f32.mrb[0].mxu0
        %v738 = vadd.f32 %v637, %v737
        %739 = vmatprep.mubr.f32.mxu0 0.0
        %740 = vmatmul.mubr.f32.gmra.mrb[0].mxu0 %v655
        %v741 = vpop.f32.mrb[0].mxu0
        %v742 = vadd.f32 %v641, %v741
        %v743 = vpop.f32.mrb[0].mxu0
        %v744 = vadd.f32 %v643, %v743
        %745 = vdwg.mxu0
        %746 = vrot.lane.b32.xlu0 %v483, 16
        %v747 = vpop.permute.xlu0 %746
        %748 = vrot.lane.b32.xlu0 %v485, 16
        %v749 = vpop.permute.xlu0 %748
        %750 = vrot.lane.b32.xlu0 %v487, 16
        %v751 = vpop.permute.xlu0 %750
        %752 = vrot.lane.b32.xlu0 %v489, 16
        %v753 = vpop.permute.xlu0 %752
        %754 = vrot.lane.b32.xlu0 %v484, 16
        %v755 = vpop.permute.xlu0 %754
        %756 = vrot.lane.b32.xlu0 %v486, 16
        %v757 = vpop.permute.xlu0 %756
        %758 = vrot.lane.b32.xlu0 %v488, 16
        %v759 = vpop.permute.xlu0 %758
        %760 = vrot.lane.b32.xlu0 %v490, 16
        %v761 = vpop.permute.xlu0 %760
        %vm762 = vcmp.lt.s32.totalorder %v513, 16
        %v763 = vsel %vm762, %v747, %v755
        %v764 = vsel %vm762, %v749, %v757
        %v765 = vsel %vm762, %v751, %v759
        %v766 = vsel %vm762, %v753, %v761
        %v767 = vsel %vm762, %v755, %v747
        %v768 = vsel %vm762, %v757, %v749
        %v769 = vsel %vm762, %v759, %v751
        %v770 = vsel %vm762, %v761, %v753
        %s771 = scalar_lea.vmem [#allocation2], 64
        %v772 = vld [vmem:[%s771] sm:$0xff]
        %v773 = vld [vmem:[%s771 + $0x8] sm:$0xff]
        %v774 = vld [vmem:[%s771 + $0x10] sm:$0xff]
        %v775 = vld [vmem:[%s771 + $0x18] sm:$0xff]
        %v776 = vld [vmem:[%s771 + $0x20] sm:$0xff]
        %v777 = vld [vmem:[%s771 + $0x28] sm:$0xff]
        %v778 = vld [vmem:[%s771 + $0x30] sm:$0xff]
        %v779 = vld [vmem:[%s771 + $0x38] sm:$0xff]
        %v780 = vmul.f32 %v767, %v772
        %v781 = vmul.f32 %v763, %v773
        %v782 = vmul.f32 %v768, %v774
        %v783 = vmul.f32 %v764, %v775
        %v784 = vmul.f32 %v769, %v776
        %v785 = vmul.f32 %v765, %v777
        %v786 = vmul.f32 %v770, %v778
        %v787 = vmul.f32 %v766, %v779
        %s788 = scalar_lea.vmem [#allocation5], 32
        %v789 = vld [vmem:[%s788] sm:$0xff]
        %v790 = vld [vmem:[%s788 + $0x8] sm:$0xff]
        %v791 = vld [vmem:[%s788 + $0x10] sm:$0xff]
        %v792 = vld [vmem:[%s788 + $0x18] sm:$0xff]
        %v794 = vsel %vm543, %v789, 0
        %v797 = vsel %vm543, %v790, 0
        %v800 = vsel %vm543, %v791, 0
        %v803 = vsel %vm543, %v792, 0
        %805 = vmatprep.subr.mxu0 %v781
        %806 = vmatpush1.msra.mxu0 %v780
        %807 = vmatprep.subr.mxu0 %v783
        %808 = vmatpush1.msra.mxu0 %v782
        %809 = vmatprep.subr.mxu0 %v785
        %810 = vmatpush1.msra.mxu0 %v784
        %811 = vmatprep.subr.mxu0 %v787
        %812 = vmatpush1.msra.mxu0 %v786
        %813 = vmatprep.subr.mxu0 0.0
        %814 = vmatpush1.msra.mxu0 0.0
        %815 = vmatprep.subr.mxu0 0.0
        %816 = vmatpush1.msra.mxu0 0.0
        %817 = vmatprep.subr.mxu0 0.0
        %818 = vmatpush1.msra.mxu0 0.0
        %819 = vmatprep.subr.mxu0 0.0
        %820 = vmatpush1.msra.mxu0 0.0
        %821 = vmatprep.subr.mxu0 0.0
        %822 = vmatpush1.msra.mxu0 0.0
        %823 = vmatprep.subr.mxu0 0.0
        %824 = vmatpush1.msra.mxu0 0.0
        %825 = vmatprep.subr.mxu0 0.0
        %826 = vmatpush1.msra.mxu0 0.0
        %827 = vmatprep.subr.mxu0 0.0
        %828 = vmatpush1.msra.mxu0 0.0
        %829 = vmatprep.subr.mxu0 0.0
        %830 = vmatpush1.msra.mxu0 0.0
        %831 = vmatprep.subr.mxu0 0.0
        %832 = vmatpush1.msra.mxu0 0.0
        %833 = vmatprep.subr.mxu0 0.0
        %834 = vmatpush1.msra.mxu0 0.0
        %835 = vmatprep.subr.mxu0 0.0
        %836 = vmatpush1.msra.mxu0 0.0
        %837 = vmatprep.subr.mxu0 0.0
        %838 = vmatpush1.msra.mxu0 0.0
        %839 = vmatprep.subr.mxu0 0.0
        %840 = vmatpush1.msra.mxu0 0.0
        %841 = vmatprep.subr.mxu0 0.0
        %842 = vmatpush1.msra.mxu0 0.0
        %843 = vmatprep.subr.mxu0 0.0
        %844 = vmatpush1.msra.mxu0 0.0
        %845 = vmatprep.subr.mxu0 0.0
        %846 = vmatpush1.msra.mxu0 0.0
        %847 = vmatprep.subr.mxu0 0.0
        %848 = vmatpush1.msra.mxu0 0.0
        %849 = vmatprep.subr.mxu0 0.0
        %850 = vmatpush1.msra.mxu0 0.0
        %851 = vmatprep.subr.mxu0 0.0
        %852 = vmatpush1.msra.mxu0 0.0
        %853 = vmatprep.subr.mxu0 0.0
        %854 = vmatpush1.msra.mxu0 0.0
        %855 = vmatprep.subr.mxu0 0.0
        %856 = vmatpush1.msra.mxu0 0.0
        %857 = vmatprep.subr.mxu0 0.0
        %858 = vmatpush1.msra.mxu0 0.0
        %859 = vmatprep.subr.mxu0 0.0
        %860 = vmatpush1.msra.mxu0 0.0
        %861 = vmatprep.subr.mxu0 0.0
        %862 = vmatpush1.msra.mxu0 0.0
        %863 = vmatprep.subr.mxu0 0.0
        %864 = vmatpush1.msra.mxu0 0.0
        %865 = vmatprep.subr.mxu0 0.0
        %866 = vmatpush1.msra.mxu0 0.0
        %867 = vmatprep.subr.mxu0 0.0
        %868 = vmatpush1.msra.mxu0 0.0
        %869 = vmatprep.mubr.f32.mxu0 0.0
        %870 = vmatmul.mubr.f32.gmra.mrb[0].mxu0 %v794
        %v871 = vpop.f32.mrb[0].mxu0
        %v872 = vadd.f32 0.0, %v871
        %v873 = vpop.f32.mrb[0].mxu0
        %v874 = vadd.f32 0.0, %v873
        %875 = vmatprep.mubr.f32.mxu0 0.0
        %876 = vmatmul.mubr.f32.gmra.mrb[0].mxu0 %v797
        %v877 = vpop.f32.mrb[0].mxu0
        %v878 = vadd.f32 0.0, %v877
        %v879 = vpop.f32.mrb[0].mxu0
        %v880 = vadd.f32 0.0, %v879
        %881 = vmatprep.mubr.f32.mxu0 0.0
        %882 = vmatmul.mubr.f32.gmra.mrb[0].mxu0 %v800
        %v883 = vpop.f32.mrb[0].mxu0
        %v884 = vadd.f32 0.0, %v883
        %v885 = vpop.f32.mrb[0].mxu0
        %v886 = vadd.f32 0.0, %v885
        %887 = vmatprep.mubr.f32.mxu0 0.0
        %888 = vmatmul.mubr.f32.gmra.mrb[0].mxu0 %v803
        %v889 = vpop.f32.mrb[0].mxu0
        %v890 = vadd.f32 0.0, %v889
        %v891 = vpop.f32.mrb[0].mxu0
        %v892 = vadd.f32 0.0, %v891
        %893 = vdwg.mxu0
        %v894 = vadd.f32 %v724, %v872
        %v895 = vadd.f32 %v726, %v874
        %v896 = vadd.f32 %v730, %v878
        %v897 = vadd.f32 %v732, %v880
        %v898 = vadd.f32 %v736, %v884
        %v899 = vadd.f32 %v738, %v886
        %v900 = vadd.f32 %v742, %v890
        %v901 = vadd.f32 %v744, %v892
        %902 = vrot.lane.b32.xlu0 %v483, 15
        %v903 = vpop.permute.xlu0 %902
        %904 = vrot.lane.b32.xlu0 %v485, 15
        %v905 = vpop.permute.xlu0 %904
        %906 = vrot.lane.b32.xlu0 %v487, 15
        %v907 = vpop.permute.xlu0 %906
        %908 = vrot.lane.b32.xlu0 %v489, 15
        %v909 = vpop.permute.xlu0 %908
        %910 = vrot.lane.b32.xlu0 %v484, 15
        %v911 = vpop.permute.xlu0 %910
        %912 = vrot.lane.b32.xlu0 %v486, 15
        %v913 = vpop.permute.xlu0 %912
        %914 = vrot.lane.b32.xlu0 %v488, 15
        %v915 = vpop.permute.xlu0 %914
        %916 = vrot.lane.b32.xlu0 %v490, 15
        %v917 = vpop.permute.xlu0 %916
        %vm918 = vcmp.lt.s32.totalorder %v513, 15
        %v919 = vsel %vm918, %v903, %v911
        %v920 = vsel %vm918, %v905, %v913
        %v921 = vsel %vm918, %v907, %v915
        %v922 = vsel %vm918, %v909, %v917
        %v923 = vsel %vm918, %v911, %v903
        %v924 = vsel %vm918, %v913, %v905
        %v925 = vsel %vm918, %v915, %v907
        %v926 = vsel %vm918, %v917, %v909
        %s927 = scalar_lea.vmem [#allocation2], 128
        %v928 = vld [vmem:[%s927] sm:$0xff]
        %v929 = vld [vmem:[%s927 + $0x8] sm:$0xff]
        %v930 = vld [vmem:[%s927 + $0x10] sm:$0xff]
        %v931 = vld [vmem:[%s927 + $0x18] sm:$0xff]
        %v932 = vld [vmem:[%s927 + $0x20] sm:$0xff]
        %v933 = vld [vmem:[%s927 + $0x28] sm:$0xff]
        %v934 = vld [vmem:[%s927 + $0x30] sm:$0xff]
        %v935 = vld [vmem:[%s927 + $0x38] sm:$0xff]
        %v936 = vmul.f32 %v923, %v928
        %v937 = vmul.f32 %v919, %v929
        %v938 = vmul.f32 %v924, %v930
        %v939 = vmul.f32 %v920, %v931
        %v940 = vmul.f32 %v925, %v932
        %v941 = vmul.f32 %v921, %v933
        %v942 = vmul.f32 %v926, %v934
        %v943 = vmul.f32 %v922, %v935
        %s944 = scalar_lea.vmem [#allocation5], 64
        %v945 = vld [vmem:[%s944] sm:$0xff]
        %v946 = vld [vmem:[%s944 + $0x8] sm:$0xff]
        %v947 = vld [vmem:[%s944 + $0x10] sm:$0xff]
        %v948 = vld [vmem:[%s944 + $0x18] sm:$0xff]
        %v950 = vsel %vm543, %v945, 0
        %v953 = vsel %vm543, %v946, 0
        %v956 = vsel %vm543, %v947, 0
        %v959 = vsel %vm543, %v948, 0
        %961 = vmatprep.subr.mxu0 %v937
        %962 = vmatpush1.msra.mxu0 %v936
        %963 = vmatprep.subr.mxu0 %v939
        %964 = vmatpush1.msra.mxu0 %v938
        %965 = vmatprep.subr.mxu0 %v941
        %966 = vmatpush1.msra.mxu0 %v940
        %967 = vmatprep.subr.mxu0 %v943
        %968 = vmatpush1.msra.mxu0 %v942
        %969 = vmatprep.subr.mxu0 0.0
        %970 = vmatpush1.msra.mxu0 0.0
        %971 = vmatprep.subr.mxu0 0.0
        %972 = vmatpush1.msra.mxu0 0.0
        %973 = vmatprep.subr.mxu0 0.0
        %974 = vmatpush1.msra.mxu0 0.0
        %975 = vmatprep.subr.mxu0 0.0
        %976 = vmatpush1.msra.mxu0 0.0
        %977 = vmatprep.subr.mxu0 0.0
        %978 = vmatpush1.msra.mxu0 0.0
        %979 = vmatprep.subr.mxu0 0.0
        %980 = vmatpush1.msra.mxu0 0.0
        %981 = vmatprep.subr.mxu0 0.0
        %982 = vmatpush1.msra.mxu0 0.0
        %983 = vmatprep.subr.mxu0 0.0
        %984 = vmatpush1.msra.mxu0 0.0
        %985 = vmatprep.subr.mxu0 0.0
        %986 = vmatpush1.msra.mxu0 0.0
        %987 = vmatprep.subr.mxu0 0.0
        %988 = vmatpush1.msra.mxu0 0.0
        %989 = vmatprep.subr.mxu0 0.0
        %990 = vmatpush1.msra.mxu0 0.0
        %991 = vmatprep.subr.mxu0 0.0
        %992 = vmatpush1.msra.mxu0 0.0
        %993 = vmatprep.subr.mxu0 0.0
        %994 = vmatpush1.msra.mxu0 0.0
        %995 = vmatprep.subr.mxu0 0.0
        %996 = vmatpush1.msra.mxu0 0.0
        %997 = vmatprep.subr.mxu0 0.0
        %998 = vmatpush1.msra.mxu0 0.0
        %999 = vmatprep.subr.mxu0 0.0
        %1000 = vmatpush1.msra.mxu0 0.0
        %1001 = vmatprep.subr.mxu0 0.0
        %1002 = vmatpush1.msra.mxu0 0.0
        %1003 = vmatprep.subr.mxu0 0.0
        %1004 = vmatpush1.msra.mxu0 0.0
        %1005 = vmatprep.subr.mxu0 0.0
        %1006 = vmatpush1.msra.mxu0 0.0
        %1007 = vmatprep.subr.mxu0 0.0
        %1008 = vmatpush1.msra.mxu0 0.0
        %1009 = vmatprep.subr.mxu0 0.0
        %1010 = vmatpush1.msra.mxu0 0.0
        %1011 = vmatprep.subr.mxu0 0.0
        %1012 = vmatpush1.msra.mxu0 0.0
        %1013 = vmatprep.subr.mxu0 0.0
        %1014 = vmatpush1.msra.mxu0 0.0
        %1015 = vmatprep.subr.mxu0 0.0
        %1016 = vmatpush1.msra.mxu0 0.0
        %1017 = vmatprep.subr.mxu0 0.0
        %1018 = vmatpush1.msra.mxu0 0.0
        %1019 = vmatprep.subr.mxu0 0.0
        %1020 = vmatpush1.msra.mxu0 0.0
        %1021 = vmatprep.subr.mxu0 0.0
        %1022 = vmatpush1.msra.mxu0 0.0
        %1023 = vmatprep.subr.mxu0 0.0
        %1024 = vmatpush1.msra.mxu0 0.0
        %1025 = vmatprep.mubr.f32.mxu0 0.0
        %1026 = vmatmul.mubr.f32.gmra.mrb[0].mxu0 %v950
        %v1027 = vpop.f32.mrb[0].mxu0
        %v1028 = vadd.f32 0.0, %v1027
        %v1029 = vpop.f32.mrb[0].mxu0
        %v1030 = vadd.f32 0.0, %v1029
        %1031 = vmatprep.mubr.f32.mxu0 0.0
        %1032 = vmatmul.mubr.f32.gmra.mrb[0].mxu0 %v953
        %v1033 = vpop.f32.mrb[0].mxu0
        %v1034 = vadd.f32 0.0, %v1033
        %v1035 = vpop.f32.mrb[0].mxu0
        %v1036 = vadd.f32 0.0, %v1035
        %1037 = vmatprep.mubr.f32.mxu0 0.0
        %1038 = vmatmul.mubr.f32.gmra.mrb[0].mxu0 %v956
        %v1039 = vpop.f32.mrb[0].mxu0
        %v1040 = vadd.f32 0.0, %v1039
        %v1041 = vpop.f32.mrb[0].mxu0
        %v1042 = vadd.f32 0.0, %v1041
        %1043 = vmatprep.mubr.f32.mxu0 0.0
        %1044 = vmatmul.mubr.f32.gmra.mrb[0].mxu0 %v959
        %v1045 = vpop.f32.mrb[0].mxu0
        %v1046 = vadd.f32 0.0, %v1045
        %v1047 = vpop.f32.mrb[0].mxu0
        %v1048 = vadd.f32 0.0, %v1047
        %1049 = vdwg.mxu0
        %v1050 = vadd.f32 %v894, %v1028
        %v1051 = vadd.f32 %v895, %v1030
        %v1052 = vadd.f32 %v896, %v1034
        %v1053 = vadd.f32 %v897, %v1036
        %v1054 = vadd.f32 %v898, %v1040
        %v1055 = vadd.f32 %v899, %v1042
        %v1056 = vadd.f32 %v900, %v1046
        %v1057 = vadd.f32 %v901, %v1048
        %1058 = vrot.lane.b32.xlu0 %v483, 1
        %v1059 = vpop.permute.xlu0 %1058
        %1060 = vrot.lane.b32.xlu0 %v485, 1
        %v1061 = vpop.permute.xlu0 %1060
        %1062 = vrot.lane.b32.xlu0 %v487, 1
        %v1063 = vpop.permute.xlu0 %1062
        %1064 = vrot.lane.b32.xlu0 %v489, 1
        %v1065 = vpop.permute.xlu0 %1064
        %1066 = vrot.lane.b32.xlu0 %v484, 1
        %v1067 = vpop.permute.xlu0 %1066
        %1068 = vrot.lane.b32.xlu0 %v486, 1
        %v1069 = vpop.permute.xlu0 %1068
        %1070 = vrot.lane.b32.xlu0 %v488, 1
        %v1071 = vpop.permute.xlu0 %1070
        %1072 = vrot.lane.b32.xlu0 %v490, 1
        %v1073 = vpop.permute.xlu0 %1072
        %vm1074 = vcmp.lt.s32.totalorder %v513, 1
        %v1075 = vsel %vm1074, %v1059, %v1067
        %v1076 = vsel %vm1074, %v1061, %v1069
        %v1077 = vsel %vm1074, %v1063, %v1071
        %v1078 = vsel %vm1074, %v1065, %v1073
        %v1079 = vsel %vm1074, %v1067, %v1059
        %v1080 = vsel %vm1074, %v1069, %v1061
        %v1081 = vsel %vm1074, %v1071, %v1063
        %v1082 = vsel %vm1074, %v1073, %v1065
        %s1083 = scalar_lea.vmem [#allocation2], 192
        %v1084 = vld [vmem:[%s1083] sm:$0xff]
        %v1085 = vld [vmem:[%s1083 + $0x8] sm:$0xff]
        %v1086 = vld [vmem:[%s1083 + $0x10] sm:$0xff]
        %v1087 = vld [vmem:[%s1083 + $0x18] sm:$0xff]
        %v1088 = vld [vmem:[%s1083 + $0x20] sm:$0xff]
        %v1089 = vld [vmem:[%s1083 + $0x28] sm:$0xff]
        %v1090 = vld [vmem:[%s1083 + $0x30] sm:$0xff]
        %v1091 = vld [vmem:[%s1083 + $0x38] sm:$0xff]
        %v1092 = vmul.f32 %v1079, %v1084
        %v1093 = vmul.f32 %v1075, %v1085
        %v1094 = vmul.f32 %v1080, %v1086
        %v1095 = vmul.f32 %v1076, %v1087
        %v1096 = vmul.f32 %v1081, %v1088
        %v1097 = vmul.f32 %v1077, %v1089
        %v1098 = vmul.f32 %v1082, %v1090
        %v1099 = vmul.f32 %v1078, %v1091
        %s1100 = scalar_lea.vmem [#allocation5], 96
        %v1101 = vld [vmem:[%s1100] sm:$0xff]
        %v1102 = vld [vmem:[%s1100 + $0x8] sm:$0xff]
        %v1103 = vld [vmem:[%s1100 + $0x10] sm:$0xff]
        %v1104 = vld [vmem:[%s1100 + $0x18] sm:$0xff]
        %v1106 = vsel %vm543, %v1101, 0
        %v1109 = vsel %vm543, %v1102, 0
        %v1112 = vsel %vm543, %v1103, 0
        %v1115 = vsel %vm543, %v1104, 0
        %1117 = vmatprep.subr.mxu0 %v1093
        %1118 = vmatpush1.msra.mxu0 %v1092
        %1119 = vmatprep.subr.mxu0 %v1095
        %1120 = vmatpush1.msra.mxu0 %v1094
        %1121 = vmatprep.subr.mxu0 %v1097
        %1122 = vmatpush1.msra.mxu0 %v1096
        %1123 = vmatprep.subr.mxu0 %v1099
        %1124 = vmatpush1.msra.mxu0 %v1098
        %1125 = vmatprep.subr.mxu0 0.0
        %1126 = vmatpush1.msra.mxu0 0.0
        %1127 = vmatprep.subr.mxu0 0.0
        %1128 = vmatpush1.msra.mxu0 0.0
        %1129 = vmatprep.subr.mxu0 0.0
        %1130 = vmatpush1.msra.mxu0 0.0
        %1131 = vmatprep.subr.mxu0 0.0
        %1132 = vmatpush1.msra.mxu0 0.0
        %1133 = vmatprep.subr.mxu0 0.0
        %1134 = vmatpush1.msra.mxu0 0.0
        %1135 = vmatprep.subr.mxu0 0.0
        %1136 = vmatpush1.msra.mxu0 0.0
        %1137 = vmatprep.subr.mxu0 0.0
        %1138 = vmatpush1.msra.mxu0 0.0
        %1139 = vmatprep.subr.mxu0 0.0
        %1140 = vmatpush1.msra.mxu0 0.0
        %1141 = vmatprep.subr.mxu0 0.0
        %1142 = vmatpush1.msra.mxu0 0.0
        %1143 = vmatprep.subr.mxu0 0.0
        %1144 = vmatpush1.msra.mxu0 0.0
        %1145 = vmatprep.subr.mxu0 0.0
        %1146 = vmatpush1.msra.mxu0 0.0
        %1147 = vmatprep.subr.mxu0 0.0
        %1148 = vmatpush1.msra.mxu0 0.0
        %1149 = vmatprep.subr.mxu0 0.0
        %1150 = vmatpush1.msra.mxu0 0.0
        %1151 = vmatprep.subr.mxu0 0.0
        %1152 = vmatpush1.msra.mxu0 0.0
        %1153 = vmatprep.subr.mxu0 0.0
        %1154 = vmatpush1.msra.mxu0 0.0
        %1155 = vmatprep.subr.mxu0 0.0
        %1156 = vmatpush1.msra.mxu0 0.0
        %1157 = vmatprep.subr.mxu0 0.0
        %1158 = vmatpush1.msra.mxu0 0.0
        %1159 = vmatprep.subr.mxu0 0.0
        %1160 = vmatpush1.msra.mxu0 0.0
        %1161 = vmatprep.subr.mxu0 0.0
        %1162 = vmatpush1.msra.mxu0 0.0
        %1163 = vmatprep.subr.mxu0 0.0
        %1164 = vmatpush1.msra.mxu0 0.0
        %1165 = vmatprep.subr.mxu0 0.0
        %1166 = vmatpush1.msra.mxu0 0.0
        %1167 = vmatprep.subr.mxu0 0.0
        %1168 = vmatpush1.msra.mxu0 0.0
        %1169 = vmatprep.subr.mxu0 0.0
        %1170 = vmatpush1.msra.mxu0 0.0
        %1171 = vmatprep.subr.mxu0 0.0
        %1172 = vmatpush1.msra.mxu0 0.0
        %1173 = vmatprep.subr.mxu0 0.0
        %1174 = vmatpush1.msra.mxu0 0.0
        %1175 = vmatprep.subr.mxu0 0.0
        %1176 = vmatpush1.msra.mxu0 0.0
        %1177 = vmatprep.subr.mxu0 0.0
        %1178 = vmatpush1.msra.mxu0 0.0
        %1179 = vmatprep.subr.mxu0 0.0
        %1180 = vmatpush1.msra.mxu0 0.0
        %1181 = vmatprep.mubr.f32.mxu0 0.0
        %1182 = vmatmul.mubr.f32.gmra.mrb[0].mxu0 %v1106
        %v1183 = vpop.f32.mrb[0].mxu0
        %v1184 = vadd.f32 0.0, %v1183
        %v1185 = vpop.f32.mrb[0].mxu0
        %v1186 = vadd.f32 0.0, %v1185
        %1187 = vmatprep.mubr.f32.mxu0 0.0
        %1188 = vmatmul.mubr.f32.gmra.mrb[0].mxu0 %v1109
        %v1189 = vpop.f32.mrb[0].mxu0
        %v1190 = vadd.f32 0.0, %v1189
        %v1191 = vpop.f32.mrb[0].mxu0
        %v1192 = vadd.f32 0.0, %v1191
        %1193 = vmatprep.mubr.f32.mxu0 0.0
        %1194 = vmatmul.mubr.f32.gmra.mrb[0].mxu0 %v1112
        %v1195 = vpop.f32.mrb[0].mxu0
        %v1196 = vadd.f32 0.0, %v1195
        %v1197 = vpop.f32.mrb[0].mxu0
        %v1198 = vadd.f32 0.0, %v1197
        %1199 = vmatprep.mubr.f32.mxu0 0.0
        %1200 = vmatmul.mubr.f32.gmra.mrb[0].mxu0 %v1115
        %v1201 = vpop.f32.mrb[0].mxu0
        %v1202 = vadd.f32 0.0, %v1201
        %v1203 = vpop.f32.mrb[0].mxu0
        %v1204 = vadd.f32 0.0, %v1203
        %1205 = vdwg.mxu0
        %v1206 = vadd.f32 %v1050, %v1184
        %v1207 = vadd.f32 %v1051, %v1186
        %v1208 = vadd.f32 %v1052, %v1190
        %v1209 = vadd.f32 %v1053, %v1192
        %v1210 = vadd.f32 %v1054, %v1196
        %v1211 = vadd.f32 %v1055, %v1198
        %v1212 = vadd.f32 %v1056, %v1202
        %v1213 = vadd.f32 %v1057, %v1204
        %1214 = vrot.lane.b32.xlu0 %v483, 127
        %v1215 = vpop.permute.xlu0 %1214
        %1216 = vrot.lane.b32.xlu0 %v485, 127
        %v1217 = vpop.permute.xlu0 %1216
        %1218 = vrot.lane.b32.xlu0 %v487, 127
        %v1219 = vpop.permute.xlu0 %1218
        %1220 = vrot.lane.b32.xlu0 %v489, 127
        %v1221 = vpop.permute.xlu0 %1220
        %1222 = vrot.lane.b32.xlu0 %v484, 127
        %v1223 = vpop.permute.xlu0 %1222
        %1224 = vrot.lane.b32.xlu0 %v486, 127
        %v1225 = vpop.permute.xlu0 %1224
        %1226 = vrot.lane.b32.xlu0 %v488, 127
        %v1227 = vpop.permute.xlu0 %1226
        %1228 = vrot.lane.b32.xlu0 %v490, 127
        %v1229 = vpop.permute.xlu0 %1228
        %vm1230 = vcmp.lt.s32.totalorder %v513, 127
        %v1231 = vsel %vm1230, %v1215, %v1223
        %v1232 = vsel %vm1230, %v1217, %v1225
        %v1233 = vsel %vm1230, %v1219, %v1227
        %v1234 = vsel %vm1230, %v1221, %v1229
        %v1235 = vsel %vm1230, %v1223, %v1215
        %v1236 = vsel %vm1230, %v1225, %v1217
        %v1237 = vsel %vm1230, %v1227, %v1219
        %v1238 = vsel %vm1230, %v1229, %v1221
        %s1239 = scalar_lea.vmem [#allocation2], 320
        %v1240 = vld [vmem:[%s1239] sm:$0xff]
        %v1241 = vld [vmem:[%s1239 + $0x8] sm:$0xff]
        %v1242 = vld [vmem:[%s1239 + $0x10] sm:$0xff]
        %v1243 = vld [vmem:[%s1239 + $0x18] sm:$0xff]
        %v1244 = vld [vmem:[%s1239 + $0x20] sm:$0xff]
        %v1245 = vld [vmem:[%s1239 + $0x28] sm:$0xff]
        %v1246 = vld [vmem:[%s1239 + $0x30] sm:$0xff]
        %v1247 = vld [vmem:[%s1239 + $0x38] sm:$0xff]
        %v1248 = vmul.f32 %v1231, %v1240
        %v1249 = vmul.f32 %v1235, %v1241
        %v1250 = vmul.f32 %v1232, %v1242
        %v1251 = vmul.f32 %v1236, %v1243
        %v1252 = vmul.f32 %v1233, %v1244
        %v1253 = vmul.f32 %v1237, %v1245
        %v1254 = vmul.f32 %v1234, %v1246
        %v1255 = vmul.f32 %v1238, %v1247
        %s1256 = scalar_lea.vmem [#allocation5], 160
        %v1257 = vld [vmem:[%s1256] sm:$0xff]
        %v1258 = vld [vmem:[%s1256 + $0x8] sm:$0xff]
        %v1259 = vld [vmem:[%s1256 + $0x10] sm:$0xff]
        %v1260 = vld [vmem:[%s1256 + $0x18] sm:$0xff]
        %v1262 = vsel %vm543, %v1257, 0
        %v1265 = vsel %vm543, %v1258, 0
        %v1268 = vsel %vm543, %v1259, 0
        %v1271 = vsel %vm543, %v1260, 0
        %1273 = vmatprep.subr.mxu0 %v1249
        %1274 = vmatpush1.msra.mxu0 %v1248
        %1275 = vmatprep.subr.mxu0 %v1251
        %1276 = vmatpush1.msra.mxu0 %v1250
        %1277 = vmatprep.subr.mxu0 %v1253
        %1278 = vmatpush1.msra.mxu0 %v1252
        %1279 = vmatprep.subr.mxu0 %v1255
        %1280 = vmatpush1.msra.mxu0 %v1254
        %1281 = vmatprep.subr.mxu0 0.0
        %1282 = vmatpush1.msra.mxu0 0.0
        %1283 = vmatprep.subr.mxu0 0.0
        %1284 = vmatpush1.msra.mxu0 0.0
        %1285 = vmatprep.subr.mxu0 0.0
        %1286 = vmatpush1.msra.mxu0 0.0
        %1287 = vmatprep.subr.mxu0 0.0
        %1288 = vmatpush1.msra.mxu0 0.0
        %1289 = vmatprep.subr.mxu0 0.0
        %1290 = vmatpush1.msra.mxu0 0.0
        %1291 = vmatprep.subr.mxu0 0.0
        %1292 = vmatpush1.msra.mxu0 0.0
        %1293 = vmatprep.subr.mxu0 0.0
        %1294 = vmatpush1.msra.mxu0 0.0
        %1295 = vmatprep.subr.mxu0 0.0
        %1296 = vmatpush1.msra.mxu0 0.0
        %1297 = vmatprep.subr.mxu0 0.0
        %1298 = vmatpush1.msra.mxu0 0.0
        %1299 = vmatprep.subr.mxu0 0.0
        %1300 = vmatpush1.msra.mxu0 0.0
        %1301 = vmatprep.subr.mxu0 0.0
        %1302 = vmatpush1.msra.mxu0 0.0
        %1303 = vmatprep.subr.mxu0 0.0
        %1304 = vmatpush1.msra.mxu0 0.0
        %1305 = vmatprep.subr.mxu0 0.0
        %1306 = vmatpush1.msra.mxu0 0.0
        %1307 = vmatprep.subr.mxu0 0.0
        %1308 = vmatpush1.msra.mxu0 0.0
        %1309 = vmatprep.subr.mxu0 0.0
        %1310 = vmatpush1.msra.mxu0 0.0
        %1311 = vmatprep.subr.mxu0 0.0
        %1312 = vmatpush1.msra.mxu0 0.0
        %1313 = vmatprep.subr.mxu0 0.0
        %1314 = vmatpush1.msra.mxu0 0.0
        %1315 = vmatprep.subr.mxu0 0.0
        %1316 = vmatpush1.msra.mxu0 0.0
        %1317 = vmatprep.subr.mxu0 0.0
        %1318 = vmatpush1.msra.mxu0 0.0
        %1319 = vmatprep.subr.mxu0 0.0
        %1320 = vmatpush1.msra.mxu0 0.0
        %1321 = vmatprep.subr.mxu0 0.0
        %1322 = vmatpush1.msra.mxu0 0.0
        %1323 = vmatprep.subr.mxu0 0.0
        %1324 = vmatpush1.msra.mxu0 0.0
        %1325 = vmatprep.subr.mxu0 0.0
        %1326 = vmatpush1.msra.mxu0 0.0
        %1327 = vmatprep.subr.mxu0 0.0
        %1328 = vmatpush1.msra.mxu0 0.0
        %1329 = vmatprep.subr.mxu0 0.0
        %1330 = vmatpush1.msra.mxu0 0.0
        %1331 = vmatprep.subr.mxu0 0.0
        %1332 = vmatpush1.msra.mxu0 0.0
        %1333 = vmatprep.subr.mxu0 0.0
        %1334 = vmatpush1.msra.mxu0 0.0
        %1335 = vmatprep.subr.mxu0 0.0
        %1336 = vmatpush1.msra.mxu0 0.0
        %1337 = vmatprep.mubr.f32.mxu0 0.0
        %1338 = vmatmul.mubr.f32.gmra.mrb[0].mxu0 %v1262
        %v1339 = vpop.f32.mrb[0].mxu0
        %v1340 = vadd.f32 0.0, %v1339
        %v1341 = vpop.f32.mrb[0].mxu0
        %v1342 = vadd.f32 0.0, %v1341
        %1343 = vmatprep.mubr.f32.mxu0 0.0
        %1344 = vmatmul.mubr.f32.gmra.mrb[0].mxu0 %v1265
        %v1345 = vpop.f32.mrb[0].mxu0
        %v1346 = vadd.f32 0.0, %v1345
        %v1347 = vpop.f32.mrb[0].mxu0
        %v1348 = vadd.f32 0.0, %v1347
        %1349 = vmatprep.mubr.f32.mxu0 0.0
        %1350 = vmatmul.mubr.f32.gmra.mrb[0].mxu0 %v1268
        %v1351 = vpop.f32.mrb[0].mxu0
        %v1352 = vadd.f32 0.0, %v1351
        %v1353 = vpop.f32.mrb[0].mxu0
        %v1354 = vadd.f32 0.0, %v1353
        %1355 = vmatprep.mubr.f32.mxu0 0.0
        %1356 = vmatmul.mubr.f32.gmra.mrb[0].mxu0 %v1271
        %v1357 = vpop.f32.mrb[0].mxu0
        %v1358 = vadd.f32 0.0, %v1357
        %v1359 = vpop.f32.mrb[0].mxu0
        %v1360 = vadd.f32 0.0, %v1359
        %1361 = vdwg.mxu0
        %v1362 = vadd.f32 %v1206, %v1340
        %v1363 = vadd.f32 %v1207, %v1342
        %v1364 = vadd.f32 %v1208, %v1346
        %v1365 = vadd.f32 %v1209, %v1348
        %v1366 = vadd.f32 %v1210, %v1352
        %v1367 = vadd.f32 %v1211, %v1354
        %v1368 = vadd.f32 %v1212, %v1358
        %v1369 = vadd.f32 %v1213, %v1360
        %1370 = vrot.lane.b32.xlu0 %v483, 113
        %v1371 = vpop.permute.xlu0 %1370
        %1372 = vrot.lane.b32.xlu0 %v485, 113
        %v1373 = vpop.permute.xlu0 %1372
        %1374 = vrot.lane.b32.xlu0 %v487, 113
        %v1375 = vpop.permute.xlu0 %1374
        %1376 = vrot.lane.b32.xlu0 %v489, 113
        %v1377 = vpop.permute.xlu0 %1376
        %1378 = vrot.lane.b32.xlu0 %v484, 113
        %v1379 = vpop.permute.xlu0 %1378
        %1380 = vrot.lane.b32.xlu0 %v486, 113
        %v1381 = vpop.permute.xlu0 %1380
        %1382 = vrot.lane.b32.xlu0 %v488, 113
        %v1383 = vpop.permute.xlu0 %1382
        %1384 = vrot.lane.b32.xlu0 %v490, 113
        %v1385 = vpop.permute.xlu0 %1384
        %vm1386 = vcmp.lt.s32.totalorder %v513, 113
        %v1387 = vsel %vm1386, %v1371, %v1379
        %v1388 = vsel %vm1386, %v1373, %v1381
        %v1389 = vsel %vm1386, %v1375, %v1383
        %v1390 = vsel %vm1386, %v1377, %v1385
        %v1391 = vsel %vm1386, %v1379, %v1371
        %v1392 = vsel %vm1386, %v1381, %v1373
        %v1393 = vsel %vm1386, %v1383, %v1375
        %v1394 = vsel %vm1386, %v1385, %v1377
        %s1395 = scalar_lea.vmem [#allocation2], 384
        %v1396 = vld [vmem:[%s1395] sm:$0xff]
        %v1397 = vld [vmem:[%s1395 + $0x8] sm:$0xff]
        %v1398 = vld [vmem:[%s1395 + $0x10] sm:$0xff]
        %v1399 = vld [vmem:[%s1395 + $0x18] sm:$0xff]
        %v1400 = vld [vmem:[%s1395 + $0x20] sm:$0xff]
        %v1401 = vld [vmem:[%s1395 + $0x28] sm:$0xff]
        %v1402 = vld [vmem:[%s1395 + $0x30] sm:$0xff]
        %v1403 = vld [vmem:[%s1395 + $0x38] sm:$0xff]
        %v1404 = vmul.f32 %v1387, %v1396
        %v1405 = vmul.f32 %v1391, %v1397
        %v1406 = vmul.f32 %v1388, %v1398
        %v1407 = vmul.f32 %v1392, %v1399
        %v1408 = vmul.f32 %v1389, %v1400
        %v1409 = vmul.f32 %v1393, %v1401
        %v1410 = vmul.f32 %v1390, %v1402
        %v1411 = vmul.f32 %v1394, %v1403
        %s1412 = scalar_lea.vmem [#allocation5], 192
        %v1413 = vld [vmem:[%s1412] sm:$0xff]
        %v1414 = vld [vmem:[%s1412 + $0x8] sm:$0xff]
        %v1415 = vld [vmem:[%s1412 + $0x10] sm:$0xff]
        %v1416 = vld [vmem:[%s1412 + $0x18] sm:$0xff]
        %v1418 = vsel %vm543, %v1413, 0
        %v1421 = vsel %vm543, %v1414, 0
        %v1424 = vsel %vm543, %v1415, 0
        %v1427 = vsel %vm543, %v1416, 0
        %1429 = vmatprep.subr.mxu0 %v1405
        %1430 = vmatpush1.msra.mxu0 %v1404
        %1431 = vmatprep.subr.mxu0 %v1407
        %1432 = vmatpush1.msra.mxu0 %v1406
        %1433 = vmatprep.subr.mxu0 %v1409
        %1434 = vmatpush1.msra.mxu0 %v1408
        %1435 = vmatprep.subr.mxu0 %v1411
        %1436 = vmatpush1.msra.mxu0 %v1410
        %1437 = vmatprep.subr.mxu0 0.0
        %1438 = vmatpush1.msra.mxu0 0.0
        %1439 = vmatprep.subr.mxu0 0.0
        %1440 = vmatpush1.msra.mxu0 0.0
        %1441 = vmatprep.subr.mxu0 0.0
        %1442 = vmatpush1.msra.mxu0 0.0
        %1443 = vmatprep.subr.mxu0 0.0
        %1444 = vmatpush1.msra.mxu0 0.0
        %1445 = vmatprep.subr.mxu0 0.0
        %1446 = vmatpush1.msra.mxu0 0.0
        %1447 = vmatprep.subr.mxu0 0.0
        %1448 = vmatpush1.msra.mxu0 0.0
        %1449 = vmatprep.subr.mxu0 0.0
        %1450 = vmatpush1.msra.mxu0 0.0
        %1451 = vmatprep.subr.mxu0 0.0
        %1452 = vmatpush1.msra.mxu0 0.0
        %1453 = vmatprep.subr.mxu0 0.0
        %1454 = vmatpush1.msra.mxu0 0.0
        %1455 = vmatprep.subr.mxu0 0.0
        %1456 = vmatpush1.msra.mxu0 0.0
        %1457 = vmatprep.subr.mxu0 0.0
        %1458 = vmatpush1.msra.mxu0 0.0
        %1459 = vmatprep.subr.mxu0 0.0
        %1460 = vmatpush1.msra.mxu0 0.0
        %1461 = vmatprep.subr.mxu0 0.0
        %1462 = vmatpush1.msra.mxu0 0.0
        %1463 = vmatprep.subr.mxu0 0.0
        %1464 = vmatpush1.msra.mxu0 0.0
        %1465 = vmatprep.subr.mxu0 0.0
        %1466 = vmatpush1.msra.mxu0 0.0
        %1467 = vmatprep.subr.mxu0 0.0
        %1468 = vmatpush1.msra.mxu0 0.0
        %1469 = vmatprep.subr.mxu0 0.0
        %1470 = vmatpush1.msra.mxu0 0.0
        %1471 = vmatprep.subr.mxu0 0.0
        %1472 = vmatpush1.msra.mxu0 0.0
        %1473 = vmatprep.subr.mxu0 0.0
        %1474 = vmatpush1.msra.mxu0 0.0
        %1475 = vmatprep.subr.mxu0 0.0
        %1476 = vmatpush1.msra.mxu0 0.0
        %1477 = vmatprep.subr.mxu0 0.0
        %1478 = vmatpush1.msra.mxu0 0.0
        %1479 = vmatprep.subr.mxu0 0.0
        %1480 = vmatpush1.msra.mxu0 0.0
        %1481 = vmatprep.subr.mxu0 0.0
        %1482 = vmatpush1.msra.mxu0 0.0
        %1483 = vmatprep.subr.mxu0 0.0
        %1484 = vmatpush1.msra.mxu0 0.0
        %1485 = vmatprep.subr.mxu0 0.0
        %1486 = vmatpush1.msra.mxu0 0.0
        %1487 = vmatprep.subr.mxu0 0.0
        %1488 = vmatpush1.msra.mxu0 0.0
        %1489 = vmatprep.subr.mxu0 0.0
        %1490 = vmatpush1.msra.mxu0 0.0
        %1491 = vmatprep.subr.mxu0 0.0
        %1492 = vmatpush1.msra.mxu0 0.0
        %1493 = vmatprep.mubr.f32.mxu0 0.0
        %1494 = vmatmul.mubr.f32.gmra.mrb[0].mxu0 %v1418
        %v1495 = vpop.f32.mrb[0].mxu0
        %v1496 = vadd.f32 0.0, %v1495
        %v1497 = vpop.f32.mrb[0].mxu0
        %v1498 = vadd.f32 0.0, %v1497
        %1499 = vmatprep.mubr.f32.mxu0 0.0
        %1500 = vmatmul.mubr.f32.gmra.mrb[0].mxu0 %v1421
        %v1501 = vpop.f32.mrb[0].mxu0
        %v1502 = vadd.f32 0.0, %v1501
        %v1503 = vpop.f32.mrb[0].mxu0
        %v1504 = vadd.f32 0.0, %v1503
        %1505 = vmatprep.mubr.f32.mxu0 0.0
        %1506 = vmatmul.mubr.f32.gmra.mrb[0].mxu0 %v1424
        %v1507 = vpop.f32.mrb[0].mxu0
        %v1508 = vadd.f32 0.0, %v1507
        %v1509 = vpop.f32.mrb[0].mxu0
        %v1510 = vadd.f32 0.0, %v1509
        %1511 = vmatprep.mubr.f32.mxu0 0.0
        %1512 = vmatmul.mubr.f32.gmra.mrb[0].mxu0 %v1427
        %v1513 = vpop.f32.mrb[0].mxu0
        %v1514 = vadd.f32 0.0, %v1513
        %v1515 = vpop.f32.mrb[0].mxu0
        %v1516 = vadd.f32 0.0, %v1515
        %1517 = vdwg.mxu0
        %v1518 = vadd.f32 %v1362, %v1496
        %v1519 = vadd.f32 %v1363, %v1498
        %v1520 = vadd.f32 %v1364, %v1502
        %v1521 = vadd.f32 %v1365, %v1504
        %v1522 = vadd.f32 %v1366, %v1508
        %v1523 = vadd.f32 %v1367, %v1510
        %v1524 = vadd.f32 %v1368, %v1514
        %v1525 = vadd.f32 %v1369, %v1516
        %1526 = vrot.lane.b32.xlu0 %v483, 112
        %v1527 = vpop.permute.xlu0 %1526
        %1528 = vrot.lane.b32.xlu0 %v485, 112
        %v1529 = vpop.permute.xlu0 %1528
        %1530 = vrot.lane.b32.xlu0 %v487, 112
        %v1531 = vpop.permute.xlu0 %1530
        %1532 = vrot.lane.b32.xlu0 %v489, 112
        %v1533 = vpop.permute.xlu0 %1532
        %1534 = vrot.lane.b32.xlu0 %v484, 112
        %v1535 = vpop.permute.xlu0 %1534
        %1536 = vrot.lane.b32.xlu0 %v486, 112
        %v1537 = vpop.permute.xlu0 %1536
        %1538 = vrot.lane.b32.xlu0 %v488, 112
        %v1539 = vpop.permute.xlu0 %1538
        %1540 = vrot.lane.b32.xlu0 %v490, 112
        %v1541 = vpop.permute.xlu0 %1540
        %vm1542 = vcmp.lt.s32.totalorder %v513, 112
        %v1543 = vsel %vm1542, %v1527, %v1535
        %v1544 = vsel %vm1542, %v1529, %v1537
        %v1545 = vsel %vm1542, %v1531, %v1539
        %v1546 = vsel %vm1542, %v1533, %v1541
        %v1547 = vsel %vm1542, %v1535, %v1527
        %v1548 = vsel %vm1542, %v1537, %v1529
        %v1549 = vsel %vm1542, %v1539, %v1531
        %v1550 = vsel %vm1542, %v1541, %v1533
        %s1551 = scalar_lea.vmem [#allocation2], 448
        %v1552 = vld [vmem:[%s1551] sm:$0xff]
        %v1553 = vld [vmem:[%s1551 + $0x8] sm:$0xff]
        %v1554 = vld [vmem:[%s1551 + $0x10] sm:$0xff]
        %v1555 = vld [vmem:[%s1551 + $0x18] sm:$0xff]
        %v1556 = vld [vmem:[%s1551 + $0x20] sm:$0xff]
        %v1557 = vld [vmem:[%s1551 + $0x28] sm:$0xff]
        %v1558 = vld [vmem:[%s1551 + $0x30] sm:$0xff]
        %v1559 = vld [vmem:[%s1551 + $0x38] sm:$0xff]
        %v1560 = vmul.f32 %v1543, %v1552
        %v1561 = vmul.f32 %v1547, %v1553
        %v1562 = vmul.f32 %v1544, %v1554
        %v1563 = vmul.f32 %v1548, %v1555
        %v1564 = vmul.f32 %v1545, %v1556
        %v1565 = vmul.f32 %v1549, %v1557
        %v1566 = vmul.f32 %v1546, %v1558
        %v1567 = vmul.f32 %v1550, %v1559
        %s1568 = scalar_lea.vmem [#allocation5], 224
        %v1569 = vld [vmem:[%s1568] sm:$0xff]
        %v1570 = vld [vmem:[%s1568 + $0x8] sm:$0xff]
        %v1571 = vld [vmem:[%s1568 + $0x10] sm:$0xff]
        %v1572 = vld [vmem:[%s1568 + $0x18] sm:$0xff]
        %v1574 = vsel %vm543, %v1569, 0
        %v1577 = vsel %vm543, %v1570, 0
        %v1580 = vsel %vm543, %v1571, 0
        %v1583 = vsel %vm543, %v1572, 0
        %1585 = vmatprep.subr.mxu0 %v1561
        %1586 = vmatpush1.msra.mxu0 %v1560
        %1587 = vmatprep.subr.mxu0 %v1563
        %1588 = vmatpush1.msra.mxu0 %v1562
        %1589 = vmatprep.subr.mxu0 %v1565
        %1590 = vmatpush1.msra.mxu0 %v1564
        %1591 = vmatprep.subr.mxu0 %v1567
        %1592 = vmatpush1.msra.mxu0 %v1566
        %1593 = vmatprep.subr.mxu0 0.0
        %1594 = vmatpush1.msra.mxu0 0.0
        %1595 = vmatprep.subr.mxu0 0.0
        %1596 = vmatpush1.msra.mxu0 0.0
        %1597 = vmatprep.subr.mxu0 0.0
        %1598 = vmatpush1.msra.mxu0 0.0
        %1599 = vmatprep.subr.mxu0 0.0
        %1600 = vmatpush1.msra.mxu0 0.0
        %1601 = vmatprep.subr.mxu0 0.0
        %1602 = vmatpush1.msra.mxu0 0.0
        %1603 = vmatprep.subr.mxu0 0.0
        %1604 = vmatpush1.msra.mxu0 0.0
        %1605 = vmatprep.subr.mxu0 0.0
        %1606 = vmatpush1.msra.mxu0 0.0
        %1607 = vmatprep.subr.mxu0 0.0
        %1608 = vmatpush1.msra.mxu0 0.0
        %1609 = vmatprep.subr.mxu0 0.0
        %1610 = vmatpush1.msra.mxu0 0.0
        %1611 = vmatprep.subr.mxu0 0.0
        %1612 = vmatpush1.msra.mxu0 0.0
        %1613 = vmatprep.subr.mxu0 0.0
        %1614 = vmatpush1.msra.mxu0 0.0
        %1615 = vmatprep.subr.mxu0 0.0
        %1616 = vmatpush1.msra.mxu0 0.0
        %1617 = vmatprep.subr.mxu0 0.0
        %1618 = vmatpush1.msra.mxu0 0.0
        %1619 = vmatprep.subr.mxu0 0.0
        %1620 = vmatpush1.msra.mxu0 0.0
        %1621 = vmatprep.subr.mxu0 0.0
        %1622 = vmatpush1.msra.mxu0 0.0
        %1623 = vmatprep.subr.mxu0 0.0
        %1624 = vmatpush1.msra.mxu0 0.0
        %1625 = vmatprep.subr.mxu0 0.0
        %1626 = vmatpush1.msra.mxu0 0.0
        %1627 = vmatprep.subr.mxu0 0.0
        %1628 = vmatpush1.msra.mxu0 0.0
        %1629 = vmatprep.subr.mxu0 0.0
        %1630 = vmatpush1.msra.mxu0 0.0
        %1631 = vmatprep.subr.mxu0 0.0
        %1632 = vmatpush1.msra.mxu0 0.0
        %1633 = vmatprep.subr.mxu0 0.0
        %1634 = vmatpush1.msra.mxu0 0.0
        %1635 = vmatprep.subr.mxu0 0.0
        %1636 = vmatpush1.msra.mxu0 0.0
        %1637 = vmatprep.subr.mxu0 0.0
        %1638 = vmatpush1.msra.mxu0 0.0
        %1639 = vmatprep.subr.mxu0 0.0
        %1640 = vmatpush1.msra.mxu0 0.0
        %1641 = vmatprep.subr.mxu0 0.0
        %1642 = vmatpush1.msra.mxu0 0.0
        %1643 = vmatprep.subr.mxu0 0.0
        %1644 = vmatpush1.msra.mxu0 0.0
        %1645 = vmatprep.subr.mxu0 0.0
        %1646 = vmatpush1.msra.mxu0 0.0
        %1647 = vmatprep.subr.mxu0 0.0
        %1648 = vmatpush1.msra.mxu0 0.0
        %1649 = vmatprep.mubr.f32.mxu0 0.0
        %1650 = vmatmul.mubr.f32.gmra.mrb[0].mxu0 %v1574
        %v1651 = vpop.f32.mrb[0].mxu0
        %v1652 = vadd.f32 0.0, %v1651
        %v1653 = vpop.f32.mrb[0].mxu0
        %v1654 = vadd.f32 0.0, %v1653
        %1655 = vmatprep.mubr.f32.mxu0 0.0
        %1656 = vmatmul.mubr.f32.gmra.mrb[0].mxu0 %v1577
        %v1657 = vpop.f32.mrb[0].mxu0
        %v1658 = vadd.f32 0.0, %v1657
        %v1659 = vpop.f32.mrb[0].mxu0
        %v1660 = vadd.f32 0.0, %v1659
        %1661 = vmatprep.mubr.f32.mxu0 0.0
        %1662 = vmatmul.mubr.f32.gmra.mrb[0].mxu0 %v1580
        %v1663 = vpop.f32.mrb[0].mxu0
        %v1664 = vadd.f32 0.0, %v1663
        %v1665 = vpop.f32.mrb[0].mxu0
        %v1666 = vadd.f32 0.0, %v1665
        %1667 = vmatprep.mubr.f32.mxu0 0.0
        %1668 = vmatmul.mubr.f32.gmra.mrb[0].mxu0 %v1583
        %v1669 = vpop.f32.mrb[0].mxu0
        %v1670 = vadd.f32 0.0, %v1669
        %v1671 = vpop.f32.mrb[0].mxu0
        %v1672 = vadd.f32 0.0, %v1671
        %1673 = vdwg.mxu0
        %v1674 = vadd.f32 %v1518, %v1652
        %v1675 = vadd.f32 %v1519, %v1654
        %v1676 = vadd.f32 %v1520, %v1658
        %v1677 = vadd.f32 %v1521, %v1660
        %v1678 = vadd.f32 %v1522, %v1664
        %v1679 = vadd.f32 %v1523, %v1666
        %v1680 = vadd.f32 %v1524, %v1670
        %v1681 = vadd.f32 %v1525, %v1672
        %1682 = vrot.lane.b32.xlu0 %v483, 111
        %v1683 = vpop.permute.xlu0 %1682
        %1684 = vrot.lane.b32.xlu0 %v485, 111
        %v1685 = vpop.permute.xlu0 %1684
        %1686 = vrot.lane.b32.xlu0 %v487, 111
        %v1687 = vpop.permute.xlu0 %1686
        %1688 = vrot.lane.b32.xlu0 %v489, 111
        %v1689 = vpop.permute.xlu0 %1688
        %1690 = vrot.lane.b32.xlu0 %v484, 111
        %v1691 = vpop.permute.xlu0 %1690
        %1692 = vrot.lane.b32.xlu0 %v486, 111
        %v1693 = vpop.permute.xlu0 %1692
        %1694 = vrot.lane.b32.xlu0 %v488, 111
        %v1695 = vpop.permute.xlu0 %1694
        %1696 = vrot.lane.b32.xlu0 %v490, 111
        %v1697 = vpop.permute.xlu0 %1696
        %vm1698 = vcmp.lt.s32.totalorder %v513, 111
        %v1699 = vsel %vm1698, %v1683, %v1691
        %v1700 = vsel %vm1698, %v1685, %v1693
        %v1701 = vsel %vm1698, %v1687, %v1695
        %v1702 = vsel %vm1698, %v1689, %v1697
        %v1703 = vsel %vm1698, %v1691, %v1683
        %v1704 = vsel %vm1698, %v1693, %v1685
        %v1705 = vsel %vm1698, %v1695, %v1687
        %v1706 = vsel %vm1698, %v1697, %v1689
        %s1707 = scalar_lea.vmem [#allocation2], 512
        %v1708 = vld [vmem:[%s1707] sm:$0xff]
        %v1709 = vld [vmem:[%s1707 + $0x8] sm:$0xff]
        %v1710 = vld [vmem:[%s1707 + $0x10] sm:$0xff]
        %v1711 = vld [vmem:[%s1707 + $0x18] sm:$0xff]
        %v1712 = vld [vmem:[%s1707 + $0x20] sm:$0xff]
        %v1713 = vld [vmem:[%s1707 + $0x28] sm:$0xff]
        %v1714 = vld [vmem:[%s1707 + $0x30] sm:$0xff]
        %v1715 = vld [vmem:[%s1707 + $0x38] sm:$0xff]
        %v1716 = vmul.f32 %v1699, %v1708
        %v1717 = vmul.f32 %v1703, %v1709
        %v1718 = vmul.f32 %v1700, %v1710
        %v1719 = vmul.f32 %v1704, %v1711
        %v1720 = vmul.f32 %v1701, %v1712
        %v1721 = vmul.f32 %v1705, %v1713
        %v1722 = vmul.f32 %v1702, %v1714
        %v1723 = vmul.f32 %v1706, %v1715
        %s1724 = scalar_lea.vmem [#allocation5], 256
        %v1725 = vld [vmem:[%s1724] sm:$0xff]
        %v1726 = vld [vmem:[%s1724 + $0x8] sm:$0xff]
        %v1727 = vld [vmem:[%s1724 + $0x10] sm:$0xff]
        %v1728 = vld [vmem:[%s1724 + $0x18] sm:$0xff]
        %v1730 = vsel %vm543, %v1725, 0
        %v1733 = vsel %vm543, %v1726, 0
        %v1736 = vsel %vm543, %v1727, 0
        %v1739 = vsel %vm543, %v1728, 0
        %1741 = vmatprep.subr.mxu0 %v1717
        %1742 = vmatpush1.msra.mxu0 %v1716
        %1743 = vmatprep.subr.mxu0 %v1719
        %1744 = vmatpush1.msra.mxu0 %v1718
        %1745 = vmatprep.subr.mxu0 %v1721
        %1746 = vmatpush1.msra.mxu0 %v1720
        %1747 = vmatprep.subr.mxu0 %v1723
        %1748 = vmatpush1.msra.mxu0 %v1722
        %1749 = vmatprep.subr.mxu0 0.0
        %1750 = vmatpush1.msra.mxu0 0.0
        %1751 = vmatprep.subr.mxu0 0.0
        %1752 = vmatpush1.msra.mxu0 0.0
        %1753 = vmatprep.subr.mxu0 0.0
        %1754 = vmatpush1.msra.mxu0 0.0
        %1755 = vmatprep.subr.mxu0 0.0
        %1756 = vmatpush1.msra.mxu0 0.0
        %1757 = vmatprep.subr.mxu0 0.0
        %1758 = vmatpush1.msra.mxu0 0.0
        %1759 = vmatprep.subr.mxu0 0.0
        %1760 = vmatpush1.msra.mxu0 0.0
        %1761 = vmatprep.subr.mxu0 0.0
        %1762 = vmatpush1.msra.mxu0 0.0
        %1763 = vmatprep.subr.mxu0 0.0
        %1764 = vmatpush1.msra.mxu0 0.0
        %1765 = vmatprep.subr.mxu0 0.0
        %1766 = vmatpush1.msra.mxu0 0.0
        %1767 = vmatprep.subr.mxu0 0.0
        %1768 = vmatpush1.msra.mxu0 0.0
        %1769 = vmatprep.subr.mxu0 0.0
        %1770 = vmatpush1.msra.mxu0 0.0
        %1771 = vmatprep.subr.mxu0 0.0
        %1772 = vmatpush1.msra.mxu0 0.0
        %1773 = vmatprep.subr.mxu0 0.0
        %1774 = vmatpush1.msra.mxu0 0.0
        %1775 = vmatprep.subr.mxu0 0.0
        %1776 = vmatpush1.msra.mxu0 0.0
        %1777 = vmatprep.subr.mxu0 0.0
        %1778 = vmatpush1.msra.mxu0 0.0
        %1779 = vmatprep.subr.mxu0 0.0
        %1780 = vmatpush1.msra.mxu0 0.0
        %1781 = vmatprep.subr.mxu0 0.0
        %1782 = vmatpush1.msra.mxu0 0.0
        %1783 = vmatprep.subr.mxu0 0.0
        %1784 = vmatpush1.msra.mxu0 0.0
        %1785 = vmatprep.subr.mxu0 0.0
        %1786 = vmatpush1.msra.mxu0 0.0
        %1787 = vmatprep.subr.mxu0 0.0
        %1788 = vmatpush1.msra.mxu0 0.0
        %1789 = vmatprep.subr.mxu0 0.0
        %1790 = vmatpush1.msra.mxu0 0.0
        %1791 = vmatprep.subr.mxu0 0.0
        %1792 = vmatpush1.msra.mxu0 0.0
        %1793 = vmatprep.subr.mxu0 0.0
        %1794 = vmatpush1.msra.mxu0 0.0
        %1795 = vmatprep.subr.mxu0 0.0
        %1796 = vmatpush1.msra.mxu0 0.0
        %1797 = vmatprep.subr.mxu0 0.0
        %1798 = vmatpush1.msra.mxu0 0.0
        %1799 = vmatprep.subr.mxu0 0.0
        %1800 = vmatpush1.msra.mxu0 0.0
        %1801 = vmatprep.subr.mxu0 0.0
        %1802 = vmatpush1.msra.mxu0 0.0
        %1803 = vmatprep.subr.mxu0 0.0
        %1804 = vmatpush1.msra.mxu0 0.0
        %1805 = vmatprep.mubr.f32.mxu0 0.0
        %1806 = vmatmul.mubr.f32.gmra.mrb[0].mxu0 %v1730
        %v1807 = vpop.f32.mrb[0].mxu0
        %v1808 = vadd.f32 0.0, %v1807
        %v1809 = vpop.f32.mrb[0].mxu0
        %v1810 = vadd.f32 0.0, %v1809
        %1811 = vmatprep.mubr.f32.mxu0 0.0
        %1812 = vmatmul.mubr.f32.gmra.mrb[0].mxu0 %v1733
        %v1813 = vpop.f32.mrb[0].mxu0
        %v1814 = vadd.f32 0.0, %v1813
        %v1815 = vpop.f32.mrb[0].mxu0
        %v1816 = vadd.f32 0.0, %v1815
        %1817 = vmatprep.mubr.f32.mxu0 0.0
        %1818 = vmatmul.mubr.f32.gmra.mrb[0].mxu0 %v1736
        %v1819 = vpop.f32.mrb[0].mxu0
        %v1820 = vadd.f32 0.0, %v1819
        %v1821 = vpop.f32.mrb[0].mxu0
        %v1822 = vadd.f32 0.0, %v1821
        %1823 = vmatprep.mubr.f32.mxu0 0.0
        %1824 = vmatmul.mubr.f32.gmra.mrb[0].mxu0 %v1739
        %v1825 = vpop.f32.mrb[0].mxu0
        %v1826 = vadd.f32 0.0, %v1825
        %v1827 = vpop.f32.mrb[0].mxu0
        %v1828 = vadd.f32 0.0, %v1827
        %1829 = vdwg.mxu0
        %v1830 = vadd.f32 %v1674, %v1808
        %v1831 = vadd.f32 %v1675, %v1810
        %v1832 = vadd.f32 %v1676, %v1814
        %v1833 = vadd.f32 %v1677, %v1816
        %v1834 = vadd.f32 %v1678, %v1820
        %v1835 = vadd.f32 %v1679, %v1822
        %v1836 = vadd.f32 %v1680, %v1826
        %v1837 = vadd.f32 %v1681, %v1828
        %v1838 = vld [vmem:[%s5] sm:$0xff]
        %v1839 = vld [vmem:[%s5 + $0x8] sm:$0xff]
        %v1840 = vld [vmem:[%s5 + $0x10] sm:$0xff]
        %v1841 = vld [vmem:[%s5 + $0x18] sm:$0xff]
        %1843 = vset.pattern.permute.xlu0 0
        %1844 = vperm.xlu0 %1843, %v1838
        %v1845 = vpop.permute.xlu0 %1844
        %1848 = vset.pattern.permute.xlu0 0
        %1849 = vperm.xlu0 %1848, %v1839
        %v1850 = vpop.permute.xlu0 %1849
        %1853 = vset.pattern.permute.xlu0 0
        %1854 = vperm.xlu0 %1853, %v1840
        %v1855 = vpop.permute.xlu0 %1854
        %1858 = vset.pattern.permute.xlu0 0
        %1859 = vperm.xlu0 %1858, %v1841
        %v1860 = vpop.permute.xlu0 %1859
        %v1862 = vmul.f32 %v1830, %v1845
        %v1863 = vmul.f32 %v1831, %v1845
        %v1864 = vmul.f32 %v1832, %v1850
        %v1865 = vmul.f32 %v1833, %v1850
        %v1866 = vmul.f32 %v1834, %v1855
        %v1867 = vmul.f32 %v1835, %v1855
        %v1868 = vmul.f32 %v1836, %v1860
        %v1869 = vmul.f32 %v1837, %v1860
        %v1870 = vld [vmem:[%s6] sm:$0xff]
        %v1871 = vld [vmem:[%s6 + $0x8] sm:$0xff]
        %v1872 = vld [vmem:[%s6 + $0x10] sm:$0xff]
        %v1873 = vld [vmem:[%s6 + $0x18] sm:$0xff]
        %1875 = vset.pattern.permute.xlu0 0
        %1876 = vperm.xlu0 %1875, %v1870
        %v1877 = vpop.permute.xlu0 %1876
        %1880 = vset.pattern.permute.xlu0 0
        %1881 = vperm.xlu0 %1880, %v1871
        %v1882 = vpop.permute.xlu0 %1881
        %1885 = vset.pattern.permute.xlu0 0
        %1886 = vperm.xlu0 %1885, %v1872
        %v1887 = vpop.permute.xlu0 %1886
        %1890 = vset.pattern.permute.xlu0 0
        %1891 = vperm.xlu0 %1890, %v1873
        %v1892 = vpop.permute.xlu0 %1891
        %v1894 = vadd.f32 %v1862, %v1877
        %v1895 = vadd.f32 %v1863, %v1877
        %v1896 = vadd.f32 %v1864, %v1882
        %v1897 = vadd.f32 %v1865, %v1882
        %v1898 = vadd.f32 %v1866, %v1887
        %v1899 = vadd.f32 %v1867, %v1887
        %v1900 = vadd.f32 %v1868, %v1892
        %v1901 = vadd.f32 %v1869, %v1892
        %v1902 = vmax.f32 %v1894, 0.0
        %v1903 = vmax.f32 %v1895, 0.0
        %v1904 = vmax.f32 %v1896, 0.0
        %v1905 = vmax.f32 %v1897, 0.0
        %v1906 = vmax.f32 %v1898, 0.0
        %v1907 = vmax.f32 %v1899, 0.0
        %v1908 = vmax.f32 %v1900, 0.0
        %v1909 = vmax.f32 %v1901, 0.0
        %s1910 = scalar_lea.vmem [#allocation7], 128
        %v1911 = vld [vmem:[%s1910] sm:$0xff]
        %v1912 = vld [vmem:[%s1910 + $0x8] sm:$0xff]
        %v1913 = vld [vmem:[%s1910 + $0x10] sm:$0xff]
        %v1914 = vld [vmem:[%s1910 + $0x18] sm:$0xff]
        %1915 = vrot.lane.b32.xlu0 %v1902, 17
        %v1916 = vpop.permute.xlu0 %1915
        %1917 = vrot.lane.b32.xlu0 %v1904, 17
        %v1918 = vpop.permute.xlu0 %1917
        %1919 = vrot.lane.b32.xlu0 %v1906, 17
        %v1920 = vpop.permute.xlu0 %1919
        %1921 = vrot.lane.b32.xlu0 %v1908, 17
        %v1922 = vpop.permute.xlu0 %1921
        %1923 = vrot.lane.b32.xlu0 %v1903, 17
        %v1924 = vpop.permute.xlu0 %1923
        %1925 = vrot.lane.b32.xlu0 %v1905, 17
        %v1926 = vpop.permute.xlu0 %1925
        %1927 = vrot.lane.b32.xlu0 %v1907, 17
        %v1928 = vpop.permute.xlu0 %1927
        %1929 = vrot.lane.b32.xlu0 %v1909, 17
        %v1930 = vpop.permute.xlu0 %1929
        %v1931 = vsel %vm514, %v1916, %v1924
        %v1932 = vsel %vm514, %v1918, %v1926
        %v1933 = vsel %vm514, %v1920, %v1928
        %v1934 = vsel %vm514, %v1922, %v1930
        %v1935 = vsel %vm514, %v1924, %v1916
        %v1936 = vsel %vm514, %v1926, %v1918
        %v1937 = vsel %vm514, %v1928, %v1920
        %v1938 = vsel %vm514, %v1930, %v1922
        %v1939 = vmul.f32 %v1935, %v523
        %v1940 = vmul.f32 %v1931, %v524
        %v1941 = vmul.f32 %v1936, %v525
        %v1942 = vmul.f32 %v1932, %v526
        %v1943 = vmul.f32 %v1937, %v527
        %v1944 = vmul.f32 %v1933, %v528
        %v1945 = vmul.f32 %v1938, %v529
        %v1946 = vmul.f32 %v1934, %v530
        %v1947 = vld [vmem:[#allocation7] sm:$0xff]
        %v1948 = vld [vmem:[#allocation7 + $0x8] sm:$0xff]
        %v1949 = vld [vmem:[#allocation7 + $0x10] sm:$0xff]
        %v1950 = vld [vmem:[#allocation7 + $0x18] sm:$0xff]
        %v1952 = vsel %vm543, %v1947, 0
        %v1955 = vsel %vm543, %v1948, 0
        %v1958 = vsel %vm543, %v1949, 0
        %v1961 = vsel %vm543, %v1950, 0
        %1963 = vmatprep.subr.mxu0 %v1940
        %1964 = vmatpush1.msra.mxu0 %v1939
        %1965 = vmatprep.subr.mxu0 %v1942
        %1966 = vmatpush1.msra.mxu0 %v1941
        %1967 = vmatprep.subr.mxu0 %v1944
        %1968 = vmatpush1.msra.mxu0 %v1943
        %1969 = vmatprep.subr.mxu0 %v1946
        %1970 = vmatpush1.msra.mxu0 %v1945
        %1971 = vmatprep.subr.mxu0 0.0
        %1972 = vmatpush1.msra.mxu0 0.0
        %1973 = vmatprep.subr.mxu0 0.0
        %1974 = vmatpush1.msra.mxu0 0.0
        %1975 = vmatprep.subr.mxu0 0.0
        %1976 = vmatpush1.msra.mxu0 0.0
        %1977 = vmatprep.subr.mxu0 0.0
        %1978 = vmatpush1.msra.mxu0 0.0
        %1979 = vmatprep.subr.mxu0 0.0
        %1980 = vmatpush1.msra.mxu0 0.0
        %1981 = vmatprep.subr.mxu0 0.0
        %1982 = vmatpush1.msra.mxu0 0.0
        %1983 = vmatprep.subr.mxu0 0.0
        %1984 = vmatpush1.msra.mxu0 0.0
        %1985 = vmatprep.subr.mxu0 0.0
        %1986 = vmatpush1.msra.mxu0 0.0
        %1987 = vmatprep.subr.mxu0 0.0
        %1988 = vmatpush1.msra.mxu0 0.0
        %1989 = vmatprep.subr.mxu0 0.0
        %1990 = vmatpush1.msra.mxu0 0.0
        %1991 = vmatprep.subr.mxu0 0.0
        %1992 = vmatpush1.msra.mxu0 0.0
        %1993 = vmatprep.subr.mxu0 0.0
        %1994 = vmatpush1.msra.mxu0 0.0
        %1995 = vmatprep.subr.mxu0 0.0
        %1996 = vmatpush1.msra.mxu0 0.0
        %1997 = vmatprep.subr.mxu0 0.0
        %1998 = vmatpush1.msra.mxu0 0.0
        %1999 = vmatprep.subr.mxu0 0.0
        %2000 = vmatpush1.msra.mxu0 0.0
        %2001 = vmatprep.subr.mxu0 0.0
        %2002 = vmatpush1.msra.mxu0 0.0
        %2003 = vmatprep.subr.mxu0 0.0
        %2004 = vmatpush1.msra.mxu0 0.0
        %2005 = vmatprep.subr.mxu0 0.0
        %2006 = vmatpush1.msra.mxu0 0.0
        %2007 = vmatprep.subr.mxu0 0.0
        %2008 = vmatpush1.msra.mxu0 0.0
        %2009 = vmatprep.subr.mxu0 0.0
        %2010 = vmatpush1.msra.mxu0 0.0
        %2011 = vmatprep.subr.mxu0 0.0
        %2012 = vmatpush1.msra.mxu0 0.0
        %2013 = vmatprep.subr.mxu0 0.0
        %2014 = vmatpush1.msra.mxu0 0.0
        %2015 = vmatprep.subr.mxu0 0.0
        %2016 = vmatpush1.msra.mxu0 0.0
        %2017 = vmatprep.subr.mxu0 0.0
        %2018 = vmatpush1.msra.mxu0 0.0
        %2019 = vmatprep.subr.mxu0 0.0
        %2020 = vmatpush1.msra.mxu0 0.0
        %2021 = vmatprep.subr.mxu0 0.0
        %2022 = vmatpush1.msra.mxu0 0.0
        %2023 = vmatprep.subr.mxu0 0.0
        %2024 = vmatpush1.msra.mxu0 0.0
        %2025 = vmatprep.subr.mxu0 0.0
        %2026 = vmatpush1.msra.mxu0 0.0
        %2027 = vmatprep.mubr.f32.mxu0 0.0
        %2028 = vmatmul.mubr.f32.gmra.mrb[0].mxu0 %v1952
        %v2029 = vpop.f32.mrb[0].mxu0
        %v2030 = vadd.f32 0.0, %v2029
        %v2031 = vpop.f32.mrb[0].mxu0
        %v2032 = vadd.f32 0.0, %v2031
        %2033 = vmatprep.mubr.f32.mxu0 0.0
        %2034 = vmatmul.mubr.f32.gmra.mrb[0].mxu0 %v1955
        %v2035 = vpop.f32.mrb[0].mxu0
        %v2036 = vadd.f32 0.0, %v2035
        %v2037 = vpop.f32.mrb[0].mxu0
        %v2038 = vadd.f32 0.0, %v2037
        %2039 = vmatprep.mubr.f32.mxu0 0.0
        %2040 = vmatmul.mubr.f32.gmra.mrb[0].mxu0 %v1958
        %v2041 = vpop.f32.mrb[0].mxu0
        %v2042 = vadd.f32 0.0, %v2041
        %v2043 = vpop.f32.mrb[0].mxu0
        %v2044 = vadd.f32 0.0, %v2043
        %2045 = vmatprep.mubr.f32.mxu0 0.0
        %2046 = vmatmul.mubr.f32.gmra.mrb[0].mxu0 %v1961
        %v2047 = vpop.f32.mrb[0].mxu0
        %v2048 = vadd.f32 0.0, %v2047
        %v2049 = vpop.f32.mrb[0].mxu0
        %v2050 = vadd.f32 0.0, %v2049
        %2051 = vdwg.mxu0
        %v2053 = vsel %vm543, %v1911, 0
        %v2056 = vsel %vm543, %v1912, 0
        %v2059 = vsel %vm543, %v1913, 0
        %v2062 = vsel %vm543, %v1914, 0
        %2064 = vmatprep.subr.mxu0 %v1903
        %2065 = vmatpush1.msra.mxu0 %v1902
        %2066 = vmatprep.subr.mxu0 %v1905
        %2067 = vmatpush1.msra.mxu0 %v1904
        %2068 = vmatprep.subr.mxu0 %v1907
        %2069 = vmatpush1.msra.mxu0 %v1906
        %2070 = vmatprep.subr.mxu0 %v1909
        %2071 = vmatpush1.msra.mxu0 %v1908
        %2072 = vmatprep.subr.mxu0 0.0
        %2073 = vmatpush1.msra.mxu0 0.0
        %2074 = vmatprep.subr.mxu0 0.0
        %2075 = vmatpush1.msra.mxu0 0.0
        %2076 = vmatprep.subr.mxu0 0.0
        %2077 = vmatpush1.msra.mxu0 0.0
        %2078 = vmatprep.subr.mxu0 0.0
        %2079 = vmatpush1.msra.mxu0 0.0
        %2080 = vmatprep.subr.mxu0 0.0
        %2081 = vmatpush1.msra.mxu0 0.0
        %2082 = vmatprep.subr.mxu0 0.0
        %2083 = vmatpush1.msra.mxu0 0.0
        %2084 = vmatprep.subr.mxu0 0.0
        %2085 = vmatpush1.msra.mxu0 0.0
        %2086 = vmatprep.subr.mxu0 0.0
        %2087 = vmatpush1.msra.mxu0 0.0
        %2088 = vmatprep.subr.mxu0 0.0
        %2089 = vmatpush1.msra.mxu0 0.0
        %2090 = vmatprep.subr.mxu0 0.0
        %2091 = vmatpush1.msra.mxu0 0.0
        %2092 = vmatprep.subr.mxu0 0.0
        %2093 = vmatpush1.msra.mxu0 0.0
        %2094 = vmatprep.subr.mxu0 0.0
        %2095 = vmatpush1.msra.mxu0 0.0
        %2096 = vmatprep.subr.mxu0 0.0
        %2097 = vmatpush1.msra.mxu0 0.0
        %2098 = vmatprep.subr.mxu0 0.0
        %2099 = vmatpush1.msra.mxu0 0.0
        %2100 = vmatprep.subr.mxu0 0.0
        %2101 = vmatpush1.msra.mxu0 0.0
        %2102 = vmatprep.subr.mxu0 0.0
        %2103 = vmatpush1.msra.mxu0 0.0
        %2104 = vmatprep.subr.mxu0 0.0
        %2105 = vmatpush1.msra.mxu0 0.0
        %2106 = vmatprep.subr.mxu0 0.0
        %2107 = vmatpush1.msra.mxu0 0.0
        %2108 = vmatprep.subr.mxu0 0.0
        %2109 = vmatpush1.msra.mxu0 0.0
        %2110 = vmatprep.subr.mxu0 0.0
        %2111 = vmatpush1.msra.mxu0 0.0
        %2112 = vmatprep.subr.mxu0 0.0
        %2113 = vmatpush1.msra.mxu0 0.0
        %2114 = vmatprep.subr.mxu0 0.0
        %2115 = vmatpush1.msra.mxu0 0.0
        %2116 = vmatprep.subr.mxu0 0.0
        %2117 = vmatpush1.msra.mxu0 0.0
        %2118 = vmatprep.subr.mxu0 0.0
        %2119 = vmatpush1.msra.mxu0 0.0
        %2120 = vmatprep.subr.mxu0 0.0
        %2121 = vmatpush1.msra.mxu0 0.0
        %2122 = vmatprep.subr.mxu0 0.0
        %2123 = vmatpush1.msra.mxu0 0.0
        %2124 = vmatprep.subr.mxu0 0.0
        %2125 = vmatpush1.msra.mxu0 0.0
        %2126 = vmatprep.subr.mxu0 0.0
        %2127 = vmatpush1.msra.mxu0 0.0
        %2128 = vmatprep.mubr.f32.mxu0 0.0
        %2129 = vmatmul.mubr.f32.gmra.mrb[0].mxu0 %v2053
        %v2130 = vpop.f32.mrb[0].mxu0
        %v2131 = vadd.f32 %v2030, %v2130
        %v2132 = vpop.f32.mrb[0].mxu0
        %v2133 = vadd.f32 %v2032, %v2132
        %2134 = vmatprep.mubr.f32.mxu0 0.0
        %2135 = vmatmul.mubr.f32.gmra.mrb[0].mxu0 %v2056
        %v2136 = vpop.f32.mrb[0].mxu0
        %v2137 = vadd.f32 %v2036, %v2136
        %v2138 = vpop.f32.mrb[0].mxu0
        %v2139 = vadd.f32 %v2038, %v2138
        %2140 = vmatprep.mubr.f32.mxu0 0.0
        %2141 = vmatmul.mubr.f32.gmra.mrb[0].mxu0 %v2059
        %v2142 = vpop.f32.mrb[0].mxu0
        %v2143 = vadd.f32 %v2042, %v2142
        %v2144 = vpop.f32.mrb[0].mxu0
        %v2145 = vadd.f32 %v2044, %v2144
        %2146 = vmatprep.mubr.f32.mxu0 0.0
        %2147 = vmatmul.mubr.f32.gmra.mrb[0].mxu0 %v2062
        %v2148 = vpop.f32.mrb[0].mxu0
        %v2149 = vadd.f32 %v2048, %v2148
        %v2150 = vpop.f32.mrb[0].mxu0
        %v2151 = vadd.f32 %v2050, %v2150
        %2152 = vdwg.mxu0
        %2153 = vrot.lane.b32.xlu0 %v1902, 16
        %v2154 = vpop.permute.xlu0 %2153
        %2155 = vrot.lane.b32.xlu0 %v1904, 16
        %v2156 = vpop.permute.xlu0 %2155
        %2157 = vrot.lane.b32.xlu0 %v1906, 16
        %v2158 = vpop.permute.xlu0 %2157
        %2159 = vrot.lane.b32.xlu0 %v1908, 16
        %v2160 = vpop.permute.xlu0 %2159
        %2161 = vrot.lane.b32.xlu0 %v1903, 16
        %v2162 = vpop.permute.xlu0 %2161
        %2163 = vrot.lane.b32.xlu0 %v1905, 16
        %v2164 = vpop.permute.xlu0 %2163
        %2165 = vrot.lane.b32.xlu0 %v1907, 16
        %v2166 = vpop.permute.xlu0 %2165
        %2167 = vrot.lane.b32.xlu0 %v1909, 16
        %v2168 = vpop.permute.xlu0 %2167
        %v2169 = vsel %vm762, %v2154, %v2162
        %v2170 = vsel %vm762, %v2156, %v2164
        %v2171 = vsel %vm762, %v2158, %v2166
        %v2172 = vsel %vm762, %v2160, %v2168
        %v2173 = vsel %vm762, %v2162, %v2154
        %v2174 = vsel %vm762, %v2164, %v2156
        %v2175 = vsel %vm762, %v2166, %v2158
        %v2176 = vsel %vm762, %v2168, %v2160
        %v2177 = vmul.f32 %v2173, %v772
        %v2178 = vmul.f32 %v2169, %v773
        %v2179 = vmul.f32 %v2174, %v774
        %v2180 = vmul.f32 %v2170, %v775
        %v2181 = vmul.f32 %v2175, %v776
        %v2182 = vmul.f32 %v2171, %v777
        %v2183 = vmul.f32 %v2176, %v778
        %v2184 = vmul.f32 %v2172, %v779
        %s2185 = scalar_lea.vmem [#allocation7], 32
        %v2186 = vld [vmem:[%s2185] sm:$0xff]
        %v2187 = vld [vmem:[%s2185 + $0x8] sm:$0xff]
        %v2188 = vld [vmem:[%s2185 + $0x10] sm:$0xff]
        %v2189 = vld [vmem:[%s2185 + $0x18] sm:$0xff]
        %v2191 = vsel %vm543, %v2186, 0
        %v2194 = vsel %vm543, %v2187, 0
        %v2197 = vsel %vm543, %v2188, 0
        %v2200 = vsel %vm543, %v2189, 0
        %2202 = vmatprep.subr.mxu0 %v2178
        %2203 = vmatpush1.msra.mxu0 %v2177
        %2204 = vmatprep.subr.mxu0 %v2180
        %2205 = vmatpush1.msra.mxu0 %v2179
        %2206 = vmatprep.subr.mxu0 %v2182
        %2207 = vmatpush1.msra.mxu0 %v2181
        %2208 = vmatprep.subr.mxu0 %v2184
        %2209 = vmatpush1.msra.mxu0 %v2183
        %2210 = vmatprep.subr.mxu0 0.0
        %2211 = vmatpush1.msra.mxu0 0.0
        %2212 = vmatprep.subr.mxu0 0.0
        %2213 = vmatpush1.msra.mxu0 0.0
        %2214 = vmatprep.subr.mxu0 0.0
        %2215 = vmatpush1.msra.mxu0 0.0
        %2216 = vmatprep.subr.mxu0 0.0
        %2217 = vmatpush1.msra.mxu0 0.0
        %2218 = vmatprep.subr.mxu0 0.0
        %2219 = vmatpush1.msra.mxu0 0.0
        %2220 = vmatprep.subr.mxu0 0.0
        %2221 = vmatpush1.msra.mxu0 0.0
        %2222 = vmatprep.subr.mxu0 0.0
        %2223 = vmatpush1.msra.mxu0 0.0
        %2224 = vmatprep.subr.mxu0 0.0
        %2225 = vmatpush1.msra.mxu0 0.0
        %2226 = vmatprep.subr.mxu0 0.0
        %2227 = vmatpush1.msra.mxu0 0.0
        %2228 = vmatprep.subr.mxu0 0.0
        %2229 = vmatpush1.msra.mxu0 0.0
        %2230 = vmatprep.subr.mxu0 0.0
        %2231 = vmatpush1.msra.mxu0 0.0
        %2232 = vmatprep.subr.mxu0 0.0
        %2233 = vmatpush1.msra.mxu0 0.0
        %2234 = vmatprep.subr.mxu0 0.0
        %2235 = vmatpush1.msra.mxu0 0.0
        %2236 = vmatprep.subr.mxu0 0.0
        %2237 = vmatpush1.msra.mxu0 0.0
        %2238 = vmatprep.subr.mxu0 0.0
        %2239 = vmatpush1.msra.mxu0 0.0
        %2240 = vmatprep.subr.mxu0 0.0
        %2241 = vmatpush1.msra.mxu0 0.0
        %2242 = vmatprep.subr.mxu0 0.0
        %2243 = vmatpush1.msra.mxu0 0.0
        %2244 = vmatprep.subr.mxu0 0.0
        %2245 = vmatpush1.msra.mxu0 0.0
        %2246 = vmatprep.subr.mxu0 0.0
        %2247 = vmatpush1.msra.mxu0 0.0
        %2248 = vmatprep.subr.mxu0 0.0
        %2249 = vmatpush1.msra.mxu0 0.0
        %2250 = vmatprep.subr.mxu0 0.0
        %2251 = vmatpush1.msra.mxu0 0.0
        %2252 = vmatprep.subr.mxu0 0.0
        %2253 = vmatpush1.msra.mxu0 0.0
        %2254 = vmatprep.subr.mxu0 0.0
        %2255 = vmatpush1.msra.mxu0 0.0
        %2256 = vmatprep.subr.mxu0 0.0
        %2257 = vmatpush1.msra.mxu0 0.0
        %2258 = vmatprep.subr.mxu0 0.0
        %2259 = vmatpush1.msra.mxu0 0.0
        %2260 = vmatprep.subr.mxu0 0.0
        %2261 = vmatpush1.msra.mxu0 0.0
        %2262 = vmatprep.subr.mxu0 0.0
        %2263 = vmatpush1.msra.mxu0 0.0
        %2264 = vmatprep.subr.mxu0 0.0
        %2265 = vmatpush1.msra.mxu0 0.0
        %2266 = vmatprep.mubr.f32.mxu0 0.0
        %2267 = vmatmul.mubr.f32.gmra.mrb[0].mxu0 %v2191
        %v2268 = vpop.f32.mrb[0].mxu0
        %v2269 = vadd.f32 0.0, %v2268
        %v2270 = vpop.f32.mrb[0].mxu0
        %v2271 = vadd.f32 0.0, %v2270
        %2272 = vmatprep.mubr.f32.mxu0 0.0
        %2273 = vmatmul.mubr.f32.gmra.mrb[0].mxu0 %v2194
        %v2274 = vpop.f32.mrb[0].mxu0
        %v2275 = vadd.f32 0.0, %v2274
        %v2276 = vpop.f32.mrb[0].mxu0
        %v2277 = vadd.f32 0.0, %v2276
        %2278 = vmatprep.mubr.f32.mxu0 0.0
        %2279 = vmatmul.mubr.f32.gmra.mrb[0].mxu0 %v2197
        %v2280 = vpop.f32.mrb[0].mxu0
        %v2281 = vadd.f32 0.0, %v2280
        %v2282 = vpop.f32.mrb[0].mxu0
        %v2283 = vadd.f32 0.0, %v2282
        %2284 = vmatprep.mubr.f32.mxu0 0.0
        %2285 = vmatmul.mubr.f32.gmra.mrb[0].mxu0 %v2200
        %v2286 = vpop.f32.mrb[0].mxu0
        %v2287 = vadd.f32 0.0, %v2286
        %v2288 = vpop.f32.mrb[0].mxu0
        %v2289 = vadd.f32 0.0, %v2288
        %2290 = vdwg.mxu0
        %v2291 = vadd.f32 %v2131, %v2269
        %v2292 = vadd.f32 %v2133, %v2271
        %v2293 = vadd.f32 %v2137, %v2275
        %v2294 = vadd.f32 %v2139, %v2277
        %v2295 = vadd.f32 %v2143, %v2281
        %v2296 = vadd.f32 %v2145, %v2283
        %v2297 = vadd.f32 %v2149, %v2287
        %v2298 = vadd.f32 %v2151, %v2289
        %2299 = vrot.lane.b32.xlu0 %v1902, 15
        %v2300 = vpop.permute.xlu0 %2299
        %2301 = vrot.lane.b32.xlu0 %v1904, 15
        %v2302 = vpop.permute.xlu0 %2301
        %2303 = vrot.lane.b32.xlu0 %v1906, 15
        %v2304 = vpop.permute.xlu0 %2303
        %2305 = vrot.lane.b32.xlu0 %v1908, 15
        %v2306 = vpop.permute.xlu0 %2305
        %2307 = vrot.lane.b32.xlu0 %v1903, 15
        %v2308 = vpop.permute.xlu0 %2307
        %2309 = vrot.lane.b32.xlu0 %v1905, 15
        %v2310 = vpop.permute.xlu0 %2309
        %2311 = vrot.lane.b32.xlu0 %v1907, 15
        %v2312 = vpop.permute.xlu0 %2311
        %2313 = vrot.lane.b32.xlu0 %v1909, 15
        %v2314 = vpop.permute.xlu0 %2313
        %v2315 = vsel %vm918, %v2300, %v2308
        %v2316 = vsel %vm918, %v2302, %v2310
        %v2317 = vsel %vm918, %v2304, %v2312
        %v2318 = vsel %vm918, %v2306, %v2314
        %v2319 = vsel %vm918, %v2308, %v2300
        %v2320 = vsel %vm918, %v2310, %v2302
        %v2321 = vsel %vm918, %v2312, %v2304
        %v2322 = vsel %vm918, %v2314, %v2306
        %v2323 = vmul.f32 %v2319, %v928
        %v2324 = vmul.f32 %v2315, %v929
        %v2325 = vmul.f32 %v2320, %v930
        %v2326 = vmul.f32 %v2316, %v931
        %v2327 = vmul.f32 %v2321, %v932
        %v2328 = vmul.f32 %v2317, %v933
        %v2329 = vmul.f32 %v2322, %v934
        %v2330 = vmul.f32 %v2318, %v935
        %s2331 = scalar_lea.vmem [#allocation7], 64
        %v2332 = vld [vmem:[%s2331] sm:$0xff]
        %v2333 = vld [vmem:[%s2331 + $0x8] sm:$0xff]
        %v2334 = vld [vmem:[%s2331 + $0x10] sm:$0xff]
        %v2335 = vld [vmem:[%s2331 + $0x18] sm:$0xff]
        %v2337 = vsel %vm543, %v2332, 0
        %v2340 = vsel %vm543, %v2333, 0
        %v2343 = vsel %vm543, %v2334, 0
        %v2346 = vsel %vm543, %v2335, 0
        %2348 = vmatprep.subr.mxu0 %v2324
        %2349 = vmatpush1.msra.mxu0 %v2323
        %2350 = vmatprep.subr.mxu0 %v2326
        %2351 = vmatpush1.msra.mxu0 %v2325
        %2352 = vmatprep.subr.mxu0 %v2328
        %2353 = vmatpush1.msra.mxu0 %v2327
        %2354 = vmatprep.subr.mxu0 %v2330
        %2355 = vmatpush1.msra.mxu0 %v2329
        %2356 = vmatprep.subr.mxu0 0.0
        %2357 = vmatpush1.msra.mxu0 0.0
        %2358 = vmatprep.subr.mxu0 0.0
        %2359 = vmatpush1.msra.mxu0 0.0
        %2360 = vmatprep.subr.mxu0 0.0
        %2361 = vmatpush1.msra.mxu0 0.0
        %2362 = vmatprep.subr.mxu0 0.0
        %2363 = vmatpush1.msra.mxu0 0.0
        %2364 = vmatprep.subr.mxu0 0.0
        %2365 = vmatpush1.msra.mxu0 0.0
        %2366 = vmatprep.subr.mxu0 0.0
        %2367 = vmatpush1.msra.mxu0 0.0
        %2368 = vmatprep.subr.mxu0 0.0
        %2369 = vmatpush1.msra.mxu0 0.0
        %2370 = vmatprep.subr.mxu0 0.0
        %2371 = vmatpush1.msra.mxu0 0.0
        %2372 = vmatprep.subr.mxu0 0.0
        %2373 = vmatpush1.msra.mxu0 0.0
        %2374 = vmatprep.subr.mxu0 0.0
        %2375 = vmatpush1.msra.mxu0 0.0
        %2376 = vmatprep.subr.mxu0 0.0
        %2377 = vmatpush1.msra.mxu0 0.0
        %2378 = vmatprep.subr.mxu0 0.0
        %2379 = vmatpush1.msra.mxu0 0.0
        %2380 = vmatprep.subr.mxu0 0.0
        %2381 = vmatpush1.msra.mxu0 0.0
        %2382 = vmatprep.subr.mxu0 0.0
        %2383 = vmatpush1.msra.mxu0 0.0
        %2384 = vmatprep.subr.mxu0 0.0
        %2385 = vmatpush1.msra.mxu0 0.0
        %2386 = vmatprep.subr.mxu0 0.0
        %2387 = vmatpush1.msra.mxu0 0.0
        %2388 = vmatprep.subr.mxu0 0.0
        %2389 = vmatpush1.msra.mxu0 0.0
        %2390 = vmatprep.subr.mxu0 0.0
        %2391 = vmatpush1.msra.mxu0 0.0
        %2392 = vmatprep.subr.mxu0 0.0
        %2393 = vmatpush1.msra.mxu0 0.0
        %2394 = vmatprep.subr.mxu0 0.0
        %2395 = vmatpush1.msra.mxu0 0.0
        %2396 = vmatprep.subr.mxu0 0.0
        %2397 = vmatpush1.msra.mxu0 0.0
        %2398 = vmatprep.subr.mxu0 0.0
        %2399 = vmatpush1.msra.mxu0 0.0
        %2400 = vmatprep.subr.mxu0 0.0
        %2401 = vmatpush1.msra.mxu0 0.0
        %2402 = vmatprep.subr.mxu0 0.0
        %2403 = vmatpush1.msra.mxu0 0.0
        %2404 = vmatprep.subr.mxu0 0.0
        %2405 = vmatpush1.msra.mxu0 0.0
        %2406 = vmatprep.subr.mxu0 0.0
        %2407 = vmatpush1.msra.mxu0 0.0
        %2408 = vmatprep.subr.mxu0 0.0
        %2409 = vmatpush1.msra.mxu0 0.0
        %2410 = vmatprep.subr.mxu0 0.0
        %2411 = vmatpush1.msra.mxu0 0.0
        %2412 = vmatprep.mubr.f32.mxu0 0.0
        %2413 = vmatmul.mubr.f32.gmra.mrb[0].mxu0 %v2337
        %v2414 = vpop.f32.mrb[0].mxu0
        %v2415 = vadd.f32 0.0, %v2414
        %v2416 = vpop.f32.mrb[0].mxu0
        %v2417 = vadd.f32 0.0, %v2416
        %2418 = vmatprep.mubr.f32.mxu0 0.0
        %2419 = vmatmul.mubr.f32.gmra.mrb[0].mxu0 %v2340
        %v2420 = vpop.f32.mrb[0].mxu0
        %v2421 = vadd.f32 0.0, %v2420
        %v2422 = vpop.f32.mrb[0].mxu0
        %v2423 = vadd.f32 0.0, %v2422
        %2424 = vmatprep.mubr.f32.mxu0 0.0
        %2425 = vmatmul.mubr.f32.gmra.mrb[0].mxu0 %v2343
        %v2426 = vpop.f32.mrb[0].mxu0
        %v2427 = vadd.f32 0.0, %v2426
        %v2428 = vpop.f32.mrb[0].mxu0
        %v2429 = vadd.f32 0.0, %v2428
        %2430 = vmatprep.mubr.f32.mxu0 0.0
        %2431 = vmatmul.mubr.f32.gmra.mrb[0].mxu0 %v2346
        %v2432 = vpop.f32.mrb[0].mxu0
        %v2433 = vadd.f32 0.0, %v2432
        %v2434 = vpop.f32.mrb[0].mxu0
        %v2435 = vadd.f32 0.0, %v2434
        %2436 = vdwg.mxu0
        %v2437 = vadd.f32 %v2291, %v2415
        %v2438 = vadd.f32 %v2292, %v2417
        %v2439 = vadd.f32 %v2293, %v2421
        %v2440 = vadd.f32 %v2294, %v2423
        %v2441 = vadd.f32 %v2295, %v2427
        %v2442 = vadd.f32 %v2296, %v2429
        %v2443 = vadd.f32 %v2297, %v2433
        %v2444 = vadd.f32 %v2298, %v2435
        %2445 = vrot.lane.b32.xlu0 %v1902, 1
        %v2446 = vpop.permute.xlu0 %2445
        %2447 = vrot.lane.b32.xlu0 %v1904, 1
        %v2448 = vpop.permute.xlu0 %2447
        %2449 = vrot.lane.b32.xlu0 %v1906, 1
        %v2450 = vpop.permute.xlu0 %2449
        %2451 = vrot.lane.b32.xlu0 %v1908, 1
        %v2452 = vpop.permute.xlu0 %2451
        %2453 = vrot.lane.b32.xlu0 %v1903, 1
        %v2454 = vpop.permute.xlu0 %2453
        %2455 = vrot.lane.b32.xlu0 %v1905, 1
        %v2456 = vpop.permute.xlu0 %2455
        %2457 = vrot.lane.b32.xlu0 %v1907, 1
        %v2458 = vpop.permute.xlu0 %2457
        %2459 = vrot.lane.b32.xlu0 %v1909, 1
        %v2460 = vpop.permute.xlu0 %2459
        %v2461 = vsel %vm1074, %v2446, %v2454
        %v2462 = vsel %vm1074, %v2448, %v2456
        %v2463 = vsel %vm1074, %v2450, %v2458
        %v2464 = vsel %vm1074, %v2452, %v2460
        %v2465 = vsel %vm1074, %v2454, %v2446
        %v2466 = vsel %vm1074, %v2456, %v2448
        %v2467 = vsel %vm1074, %v2458, %v2450
        %v2468 = vsel %vm1074, %v2460, %v2452
        %v2469 = vmul.f32 %v2465, %v1084
        %v2470 = vmul.f32 %v2461, %v1085
        %v2471 = vmul.f32 %v2466, %v1086
        %v2472 = vmul.f32 %v2462, %v1087
        %v2473 = vmul.f32 %v2467, %v1088
        %v2474 = vmul.f32 %v2463, %v1089
        %v2475 = vmul.f32 %v2468, %v1090
        %v2476 = vmul.f32 %v2464, %v1091
        %s2477 = scalar_lea.vmem [#allocation7], 96
        %v2478 = vld [vmem:[%s2477] sm:$0xff]
        %v2479 = vld [vmem:[%s2477 + $0x8] sm:$0xff]
        %v2480 = vld [vmem:[%s2477 + $0x10] sm:$0xff]
        %v2481 = vld [vmem:[%s2477 + $0x18] sm:$0xff]
        %v2483 = vsel %vm543, %v2478, 0
        %v2486 = vsel %vm543, %v2479, 0
        %v2489 = vsel %vm543, %v2480, 0
        %v2492 = vsel %vm543, %v2481, 0
        %2494 = vmatprep.subr.mxu0 %v2470
        %2495 = vmatpush1.msra.mxu0 %v2469
        %2496 = vmatprep.subr.mxu0 %v2472
        %2497 = vmatpush1.msra.mxu0 %v2471
        %2498 = vmatprep.subr.mxu0 %v2474
        %2499 = vmatpush1.msra.mxu0 %v2473
        %2500 = vmatprep.subr.mxu0 %v2476
        %2501 = vmatpush1.msra.mxu0 %v2475
        %2502 = vmatprep.subr.mxu0 0.0
        %2503 = vmatpush1.msra.mxu0 0.0
        %2504 = vmatprep.subr.mxu0 0.0
        %2505 = vmatpush1.msra.mxu0 0.0
        %2506 = vmatprep.subr.mxu0 0.0
        %2507 = vmatpush1.msra.mxu0 0.0
        %2508 = vmatprep.subr.mxu0 0.0
        %2509 = vmatpush1.msra.mxu0 0.0
        %2510 = vmatprep.subr.mxu0 0.0
        %2511 = vmatpush1.msra.mxu0 0.0
        %2512 = vmatprep.subr.mxu0 0.0
        %2513 = vmatpush1.msra.mxu0 0.0
        %2514 = vmatprep.subr.mxu0 0.0
        %2515 = vmatpush1.msra.mxu0 0.0
        %2516 = vmatprep.subr.mxu0 0.0
        %2517 = vmatpush1.msra.mxu0 0.0
        %2518 = vmatprep.subr.mxu0 0.0
        %2519 = vmatpush1.msra.mxu0 0.0
        %2520 = vmatprep.subr.mxu0 0.0
        %2521 = vmatpush1.msra.mxu0 0.0
        %2522 = vmatprep.subr.mxu0 0.0
        %2523 = vmatpush1.msra.mxu0 0.0
        %2524 = vmatprep.subr.mxu0 0.0
        %2525 = vmatpush1.msra.mxu0 0.0
        %2526 = vmatprep.subr.mxu0 0.0
        %2527 = vmatpush1.msra.mxu0 0.0
        %2528 = vmatprep.subr.mxu0 0.0
        %2529 = vmatpush1.msra.mxu0 0.0
        %2530 = vmatprep.subr.mxu0 0.0
        %2531 = vmatpush1.msra.mxu0 0.0
        %2532 = vmatprep.subr.mxu0 0.0
        %2533 = vmatpush1.msra.mxu0 0.0
        %2534 = vmatprep.subr.mxu0 0.0
        %2535 = vmatpush1.msra.mxu0 0.0
        %2536 = vmatprep.subr.mxu0 0.0
        %2537 = vmatpush1.msra.mxu0 0.0
        %2538 = vmatprep.subr.mxu0 0.0
        %2539 = vmatpush1.msra.mxu0 0.0
        %2540 = vmatprep.subr.mxu0 0.0
        %2541 = vmatpush1.msra.mxu0 0.0
        %2542 = vmatprep.subr.mxu0 0.0
        %2543 = vmatpush1.msra.mxu0 0.0
        %2544 = vmatprep.subr.mxu0 0.0
        %2545 = vmatpush1.msra.mxu0 0.0
        %2546 = vmatprep.subr.mxu0 0.0
        %2547 = vmatpush1.msra.mxu0 0.0
        %2548 = vmatprep.subr.mxu0 0.0
        %2549 = vmatpush1.msra.mxu0 0.0
        %2550 = vmatprep.subr.mxu0 0.0
        %2551 = vmatpush1.msra.mxu0 0.0
        %2552 = vmatprep.subr.mxu0 0.0
        %2553 = vmatpush1.msra.mxu0 0.0
        %2554 = vmatprep.subr.mxu0 0.0
        %2555 = vmatpush1.msra.mxu0 0.0
        %2556 = vmatprep.subr.mxu0 0.0
        %2557 = vmatpush1.msra.mxu0 0.0
        %2558 = vmatprep.mubr.f32.mxu0 0.0
        %2559 = vmatmul.mubr.f32.gmra.mrb[0].mxu0 %v2483
        %v2560 = vpop.f32.mrb[0].mxu0
        %v2561 = vadd.f32 0.0, %v2560
        %v2562 = vpop.f32.mrb[0].mxu0
        %v2563 = vadd.f32 0.0, %v2562
        %2564 = vmatprep.mubr.f32.mxu0 0.0
        %2565 = vmatmul.mubr.f32.gmra.mrb[0].mxu0 %v2486
        %v2566 = vpop.f32.mrb[0].mxu0
        %v2567 = vadd.f32 0.0, %v2566
        %v2568 = vpop.f32.mrb[0].mxu0
        %v2569 = vadd.f32 0.0, %v2568
        %2570 = vmatprep.mubr.f32.mxu0 0.0
        %2571 = vmatmul.mubr.f32.gmra.mrb[0].mxu0 %v2489
        %v2572 = vpop.f32.mrb[0].mxu0
        %v2573 = vadd.f32 0.0, %v2572
        %v2574 = vpop.f32.mrb[0].mxu0
        %v2575 = vadd.f32 0.0, %v2574
        %2576 = vmatprep.mubr.f32.mxu0 0.0
        %2577 = vmatmul.mubr.f32.gmra.mrb[0].mxu0 %v2492
        %v2578 = vpop.f32.mrb[0].mxu0
        %v2579 = vadd.f32 0.0, %v2578
        %v2580 = vpop.f32.mrb[0].mxu0
        %v2581 = vadd.f32 0.0, %v2580
        %2582 = vdwg.mxu0
        %v2583 = vadd.f32 %v2437, %v2561
        %v2584 = vadd.f32 %v2438, %v2563
        %v2585 = vadd.f32 %v2439, %v2567
        %v2586 = vadd.f32 %v2440, %v2569
        %v2587 = vadd.f32 %v2441, %v2573
        %v2588 = vadd.f32 %v2442, %v2575
        %v2589 = vadd.f32 %v2443, %v2579
        %v2590 = vadd.f32 %v2444, %v2581
        %2591 = vrot.lane.b32.xlu0 %v1902, 127
        %v2592 = vpop.permute.xlu0 %2591
        %2593 = vrot.lane.b32.xlu0 %v1904, 127
        %v2594 = vpop.permute.xlu0 %2593
        %2595 = vrot.lane.b32.xlu0 %v1906, 127
        %v2596 = vpop.permute.xlu0 %2595
        %2597 = vrot.lane.b32.xlu0 %v1908, 127
        %v2598 = vpop.permute.xlu0 %2597
        %2599 = vrot.lane.b32.xlu0 %v1903, 127
        %v2600 = vpop.permute.xlu0 %2599
        %2601 = vrot.lane.b32.xlu0 %v1905, 127
        %v2602 = vpop.permute.xlu0 %2601
        %2603 = vrot.lane.b32.xlu0 %v1907, 127
        %v2604 = vpop.permute.xlu0 %2603
        %2605 = vrot.lane.b32.xlu0 %v1909, 127
        %v2606 = vpop.permute.xlu0 %2605
        %v2607 = vsel %vm1230, %v2592, %v2600
        %v2608 = vsel %vm1230, %v2594, %v2602
        %v2609 = vsel %vm1230, %v2596, %v2604
        %v2610 = vsel %vm1230, %v2598, %v2606
        %v2611 = vsel %vm1230, %v2600, %v2592
        %v2612 = vsel %vm1230, %v2602, %v2594
        %v2613 = vsel %vm1230, %v2604, %v2596
        %v2614 = vsel %vm1230, %v2606, %v2598
        %v2615 = vmul.f32 %v2607, %v1240
        %v2616 = vmul.f32 %v2611, %v1241
        %v2617 = vmul.f32 %v2608, %v1242
        %v2618 = vmul.f32 %v2612, %v1243
        %v2619 = vmul.f32 %v2609, %v1244
        %v2620 = vmul.f32 %v2613, %v1245
        %v2621 = vmul.f32 %v2610, %v1246
        %v2622 = vmul.f32 %v2614, %v1247
        %s2623 = scalar_lea.vmem [#allocation7], 160
        %v2624 = vld [vmem:[%s2623] sm:$0xff]
        %v2625 = vld [vmem:[%s2623 + $0x8] sm:$0xff]
        %v2626 = vld [vmem:[%s2623 + $0x10] sm:$0xff]
        %v2627 = vld [vmem:[%s2623 + $0x18] sm:$0xff]
        %v2629 = vsel %vm543, %v2624, 0
        %v2632 = vsel %vm543, %v2625, 0
        %v2635 = vsel %vm543, %v2626, 0
        %v2638 = vsel %vm543, %v2627, 0
        %2640 = vmatprep.subr.mxu0 %v2616
        %2641 = vmatpush1.msra.mxu0 %v2615
        %2642 = vmatprep.subr.mxu0 %v2618
        %2643 = vmatpush1.msra.mxu0 %v2617
        %2644 = vmatprep.subr.mxu0 %v2620
        %2645 = vmatpush1.msra.mxu0 %v2619
        %2646 = vmatprep.subr.mxu0 %v2622
        %2647 = vmatpush1.msra.mxu0 %v2621
        %2648 = vmatprep.subr.mxu0 0.0
        %2649 = vmatpush1.msra.mxu0 0.0
        %2650 = vmatprep.subr.mxu0 0.0
        %2651 = vmatpush1.msra.mxu0 0.0
        %2652 = vmatprep.subr.mxu0 0.0
        %2653 = vmatpush1.msra.mxu0 0.0
        %2654 = vmatprep.subr.mxu0 0.0
        %2655 = vmatpush1.msra.mxu0 0.0
        %2656 = vmatprep.subr.mxu0 0.0
        %2657 = vmatpush1.msra.mxu0 0.0
        %2658 = vmatprep.subr.mxu0 0.0
        %2659 = vmatpush1.msra.mxu0 0.0
        %2660 = vmatprep.subr.mxu0 0.0
        %2661 = vmatpush1.msra.mxu0 0.0
        %2662 = vmatprep.subr.mxu0 0.0
        %2663 = vmatpush1.msra.mxu0 0.0
        %2664 = vmatprep.subr.mxu0 0.0
        %2665 = vmatpush1.msra.mxu0 0.0
        %2666 = vmatprep.subr.mxu0 0.0
        %2667 = vmatpush1.msra.mxu0 0.0
        %2668 = vmatprep.subr.mxu0 0.0
        %2669 = vmatpush1.msra.mxu0 0.0
        %2670 = vmatprep.subr.mxu0 0.0
        %2671 = vmatpush1.msra.mxu0 0.0
        %2672 = vmatprep.subr.mxu0 0.0
        %2673 = vmatpush1.msra.mxu0 0.0
        %2674 = vmatprep.subr.mxu0 0.0
        %2675 = vmatpush1.msra.mxu0 0.0
        %2676 = vmatprep.subr.mxu0 0.0
        %2677 = vmatpush1.msra.mxu0 0.0
        %2678 = vmatprep.subr.mxu0 0.0
        %2679 = vmatpush1.msra.mxu0 0.0
        %2680 = vmatprep.subr.mxu0 0.0
        %2681 = vmatpush1.msra.mxu0 0.0
        %2682 = vmatprep.subr.mxu0 0.0
        %2683 = vmatpush1.msra.mxu0 0.0
        %2684 = vmatprep.subr.mxu0 0.0
        %2685 = vmatpush1.msra.mxu0 0.0
        %2686 = vmatprep.subr.mxu0 0.0
        %2687 = vmatpush1.msra.mxu0 0.0
        %2688 = vmatprep.subr.mxu0 0.0
        %2689 = vmatpush1.msra.mxu0 0.0
        %2690 = vmatprep.subr.mxu0 0.0
        %2691 = vmatpush1.msra.mxu0 0.0
        %2692 = vmatprep.subr.mxu0 0.0
        %2693 = vmatpush1.msra.mxu0 0.0
        %2694 = vmatprep.subr.mxu0 0.0
        %2695 = vmatpush1.msra.mxu0 0.0
        %2696 = vmatprep.subr.mxu0 0.0
        %2697 = vmatpush1.msra.mxu0 0.0
        %2698 = vmatprep.subr.mxu0 0.0
        %2699 = vmatpush1.msra.mxu0 0.0
        %2700 = vmatprep.subr.mxu0 0.0
        %2701 = vmatpush1.msra.mxu0 0.0
        %2702 = vmatprep.subr.mxu0 0.0
        %2703 = vmatpush1.msra.mxu0 0.0
        %2704 = vmatprep.mubr.f32.mxu0 0.0
        %2705 = vmatmul.mubr.f32.gmra.mrb[0].mxu0 %v2629
        %v2706 = vpop.f32.mrb[0].mxu0
        %v2707 = vadd.f32 0.0, %v2706
        %v2708 = vpop.f32.mrb[0].mxu0
        %v2709 = vadd.f32 0.0, %v2708
        %2710 = vmatprep.mubr.f32.mxu0 0.0
        %2711 = vmatmul.mubr.f32.gmra.mrb[0].mxu0 %v2632
        %v2712 = vpop.f32.mrb[0].mxu0
        %v2713 = vadd.f32 0.0, %v2712
        %v2714 = vpop.f32.mrb[0].mxu0
        %v2715 = vadd.f32 0.0, %v2714
        %2716 = vmatprep.mubr.f32.mxu0 0.0
        %2717 = vmatmul.mubr.f32.gmra.mrb[0].mxu0 %v2635
        %v2718 = vpop.f32.mrb[0].mxu0
        %v2719 = vadd.f32 0.0, %v2718
        %v2720 = vpop.f32.mrb[0].mxu0
        %v2721 = vadd.f32 0.0, %v2720
        %2722 = vmatprep.mubr.f32.mxu0 0.0
        %2723 = vmatmul.mubr.f32.gmra.mrb[0].mxu0 %v2638
        %v2724 = vpop.f32.mrb[0].mxu0
        %v2725 = vadd.f32 0.0, %v2724
        %v2726 = vpop.f32.mrb[0].mxu0
        %v2727 = vadd.f32 0.0, %v2726
        %2728 = vdwg.mxu0
        %v2729 = vadd.f32 %v2583, %v2707
        %v2730 = vadd.f32 %v2584, %v2709
        %v2731 = vadd.f32 %v2585, %v2713
        %v2732 = vadd.f32 %v2586, %v2715
        %v2733 = vadd.f32 %v2587, %v2719
        %v2734 = vadd.f32 %v2588, %v2721
        %v2735 = vadd.f32 %v2589, %v2725
        %v2736 = vadd.f32 %v2590, %v2727
        %2737 = vrot.lane.b32.xlu0 %v1902, 113
        %v2738 = vpop.permute.xlu0 %2737
        %2739 = vrot.lane.b32.xlu0 %v1904, 113
        %v2740 = vpop.permute.xlu0 %2739
        %2741 = vrot.lane.b32.xlu0 %v1906, 113
        %v2742 = vpop.permute.xlu0 %2741
        %2743 = vrot.lane.b32.xlu0 %v1908, 113
        %v2744 = vpop.permute.xlu0 %2743
        %2745 = vrot.lane.b32.xlu0 %v1903, 113
        %v2746 = vpop.permute.xlu0 %2745
        %2747 = vrot.lane.b32.xlu0 %v1905, 113
        %v2748 = vpop.permute.xlu0 %2747
        %2749 = vrot.lane.b32.xlu0 %v1907, 113
        %v2750 = vpop.permute.xlu0 %2749
        %2751 = vrot.lane.b32.xlu0 %v1909, 113
        %v2752 = vpop.permute.xlu0 %2751
        %v2753 = vsel %vm1386, %v2738, %v2746
        %v2754 = vsel %vm1386, %v2740, %v2748
        %v2755 = vsel %vm1386, %v2742, %v2750
        %v2756 = vsel %vm1386, %v2744, %v2752
        %v2757 = vsel %vm1386, %v2746, %v2738
        %v2758 = vsel %vm1386, %v2748, %v2740
        %v2759 = vsel %vm1386, %v2750, %v2742
        %v2760 = vsel %vm1386, %v2752, %v2744
        %v2761 = vmul.f32 %v2753, %v1396
        %v2762 = vmul.f32 %v2757, %v1397
        %v2763 = vmul.f32 %v2754, %v1398
        %v2764 = vmul.f32 %v2758, %v1399
        %v2765 = vmul.f32 %v2755, %v1400
        %v2766 = vmul.f32 %v2759, %v1401
        %v2767 = vmul.f32 %v2756, %v1402
        %v2768 = vmul.f32 %v2760, %v1403
        %s2769 = scalar_lea.vmem [#allocation7], 192
        %v2770 = vld [vmem:[%s2769] sm:$0xff]
        %v2771 = vld [vmem:[%s2769 + $0x8] sm:$0xff]
        %v2772 = vld [vmem:[%s2769 + $0x10] sm:$0xff]
        %v2773 = vld [vmem:[%s2769 + $0x18] sm:$0xff]
        %v2775 = vsel %vm543, %v2770, 0
        %v2778 = vsel %vm543, %v2771, 0
        %v2781 = vsel %vm543, %v2772, 0
        %v2784 = vsel %vm543, %v2773, 0
        %2786 = vmatprep.subr.mxu0 %v2762
        %2787 = vmatpush1.msra.mxu0 %v2761
        %2788 = vmatprep.subr.mxu0 %v2764
        %2789 = vmatpush1.msra.mxu0 %v2763
        %2790 = vmatprep.subr.mxu0 %v2766
        %2791 = vmatpush1.msra.mxu0 %v2765
        %2792 = vmatprep.subr.mxu0 %v2768
        %2793 = vmatpush1.msra.mxu0 %v2767
        %2794 = vmatprep.subr.mxu0 0.0
        %2795 = vmatpush1.msra.mxu0 0.0
        %2796 = vmatprep.subr.mxu0 0.0
        %2797 = vmatpush1.msra.mxu0 0.0
        %2798 = vmatprep.subr.mxu0 0.0
        %2799 = vmatpush1.msra.mxu0 0.0
        %2800 = vmatprep.subr.mxu0 0.0
        %2801 = vmatpush1.msra.mxu0 0.0
        %2802 = vmatprep.subr.mxu0 0.0
        %2803 = vmatpush1.msra.mxu0 0.0
        %2804 = vmatprep.subr.mxu0 0.0
        %2805 = vmatpush1.msra.mxu0 0.0
        %2806 = vmatprep.subr.mxu0 0.0
        %2807 = vmatpush1.msra.mxu0 0.0
        %2808 = vmatprep.subr.mxu0 0.0
        %2809 = vmatpush1.msra.mxu0 0.0
        %2810 = vmatprep.subr.mxu0 0.0
        %2811 = vmatpush1.msra.mxu0 0.0
        %2812 = vmatprep.subr.mxu0 0.0
        %2813 = vmatpush1.msra.mxu0 0.0
        %2814 = vmatprep.subr.mxu0 0.0
        %2815 = vmatpush1.msra.mxu0 0.0
        %2816 = vmatprep.subr.mxu0 0.0
        %2817 = vmatpush1.msra.mxu0 0.0
        %2818 = vmatprep.subr.mxu0 0.0
        %2819 = vmatpush1.msra.mxu0 0.0
        %2820 = vmatprep.subr.mxu0 0.0
        %2821 = vmatpush1.msra.mxu0 0.0
        %2822 = vmatprep.subr.mxu0 0.0
        %2823 = vmatpush1.msra.mxu0 0.0
        %2824 = vmatprep.subr.mxu0 0.0
        %2825 = vmatpush1.msra.mxu0 0.0
        %2826 = vmatprep.subr.mxu0 0.0
        %2827 = vmatpush1.msra.mxu0 0.0
        %2828 = vmatprep.subr.mxu0 0.0
        %2829 = vmatpush1.msra.mxu0 0.0
        %2830 = vmatprep.subr.mxu0 0.0
        %2831 = vmatpush1.msra.mxu0 0.0
        %2832 = vmatprep.subr.mxu0 0.0
        %2833 = vmatpush1.msra.mxu0 0.0
        %2834 = vmatprep.subr.mxu0 0.0
        %2835 = vmatpush1.msra.mxu0 0.0
        %2836 = vmatprep.subr.mxu0 0.0
        %2837 = vmatpush1.msra.mxu0 0.0
        %2838 = vmatprep.subr.mxu0 0.0
        %2839 = vmatpush1.msra.mxu0 0.0
        %2840 = vmatprep.subr.mxu0 0.0
        %2841 = vmatpush1.msra.mxu0 0.0
        %2842 = vmatprep.subr.mxu0 0.0
        %2843 = vmatpush1.msra.mxu0 0.0
        %2844 = vmatprep.subr.mxu0 0.0
        %2845 = vmatpush1.msra.mxu0 0.0
        %2846 = vmatprep.subr.mxu0 0.0
        %2847 = vmatpush1.msra.mxu0 0.0
        %2848 = vmatprep.subr.mxu0 0.0
        %2849 = vmatpush1.msra.mxu0 0.0
        %2850 = vmatprep.mubr.f32.mxu0 0.0
        %2851 = vmatmul.mubr.f32.gmra.mrb[0].mxu0 %v2775
        %v2852 = vpop.f32.mrb[0].mxu0
        %v2853 = vadd.f32 0.0, %v2852
        %v2854 = vpop.f32.mrb[0].mxu0
        %v2855 = vadd.f32 0.0, %v2854
        %2856 = vmatprep.mubr.f32.mxu0 0.0
        %2857 = vmatmul.mubr.f32.gmra.mrb[0].mxu0 %v2778
        %v2858 = vpop.f32.mrb[0].mxu0
        %v2859 = vadd.f32 0.0, %v2858
        %v2860 = vpop.f32.mrb[0].mxu0
        %v2861 = vadd.f32 0.0, %v2860
        %2862 = vmatprep.mubr.f32.mxu0 0.0
        %2863 = vmatmul.mubr.f32.gmra.mrb[0].mxu0 %v2781
        %v2864 = vpop.f32.mrb[0].mxu0
        %v2865 = vadd.f32 0.0, %v2864
        %v2866 = vpop.f32.mrb[0].mxu0
        %v2867 = vadd.f32 0.0, %v2866
        %2868 = vmatprep.mubr.f32.mxu0 0.0
        %2869 = vmatmul.mubr.f32.gmra.mrb[0].mxu0 %v2784
        %v2870 = vpop.f32.mrb[0].mxu0
        %v2871 = vadd.f32 0.0, %v2870
        %v2872 = vpop.f32.mrb[0].mxu0
        %v2873 = vadd.f32 0.0, %v2872
        %2874 = vdwg.mxu0
        %v2875 = vadd.f32 %v2729, %v2853
        %v2876 = vadd.f32 %v2730, %v2855
        %v2877 = vadd.f32 %v2731, %v2859
        %v2878 = vadd.f32 %v2732, %v2861
        %v2879 = vadd.f32 %v2733, %v2865
        %v2880 = vadd.f32 %v2734, %v2867
        %v2881 = vadd.f32 %v2735, %v2871
        %v2882 = vadd.f32 %v2736, %v2873
        %2883 = vrot.lane.b32.xlu0 %v1902, 112
        %v2884 = vpop.permute.xlu0 %2883
        %2885 = vrot.lane.b32.xlu0 %v1904, 112
        %v2886 = vpop.permute.xlu0 %2885
        %2887 = vrot.lane.b32.xlu0 %v1906, 112
        %v2888 = vpop.permute.xlu0 %2887
        %2889 = vrot.lane.b32.xlu0 %v1908, 112
        %v2890 = vpop.permute.xlu0 %2889
        %2891 = vrot.lane.b32.xlu0 %v1903, 112
        %v2892 = vpop.permute.xlu0 %2891
        %2893 = vrot.lane.b32.xlu0 %v1905, 112
        %v2894 = vpop.permute.xlu0 %2893
        %2895 = vrot.lane.b32.xlu0 %v1907, 112
        %v2896 = vpop.permute.xlu0 %2895
        %2897 = vrot.lane.b32.xlu0 %v1909, 112
        %v2898 = vpop.permute.xlu0 %2897
        %v2899 = vsel %vm1542, %v2884, %v2892
        %v2900 = vsel %vm1542, %v2886, %v2894
        %v2901 = vsel %vm1542, %v2888, %v2896
        %v2902 = vsel %vm1542, %v2890, %v2898
        %v2903 = vsel %vm1542, %v2892, %v2884
        %v2904 = vsel %vm1542, %v2894, %v2886
        %v2905 = vsel %vm1542, %v2896, %v2888
        %v2906 = vsel %vm1542, %v2898, %v2890
        %v2907 = vmul.f32 %v2899, %v1552
        %v2908 = vmul.f32 %v2903, %v1553
        %v2909 = vmul.f32 %v2900, %v1554
        %v2910 = vmul.f32 %v2904, %v1555
        %v2911 = vmul.f32 %v2901, %v1556
        %v2912 = vmul.f32 %v2905, %v1557
        %v2913 = vmul.f32 %v2902, %v1558
        %v2914 = vmul.f32 %v2906, %v1559
        %s2915 = scalar_lea.vmem [#allocation7], 224
        %v2916 = vld [vmem:[%s2915] sm:$0xff]
        %v2917 = vld [vmem:[%s2915 + $0x8] sm:$0xff]
        %v2918 = vld [vmem:[%s2915 + $0x10] sm:$0xff]
        %v2919 = vld [vmem:[%s2915 + $0x18] sm:$0xff]
        %v2921 = vsel %vm543, %v2916, 0
        %v2924 = vsel %vm543, %v2917, 0
        %v2927 = vsel %vm543, %v2918, 0
        %v2930 = vsel %vm543, %v2919, 0
        %2932 = vmatprep.subr.mxu0 %v2908
        %2933 = vmatpush1.msra.mxu0 %v2907
        %2934 = vmatprep.subr.mxu0 %v2910
        %2935 = vmatpush1.msra.mxu0 %v2909
        %2936 = vmatprep.subr.mxu0 %v2912
        %2937 = vmatpush1.msra.mxu0 %v2911
        %2938 = vmatprep.subr.mxu0 %v2914
        %2939 = vmatpush1.msra.mxu0 %v2913
        %2940 = vmatprep.subr.mxu0 0.0
        %2941 = vmatpush1.msra.mxu0 0.0
        %2942 = vmatprep.subr.mxu0 0.0
        %2943 = vmatpush1.msra.mxu0 0.0
        %2944 = vmatprep.subr.mxu0 0.0
        %2945 = vmatpush1.msra.mxu0 0.0
        %2946 = vmatprep.subr.mxu0 0.0
        %2947 = vmatpush1.msra.mxu0 0.0
        %2948 = vmatprep.subr.mxu0 0.0
        %2949 = vmatpush1.msra.mxu0 0.0
        %2950 = vmatprep.subr.mxu0 0.0
        %2951 = vmatpush1.msra.mxu0 0.0
        %2952 = vmatprep.subr.mxu0 0.0
        %2953 = vmatpush1.msra.mxu0 0.0
        %2954 = vmatprep.subr.mxu0 0.0
        %2955 = vmatpush1.msra.mxu0 0.0
        %2956 = vmatprep.subr.mxu0 0.0
        %2957 = vmatpush1.msra.mxu0 0.0
        %2958 = vmatprep.subr.mxu0 0.0
        %2959 = vmatpush1.msra.mxu0 0.0
        %2960 = vmatprep.subr.mxu0 0.0
        %2961 = vmatpush1.msra.mxu0 0.0
        %2962 = vmatprep.subr.mxu0 0.0
        %2963 = vmatpush1.msra.mxu0 0.0
        %2964 = vmatprep.subr.mxu0 0.0
        %2965 = vmatpush1.msra.mxu0 0.0
        %2966 = vmatprep.subr.mxu0 0.0
        %2967 = vmatpush1.msra.mxu0 0.0
        %2968 = vmatprep.subr.mxu0 0.0
        %2969 = vmatpush1.msra.mxu0 0.0
        %2970 = vmatprep.subr.mxu0 0.0
        %2971 = vmatpush1.msra.mxu0 0.0
        %2972 = vmatprep.subr.mxu0 0.0
        %2973 = vmatpush1.msra.mxu0 0.0
        %2974 = vmatprep.subr.mxu0 0.0
        %2975 = vmatpush1.msra.mxu0 0.0
        %2976 = vmatprep.subr.mxu0 0.0
        %2977 = vmatpush1.msra.mxu0 0.0
        %2978 = vmatprep.subr.mxu0 0.0
        %2979 = vmatpush1.msra.mxu0 0.0
        %2980 = vmatprep.subr.mxu0 0.0
        %2981 = vmatpush1.msra.mxu0 0.0
        %2982 = vmatprep.subr.mxu0 0.0
        %2983 = vmatpush1.msra.mxu0 0.0
        %2984 = vmatprep.subr.mxu0 0.0
        %2985 = vmatpush1.msra.mxu0 0.0
        %2986 = vmatprep.subr.mxu0 0.0
        %2987 = vmatpush1.msra.mxu0 0.0
        %2988 = vmatprep.subr.mxu0 0.0
        %2989 = vmatpush1.msra.mxu0 0.0
        %2990 = vmatprep.subr.mxu0 0.0
        %2991 = vmatpush1.msra.mxu0 0.0
        %2992 = vmatprep.subr.mxu0 0.0
        %2993 = vmatpush1.msra.mxu0 0.0
        %2994 = vmatprep.subr.mxu0 0.0
        %2995 = vmatpush1.msra.mxu0 0.0
        %2996 = vmatprep.mubr.f32.mxu0 0.0
        %2997 = vmatmul.mubr.f32.gmra.mrb[0].mxu0 %v2921
        %v2998 = vpop.f32.mrb[0].mxu0
        %v2999 = vadd.f32 0.0, %v2998
        %v3000 = vpop.f32.mrb[0].mxu0
        %v3001 = vadd.f32 0.0, %v3000
        %3002 = vmatprep.mubr.f32.mxu0 0.0
        %3003 = vmatmul.mubr.f32.gmra.mrb[0].mxu0 %v2924
        %v3004 = vpop.f32.mrb[0].mxu0
        %v3005 = vadd.f32 0.0, %v3004
        %v3006 = vpop.f32.mrb[0].mxu0
        %v3007 = vadd.f32 0.0, %v3006
        %3008 = vmatprep.mubr.f32.mxu0 0.0
        %3009 = vmatmul.mubr.f32.gmra.mrb[0].mxu0 %v2927
        %v3010 = vpop.f32.mrb[0].mxu0
        %v3011 = vadd.f32 0.0, %v3010
        %v3012 = vpop.f32.mrb[0].mxu0
        %v3013 = vadd.f32 0.0, %v3012
        %3014 = vmatprep.mubr.f32.mxu0 0.0
        %3015 = vmatmul.mubr.f32.gmra.mrb[0].mxu0 %v2930
        %v3016 = vpop.f32.mrb[0].mxu0
        %v3017 = vadd.f32 0.0, %v3016
        %v3018 = vpop.f32.mrb[0].mxu0
        %v3019 = vadd.f32 0.0, %v3018
        %3020 = vdwg.mxu0
        %v3021 = vadd.f32 %v2875, %v2999
        %v3022 = vadd.f32 %v2876, %v3001
        %v3023 = vadd.f32 %v2877, %v3005
        %v3024 = vadd.f32 %v2878, %v3007
        %v3025 = vadd.f32 %v2879, %v3011
        %v3026 = vadd.f32 %v2880, %v3013
        %v3027 = vadd.f32 %v2881, %v3017
        %v3028 = vadd.f32 %v2882, %v3019
        %3029 = vrot.lane.b32.xlu0 %v1902, 111
        %v3030 = vpop.permute.xlu0 %3029
        %3031 = vrot.lane.b32.xlu0 %v1904, 111
        %v3032 = vpop.permute.xlu0 %3031
        %3033 = vrot.lane.b32.xlu0 %v1906, 111
        %v3034 = vpop.permute.xlu0 %3033
        %3035 = vrot.lane.b32.xlu0 %v1908, 111
        %v3036 = vpop.permute.xlu0 %3035
        %3037 = vrot.lane.b32.xlu0 %v1903, 111
        %v3038 = vpop.permute.xlu0 %3037
        %3039 = vrot.lane.b32.xlu0 %v1905, 111
        %v3040 = vpop.permute.xlu0 %3039
        %3041 = vrot.lane.b32.xlu0 %v1907, 111
        %v3042 = vpop.permute.xlu0 %3041
        %3043 = vrot.lane.b32.xlu0 %v1909, 111
        %v3044 = vpop.permute.xlu0 %3043
        %v3045 = vsel %vm1698, %v3030, %v3038
        %v3046 = vsel %vm1698, %v3032, %v3040
        %v3047 = vsel %vm1698, %v3034, %v3042
        %v3048 = vsel %vm1698, %v3036, %v3044
        %v3049 = vsel %vm1698, %v3038, %v3030
        %v3050 = vsel %vm1698, %v3040, %v3032
        %v3051 = vsel %vm1698, %v3042, %v3034
        %v3052 = vsel %vm1698, %v3044, %v3036
        %v3053 = vmul.f32 %v3045, %v1708
        %v3054 = vmul.f32 %v3049, %v1709
        %v3055 = vmul.f32 %v3046, %v1710
        %v3056 = vmul.f32 %v3050, %v1711
        %v3057 = vmul.f32 %v3047, %v1712
        %v3058 = vmul.f32 %v3051, %v1713
        %v3059 = vmul.f32 %v3048, %v1714
        %v3060 = vmul.f32 %v3052, %v1715
        %s3061 = scalar_lea.vmem [#allocation7], 256
        %v3062 = vld [vmem:[%s3061] sm:$0xff]
        %v3063 = vld [vmem:[%s3061 + $0x8] sm:$0xff]
        %v3064 = vld [vmem:[%s3061 + $0x10] sm:$0xff]
        %v3065 = vld [vmem:[%s3061 + $0x18] sm:$0xff]
        %v3067 = vsel %vm543, %v3062, 0
        %v3070 = vsel %vm543, %v3063, 0
        %v3073 = vsel %vm543, %v3064, 0
        %v3076 = vsel %vm543, %v3065, 0
        %3078 = vmatprep.subr.mxu0 %v3054
        %3079 = vmatpush1.msra.mxu0 %v3053
        %3080 = vmatprep.subr.mxu0 %v3056
        %3081 = vmatpush1.msra.mxu0 %v3055
        %3082 = vmatprep.subr.mxu0 %v3058
        %3083 = vmatpush1.msra.mxu0 %v3057
        %3084 = vmatprep.subr.mxu0 %v3060
        %3085 = vmatpush1.msra.mxu0 %v3059
        %3086 = vmatprep.subr.mxu0 0.0
        %3087 = vmatpush1.msra.mxu0 0.0
        %3088 = vmatprep.subr.mxu0 0.0
        %3089 = vmatpush1.msra.mxu0 0.0
        %3090 = vmatprep.subr.mxu0 0.0
        %3091 = vmatpush1.msra.mxu0 0.0
        %3092 = vmatprep.subr.mxu0 0.0
        %3093 = vmatpush1.msra.mxu0 0.0
        %3094 = vmatprep.subr.mxu0 0.0
        %3095 = vmatpush1.msra.mxu0 0.0
        %3096 = vmatprep.subr.mxu0 0.0
        %3097 = vmatpush1.msra.mxu0 0.0
        %3098 = vmatprep.subr.mxu0 0.0
        %3099 = vmatpush1.msra.mxu0 0.0
        %3100 = vmatprep.subr.mxu0 0.0
        %3101 = vmatpush1.msra.mxu0 0.0
        %3102 = vmatprep.subr.mxu0 0.0
        %3103 = vmatpush1.msra.mxu0 0.0
        %3104 = vmatprep.subr.mxu0 0.0
        %3105 = vmatpush1.msra.mxu0 0.0
        %3106 = vmatprep.subr.mxu0 0.0
        %3107 = vmatpush1.msra.mxu0 0.0
        %3108 = vmatprep.subr.mxu0 0.0
        %3109 = vmatpush1.msra.mxu0 0.0
        %3110 = vmatprep.subr.mxu0 0.0
        %3111 = vmatpush1.msra.mxu0 0.0
        %3112 = vmatprep.subr.mxu0 0.0
        %3113 = vmatpush1.msra.mxu0 0.0
        %3114 = vmatprep.subr.mxu0 0.0
        %3115 = vmatpush1.msra.mxu0 0.0
        %3116 = vmatprep.subr.mxu0 0.0
        %3117 = vmatpush1.msra.mxu0 0.0
        %3118 = vmatprep.subr.mxu0 0.0
        %3119 = vmatpush1.msra.mxu0 0.0
        %3120 = vmatprep.subr.mxu0 0.0
        %3121 = vmatpush1.msra.mxu0 0.0
        %3122 = vmatprep.subr.mxu0 0.0
        %3123 = vmatpush1.msra.mxu0 0.0
        %3124 = vmatprep.subr.mxu0 0.0
        %3125 = vmatpush1.msra.mxu0 0.0
        %3126 = vmatprep.subr.mxu0 0.0
        %3127 = vmatpush1.msra.mxu0 0.0
        %3128 = vmatprep.subr.mxu0 0.0
        %3129 = vmatpush1.msra.mxu0 0.0
        %3130 = vmatprep.subr.mxu0 0.0
        %3131 = vmatpush1.msra.mxu0 0.0
        %3132 = vmatprep.subr.mxu0 0.0
        %3133 = vmatpush1.msra.mxu0 0.0
        %3134 = vmatprep.subr.mxu0 0.0
        %3135 = vmatpush1.msra.mxu0 0.0
        %3136 = vmatprep.subr.mxu0 0.0
        %3137 = vmatpush1.msra.mxu0 0.0
        %3138 = vmatprep.subr.mxu0 0.0
        %3139 = vmatpush1.msra.mxu0 0.0
        %3140 = vmatprep.subr.mxu0 0.0
        %3141 = vmatpush1.msra.mxu0 0.0
        %3142 = vmatprep.mubr.f32.mxu0 0.0
        %3143 = vmatmul.mubr.f32.gmra.mrb[0].mxu0 %v3067
        %v3144 = vpop.f32.mrb[0].mxu0
        %v3145 = vadd.f32 0.0, %v3144
        %v3146 = vpop.f32.mrb[0].mxu0
        %v3147 = vadd.f32 0.0, %v3146
        %3148 = vmatprep.mubr.f32.mxu0 0.0
        %3149 = vmatmul.mubr.f32.gmra.mrb[0].mxu0 %v3070
        %v3150 = vpop.f32.mrb[0].mxu0
        %v3151 = vadd.f32 0.0, %v3150
        %v3152 = vpop.f32.mrb[0].mxu0
        %v3153 = vadd.f32 0.0, %v3152
        %3154 = vmatprep.mubr.f32.mxu0 0.0
        %3155 = vmatmul.mubr.f32.gmra.mrb[0].mxu0 %v3073
        %v3156 = vpop.f32.mrb[0].mxu0
        %v3157 = vadd.f32 0.0, %v3156
        %v3158 = vpop.f32.mrb[0].mxu0
        %v3159 = vadd.f32 0.0, %v3158
        %3160 = vmatprep.mubr.f32.mxu0 0.0
        %3161 = vmatmul.mubr.f32.gmra.mrb[0].mxu0 %v3076
        %v3162 = vpop.f32.mrb[0].mxu0
        %v3163 = vadd.f32 0.0, %v3162
        %v3164 = vpop.f32.mrb[0].mxu0
        %v3165 = vadd.f32 0.0, %v3164
        %3166 = vdwg.mxu0
        %v3167 = vadd.f32 %v3021, %v3145
        %v3168 = vadd.f32 %v3022, %v3147
        %v3169 = vadd.f32 %v3023, %v3151
        %v3170 = vadd.f32 %v3024, %v3153
        %v3171 = vadd.f32 %v3025, %v3157
        %v3172 = vadd.f32 %v3026, %v3159
        %v3173 = vadd.f32 %v3027, %v3163
        %v3174 = vadd.f32 %v3028, %v3165
        %v3175 = vld [vmem:[%s8] sm:$0xff]
        %v3176 = vld [vmem:[%s8 + $0x8] sm:$0xff]
        %v3177 = vld [vmem:[%s8 + $0x10] sm:$0xff]
        %v3178 = vld [vmem:[%s8 + $0x18] sm:$0xff]
        %3180 = vset.pattern.permute.xlu0 0
        %3181 = vperm.xlu0 %3180, %v3175
        %v3182 = vpop.permute.xlu0 %3181
        %3185 = vset.pattern.permute.xlu0 0
        %3186 = vperm.xlu0 %3185, %v3176
        %v3187 = vpop.permute.xlu0 %3186
        %3190 = vset.pattern.permute.xlu0 0
        %3191 = vperm.xlu0 %3190, %v3177
        %v3192 = vpop.permute.xlu0 %3191
        %3195 = vset.pattern.permute.xlu0 0
        %3196 = vperm.xlu0 %3195, %v3178
        %v3197 = vpop.permute.xlu0 %3196
        %v3199 = vmul.f32 %v3167, %v3182
        %v3200 = vmul.f32 %v3168, %v3182
        %v3201 = vmul.f32 %v3169, %v3187
        %v3202 = vmul.f32 %v3170, %v3187
        %v3203 = vmul.f32 %v3171, %v3192
        %v3204 = vmul.f32 %v3172, %v3192
        %v3205 = vmul.f32 %v3173, %v3197
        %v3206 = vmul.f32 %v3174, %v3197
        %v3207 = vld [vmem:[%s9] sm:$0xff]
        %v3208 = vld [vmem:[%s9 + $0x8] sm:$0xff]
        %v3209 = vld [vmem:[%s9 + $0x10] sm:$0xff]
        %v3210 = vld [vmem:[%s9 + $0x18] sm:$0xff]
        %3212 = vset.pattern.permute.xlu0 0
        %3213 = vperm.xlu0 %3212, %v3207
        %v3214 = vpop.permute.xlu0 %3213
        %3217 = vset.pattern.permute.xlu0 0
        %3218 = vperm.xlu0 %3217, %v3208
        %v3219 = vpop.permute.xlu0 %3218
        %3222 = vset.pattern.permute.xlu0 0
        %3223 = vperm.xlu0 %3222, %v3209
        %v3224 = vpop.permute.xlu0 %3223
        %3227 = vset.pattern.permute.xlu0 0
        %3228 = vperm.xlu0 %3227, %v3210
        %v3229 = vpop.permute.xlu0 %3228
        %v3231 = vadd.f32 %v3199, %v3214
        %v3232 = vadd.f32 %v3200, %v3214
        %v3233 = vadd.f32 %v3201, %v3219
        %v3234 = vadd.f32 %v3202, %v3219
        %v3235 = vadd.f32 %v3203, %v3224
        %v3236 = vadd.f32 %v3204, %v3224
        %v3237 = vadd.f32 %v3205, %v3229
        %v3238 = vadd.f32 %v3206, %v3229
        %v3239 = vadd.f32 %v3231, %v3232
        %3240 = vadd.xlane.f32.xlu0 %v3239
        %v3241 = vpop.xlane.xlu0 %3240
        %v3242 = vadd.f32 %v3233, %v3234
        %3243 = vadd.xlane.f32.xlu0 %v3242
        %v3244 = vpop.xlane.xlu0 %3243
        %v3245 = vadd.f32 %v3235, %v3236
        %3246 = vadd.xlane.f32.xlu0 %v3245
        %v3247 = vpop.xlane.xlu0 %3246
        %v3248 = vadd.f32 %v3237, %v3238
        %3249 = vadd.xlane.f32.xlu0 %v3248
        %v3250 = vpop.xlane.xlu0 %3249
        %v3251 = vrcp.pop 256.0
        %v3252 = vmul.f32 %v3241, %v3251
        %v3253 = vmul.f32 %v3244, %v3251
        %v3254 = vmul.f32 %v3247, %v3251
        %v3255 = vmul.f32 %v3250, %v3251
        %v3256 = vmax.f32 %v3231, %v3232
        %3257 = vmax.xlane.f32.xlu0 %v3256
        %v3258 = vpop.xlane.xlu0 %3257
        %v3259 = vmax.f32 %v3233, %v3234
        %3260 = vmax.xlane.f32.xlu0 %v3259
        %v3261 = vpop.xlane.xlu0 %3260
        %v3262 = vmax.f32 %v3235, %v3236
        %3263 = vmax.xlane.f32.xlu0 %v3262
        %v3264 = vpop.xlane.xlu0 %3263
        %v3265 = vmax.f32 %v3237, %v3238
        %3266 = vmax.xlane.f32.xlu0 %v3265
        %v3267 = vpop.xlane.xlu0 %3266
        %vm3268 = vcmask 7168
        %v3269 = vsel %vm3268, %v3252, %v3258
        %v3270 = vsel %vm3268, %v3253, %v3261
        %v3271 = vsel %vm3268, %v3254, %v3264
        %v3272 = vsel %vm3268, %v3255, %v3267
        %v3273 = vld [vmem:[%s10] sm:$0x3]
        %v3275 = vsel %vm543, %v3273, 0
        %3277 = vmatprep.subr.mxu0 0.0
        %3278 = vmatpush1.msra.mxu0 %v3269
        %3279 = vmatprep.subr.mxu0 0.0
        %3280 = vmatpush1.msra.mxu0 %v3270
        %3281 = vmatprep.subr.mxu0 0.0
        %3282 = vmatpush1.msra.mxu0 %v3271
        %3283 = vmatprep.subr.mxu0 0.0
        %3284 = vmatpush1.msra.mxu0 %v3272
        %3285 = vmatprep.subr.mxu0 0.0
        %3286 = vmatpush1.msra.mxu0 0.0
        %3287 = vmatprep.subr.mxu0 0.0
        %3288 = vmatpush1.msra.mxu0 0.0
        %3289 = vmatprep.subr.mxu0 0.0
        %3290 = vmatpush1.msra.mxu0 0.0
        %3291 = vmatprep.subr.mxu0 0.0
        %3292 = vmatpush1.msra.mxu0 0.0
        %3293 = vmatprep.subr.mxu0 0.0
        %3294 = vmatpush1.msra.mxu0 0.0
        %3295 = vmatprep.subr.mxu0 0.0
        %3296 = vmatpush1.msra.mxu0 0.0
        %3297 = vmatprep.subr.mxu0 0.0
        %3298 = vmatpush1.msra.mxu0 0.0
        %3299 = vmatprep.subr.mxu0 0.0
        %3300 = vmatpush1.msra.mxu0 0.0
        %3301 = vmatprep.subr.mxu0 0.0
        %3302 = vmatpush1.msra.mxu0 0.0
        %3303 = vmatprep.subr.mxu0 0.0
        %3304 = vmatpush1.msra.mxu0 0.0
        %3305 = vmatprep.subr.mxu0 0.0
        %3306 = vmatpush1.msra.mxu0 0.0
        %3307 = vmatprep.subr.mxu0 0.0
        %3308 = vmatpush1.msra.mxu0 0.0
        %3309 = vmatprep.subr.mxu0 0.0
        %3310 = vmatpush1.msra.mxu0 0.0
        %3311 = vmatprep.subr.mxu0 0.0
        %3312 = vmatpush1.msra.mxu0 0.0
        %3313 = vmatprep.subr.mxu0 0.0
        %3314 = vmatpush1.msra.mxu0 0.0
        %3315 = vmatprep.subr.mxu0 0.0
        %3316 = vmatpush1.msra.mxu0 0.0
        %3317 = vmatprep.subr.mxu0 0.0
        %3318 = vmatpush1.msra.mxu0 0.0
        %3319 = vmatprep.subr.mxu0 0.0
        %3320 = vmatpush1.msra.mxu0 0.0
        %3321 = vmatprep.subr.mxu0 0.0
        %3322 = vmatpush1.msra.mxu0 0.0
        %3323 = vmatprep.subr.mxu0 0.0
        %3324 = vmatpush1.msra.mxu0 0.0
        %3325 = vmatprep.subr.mxu0 0.0
        %3326 = vmatpush1.msra.mxu0 0.0
        %3327 = vmatprep.subr.mxu0 0.0
        %3328 = vmatpush1.msra.mxu0 0.0
        %3329 = vmatprep.subr.mxu0 0.0
        %3330 = vmatpush1.msra.mxu0 0.0
        %3331 = vmatprep.subr.mxu0 0.0
        %3332 = vmatpush1.msra.mxu0 0.0
        %3333 = vmatprep.subr.mxu0 0.0
        %3334 = vmatpush1.msra.mxu0 0.0
        %3335 = vmatprep.subr.mxu0 0.0
        %3336 = vmatpush1.msra.mxu0 0.0
        %3337 = vmatprep.subr.mxu0 0.0
        %3338 = vmatpush1.msra.mxu0 0.0
        %3339 = vmatprep.subr.mxu0 0.0
        %3340 = vmatpush1.msra.mxu0 0.0
        %3341 = vmatprep.mubr.f32.mxu0 0.0
        %3342 = vmatmul.mubr.f32.gmra.mrb[0].mxu0 %v3275
        %v3343 = vpop.f32.mrb[0].mxu0
        %v3344 = vadd.f32 0.0, %v3343
        %v3345 = vpop.f32.mrb[0].mxu0
        %3346 = vdwg.mxu0
        %v3347 = vmax.f32 %v3344, 0.0
        %v3348 = vld [vmem:[%s11] sm:$0xff]
        %v3349 = vld [vmem:[%s11 + $0x8] sm:$0xff]
        %v3350 = vld [vmem:[%s11 + $0x10] sm:$0xff]
        %v3351 = vld [vmem:[%s11 + $0x18] sm:$0xff]
        %vm3352 = vcmask 15360
        %v3354 = vsel %vm3352, %v3348, 0
        %v3357 = vsel %vm3352, %v3349, 0
        %v3360 = vsel %vm3352, %v3350, 0
        %v3363 = vsel %vm3352, %v3351, 0
        %vm3365 = vcmask 1041408
        %v3367 = vsel %vm3365, %v3347, 0
        %3369 = vmatprep.subr.mxu0 0.0
        %3370 = vmatpush1.msra.mxu0 %v3367
        %3371 = vmatprep.subr.mxu0 0.0
        %3372 = vmatpush1.msra.mxu0 0.0
        %3373 = vmatprep.subr.mxu0 0.0
        %3374 = vmatpush1.msra.mxu0 0.0
        %3375 = vmatprep.subr.mxu0 0.0
        %3376 = vmatpush1.msra.mxu0 0.0
        %3377 = vmatprep.subr.mxu0 0.0
        %3378 = vmatpush1.msra.mxu0 0.0
        %3379 = vmatprep.subr.mxu0 0.0
        %3380 = vmatpush1.msra.mxu0 0.0
        %3381 = vmatprep.subr.mxu0 0.0
        %3382 = vmatpush1.msra.mxu0 0.0
        %3383 = vmatprep.subr.mxu0 0.0
        %3384 = vmatpush1.msra.mxu0 0.0
        %3385 = vmatprep.subr.mxu0 0.0
        %3386 = vmatpush1.msra.mxu0 0.0
        %3387 = vmatprep.subr.mxu0 0.0
        %3388 = vmatpush1.msra.mxu0 0.0
        %3389 = vmatprep.subr.mxu0 0.0
        %3390 = vmatpush1.msra.mxu0 0.0
        %3391 = vmatprep.subr.mxu0 0.0
        %3392 = vmatpush1.msra.mxu0 0.0
        %3393 = vmatprep.subr.mxu0 0.0
        %3394 = vmatpush1.msra.mxu0 0.0
        %3395 = vmatprep.subr.mxu0 0.0
        %3396 = vmatpush1.msra.mxu0 0.0
        %3397 = vmatprep.subr.mxu0 0.0
        %3398 = vmatpush1.msra.mxu0 0.0
        %3399 = vmatprep.subr.mxu0 0.0
        %3400 = vmatpush1.msra.mxu0 0.0
        %3401 = vmatprep.subr.mxu0 0.0
        %3402 = vmatpush1.msra.mxu0 0.0
        %3403 = vmatprep.subr.mxu0 0.0
        %3404 = vmatpush1.msra.mxu0 0.0
        %3405 = vmatprep.subr.mxu0 0.0
        %3406 = vmatpush1.msra.mxu0 0.0
        %3407 = vmatprep.subr.mxu0 0.0
        %3408 = vmatpush1.msra.mxu0 0.0
        %3409 = vmatprep.subr.mxu0 0.0
        %3410 = vmatpush1.msra.mxu0 0.0
        %3411 = vmatprep.subr.mxu0 0.0
        %3412 = vmatpush1.msra.mxu0 0.0
        %3413 = vmatprep.subr.mxu0 0.0
        %3414 = vmatpush1.msra.mxu0 0.0
        %3415 = vmatprep.subr.mxu0 0.0
        %3416 = vmatpush1.msra.mxu0 0.0
        %3417 = vmatprep.subr.mxu0 0.0
        %3418 = vmatpush1.msra.mxu0 0.0
        %3419 = vmatprep.subr.mxu0 0.0
        %3420 = vmatpush1.msra.mxu0 0.0
        %3421 = vmatprep.subr.mxu0 0.0
        %3422 = vmatpush1.msra.mxu0 0.0
        %3423 = vmatprep.subr.mxu0 0.0
        %3424 = vmatpush1.msra.mxu0 0.0
        %3425 = vmatprep.subr.mxu0 0.0
        %3426 = vmatpush1.msra.mxu0 0.0
        %3427 = vmatprep.subr.mxu0 0.0
        %3428 = vmatpush1.msra.mxu0 0.0
        %3429 = vmatprep.subr.mxu0 0.0
        %3430 = vmatpush1.msra.mxu0 0.0
        %3431 = vmatprep.subr.mxu0 0.0
        %3432 = vmatpush1.msra.mxu0 0.0
        %3433 = vmatprep.mubr.f32.mxu0 0.0
        %3434 = vmatmul.mubr.f32.gmra.mrb[0].mxu0 %v3354
        %v3435 = vpop.f32.mrb[0].mxu0
        %v3436 = vadd.f32 0.0, %v3435
        %v3437 = vpop.f32.mrb[0].mxu0
        %3438 = vmatprep.mubr.f32.mxu0 0.0
        %3439 = vmatmul.mubr.f32.gmra.mrb[0].mxu0 %v3357
        %v3440 = vpop.f32.mrb[0].mxu0
        %v3441 = vadd.f32 0.0, %v3440
        %v3442 = vpop.f32.mrb[0].mxu0
        %3443 = vmatprep.mubr.f32.mxu0 0.0
        %3444 = vmatmul.mubr.f32.gmra.mrb[0].mxu0 %v3360
        %v3445 = vpop.f32.mrb[0].mxu0
        %v3446 = vadd.f32 0.0, %v3445
        %v3447 = vpop.f32.mrb[0].mxu0
        %3448 = vmatprep.mubr.f32.mxu0 0.0
        %3449 = vmatmul.mubr.f32.gmra.mrb[0].mxu0 %v3363
        %v3450 = vpop.f32.mrb[0].mxu0
        %v3451 = vadd.f32 0.0, %v3450
        %v3452 = vpop.f32.mrb[0].mxu0
        %3453 = vdwg.mxu0
        %3458 = vrot.lane.b32.xlu0 %v3436, 127
        %v3459 = vpop.permute.xlu0 %3458
        %3460 = vrot.lane.b32.xlu0 %v3441, 127
        %v3461 = vpop.permute.xlu0 %3460
        %3462 = vrot.lane.b32.xlu0 %v3446, 127
        %v3463 = vpop.permute.xlu0 %3462
        %3464 = vrot.lane.b32.xlu0 %v3451, 127
        %v3465 = vpop.permute.xlu0 %3464
        %v3470 = vadd.f32 %v3436, %v3459
        %v3471 = vadd.f32 %v3441, %v3461
        %v3472 = vadd.f32 %v3446, %v3463
        %v3473 = vadd.f32 %v3451, %v3465
        %v3474 = vxor.u32 %v3470, 2147483648
        %v3475 = vxor.u32 %v3471, 2147483648
        %v3476 = vxor.u32 %v3472, 2147483648
        %v3477 = vxor.u32 %v3473, 2147483648
        %v3478 = vmul.f32 %v3474, 1.442695
        %v3479 = vpow.pop %v3478
        %v3480 = vmul.f32 %v3475, 1.442695
        %v3481 = vpow.pop %v3480
        %v3482 = vmul.f32 %v3476, 1.442695
        %v3483 = vpow.pop %v3482
        %v3484 = vmul.f32 %v3477, 1.442695
        %v3485 = vpow.pop %v3484
        %v3486 = vadd.f32 %v3479, 1.0
        %v3487 = vadd.f32 %v3481, 1.0
        %v3488 = vadd.f32 %v3483, 1.0
        %v3489 = vadd.f32 %v3485, 1.0
        %v3490 = vrcp.pop %v3486
        %v3491 = vmul.f32 1.0, %v3490
        %v3492 = vrcp.pop %v3487
        %v3493 = vmul.f32 1.0, %v3492
        %v3494 = vrcp.pop %v3488
        %v3495 = vmul.f32 1.0, %v3494
        %v3496 = vrcp.pop %v3489
        %v3497 = vmul.f32 1.0, %v3496
        %3499 = vset.pattern.permute.xlu0 0
        %3500 = vperm.xlu0 %3499, %v3491
        %v3501 = vpop.permute.xlu0 %3500
        %3504 = vset.pattern.permute.xlu0 0
        %3505 = vperm.xlu0 %3504, %v3493
        %v3506 = vpop.permute.xlu0 %3505
        %3509 = vset.pattern.permute.xlu0 0
        %3510 = vperm.xlu0 %3509, %v3495
        %v3511 = vpop.permute.xlu0 %3510
        %3514 = vset.pattern.permute.xlu0 0
        %3515 = vperm.xlu0 %3514, %v3497
        %v3516 = vpop.permute.xlu0 %3515
        %v3518 = vmul.f32 %v3231, %v3501
        %v3519 = vmul.f32 %v3232, %v3501
        %v3520 = vmul.f32 %v3233, %v3506
        %v3521 = vmul.f32 %v3234, %v3506
        %v3522 = vmul.f32 %v3235, %v3511
        %v3523 = vmul.f32 %v3236, %v3511
        %v3524 = vmul.f32 %v3237, %v3516
        %v3525 = vmul.f32 %v3238, %v3516
        %v3526 = vadd.f32 %v3518, %v3520
        %v3527 = vadd.f32 %v3526, %v3522
        %v3528 = vadd.f32 %v3527, %v3524
        %v3529 = vrot.slane %v3528, 4
        %v3530 = vadd.f32 %v3528, %v3529
        %v3531 = vrot.slane %v3530, 2
        %v3532 = vadd.f32 %v3530, %v3531
        %v3533 = vrot.slane %v3532, 1
        %v3534 = vadd.f32 %v3532, %v3533
        %v3535 = vadd.f32 %v3519, %v3521
        %v3536 = vadd.f32 %v3535, %v3523
        %v3537 = vadd.f32 %v3536, %v3525
        %v3538 = vrot.slane %v3537, 4
        %v3539 = vadd.f32 %v3537, %v3538
        %v3540 = vrot.slane %v3539, 2
        %v3541 = vadd.f32 %v3539, %v3540
        %v3542 = vrot.slane %v3541, 1
        %v3543 = vadd.f32 %v3541, %v3542
        %v3544 = vrcp.pop 32.0
        %v3545 = vmul.f32 %v3534, %v3544
        %v3546 = vmul.f32 %v3543, %v3544
        %v3547 = vmax.f32 %v3518, %v3522
        %v3548 = vmax.f32 %v3520, %v3524
        %v3549 = vmax.f32 %v3547, %v3548
        %v3550 = vrot.slane %v3549, 4
        %v3551 = vmax.f32 %v3549, %v3550
        %v3552 = vrot.slane %v3551, 2
        %v3553 = vmax.f32 %v3551, %v3552
        %v3554 = vrot.slane %v3553, 1
        %v3555 = vmax.f32 %v3553, %v3554
        %v3556 = vmax.f32 %v3519, %v3523
        %v3557 = vmax.f32 %v3521, %v3525
        %v3558 = vmax.f32 %v3556, %v3557
        %v3559 = vrot.slane %v3558, 4
        %v3560 = vmax.f32 %v3558, %v3559
        %v3561 = vrot.slane %v3560, 2
        %v3562 = vmax.f32 %v3560, %v3561
        %v3563 = vrot.slane %v3562, 1
        %v3564 = vmax.f32 %v3562, %v3563
        %3565 = vrot.lane.b32.xlu0 %v3545, 48
        %v3566 = vpop.permute.xlu0 %3565
        %3567 = vrot.lane.b32.xlu0 %v3546, 48
        %v3568 = vpop.permute.xlu0 %3567
        %vm3569 = vcmp.lt.s32.totalorder %v513, 48
        %v3570 = vsel %vm3569, %v3566, %v3568
        %v3571 = vsel %vm3569, %v3568, %v3566
        %3572 = vrot.lane.b32.xlu0 %v3545, 32
        %v3573 = vpop.permute.xlu0 %3572
        %3574 = vrot.lane.b32.xlu0 %v3546, 32
        %v3575 = vpop.permute.xlu0 %3574
        %vm3576 = vcmp.lt.s32.totalorder %v513, 32
        %v3577 = vsel %vm3576, %v3573, %v3575
        %v3578 = vsel %vm3576, %v3575, %v3573
        %3579 = vrot.lane.b32.xlu0 %v3545, 16
        %v3580 = vpop.permute.xlu0 %3579
        %3581 = vrot.lane.b32.xlu0 %v3546, 16
        %v3582 = vpop.permute.xlu0 %3581
        %v3583 = vsel %vm762, %v3580, %v3582
        %v3584 = vsel %vm762, %v3582, %v3580
        %3585 = vrot.lane.b32.xlu0 %v3545, 112
        %v3586 = vpop.permute.xlu0 %3585
        %3587 = vrot.lane.b32.xlu0 %v3546, 112
        %v3588 = vpop.permute.xlu0 %3587
        %v3589 = vsel %vm1542, %v3586, %v3588
        %v3590 = vsel %vm1542, %v3588, %v3586
        %3591 = vrot.lane.b32.xlu0 %v3545, 96
        %v3592 = vpop.permute.xlu0 %3591
        %3593 = vrot.lane.b32.xlu0 %v3546, 96
        %v3594 = vpop.permute.xlu0 %3593
        %vm3595 = vcmp.lt.s32.totalorder %v513, 96
        %v3596 = vsel %vm3595, %v3592, %v3594
        %v3597 = vsel %vm3595, %v3594, %v3592
        %3598 = vrot.lane.b32.xlu0 %v3545, 80
        %v3599 = vpop.permute.xlu0 %3598
        %3600 = vrot.lane.b32.xlu0 %v3546, 80
        %v3601 = vpop.permute.xlu0 %3600
        %vm3602 = vcmp.lt.s32.totalorder %v513, 80
        %v3603 = vsel %vm3602, %v3599, %v3601
        %v3604 = vsel %vm3602, %v3601, %v3599
        %3605 = vrot.lane.b32.xlu0 %v3555, 48
        %v3606 = vpop.permute.xlu0 %3605
        %3607 = vrot.lane.b32.xlu0 %v3564, 48
        %v3608 = vpop.permute.xlu0 %3607
        %v3609 = vsel %vm3569, %v3606, %v3608
        %v3610 = vsel %vm3569, %v3608, %v3606
        %3611 = vrot.lane.b32.xlu0 %v3555, 32
        %v3612 = vpop.permute.xlu0 %3611
        %3613 = vrot.lane.b32.xlu0 %v3564, 32
        %v3614 = vpop.permute.xlu0 %3613
        %v3615 = vsel %vm3576, %v3612, %v3614
        %v3616 = vsel %vm3576, %v3614, %v3612
        %3617 = vrot.lane.b32.xlu0 %v3555, 16
        %v3618 = vpop.permute.xlu0 %3617
        %3619 = vrot.lane.b32.xlu0 %v3564, 16
        %v3620 = vpop.permute.xlu0 %3619
        %v3621 = vsel %vm762, %v3618, %v3620
        %v3622 = vsel %vm762, %v3620, %v3618
        %3623 = vrot.lane.b32.xlu0 %v3555, 112
        %v3624 = vpop.permute.xlu0 %3623
        %3625 = vrot.lane.b32.xlu0 %v3564, 112
        %v3626 = vpop.permute.xlu0 %3625
        %v3627 = vsel %vm1542, %v3624, %v3626
        %v3628 = vsel %vm1542, %v3626, %v3624
        %3629 = vrot.lane.b32.xlu0 %v3555, 96
        %v3630 = vpop.permute.xlu0 %3629
        %3631 = vrot.lane.b32.xlu0 %v3564, 96
        %v3632 = vpop.permute.xlu0 %3631
        %v3633 = vsel %vm3595, %v3630, %v3632
        %v3634 = vsel %vm3595, %v3632, %v3630
        %3635 = vrot.lane.b32.xlu0 %v3555, 80
        %v3636 = vpop.permute.xlu0 %3635
        %3637 = vrot.lane.b32.xlu0 %v3564, 80
        %v3638 = vpop.permute.xlu0 %3637
        %v3639 = vsel %vm3602, %v3636, %v3638
        %v3640 = vsel %vm3602, %v3638, %v3636
        %v3643 = vrot.slane %v3578, 7
        %v3644 = vrot.slane %v3577, 7
        %v3649 = vrot.slane %v3584, 6
        %v3650 = vrot.slane %v3583, 6
        %v3655 = vrot.slane %v3589, 4
        %v3656 = vrot.slane %v3590, 4
        %v3661 = vrot.slane %v3596, 3
        %v3662 = vrot.slane %v3597, 3
        %v3667 = vrot.slane %v3603, 2
        %v3668 = vrot.slane %v3604, 2
        %v3673 = vrot.slane %v3616, 7
        %v3674 = vrot.slane %v3615, 7
        %v3679 = vrot.slane %v3622, 6
        %v3680 = vrot.slane %v3621, 6
        %v3685 = vrot.slane %v3627, 4
        %v3686 = vrot.slane %v3628, 4
        %v3691 = vrot.slane %v3633, 3
        %v3692 = vrot.slane %v3634, 3
        %v3697 = vrot.slane %v3639, 2
        %v3698 = vrot.slane %v3640, 2
        %vm3701 = vcmask 1040384
        %v3702 = vsel %vm3701, %v3571, %v3643
        %v3703 = vsel %vm3701, %v3570, %v3644
        %v3704 = vsel %vm3365, %v3702, %v3649
        %v3705 = vsel %vm3365, %v3703, %v3650
        %vm3706 = vcmask 1042432
        %v3707 = vsel %vm3706, %v3704, %v3545
        %v3708 = vsel %vm3706, %v3705, %v3546
        %vm3709 = vcmask 1043456
        %v3710 = vsel %vm3709, %v3707, %v3655
        %v3711 = vsel %vm3709, %v3708, %v3656
        %vm3712 = vcmask 1044480
        %v3713 = vsel %vm3712, %v3710, %v3661
        %v3714 = vsel %vm3712, %v3711, %v3662
        %vm3715 = vcmask 1045504
        %v3716 = vsel %vm3715, %v3713, %v3667
        %v3717 = vsel %vm3715, %v3714, %v3668
        %vm3718 = vcmask 1046528
        %v3719 = vsel %vm3718, %v3716, 0.0
        %v3720 = vsel %vm3718, %v3717, 0.0
        %v3721 = vsel %vm3701, %v3610, %v3673
        %v3722 = vsel %vm3701, %v3609, %v3674
        %v3723 = vsel %vm3365, %v3721, %v3679
        %v3724 = vsel %vm3365, %v3722, %v3680
        %v3725 = vsel %vm3706, %v3723, %v3555
        %v3726 = vsel %vm3706, %v3724, %v3564
        %v3727 = vsel %vm3709, %v3725, %v3685
        %v3728 = vsel %vm3709, %v3726, %v3686
        %v3729 = vsel %vm3712, %v3727, %v3691
        %v3730 = vsel %vm3712, %v3728, %v3692
        %v3731 = vsel %vm3715, %v3729, %v3697
        %v3732 = vsel %vm3715, %v3730, %v3698
        %v3733 = vsel %vm3718, %v3731, 0.0
        %v3734 = vsel %vm3718, %v3732, 0.0
        %v3735 = vld [vmem:[%s2] sm:$0xff]
        %v3736 = vld [vmem:[%s2 + $0x8] sm:$0xff]
        %v3737 = vld [vmem:[%s2 + $0x10] sm:$0xff]
        %v3738 = vld [vmem:[%s2 + $0x18] sm:$0xff]
        %v3739 = vmul.f32 %v3719, %v3735
        %v3740 = vmul.f32 %v3720, %v3736
        %v3741 = vmul.f32 %v3733, %v3737
        %v3742 = vmul.f32 %v3734, %v3738
        %v3743 = vld [vmem:[%s12] sm:$0xff]
        %v3744 = vld [vmem:[%s12 + $0x8] sm:$0xff]
        %3746 = vset.pattern.permute.xlu0 3
        %3747 = vperm.xlu0 %3746, %v3743
        %v3748 = vpop.permute.xlu0 %3747
        %3751 = vset.pattern.permute.xlu0 3
        %3752 = vperm.xlu0 %3751, %v3744
        %v3753 = vpop.permute.xlu0 %3752
        %v3755 = vmul.f32 %v3739, %v3748
        %v3756 = vmul.f32 %v3740, %v3748
        %v3757 = vmul.f32 %v3741, %v3753
        %v3758 = vmul.f32 %v3742, %v3753
        %3759 = vrot.lane.b32.xlu0 %v3739, 3
        %v3760 = vpop.permute.xlu0 %3759
        %3761 = vrot.lane.b32.xlu0 %v3741, 3
        %v3762 = vpop.permute.xlu0 %3761
        %3763 = vrot.lane.b32.xlu0 %v3740, 3
        %v3764 = vpop.permute.xlu0 %3763
        %3765 = vrot.lane.b32.xlu0 %v3742, 3
        %v3766 = vpop.permute.xlu0 %3765
        %vm3767 = vcmp.lt.s32.totalorder %v513, 3
        %v3768 = vsel %vm3767, %v3760, %v3764
        %v3769 = vsel %vm3767, %v3762, %v3766
        %v3770 = vsel %vm3767, %v3764, %v3760
        %v3771 = vsel %vm3767, %v3766, %v3762
        %3772 = vset.pattern.permute.xlu0 0
        %3773 = vperm.xlu0 %3772, %v3743
        %v3774 = vpop.permute.xlu0 %3773
        %3776 = vset.pattern.permute.xlu0 0
        %3777 = vperm.xlu0 %3776, %v3744
        %v3778 = vpop.permute.xlu0 %3777
        %v3780 = vmul.f32 %v3770, %v3774
        %v3781 = vmul.f32 %v3768, %v3774
        %v3782 = vmul.f32 %v3771, %v3778
        %v3783 = vmul.f32 %v3769, %v3778
        %v3784 = vld [vmem:[%s3] sm:$0xff]
        %v3785 = vld [vmem:[%s3 + $0x8] sm:$0xff]
        %v3786 = vld [vmem:[%s3 + $0x10] sm:$0xff]
        %v3787 = vld [vmem:[%s3 + $0x18] sm:$0xff]
        %v3788 = vmul.f32 %v3780, %v3784
        %v3789 = vmul.f32 %v3781, %v3785
        %v3790 = vmul.f32 %v3782, %v3786
        %v3791 = vmul.f32 %v3783, %v3787
        %v3792 = vadd.f32 %v3755, %v3788
        %v3793 = vadd.f32 %v3756, %v3789
        %v3794 = vadd.f32 %v3757, %v3790
        %v3795 = vadd.f32 %v3758, %v3791
        %3796 = vrot.lane.b32.xlu0 %v3739, 2
        %v3797 = vpop.permute.xlu0 %3796
        %3798 = vrot.lane.b32.xlu0 %v3741, 2
        %v3799 = vpop.permute.xlu0 %3798
        %3800 = vrot.lane.b32.xlu0 %v3740, 2
        %v3801 = vpop.permute.xlu0 %3800
        %3802 = vrot.lane.b32.xlu0 %v3742, 2
        %v3803 = vpop.permute.xlu0 %3802
        %vm3804 = vcmp.lt.s32.totalorder %v513, 2
        %v3805 = vsel %vm3804, %v3797, %v3801
        %v3806 = vsel %vm3804, %v3799, %v3803
        %v3807 = vsel %vm3804, %v3801, %v3797
        %v3808 = vsel %vm3804, %v3803, %v3799
        %3809 = vset.pattern.permute.xlu0 1
        %3810 = vperm.xlu0 %3809, %v3743
        %v3811 = vpop.permute.xlu0 %3810
        %3813 = vset.pattern.permute.xlu0 1
        %3814 = vperm.xlu0 %3813, %v3744
        %v3815 = vpop.permute.xlu0 %3814
        %v3817 = vmul.f32 %v3807, %v3811
        %v3818 = vmul.f32 %v3805, %v3811
        %v3819 = vmul.f32 %v3808, %v3815
        %v3820 = vmul.f32 %v3806, %v3815
        %s3821 = scalar_lea.vmem %s3, 32
        %v3822 = vld [vmem:[%s3821] sm:$0xff]
        %v3823 = vld [vmem:[%s3821 + $0x8] sm:$0xff]
        %v3824 = vld [vmem:[%s3821 + $0x10] sm:$0xff]
        %v3825 = vld [vmem:[%s3821 + $0x18] sm:$0xff]
        %v3826 = vmul.f32 %v3817, %v3822
        %v3827 = vmul.f32 %v3818, %v3823
        %v3828 = vmul.f32 %v3819, %v3824
        %v3829 = vmul.f32 %v3820, %v3825
        %v3830 = vadd.f32 %v3792, %v3826
        %v3831 = vadd.f32 %v3793, %v3827
        %v3832 = vadd.f32 %v3794, %v3828
        %v3833 = vadd.f32 %v3795, %v3829
        %3834 = vrot.lane.b32.xlu0 %v3739, 1
        %v3835 = vpop.permute.xlu0 %3834
        %3836 = vrot.lane.b32.xlu0 %v3741, 1
        %v3837 = vpop.permute.xlu0 %3836
        %3838 = vrot.lane.b32.xlu0 %v3740, 1
        %v3839 = vpop.permute.xlu0 %3838
        %3840 = vrot.lane.b32.xlu0 %v3742, 1
        %v3841 = vpop.permute.xlu0 %3840
        %v3842 = vsel %vm1074, %v3835, %v3839
        %v3843 = vsel %vm1074, %v3837, %v3841
        %v3844 = vsel %vm1074, %v3839, %v3835
        %v3845 = vsel %vm1074, %v3841, %v3837
        %3846 = vset.pattern.permute.xlu0 2
        %3847 = vperm.xlu0 %3846, %v3743
        %v3848 = vpop.permute.xlu0 %3847
        %3850 = vset.pattern.permute.xlu0 2
        %3851 = vperm.xlu0 %3850, %v3744
        %v3852 = vpop.permute.xlu0 %3851
        %v3854 = vmul.f32 %v3844, %v3848
        %v3855 = vmul.f32 %v3842, %v3848
        %v3856 = vmul.f32 %v3845, %v3852
        %v3857 = vmul.f32 %v3843, %v3852
        %s3858 = scalar_lea.vmem %s3, 64
        %v3859 = vld [vmem:[%s3858] sm:$0xff]
        %v3860 = vld [vmem:[%s3858 + $0x8] sm:$0xff]
        %v3861 = vld [vmem:[%s3858 + $0x10] sm:$0xff]
        %v3862 = vld [vmem:[%s3858 + $0x18] sm:$0xff]
        %v3863 = vmul.f32 %v3854, %v3859
        %v3864 = vmul.f32 %v3855, %v3860
        %v3865 = vmul.f32 %v3856, %v3861
        %v3866 = vmul.f32 %v3857, %v3862
        %v3867 = vadd.f32 %v3830, %v3863
        %v3868 = vadd.f32 %v3831, %v3864
        %v3869 = vadd.f32 %v3832, %v3865
        %v3870 = vadd.f32 %v3833, %v3866
        %3871 = vrot.lane.b32.xlu0 %v3739, 127
        %v3872 = vpop.permute.xlu0 %3871
        %3873 = vrot.lane.b32.xlu0 %v3741, 127
        %v3874 = vpop.permute.xlu0 %3873
        %3875 = vrot.lane.b32.xlu0 %v3740, 127
        %v3876 = vpop.permute.xlu0 %3875
        %3877 = vrot.lane.b32.xlu0 %v3742, 127
        %v3878 = vpop.permute.xlu0 %3877
        %v3879 = vsel %vm1230, %v3872, %v3876
        %v3880 = vsel %vm1230, %v3874, %v3878
        %v3881 = vsel %vm1230, %v3876, %v3872
        %v3882 = vsel %vm1230, %v3878, %v3874
        %3883 = vset.pattern.permute.xlu0 4
        %3884 = vperm.xlu0 %3883, %v3743
        %v3885 = vpop.permute.xlu0 %3884
        %3887 = vset.pattern.permute.xlu0 4
        %3888 = vperm.xlu0 %3887, %v3744
        %v3889 = vpop.permute.xlu0 %3888
        %v3891 = vmul.f32 %v3879, %v3885
        %v3892 = vmul.f32 %v3881, %v3885
        %v3893 = vmul.f32 %v3880, %v3889
        %v3894 = vmul.f32 %v3882, %v3889
        %s3895 = scalar_lea.vmem %s3, 128
        %v3896 = vld [vmem:[%s3895] sm:$0xff]
        %v3897 = vld [vmem:[%s3895 + $0x8] sm:$0xff]
        %v3898 = vld [vmem:[%s3895 + $0x10] sm:$0xff]
        %v3899 = vld [vmem:[%s3895 + $0x18] sm:$0xff]
        %v3900 = vmul.f32 %v3891, %v3896
        %v3901 = vmul.f32 %v3892, %v3897
        %v3902 = vmul.f32 %v3893, %v3898
        %v3903 = vmul.f32 %v3894, %v3899
        %v3904 = vadd.f32 %v3867, %v3900
        %v3905 = vadd.f32 %v3868, %v3901
        %v3906 = vadd.f32 %v3869, %v3902
        %v3907 = vadd.f32 %v3870, %v3903
        %3908 = vrot.lane.b32.xlu0 %v3739, 126
        %v3909 = vpop.permute.xlu0 %3908
        %3910 = vrot.lane.b32.xlu0 %v3741, 126
        %v3911 = vpop.permute.xlu0 %3910
        %3912 = vrot.lane.b32.xlu0 %v3740, 126
        %v3913 = vpop.permute.xlu0 %3912
        %3914 = vrot.lane.b32.xlu0 %v3742, 126
        %v3915 = vpop.permute.xlu0 %3914
        %vm3916 = vcmp.lt.s32.totalorder %v513, 126
        %v3917 = vsel %vm3916, %v3909, %v3913
        %v3918 = vsel %vm3916, %v3911, %v3915
        %v3919 = vsel %vm3916, %v3913, %v3909
        %v3920 = vsel %vm3916, %v3915, %v3911
        %3921 = vset.pattern.permute.xlu0 5
        %3922 = vperm.xlu0 %3921, %v3743
        %v3923 = vpop.permute.xlu0 %3922
        %3925 = vset.pattern.permute.xlu0 5
        %3926 = vperm.xlu0 %3925, %v3744
        %v3927 = vpop.permute.xlu0 %3926
        %v3929 = vmul.f32 %v3917, %v3923
        %v3930 = vmul.f32 %v3919, %v3923
        %v3931 = vmul.f32 %v3918, %v3927
        %v3932 = vmul.f32 %v3920, %v3927
        %s3933 = scalar_lea.vmem %s3, 160
        %v3934 = vld [vmem:[%s3933] sm:$0xff]
        %v3935 = vld [vmem:[%s3933 + $0x8] sm:$0xff]
        %v3936 = vld [vmem:[%s3933 + $0x10] sm:$0xff]
        %v3937 = vld [vmem:[%s3933 + $0x18] sm:$0xff]
        %v3938 = vmul.f32 %v3929, %v3934
        %v3939 = vmul.f32 %v3930, %v3935
        %v3940 = vmul.f32 %v3931, %v3936
        %v3941 = vmul.f32 %v3932, %v3937
        %v3942 = vadd.f32 %v3904, %v3938
        %v3943 = vadd.f32 %v3905, %v3939
        %v3944 = vadd.f32 %v3906, %v3940
        %v3945 = vadd.f32 %v3907, %v3941
        %3946 = vrot.lane.b32.xlu0 %v3739, 125
        %v3947 = vpop.permute.xlu0 %3946
        %3948 = vrot.lane.b32.xlu0 %v3741, 125
        %v3949 = vpop.permute.xlu0 %3948
        %3950 = vrot.lane.b32.xlu0 %v3740, 125
        %v3951 = vpop.permute.xlu0 %3950
        %3952 = vrot.lane.b32.xlu0 %v3742, 125
        %v3953 = vpop.permute.xlu0 %3952
        %vm3954 = vcmp.lt.s32.totalorder %v513, 125
        %v3955 = vsel %vm3954, %v3947, %v3951
        %v3956 = vsel %vm3954, %v3949, %v3953
        %v3957 = vsel %vm3954, %v3951, %v3947
        %v3958 = vsel %vm3954, %v3953, %v3949
        %3959 = vset.pattern.permute.xlu0 6
        %3960 = vperm.xlu0 %3959, %v3743
        %v3961 = vpop.permute.xlu0 %3960
        %3963 = vset.pattern.permute.xlu0 6
        %3964 = vperm.xlu0 %3963, %v3744
        %v3965 = vpop.permute.xlu0 %3964
        %v3967 = vmul.f32 %v3955, %v3961
        %v3968 = vmul.f32 %v3957, %v3961
        %v3969 = vmul.f32 %v3956, %v3965
        %v3970 = vmul.f32 %v3958, %v3965
        %s3971 = scalar_lea.vmem %s3, 192
        %v3972 = vld [vmem:[%s3971] sm:$0xff]
        %v3973 = vld [vmem:[%s3971 + $0x8] sm:$0xff]
        %v3974 = vld [vmem:[%s3971 + $0x10] sm:$0xff]
        %v3975 = vld [vmem:[%s3971 + $0x18] sm:$0xff]
        %v3976 = vmul.f32 %v3967, %v3972
        %v3977 = vmul.f32 %v3968, %v3973
        %v3978 = vmul.f32 %v3969, %v3974
        %v3979 = vmul.f32 %v3970, %v3975
        %v3980 = vadd.f32 %v3942, %v3976
        %v3981 = vadd.f32 %v3943, %v3977
        %v3982 = vadd.f32 %v3944, %v3978
        %v3983 = vadd.f32 %v3945, %v3979
        %v3984 = vadd.f32 %v3980, %v3982
        %v3985 = vrot.slane %v3984, 4
        %v3986 = vadd.f32 %v3984, %v3985
        %v3987 = vrot.slane %v3986, 2
        %v3988 = vadd.f32 %v3986, %v3987
        %v3989 = vrot.slane %v3988, 1
        %v3990 = vadd.f32 %v3988, %v3989
        %v3991 = vadd.f32 %v3981, %v3983
        %v3992 = vrot.slane %v3991, 4
        %v3993 = vadd.f32 %v3991, %v3992
        %v3994 = vrot.slane %v3993, 2
        %v3995 = vadd.f32 %v3993, %v3994
        %v3996 = vrot.slane %v3995, 1
        %v3997 = vadd.f32 %v3995, %v3996
        %v3998 = vxor.u32 %v3990, 2147483648
        %v3999 = vxor.u32 %v3997, 2147483648
        %v4000 = vmul.f32 %v3998, 1.442695
        %v4001 = vpow.pop %v4000
        %v4002 = vmul.f32 %v3999, 1.442695
        %v4003 = vpow.pop %v4002
        %v4004 = vadd.f32 %v4001, 1.0
        %v4005 = vadd.f32 %v4003, 1.0
        %v4006 = vrcp.pop %v4004
        %v4007 = vmul.f32 1.0, %v4006
        %v4008 = vrcp.pop %v4005
        %v4009 = vmul.f32 1.0, %v4008
        %v4010 = vmul.f32 %v3518, %v4007
        %v4011 = vmul.f32 %v3519, %v4009
        %v4012 = vmul.f32 %v3520, %v4007
        %v4013 = vmul.f32 %v3521, %v4009
        %v4014 = vmul.f32 %v3522, %v4007
        %v4015 = vmul.f32 %v3523, %v4009
        %v4016 = vmul.f32 %v3524, %v4007
        %v4017 = vmul.f32 %v3525, %v4009
        %v4018 = vadd.f32 %v4010, %v483
        %v4019 = vadd.f32 %v4011, %v484
        %v4020 = vadd.f32 %v4012, %v485
        %v4021 = vadd.f32 %v4013, %v486
        %v4022 = vadd.f32 %v4014, %v487
        %v4023 = vadd.f32 %v4015, %v488
        %v4024 = vadd.f32 %v4016, %v489
        %v4025 = vadd.f32 %v4017, %v490
        %v4026 = vmax.f32 %v4018, 0.0
        %v4027 = vmax.f32 %v4019, 0.0
        %v4028 = vmax.f32 %v4020, 0.0
        %v4029 = vmax.f32 %v4021, 0.0
        %v4030 = vmax.f32 %v4022, 0.0
        %v4031 = vmax.f32 %v4023, 0.0
        %v4032 = vmax.f32 %v4024, 0.0
        %v4033 = vmax.f32 %v4025, 0.0
        %s4034 = scalar_lea.vmem [#allocation5], 416
        %v4035 = vld [vmem:[%s4034] sm:$0xff]
        %v4036 = vld [vmem:[%s4034 + $0x8] sm:$0xff]
        %v4037 = vld [vmem:[%s4034 + $0x10] sm:$0xff]
        %v4038 = vld [vmem:[%s4034 + $0x18] sm:$0xff]
        %4039 = vrot.lane.b32.xlu0 %v4026, 17
        %v4040 = vpop.permute.xlu0 %4039
        %4041 = vrot.lane.b32.xlu0 %v4028, 17
        %v4042 = vpop.permute.xlu0 %4041
        %4043 = vrot.lane.b32.xlu0 %v4030, 17
        %v4044 = vpop.permute.xlu0 %4043
        %4045 = vrot.lane.b32.xlu0 %v4032, 17
        %v4046 = vpop.permute.xlu0 %4045
        %4047 = vrot.lane.b32.xlu0 %v4027, 17
        %v4048 = vpop.permute.xlu0 %4047
        %4049 = vrot.lane.b32.xlu0 %v4029, 17
        %v4050 = vpop.permute.xlu0 %4049
        %4051 = vrot.lane.b32.xlu0 %v4031, 17
        %v4052 = vpop.permute.xlu0 %4051
        %4053 = vrot.lane.b32.xlu0 %v4033, 17
        %v4054 = vpop.permute.xlu0 %4053
        %v4055 = vsel %vm514, %v4040, %v4048
        %v4056 = vsel %vm514, %v4042, %v4050
        %v4057 = vsel %vm514, %v4044, %v4052
        %v4058 = vsel %vm514, %v4046, %v4054
        %v4059 = vsel %vm514, %v4048, %v4040
        %v4060 = vsel %vm514, %v4050, %v4042
        %v4061 = vsel %vm514, %v4052, %v4044
        %v4062 = vsel %vm514, %v4054, %v4046
        %v4063 = vmul.f32 %v4059, %v523
        %v4064 = vmul.f32 %v4055, %v524
        %v4065 = vmul.f32 %v4060, %v525
        %v4066 = vmul.f32 %v4056, %v526
        %v4067 = vmul.f32 %v4061, %v527
        %v4068 = vmul.f32 %v4057, %v528
        %v4069 = vmul.f32 %v4062, %v529
        %v4070 = vmul.f32 %v4058, %v530
        %s4071 = scalar_lea.vmem [#allocation5], 288
        %v4072 = vld [vmem:[%s4071] sm:$0xff]
        %v4073 = vld [vmem:[%s4071 + $0x8] sm:$0xff]
        %v4074 = vld [vmem:[%s4071 + $0x10] sm:$0xff]
        %v4075 = vld [vmem:[%s4071 + $0x18] sm:$0xff]
        %v4077 = vsel %vm543, %v4072, 0
        %v4080 = vsel %vm543, %v4073, 0
        %v4083 = vsel %vm543, %v4074, 0
        %v4086 = vsel %vm543, %v4075, 0
        %4088 = vmatprep.subr.mxu0 %v4064
        %4089 = vmatpush1.msra.mxu0 %v4063
        %4090 = vmatprep.subr.mxu0 %v4066
        %4091 = vmatpush1.msra.mxu0 %v4065
        %4092 = vmatprep.subr.mxu0 %v4068
        %4093 = vmatpush1.msra.mxu0 %v4067
        %4094 = vmatprep.subr.mxu0 %v4070
        %4095 = vmatpush1.msra.mxu0 %v4069
        %4096 = vmatprep.subr.mxu0 0.0
        %4097 = vmatpush1.msra.mxu0 0.0
        %4098 = vmatprep.subr.mxu0 0.0
        %4099 = vmatpush1.msra.mxu0 0.0
        %4100 = vmatprep.subr.mxu0 0.0
        %4101 = vmatpush1.msra.mxu0 0.0
        %4102 = vmatprep.subr.mxu0 0.0
        %4103 = vmatpush1.msra.mxu0 0.0
        %4104 = vmatprep.subr.mxu0 0.0
        %4105 = vmatpush1.msra.mxu0 0.0
        %4106 = vmatprep.subr.mxu0 0.0
        %4107 = vmatpush1.msra.mxu0 0.0
        %4108 = vmatprep.subr.mxu0 0.0
        %4109 = vmatpush1.msra.mxu0 0.0
        %4110 = vmatprep.subr.mxu0 0.0
        %4111 = vmatpush1.msra.mxu0 0.0
        %4112 = vmatprep.subr.mxu0 0.0
        %4113 = vmatpush1.msra.mxu0 0.0
        %4114 = vmatprep.subr.mxu0 0.0
        %4115 = vmatpush1.msra.mxu0 0.0
        %4116 = vmatprep.subr.mxu0 0.0
        %4117 = vmatpush1.msra.mxu0 0.0
        %4118 = vmatprep.subr.mxu0 0.0
        %4119 = vmatpush1.msra.mxu0 0.0
        %4120 = vmatprep.subr.mxu0 0.0
        %4121 = vmatpush1.msra.mxu0 0.0
        %4122 = vmatprep.subr.mxu0 0.0
        %4123 = vmatpush1.msra.mxu0 0.0
        %4124 = vmatprep.subr.mxu0 0.0
        %4125 = vmatpush1.msra.mxu0 0.0
        %4126 = vmatprep.subr.mxu0 0.0
        %4127 = vmatpush1.msra.mxu0 0.0
        %4128 = vmatprep.subr.mxu0 0.0
        %4129 = vmatpush1.msra.mxu0 0.0
        %4130 = vmatprep.subr.mxu0 0.0
        %4131 = vmatpush1.msra.mxu0 0.0
        %4132 = vmatprep.subr.mxu0 0.0
        %4133 = vmatpush1.msra.mxu0 0.0
        %4134 = vmatprep.subr.mxu0 0.0
        %4135 = vmatpush1.msra.mxu0 0.0
        %4136 = vmatprep.subr.mxu0 0.0
        %4137 = vmatpush1.msra.mxu0 0.0
        %4138 = vmatprep.subr.mxu0 0.0
        %4139 = vmatpush1.msra.mxu0 0.0
        %4140 = vmatprep.subr.mxu0 0.0
        %4141 = vmatpush1.msra.mxu0 0.0
        %4142 = vmatprep.subr.mxu0 0.0
        %4143 = vmatpush1.msra.mxu0 0.0
        %4144 = vmatprep.subr.mxu0 0.0
        %4145 = vmatpush1.msra.mxu0 0.0
        %4146 = vmatprep.subr.mxu0 0.0
        %4147 = vmatpush1.msra.mxu0 0.0
        %4148 = vmatprep.subr.mxu0 0.0
        %4149 = vmatpush1.msra.mxu0 0.0
        %4150 = vmatprep.subr.mxu0 0.0
        %4151 = vmatpush1.msra.mxu0 0.0
        %4152 = vmatprep.mubr.f32.mxu0 0.0
        %4153 = vmatmul.mubr.f32.gmra.mrb[0].mxu0 %v4077
        %v4154 = vpop.f32.mrb[0].mxu0
        %v4155 = vadd.f32 0.0, %v4154
        %v4156 = vpop.f32.mrb[0].mxu0
        %v4157 = vadd.f32 0.0, %v4156
        %4158 = vmatprep.mubr.f32.mxu0 0.0
        %4159 = vmatmul.mubr.f32.gmra.mrb[0].mxu0 %v4080
        %v4160 = vpop.f32.mrb[0].mxu0
        %v4161 = vadd.f32 0.0, %v4160
        %v4162 = vpop.f32.mrb[0].mxu0
        %v4163 = vadd.f32 0.0, %v4162
        %4164 = vmatprep.mubr.f32.mxu0 0.0
        %4165 = vmatmul.mubr.f32.gmra.mrb[0].mxu0 %v4083
        %v4166 = vpop.f32.mrb[0].mxu0
        %v4167 = vadd.f32 0.0, %v4166
        %v4168 = vpop.f32.mrb[0].mxu0
        %v4169 = vadd.f32 0.0, %v4168
        %4170 = vmatprep.mubr.f32.mxu0 0.0
        %4171 = vmatmul.mubr.f32.gmra.mrb[0].mxu0 %v4086
        %v4172 = vpop.f32.mrb[0].mxu0
        %v4173 = vadd.f32 0.0, %v4172
        %v4174 = vpop.f32.mrb[0].mxu0
        %v4175 = vadd.f32 0.0, %v4174
        %4176 = vdwg.mxu0
        %v4178 = vsel %vm543, %v4035, 0
        %v4181 = vsel %vm543, %v4036, 0
        %v4184 = vsel %vm543, %v4037, 0
        %v4187 = vsel %vm543, %v4038, 0
        %4189 = vmatprep.subr.mxu0 %v4027
        %4190 = vmatpush1.msra.mxu0 %v4026
        %4191 = vmatprep.subr.mxu0 %v4029
        %4192 = vmatpush1.msra.mxu0 %v4028
        %4193 = vmatprep.subr.mxu0 %v4031
        %4194 = vmatpush1.msra.mxu0 %v4030
        %4195 = vmatprep.subr.mxu0 %v4033
        %4196 = vmatpush1.msra.mxu0 %v4032
        %4197 = vmatprep.subr.mxu0 0.0
        %4198 = vmatpush1.msra.mxu0 0.0
        %4199 = vmatprep.subr.mxu0 0.0
        %4200 = vmatpush1.msra.mxu0 0.0
        %4201 = vmatprep.subr.mxu0 0.0
        %4202 = vmatpush1.msra.mxu0 0.0
        %4203 = vmatprep.subr.mxu0 0.0
        %4204 = vmatpush1.msra.mxu0 0.0
        %4205 = vmatprep.subr.mxu0 0.0
        %4206 = vmatpush1.msra.mxu0 0.0
        %4207 = vmatprep.subr.mxu0 0.0
        %4208 = vmatpush1.msra.mxu0 0.0
        %4209 = vmatprep.subr.mxu0 0.0
        %4210 = vmatpush1.msra.mxu0 0.0
        %4211 = vmatprep.subr.mxu0 0.0
        %4212 = vmatpush1.msra.mxu0 0.0
        %4213 = vmatprep.subr.mxu0 0.0
        %4214 = vmatpush1.msra.mxu0 0.0
        %4215 = vmatprep.subr.mxu0 0.0
        %4216 = vmatpush1.msra.mxu0 0.0
        %4217 = vmatprep.subr.mxu0 0.0
        %4218 = vmatpush1.msra.mxu0 0.0
        %4219 = vmatprep.subr.mxu0 0.0
        %4220 = vmatpush1.msra.mxu0 0.0
        %4221 = vmatprep.subr.mxu0 0.0
        %4222 = vmatpush1.msra.mxu0 0.0
        %4223 = vmatprep.subr.mxu0 0.0
        %4224 = vmatpush1.msra.mxu0 0.0
        %4225 = vmatprep.subr.mxu0 0.0
        %4226 = vmatpush1.msra.mxu0 0.0
        %4227 = vmatprep.subr.mxu0 0.0
        %4228 = vmatpush1.msra.mxu0 0.0
        %4229 = vmatprep.subr.mxu0 0.0
        %4230 = vmatpush1.msra.mxu0 0.0
        %4231 = vmatprep.subr.mxu0 0.0
        %4232 = vmatpush1.msra.mxu0 0.0
        %4233 = vmatprep.subr.mxu0 0.0
        %4234 = vmatpush1.msra.mxu0 0.0
        %4235 = vmatprep.subr.mxu0 0.0
        %4236 = vmatpush1.msra.mxu0 0.0
        %4237 = vmatprep.subr.mxu0 0.0
        %4238 = vmatpush1.msra.mxu0 0.0
        %4239 = vmatprep.subr.mxu0 0.0
        %4240 = vmatpush1.msra.mxu0 0.0
        %4241 = vmatprep.subr.mxu0 0.0
        %4242 = vmatpush1.msra.mxu0 0.0
        %4243 = vmatprep.subr.mxu0 0.0
        %4244 = vmatpush1.msra.mxu0 0.0
        %4245 = vmatprep.subr.mxu0 0.0
        %4246 = vmatpush1.msra.mxu0 0.0
        %4247 = vmatprep.subr.mxu0 0.0
        %4248 = vmatpush1.msra.mxu0 0.0
        %4249 = vmatprep.subr.mxu0 0.0
        %4250 = vmatpush1.msra.mxu0 0.0
        %4251 = vmatprep.subr.mxu0 0.0
        %4252 = vmatpush1.msra.mxu0 0.0
        %4253 = vmatprep.mubr.f32.mxu0 0.0
        %4254 = vmatmul.mubr.f32.gmra.mrb[0].mxu0 %v4178
        %v4255 = vpop.f32.mrb[0].mxu0
        %v4256 = vadd.f32 %v4155, %v4255
        %v4257 = vpop.f32.mrb[0].mxu0
        %v4258 = vadd.f32 %v4157, %v4257
        %4259 = vmatprep.mubr.f32.mxu0 0.0
        %4260 = vmatmul.mubr.f32.gmra.mrb[0].mxu0 %v4181
        %v4261 = vpop.f32.mrb[0].mxu0
        %v4262 = vadd.f32 %v4161, %v4261
        %v4263 = vpop.f32.mrb[0].mxu0
        %v4264 = vadd.f32 %v4163, %v4263
        %4265 = vmatprep.mubr.f32.mxu0 0.0
        %4266 = vmatmul.mubr.f32.gmra.mrb[0].mxu0 %v4184
        %v4267 = vpop.f32.mrb[0].mxu0
        %v4268 = vadd.f32 %v4167, %v4267
        %v4269 = vpop.f32.mrb[0].mxu0
        %v4270 = vadd.f32 %v4169, %v4269
        %4271 = vmatprep.mubr.f32.mxu0 0.0
        %4272 = vmatmul.mubr.f32.gmra.mrb[0].mxu0 %v4187
        %v4273 = vpop.f32.mrb[0].mxu0
        %v4274 = vadd.f32 %v4173, %v4273
        %v4275 = vpop.f32.mrb[0].mxu0
        %v4276 = vadd.f32 %v4175, %v4275
        %4277 = vdwg.mxu0
        %4278 = vrot.lane.b32.xlu0 %v4026, 16
        %v4279 = vpop.permute.xlu0 %4278
        %4280 = vrot.lane.b32.xlu0 %v4028, 16
        %v4281 = vpop.permute.xlu0 %4280
        %4282 = vrot.lane.b32.xlu0 %v4030, 16
        %v4283 = vpop.permute.xlu0 %4282
        %4284 = vrot.lane.b32.xlu0 %v4032, 16
        %v4285 = vpop.permute.xlu0 %4284
        %4286 = vrot.lane.b32.xlu0 %v4027, 16
        %v4287 = vpop.permute.xlu0 %4286
        %4288 = vrot.lane.b32.xlu0 %v4029, 16
        %v4289 = vpop.permute.xlu0 %4288
        %4290 = vrot.lane.b32.xlu0 %v4031, 16
        %v4291 = vpop.permute.xlu0 %4290
        %4292 = vrot.lane.b32.xlu0 %v4033, 16
        %v4293 = vpop.permute.xlu0 %4292
        %v4294 = vsel %vm762, %v4279, %v4287
        %v4295 = vsel %vm762, %v4281, %v4289
        %v4296 = vsel %vm762, %v4283, %v4291
        %v4297 = vsel %vm762, %v4285, %v4293
        %v4298 = vsel %vm762, %v4287, %v4279
        %v4299 = vsel %vm762, %v4289, %v4281
        %v4300 = vsel %vm762, %v4291, %v4283
        %v4301 = vsel %vm762, %v4293, %v4285
        %v4302 = vmul.f32 %v4298, %v772
        %v4303 = vmul.f32 %v4294, %v773
        %v4304 = vmul.f32 %v4299, %v774
        %v4305 = vmul.f32 %v4295, %v775
        %v4306 = vmul.f32 %v4300, %v776
        %v4307 = vmul.f32 %v4296, %v777
        %v4308 = vmul.f32 %v4301, %v778
        %v4309 = vmul.f32 %v4297, %v779
        %s4310 = scalar_lea.vmem [#allocation5], 320
        %v4311 = vld [vmem:[%s4310] sm:$0xff]
        %v4312 = vld [vmem:[%s4310 + $0x8] sm:$0xff]
        %v4313 = vld [vmem:[%s4310 + $0x10] sm:$0xff]
        %v4314 = vld [vmem:[%s4310 + $0x18] sm:$0xff]
        %v4316 = vsel %vm543, %v4311, 0
        %v4319 = vsel %vm543, %v4312, 0
        %v4322 = vsel %vm543, %v4313, 0
        %v4325 = vsel %vm543, %v4314, 0
        %4327 = vmatprep.subr.mxu0 %v4303
        %4328 = vmatpush1.msra.mxu0 %v4302
        %4329 = vmatprep.subr.mxu0 %v4305
        %4330 = vmatpush1.msra.mxu0 %v4304
        %4331 = vmatprep.subr.mxu0 %v4307
        %4332 = vmatpush1.msra.mxu0 %v4306
        %4333 = vmatprep.subr.mxu0 %v4309
        %4334 = vmatpush1.msra.mxu0 %v4308
        %4335 = vmatprep.subr.mxu0 0.0
        %4336 = vmatpush1.msra.mxu0 0.0
        %4337 = vmatprep.subr.mxu0 0.0
        %4338 = vmatpush1.msra.mxu0 0.0
        %4339 = vmatprep.subr.mxu0 0.0
        %4340 = vmatpush1.msra.mxu0 0.0
        %4341 = vmatprep.subr.mxu0 0.0
        %4342 = vmatpush1.msra.mxu0 0.0
        %4343 = vmatprep.subr.mxu0 0.0
        %4344 = vmatpush1.msra.mxu0 0.0
        %4345 = vmatprep.subr.mxu0 0.0
        %4346 = vmatpush1.msra.mxu0 0.0
        %4347 = vmatprep.subr.mxu0 0.0
        %4348 = vmatpush1.msra.mxu0 0.0
        %4349 = vmatprep.subr.mxu0 0.0
        %4350 = vmatpush1.msra.mxu0 0.0
        %4351 = vmatprep.subr.mxu0 0.0
        %4352 = vmatpush1.msra.mxu0 0.0
        %4353 = vmatprep.subr.mxu0 0.0
        %4354 = vmatpush1.msra.mxu0 0.0
        %4355 = vmatprep.subr.mxu0 0.0
        %4356 = vmatpush1.msra.mxu0 0.0
        %4357 = vmatprep.subr.mxu0 0.0
        %4358 = vmatpush1.msra.mxu0 0.0
        %4359 = vmatprep.subr.mxu0 0.0
        %4360 = vmatpush1.msra.mxu0 0.0
        %4361 = vmatprep.subr.mxu0 0.0
        %4362 = vmatpush1.msra.mxu0 0.0
        %4363 = vmatprep.subr.mxu0 0.0
        %4364 = vmatpush1.msra.mxu0 0.0
        %4365 = vmatprep.subr.mxu0 0.0
        %4366 = vmatpush1.msra.mxu0 0.0
        %4367 = vmatprep.subr.mxu0 0.0
        %4368 = vmatpush1.msra.mxu0 0.0
        %4369 = vmatprep.subr.mxu0 0.0
        %4370 = vmatpush1.msra.mxu0 0.0
        %4371 = vmatprep.subr.mxu0 0.0
        %4372 = vmatpush1.msra.mxu0 0.0
        %4373 = vmatprep.subr.mxu0 0.0
        %4374 = vmatpush1.msra.mxu0 0.0
        %4375 = vmatprep.subr.mxu0 0.0
        %4376 = vmatpush1.msra.mxu0 0.0
        %4377 = vmatprep.subr.mxu0 0.0
        %4378 = vmatpush1.msra.mxu0 0.0
        %4379 = vmatprep.subr.mxu0 0.0
        %4380 = vmatpush1.msra.mxu0 0.0
        %4381 = vmatprep.subr.mxu0 0.0
        %4382 = vmatpush1.msra.mxu0 0.0
        %4383 = vmatprep.subr.mxu0 0.0
        %4384 = vmatpush1.msra.mxu0 0.0
        %4385 = vmatprep.subr.mxu0 0.0
        %4386 = vmatpush1.msra.mxu0 0.0
        %4387 = vmatprep.subr.mxu0 0.0
        %4388 = vmatpush1.msra.mxu0 0.0
        %4389 = vmatprep.subr.mxu0 0.0
        %4390 = vmatpush1.msra.mxu0 0.0
        %4391 = vmatprep.mubr.f32.mxu0 0.0
        %4392 = vmatmul.mubr.f32.gmra.mrb[0].mxu0 %v4316
        %v4393 = vpop.f32.mrb[0].mxu0
        %v4394 = vadd.f32 0.0, %v4393
        %v4395 = vpop.f32.mrb[0].mxu0
        %v4396 = vadd.f32 0.0, %v4395
        %4397 = vmatprep.mubr.f32.mxu0 0.0
        %4398 = vmatmul.mubr.f32.gmra.mrb[0].mxu0 %v4319
        %v4399 = vpop.f32.mrb[0].mxu0
        %v4400 = vadd.f32 0.0, %v4399
        %v4401 = vpop.f32.mrb[0].mxu0
        %v4402 = vadd.f32 0.0, %v4401
        %4403 = vmatprep.mubr.f32.mxu0 0.0
        %4404 = vmatmul.mubr.f32.gmra.mrb[0].mxu0 %v4322
        %v4405 = vpop.f32.mrb[0].mxu0
        %v4406 = vadd.f32 0.0, %v4405
        %v4407 = vpop.f32.mrb[0].mxu0
        %v4408 = vadd.f32 0.0, %v4407
        %4409 = vmatprep.mubr.f32.mxu0 0.0
        %4410 = vmatmul.mubr.f32.gmra.mrb[0].mxu0 %v4325
        %v4411 = vpop.f32.mrb[0].mxu0
        %v4412 = vadd.f32 0.0, %v4411
        %v4413 = vpop.f32.mrb[0].mxu0
        %v4414 = vadd.f32 0.0, %v4413
        %4415 = vdwg.mxu0
        %v4416 = vadd.f32 %v4256, %v4394
        %v4417 = vadd.f32 %v4258, %v4396
        %v4418 = vadd.f32 %v4262, %v4400
        %v4419 = vadd.f32 %v4264, %v4402
        %v4420 = vadd.f32 %v4268, %v4406
        %v4421 = vadd.f32 %v4270, %v4408
        %v4422 = vadd.f32 %v4274, %v4412
        %v4423 = vadd.f32 %v4276, %v4414
        %4424 = vrot.lane.b32.xlu0 %v4026, 15
        %v4425 = vpop.permute.xlu0 %4424
        %4426 = vrot.lane.b32.xlu0 %v4028, 15
        %v4427 = vpop.permute.xlu0 %4426
        %4428 = vrot.lane.b32.xlu0 %v4030, 15
        %v4429 = vpop.permute.xlu0 %4428
        %4430 = vrot.lane.b32.xlu0 %v4032, 15
        %v4431 = vpop.permute.xlu0 %4430
        %4432 = vrot.lane.b32.xlu0 %v4027, 15
        %v4433 = vpop.permute.xlu0 %4432
        %4434 = vrot.lane.b32.xlu0 %v4029, 15
        %v4435 = vpop.permute.xlu0 %4434
        %4436 = vrot.lane.b32.xlu0 %v4031, 15
        %v4437 = vpop.permute.xlu0 %4436
        %4438 = vrot.lane.b32.xlu0 %v4033, 15
        %v4439 = vpop.permute.xlu0 %4438
        %v4440 = vsel %vm918, %v4425, %v4433
        %v4441 = vsel %vm918, %v4427, %v4435
        %v4442 = vsel %vm918, %v4429, %v4437
        %v4443 = vsel %vm918, %v4431, %v4439
        %v4444 = vsel %vm918, %v4433, %v4425
        %v4445 = vsel %vm918, %v4435, %v4427
        %v4446 = vsel %vm918, %v4437, %v4429
        %v4447 = vsel %vm918, %v4439, %v4431
        %v4448 = vmul.f32 %v4444, %v928
        %v4449 = vmul.f32 %v4440, %v929
        %v4450 = vmul.f32 %v4445, %v930
        %v4451 = vmul.f32 %v4441, %v931
        %v4452 = vmul.f32 %v4446, %v932
        %v4453 = vmul.f32 %v4442, %v933
        %v4454 = vmul.f32 %v4447, %v934
        %v4455 = vmul.f32 %v4443, %v935
        %s4456 = scalar_lea.vmem [#allocation5], 352
        %v4457 = vld [vmem:[%s4456] sm:$0xff]
        %v4458 = vld [vmem:[%s4456 + $0x8] sm:$0xff]
        %v4459 = vld [vmem:[%s4456 + $0x10] sm:$0xff]
        %v4460 = vld [vmem:[%s4456 + $0x18] sm:$0xff]
        %v4462 = vsel %vm543, %v4457, 0
        %v4465 = vsel %vm543, %v4458, 0
        %v4468 = vsel %vm543, %v4459, 0
        %v4471 = vsel %vm543, %v4460, 0
        %4473 = vmatprep.subr.mxu0 %v4449
        %4474 = vmatpush1.msra.mxu0 %v4448
        %4475 = vmatprep.subr.mxu0 %v4451
        %4476 = vmatpush1.msra.mxu0 %v4450
        %4477 = vmatprep.subr.mxu0 %v4453
        %4478 = vmatpush1.msra.mxu0 %v4452
        %4479 = vmatprep.subr.mxu0 %v4455
        %4480 = vmatpush1.msra.mxu0 %v4454
        %4481 = vmatprep.subr.mxu0 0.0
        %4482 = vmatpush1.msra.mxu0 0.0
        %4483 = vmatprep.subr.mxu0 0.0
        %4484 = vmatpush1.msra.mxu0 0.0
        %4485 = vmatprep.subr.mxu0 0.0
        %4486 = vmatpush1.msra.mxu0 0.0
        %4487 = vmatprep.subr.mxu0 0.0
        %4488 = vmatpush1.msra.mxu0 0.0
        %4489 = vmatprep.subr.mxu0 0.0
        %4490 = vmatpush1.msra.mxu0 0.0
        %4491 = vmatprep.subr.mxu0 0.0
        %4492 = vmatpush1.msra.mxu0 0.0
        %4493 = vmatprep.subr.mxu0 0.0
        %4494 = vmatpush1.msra.mxu0 0.0
        %4495 = vmatprep.subr.mxu0 0.0
        %4496 = vmatpush1.msra.mxu0 0.0
        %4497 = vmatprep.subr.mxu0 0.0
        %4498 = vmatpush1.msra.mxu0 0.0
        %4499 = vmatprep.subr.mxu0 0.0
        %4500 = vmatpush1.msra.mxu0 0.0
        %4501 = vmatprep.subr.mxu0 0.0
        %4502 = vmatpush1.msra.mxu0 0.0
        %4503 = vmatprep.subr.mxu0 0.0
        %4504 = vmatpush1.msra.mxu0 0.0
        %4505 = vmatprep.subr.mxu0 0.0
        %4506 = vmatpush1.msra.mxu0 0.0
        %4507 = vmatprep.subr.mxu0 0.0
        %4508 = vmatpush1.msra.mxu0 0.0
        %4509 = vmatprep.subr.mxu0 0.0
        %4510 = vmatpush1.msra.mxu0 0.0
        %4511 = vmatprep.subr.mxu0 0.0
        %4512 = vmatpush1.msra.mxu0 0.0
        %4513 = vmatprep.subr.mxu0 0.0
        %4514 = vmatpush1.msra.mxu0 0.0
        %4515 = vmatprep.subr.mxu0 0.0
        %4516 = vmatpush1.msra.mxu0 0.0
        %4517 = vmatprep.subr.mxu0 0.0
        %4518 = vmatpush1.msra.mxu0 0.0
        %4519 = vmatprep.subr.mxu0 0.0
        %4520 = vmatpush1.msra.mxu0 0.0
        %4521 = vmatprep.subr.mxu0 0.0
        %4522 = vmatpush1.msra.mxu0 0.0
        %4523 = vmatprep.subr.mxu0 0.0
        %4524 = vmatpush1.msra.mxu0 0.0
        %4525 = vmatprep.subr.mxu0 0.0
        %4526 = vmatpush1.msra.mxu0 0.0
        %4527 = vmatprep.subr.mxu0 0.0
        %4528 = vmatpush1.msra.mxu0 0.0
        %4529 = vmatprep.subr.mxu0 0.0
        %4530 = vmatpush1.msra.mxu0 0.0
        %4531 = vmatprep.subr.mxu0 0.0
        %4532 = vmatpush1.msra.mxu0 0.0
        %4533 = vmatprep.subr.mxu0 0.0
        %4534 = vmatpush1.msra.mxu0 0.0
        %4535 = vmatprep.subr.mxu0 0.0
        %4536 = vmatpush1.msra.mxu0 0.0
        %4537 = vmatprep.mubr.f32.mxu0 0.0
        %4538 = vmatmul.mubr.f32.gmra.mrb[0].mxu0 %v4462
        %v4539 = vpop.f32.mrb[0].mxu0
        %v4540 = vadd.f32 0.0, %v4539
        %v4541 = vpop.f32.mrb[0].mxu0
        %v4542 = vadd.f32 0.0, %v4541
        %4543 = vmatprep.mubr.f32.mxu0 0.0
        %4544 = vmatmul.mubr.f32.gmra.mrb[0].mxu0 %v4465
        %v4545 = vpop.f32.mrb[0].mxu0
        %v4546 = vadd.f32 0.0, %v4545
        %v4547 = vpop.f32.mrb[0].mxu0
        %v4548 = vadd.f32 0.0, %v4547
        %4549 = vmatprep.mubr.f32.mxu0 0.0
        %4550 = vmatmul.mubr.f32.gmra.mrb[0].mxu0 %v4468
        %v4551 = vpop.f32.mrb[0].mxu0
        %v4552 = vadd.f32 0.0, %v4551
        %v4553 = vpop.f32.mrb[0].mxu0
        %v4554 = vadd.f32 0.0, %v4553
        %4555 = vmatprep.mubr.f32.mxu0 0.0
        %4556 = vmatmul.mubr.f32.gmra.mrb[0].mxu0 %v4471
        %v4557 = vpop.f32.mrb[0].mxu0
        %v4558 = vadd.f32 0.0, %v4557
        %v4559 = vpop.f32.mrb[0].mxu0
        %v4560 = vadd.f32 0.0, %v4559
        %4561 = vdwg.mxu0
        %v4562 = vadd.f32 %v4416, %v4540
        %v4563 = vadd.f32 %v4417, %v4542
        %v4564 = vadd.f32 %v4418, %v4546
        %v4565 = vadd.f32 %v4419, %v4548
        %v4566 = vadd.f32 %v4420, %v4552
        %v4567 = vadd.f32 %v4421, %v4554
        %v4568 = vadd.f32 %v4422, %v4558
        %v4569 = vadd.f32 %v4423, %v4560
        %4570 = vrot.lane.b32.xlu0 %v4026, 1
        %v4571 = vpop.permute.xlu0 %4570
        %4572 = vrot.lane.b32.xlu0 %v4028, 1
        %v4573 = vpop.permute.xlu0 %4572
        %4574 = vrot.lane.b32.xlu0 %v4030, 1
        %v4575 = vpop.permute.xlu0 %4574
        %4576 = vrot.lane.b32.xlu0 %v4032, 1
        %v4577 = vpop.permute.xlu0 %4576
        %4578 = vrot.lane.b32.xlu0 %v4027, 1
        %v4579 = vpop.permute.xlu0 %4578
        %4580 = vrot.lane.b32.xlu0 %v4029, 1
        %v4581 = vpop.permute.xlu0 %4580
        %4582 = vrot.lane.b32.xlu0 %v4031, 1
        %v4583 = vpop.permute.xlu0 %4582
        %4584 = vrot.lane.b32.xlu0 %v4033, 1
        %v4585 = vpop.permute.xlu0 %4584
        %v4586 = vsel %vm1074, %v4571, %v4579
        %v4587 = vsel %vm1074, %v4573, %v4581
        %v4588 = vsel %vm1074, %v4575, %v4583
        %v4589 = vsel %vm1074, %v4577, %v4585
        %v4590 = vsel %vm1074, %v4579, %v4571
        %v4591 = vsel %vm1074, %v4581, %v4573
        %v4592 = vsel %vm1074, %v4583, %v4575
        %v4593 = vsel %vm1074, %v4585, %v4577
        %v4594 = vmul.f32 %v4590, %v1084
        %v4595 = vmul.f32 %v4586, %v1085
        %v4596 = vmul.f32 %v4591, %v1086
        %v4597 = vmul.f32 %v4587, %v1087
        %v4598 = vmul.f32 %v4592, %v1088
        %v4599 = vmul.f32 %v4588, %v1089
        %v4600 = vmul.f32 %v4593, %v1090
        %v4601 = vmul.f32 %v4589, %v1091
        %s4602 = scalar_lea.vmem [#allocation5], 384
        %v4603 = vld [vmem:[%s4602] sm:$0xff]
        %v4604 = vld [vmem:[%s4602 + $0x8] sm:$0xff]
        %v4605 = vld [vmem:[%s4602 + $0x10] sm:$0xff]
        %v4606 = vld [vmem:[%s4602 + $0x18] sm:$0xff]
        %v4608 = vsel %vm543, %v4603, 0
        %v4611 = vsel %vm543, %v4604, 0
        %v4614 = vsel %vm543, %v4605, 0
        %v4617 = vsel %vm543, %v4606, 0
        %4619 = vmatprep.subr.mxu0 %v4595
        %4620 = vmatpush1.msra.mxu0 %v4594
        %4621 = vmatprep.subr.mxu0 %v4597
        %4622 = vmatpush1.msra.mxu0 %v4596
        %4623 = vmatprep.subr.mxu0 %v4599
        %4624 = vmatpush1.msra.mxu0 %v4598
        %4625 = vmatprep.subr.mxu0 %v4601
        %4626 = vmatpush1.msra.mxu0 %v4600
        %4627 = vmatprep.subr.mxu0 0.0
        %4628 = vmatpush1.msra.mxu0 0.0
        %4629 = vmatprep.subr.mxu0 0.0
        %4630 = vmatpush1.msra.mxu0 0.0
        %4631 = vmatprep.subr.mxu0 0.0
        %4632 = vmatpush1.msra.mxu0 0.0
        %4633 = vmatprep.subr.mxu0 0.0
        %4634 = vmatpush1.msra.mxu0 0.0
        %4635 = vmatprep.subr.mxu0 0.0
        %4636 = vmatpush1.msra.mxu0 0.0
        %4637 = vmatprep.subr.mxu0 0.0
        %4638 = vmatpush1.msra.mxu0 0.0
        %4639 = vmatprep.subr.mxu0 0.0
        %4640 = vmatpush1.msra.mxu0 0.0
        %4641 = vmatprep.subr.mxu0 0.0
        %4642 = vmatpush1.msra.mxu0 0.0
        %4643 = vmatprep.subr.mxu0 0.0
        %4644 = vmatpush1.msra.mxu0 0.0
        %4645 = vmatprep.subr.mxu0 0.0
        %4646 = vmatpush1.msra.mxu0 0.0
        %4647 = vmatprep.subr.mxu0 0.0
        %4648 = vmatpush1.msra.mxu0 0.0
        %4649 = vmatprep.subr.mxu0 0.0
        %4650 = vmatpush1.msra.mxu0 0.0
        %4651 = vmatprep.subr.mxu0 0.0
        %4652 = vmatpush1.msra.mxu0 0.0
        %4653 = vmatprep.subr.mxu0 0.0
        %4654 = vmatpush1.msra.mxu0 0.0
        %4655 = vmatprep.subr.mxu0 0.0
        %4656 = vmatpush1.msra.mxu0 0.0
        %4657 = vmatprep.subr.mxu0 0.0
        %4658 = vmatpush1.msra.mxu0 0.0
        %4659 = vmatprep.subr.mxu0 0.0
        %4660 = vmatpush1.msra.mxu0 0.0
        %4661 = vmatprep.subr.mxu0 0.0
        %4662 = vmatpush1.msra.mxu0 0.0
        %4663 = vmatprep.subr.mxu0 0.0
        %4664 = vmatpush1.msra.mxu0 0.0
        %4665 = vmatprep.subr.mxu0 0.0
        %4666 = vmatpush1.msra.mxu0 0.0
        %4667 = vmatprep.subr.mxu0 0.0
        %4668 = vmatpush1.msra.mxu0 0.0
        %4669 = vmatprep.subr.mxu0 0.0
        %4670 = vmatpush1.msra.mxu0 0.0
        %4671 = vmatprep.subr.mxu0 0.0
        %4672 = vmatpush1.msra.mxu0 0.0
        %4673 = vmatprep.subr.mxu0 0.0
        %4674 = vmatpush1.msra.mxu0 0.0
        %4675 = vmatprep.subr.mxu0 0.0
        %4676 = vmatpush1.msra.mxu0 0.0
        %4677 = vmatprep.subr.mxu0 0.0
        %4678 = vmatpush1.msra.mxu0 0.0
        %4679 = vmatprep.subr.mxu0 0.0
        %4680 = vmatpush1.msra.mxu0 0.0
        %4681 = vmatprep.subr.mxu0 0.0
        %4682 = vmatpush1.msra.mxu0 0.0
        %4683 = vmatprep.mubr.f32.mxu0 0.0
        %4684 = vmatmul.mubr.f32.gmra.mrb[0].mxu0 %v4608
        %v4685 = vpop.f32.mrb[0].mxu0
        %v4686 = vadd.f32 0.0, %v4685
        %v4687 = vpop.f32.mrb[0].mxu0
        %v4688 = vadd.f32 0.0, %v4687
        %4689 = vmatprep.mubr.f32.mxu0 0.0
        %4690 = vmatmul.mubr.f32.gmra.mrb[0].mxu0 %v4611
        %v4691 = vpop.f32.mrb[0].mxu0
        %v4692 = vadd.f32 0.0, %v4691
        %v4693 = vpop.f32.mrb[0].mxu0
        %v4694 = vadd.f32 0.0, %v4693
        %4695 = vmatprep.mubr.f32.mxu0 0.0
        %4696 = vmatmul.mubr.f32.gmra.mrb[0].mxu0 %v4614
        %v4697 = vpop.f32.mrb[0].mxu0
        %v4698 = vadd.f32 0.0, %v4697
        %v4699 = vpop.f32.mrb[0].mxu0
        %v4700 = vadd.f32 0.0, %v4699
        %4701 = vmatprep.mubr.f32.mxu0 0.0
        %4702 = vmatmul.mubr.f32.gmra.mrb[0].mxu0 %v4617
        %v4703 = vpop.f32.mrb[0].mxu0
        %v4704 = vadd.f32 0.0, %v4703
        %v4705 = vpop.f32.mrb[0].mxu0
        %v4706 = vadd.f32 0.0, %v4705
        %4707 = vdwg.mxu0
        %v4708 = vadd.f32 %v4562, %v4686
        %v4709 = vadd.f32 %v4563, %v4688
        %v4710 = vadd.f32 %v4564, %v4692
        %v4711 = vadd.f32 %v4565, %v4694
        %v4712 = vadd.f32 %v4566, %v4698
        %v4713 = vadd.f32 %v4567, %v4700
        %v4714 = vadd.f32 %v4568, %v4704
        %v4715 = vadd.f32 %v4569, %v4706
        %4716 = vrot.lane.b32.xlu0 %v4026, 127
        %v4717 = vpop.permute.xlu0 %4716
        %4718 = vrot.lane.b32.xlu0 %v4028, 127
        %v4719 = vpop.permute.xlu0 %4718
        %4720 = vrot.lane.b32.xlu0 %v4030, 127
        %v4721 = vpop.permute.xlu0 %4720
        %4722 = vrot.lane.b32.xlu0 %v4032, 127
        %v4723 = vpop.permute.xlu0 %4722
        %4724 = vrot.lane.b32.xlu0 %v4027, 127
        %v4725 = vpop.permute.xlu0 %4724
        %4726 = vrot.lane.b32.xlu0 %v4029, 127
        %v4727 = vpop.permute.xlu0 %4726
        %4728 = vrot.lane.b32.xlu0 %v4031, 127
        %v4729 = vpop.permute.xlu0 %4728
        %4730 = vrot.lane.b32.xlu0 %v4033, 127
        %v4731 = vpop.permute.xlu0 %4730
        %v4732 = vsel %vm1230, %v4717, %v4725
        %v4733 = vsel %vm1230, %v4719, %v4727
        %v4734 = vsel %vm1230, %v4721, %v4729
        %v4735 = vsel %vm1230, %v4723, %v4731
        %v4736 = vsel %vm1230, %v4725, %v4717
        %v4737 = vsel %vm1230, %v4727, %v4719
        %v4738 = vsel %vm1230, %v4729, %v4721
        %v4739 = vsel %vm1230, %v4731, %v4723
        %v4740 = vmul.f32 %v4732, %v1240
        %v4741 = vmul.f32 %v4736, %v1241
        %v4742 = vmul.f32 %v4733, %v1242
        %v4743 = vmul.f32 %v4737, %v1243
        %v4744 = vmul.f32 %v4734, %v1244
        %v4745 = vmul.f32 %v4738, %v1245
        %v4746 = vmul.f32 %v4735, %v1246
        %v4747 = vmul.f32 %v4739, %v1247
        %s4748 = scalar_lea.vmem [#allocation5], 448
        %v4749 = vld [vmem:[%s4748] sm:$0xff]
        %v4750 = vld [vmem:[%s4748 + $0x8] sm:$0xff]
        %v4751 = vld [vmem:[%s4748 + $0x10] sm:$0xff]
        %v4752 = vld [vmem:[%s4748 + $0x18] sm:$0xff]
        %v4754 = vsel %vm543, %v4749, 0
        %v4757 = vsel %vm543, %v4750, 0
        %v4760 = vsel %vm543, %v4751, 0
        %v4763 = vsel %vm543, %v4752, 0
        %4765 = vmatprep.subr.mxu0 %v4741
        %4766 = vmatpush1.msra.mxu0 %v4740
        %4767 = vmatprep.subr.mxu0 %v4743
        %4768 = vmatpush1.msra.mxu0 %v4742
        %4769 = vmatprep.subr.mxu0 %v4745
        %4770 = vmatpush1.msra.mxu0 %v4744
        %4771 = vmatprep.subr.mxu0 %v4747
        %4772 = vmatpush1.msra.mxu0 %v4746
        %4773 = vmatprep.subr.mxu0 0.0
        %4774 = vmatpush1.msra.mxu0 0.0
        %4775 = vmatprep.subr.mxu0 0.0
        %4776 = vmatpush1.msra.mxu0 0.0
        %4777 = vmatprep.subr.mxu0 0.0
        %4778 = vmatpush1.msra.mxu0 0.0
        %4779 = vmatprep.subr.mxu0 0.0
        %4780 = vmatpush1.msra.mxu0 0.0
        %4781 = vmatprep.subr.mxu0 0.0
        %4782 = vmatpush1.msra.mxu0 0.0
        %4783 = vmatprep.subr.mxu0 0.0
        %4784 = vmatpush1.msra.mxu0 0.0
        %4785 = vmatprep.subr.mxu0 0.0
        %4786 = vmatpush1.msra.mxu0 0.0
        %4787 = vmatprep.subr.mxu0 0.0
        %4788 = vmatpush1.msra.mxu0 0.0
        %4789 = vmatprep.subr.mxu0 0.0
        %4790 = vmatpush1.msra.mxu0 0.0
        %4791 = vmatprep.subr.mxu0 0.0
        %4792 = vmatpush1.msra.mxu0 0.0
        %4793 = vmatprep.subr.mxu0 0.0
        %4794 = vmatpush1.msra.mxu0 0.0
        %4795 = vmatprep.subr.mxu0 0.0
        %4796 = vmatpush1.msra.mxu0 0.0
        %4797 = vmatprep.subr.mxu0 0.0
        %4798 = vmatpush1.msra.mxu0 0.0
        %4799 = vmatprep.subr.mxu0 0.0
        %4800 = vmatpush1.msra.mxu0 0.0
        %4801 = vmatprep.subr.mxu0 0.0
        %4802 = vmatpush1.msra.mxu0 0.0
        %4803 = vmatprep.subr.mxu0 0.0
        %4804 = vmatpush1.msra.mxu0 0.0
        %4805 = vmatprep.subr.mxu0 0.0
        %4806 = vmatpush1.msra.mxu0 0.0
        %4807 = vmatprep.subr.mxu0 0.0
        %4808 = vmatpush1.msra.mxu0 0.0
        %4809 = vmatprep.subr.mxu0 0.0
        %4810 = vmatpush1.msra.mxu0 0.0
        %4811 = vmatprep.subr.mxu0 0.0
        %4812 = vmatpush1.msra.mxu0 0.0
        %4813 = vmatprep.subr.mxu0 0.0
        %4814 = vmatpush1.msra.mxu0 0.0
        %4815 = vmatprep.subr.mxu0 0.0
        %4816 = vmatpush1.msra.mxu0 0.0
        %4817 = vmatprep.subr.mxu0 0.0
        %4818 = vmatpush1.msra.mxu0 0.0
        %4819 = vmatprep.subr.mxu0 0.0
        %4820 = vmatpush1.msra.mxu0 0.0
        %4821 = vmatprep.subr.mxu0 0.0
        %4822 = vmatpush1.msra.mxu0 0.0
        %4823 = vmatprep.subr.mxu0 0.0
        %4824 = vmatpush1.msra.mxu0 0.0
        %4825 = vmatprep.subr.mxu0 0.0
        %4826 = vmatpush1.msra.mxu0 0.0
        %4827 = vmatprep.subr.mxu0 0.0
        %4828 = vmatpush1.msra.mxu0 0.0
        %4829 = vmatprep.mubr.f32.mxu0 0.0
        %4830 = vmatmul.mubr.f32.gmra.mrb[0].mxu0 %v4754
        %v4831 = vpop.f32.mrb[0].mxu0
        %v4832 = vadd.f32 0.0, %v4831
        %v4833 = vpop.f32.mrb[0].mxu0
        %v4834 = vadd.f32 0.0, %v4833
        %4835 = vmatprep.mubr.f32.mxu0 0.0
        %4836 = vmatmul.mubr.f32.gmra.mrb[0].mxu0 %v4757
        %v4837 = vpop.f32.mrb[0].mxu0
        %v4838 = vadd.f32 0.0, %v4837
        %v4839 = vpop.f32.mrb[0].mxu0
        %v4840 = vadd.f32 0.0, %v4839
        %4841 = vmatprep.mubr.f32.mxu0 0.0
        %4842 = vmatmul.mubr.f32.gmra.mrb[0].mxu0 %v4760
        %v4843 = vpop.f32.mrb[0].mxu0
        %v4844 = vadd.f32 0.0, %v4843
        %v4845 = vpop.f32.mrb[0].mxu0
        %v4846 = vadd.f32 0.0, %v4845
        %4847 = vmatprep.mubr.f32.mxu0 0.0
        %4848 = vmatmul.mubr.f32.gmra.mrb[0].mxu0 %v4763
        %v4849 = vpop.f32.mrb[0].mxu0
        %v4850 = vadd.f32 0.0, %v4849
        %v4851 = vpop.f32.mrb[0].mxu0
        %v4852 = vadd.f32 0.0, %v4851
        %4853 = vdwg.mxu0
        %v4854 = vadd.f32 %v4708, %v4832
        %v4855 = vadd.f32 %v4709, %v4834
        %v4856 = vadd.f32 %v4710, %v4838
        %v4857 = vadd.f32 %v4711, %v4840
        %v4858 = vadd.f32 %v4712, %v4844
        %v4859 = vadd.f32 %v4713, %v4846
        %v4860 = vadd.f32 %v4714, %v4850
        %v4861 = vadd.f32 %v4715, %v4852
        %4862 = vrot.lane.b32.xlu0 %v4026, 113
        %v4863 = vpop.permute.xlu0 %4862
        %4864 = vrot.lane.b32.xlu0 %v4028, 113
        %v4865 = vpop.permute.xlu0 %4864
        %4866 = vrot.lane.b32.xlu0 %v4030, 113
        %v4867 = vpop.permute.xlu0 %4866
        %4868 = vrot.lane.b32.xlu0 %v4032, 113
        %v4869 = vpop.permute.xlu0 %4868
        %4870 = vrot.lane.b32.xlu0 %v4027, 113
        %v4871 = vpop.permute.xlu0 %4870
        %4872 = vrot.lane.b32.xlu0 %v4029, 113
        %v4873 = vpop.permute.xlu0 %4872
        %4874 = vrot.lane.b32.xlu0 %v4031, 113
        %v4875 = vpop.permute.xlu0 %4874
        %4876 = vrot.lane.b32.xlu0 %v4033, 113
        %v4877 = vpop.permute.xlu0 %4876
        %v4878 = vsel %vm1386, %v4863, %v4871
        %v4879 = vsel %vm1386, %v4865, %v4873
        %v4880 = vsel %vm1386, %v4867, %v4875
        %v4881 = vsel %vm1386, %v4869, %v4877
        %v4882 = vsel %vm1386, %v4871, %v4863
        %v4883 = vsel %vm1386, %v4873, %v4865
        %v4884 = vsel %vm1386, %v4875, %v4867
        %v4885 = vsel %vm1386, %v4877, %v4869
        %v4886 = vmul.f32 %v4878, %v1396
        %v4887 = vmul.f32 %v4882, %v1397
        %v4888 = vmul.f32 %v4879, %v1398
        %v4889 = vmul.f32 %v4883, %v1399
        %v4890 = vmul.f32 %v4880, %v1400
        %v4891 = vmul.f32 %v4884, %v1401
        %v4892 = vmul.f32 %v4881, %v1402
        %v4893 = vmul.f32 %v4885, %v1403
        %s4894 = scalar_lea.vmem [#allocation5], 480
        %v4895 = vld [vmem:[%s4894] sm:$0xff]
        %v4896 = vld [vmem:[%s4894 + $0x8] sm:$0xff]
        %v4897 = vld [vmem:[%s4894 + $0x10] sm:$0xff]
        %v4898 = vld [vmem:[%s4894 + $0x18] sm:$0xff]
        %v4900 = vsel %vm543, %v4895, 0
        %v4903 = vsel %vm543, %v4896, 0
        %v4906 = vsel %vm543, %v4897, 0
        %v4909 = vsel %vm543, %v4898, 0
        %4911 = vmatprep.subr.mxu0 %v4887
        %4912 = vmatpush1.msra.mxu0 %v4886
        %4913 = vmatprep.subr.mxu0 %v4889
        %4914 = vmatpush1.msra.mxu0 %v4888
        %4915 = vmatprep.subr.mxu0 %v4891
        %4916 = vmatpush1.msra.mxu0 %v4890
        %4917 = vmatprep.subr.mxu0 %v4893
        %4918 = vmatpush1.msra.mxu0 %v4892
        %4919 = vmatprep.subr.mxu0 0.0
        %4920 = vmatpush1.msra.mxu0 0.0
        %4921 = vmatprep.subr.mxu0 0.0
        %4922 = vmatpush1.msra.mxu0 0.0
        %4923 = vmatprep.subr.mxu0 0.0
        %4924 = vmatpush1.msra.mxu0 0.0
        %4925 = vmatprep.subr.mxu0 0.0
        %4926 = vmatpush1.msra.mxu0 0.0
        %4927 = vmatprep.subr.mxu0 0.0
        %4928 = vmatpush1.msra.mxu0 0.0
        %4929 = vmatprep.subr.mxu0 0.0
        %4930 = vmatpush1.msra.mxu0 0.0
        %4931 = vmatprep.subr.mxu0 0.0
        %4932 = vmatpush1.msra.mxu0 0.0
        %4933 = vmatprep.subr.mxu0 0.0
        %4934 = vmatpush1.msra.mxu0 0.0
        %4935 = vmatprep.subr.mxu0 0.0
        %4936 = vmatpush1.msra.mxu0 0.0
        %4937 = vmatprep.subr.mxu0 0.0
        %4938 = vmatpush1.msra.mxu0 0.0
        %4939 = vmatprep.subr.mxu0 0.0
        %4940 = vmatpush1.msra.mxu0 0.0
        %4941 = vmatprep.subr.mxu0 0.0
        %4942 = vmatpush1.msra.mxu0 0.0
        %4943 = vmatprep.subr.mxu0 0.0
        %4944 = vmatpush1.msra.mxu0 0.0
        %4945 = vmatprep.subr.mxu0 0.0
        %4946 = vmatpush1.msra.mxu0 0.0
        %4947 = vmatprep.subr.mxu0 0.0
        %4948 = vmatpush1.msra.mxu0 0.0
        %4949 = vmatprep.subr.mxu0 0.0
        %4950 = vmatpush1.msra.mxu0 0.0
        %4951 = vmatprep.subr.mxu0 0.0
        %4952 = vmatpush1.msra.mxu0 0.0
        %4953 = vmatprep.subr.mxu0 0.0
        %4954 = vmatpush1.msra.mxu0 0.0
        %4955 = vmatprep.subr.mxu0 0.0
        %4956 = vmatpush1.msra.mxu0 0.0
        %4957 = vmatprep.subr.mxu0 0.0
        %4958 = vmatpush1.msra.mxu0 0.0
        %4959 = vmatprep.subr.mxu0 0.0
        %4960 = vmatpush1.msra.mxu0 0.0
        %4961 = vmatprep.subr.mxu0 0.0
        %4962 = vmatpush1.msra.mxu0 0.0
        %4963 = vmatprep.subr.mxu0 0.0
        %4964 = vmatpush1.msra.mxu0 0.0
        %4965 = vmatprep.subr.mxu0 0.0
        %4966 = vmatpush1.msra.mxu0 0.0
        %4967 = vmatprep.subr.mxu0 0.0
        %4968 = vmatpush1.msra.mxu0 0.0
        %4969 = vmatprep.subr.mxu0 0.0
        %4970 = vmatpush1.msra.mxu0 0.0
        %4971 = vmatprep.subr.mxu0 0.0
        %4972 = vmatpush1.msra.mxu0 0.0
        %4973 = vmatprep.subr.mxu0 0.0
        %4974 = vmatpush1.msra.mxu0 0.0
        %4975 = vmatprep.mubr.f32.mxu0 0.0
        %4976 = vmatmul.mubr.f32.gmra.mrb[0].mxu0 %v4900
        %v4977 = vpop.f32.mrb[0].mxu0
        %v4978 = vadd.f32 0.0, %v4977
        %v4979 = vpop.f32.mrb[0].mxu0
        %v4980 = vadd.f32 0.0, %v4979
        %4981 = vmatprep.mubr.f32.mxu0 0.0
        %4982 = vmatmul.mubr.f32.gmra.mrb[0].mxu0 %v4903
        %v4983 = vpop.f32.mrb[0].mxu0
        %v4984 = vadd.f32 0.0, %v4983
        %v4985 = vpop.f32.mrb[0].mxu0
        %v4986 = vadd.f32 0.0, %v4985
        %4987 = vmatprep.mubr.f32.mxu0 0.0
        %4988 = vmatmul.mubr.f32.gmra.mrb[0].mxu0 %v4906
        %v4989 = vpop.f32.mrb[0].mxu0
        %v4990 = vadd.f32 0.0, %v4989
        %v4991 = vpop.f32.mrb[0].mxu0
        %v4992 = vadd.f32 0.0, %v4991
        %4993 = vmatprep.mubr.f32.mxu0 0.0
        %4994 = vmatmul.mubr.f32.gmra.mrb[0].mxu0 %v4909
        %v4995 = vpop.f32.mrb[0].mxu0
        %v4996 = vadd.f32 0.0, %v4995
        %v4997 = vpop.f32.mrb[0].mxu0
        %v4998 = vadd.f32 0.0, %v4997
        %4999 = vdwg.mxu0
        %v5000 = vadd.f32 %v4854, %v4978
        %v5001 = vadd.f32 %v4855, %v4980
        %v5002 = vadd.f32 %v4856, %v4984
        %v5003 = vadd.f32 %v4857, %v4986
        %v5004 = vadd.f32 %v4858, %v4990
        %v5005 = vadd.f32 %v4859, %v4992
        %v5006 = vadd.f32 %v4860, %v4996
        %v5007 = vadd.f32 %v4861, %v4998
        %5008 = vrot.lane.b32.xlu0 %v4026, 112
        %v5009 = vpop.permute.xlu0 %5008
        %5010 = vrot.lane.b32.xlu0 %v4028, 112
        %v5011 = vpop.permute.xlu0 %5010
        %5012 = vrot.lane.b32.xlu0 %v4030, 112
        %v5013 = vpop.permute.xlu0 %5012
        %5014 = vrot.lane.b32.xlu0 %v4032, 112
        %v5015 = vpop.permute.xlu0 %5014
        %5016 = vrot.lane.b32.xlu0 %v4027, 112
        %v5017 = vpop.permute.xlu0 %5016
        %5018 = vrot.lane.b32.xlu0 %v4029, 112
        %v5019 = vpop.permute.xlu0 %5018
        %5020 = vrot.lane.b32.xlu0 %v4031, 112
        %v5021 = vpop.permute.xlu0 %5020
        %5022 = vrot.lane.b32.xlu0 %v4033, 112
        %v5023 = vpop.permute.xlu0 %5022
        %v5024 = vsel %vm1542, %v5009, %v5017
        %v5025 = vsel %vm1542, %v5011, %v5019
        %v5026 = vsel %vm1542, %v5013, %v5021
        %v5027 = vsel %vm1542, %v5015, %v5023
        %v5028 = vsel %vm1542, %v5017, %v5009
        %v5029 = vsel %vm1542, %v5019, %v5011
        %v5030 = vsel %vm1542, %v5021, %v5013
        %v5031 = vsel %vm1542, %v5023, %v5015
        %v5032 = vmul.f32 %v5024, %v1552
        %v5033 = vmul.f32 %v5028, %v1553
        %v5034 = vmul.f32 %v5025, %v1554
        %v5035 = vmul.f32 %v5029, %v1555
        %v5036 = vmul.f32 %v5026, %v1556
        %v5037 = vmul.f32 %v5030, %v1557
        %v5038 = vmul.f32 %v5027, %v1558
        %v5039 = vmul.f32 %v5031, %v1559
        %s5040 = scalar_lea.vmem [#allocation5], 512
        %v5041 = vld [vmem:[%s5040] sm:$0xff]
        %v5042 = vld [vmem:[%s5040 + $0x8] sm:$0xff]
        %v5043 = vld [vmem:[%s5040 + $0x10] sm:$0xff]
        %v5044 = vld [vmem:[%s5040 + $0x18] sm:$0xff]
        %v5046 = vsel %vm543, %v5041, 0
        %v5049 = vsel %vm543, %v5042, 0
        %v5052 = vsel %vm543, %v5043, 0
        %v5055 = vsel %vm543, %v5044, 0
        %5057 = vmatprep.subr.mxu0 %v5033
        %5058 = vmatpush1.msra.mxu0 %v5032
        %5059 = vmatprep.subr.mxu0 %v5035
        %5060 = vmatpush1.msra.mxu0 %v5034
        %5061 = vmatprep.subr.mxu0 %v5037
        %5062 = vmatpush1.msra.mxu0 %v5036
        %5063 = vmatprep.subr.mxu0 %v5039
        %5064 = vmatpush1.msra.mxu0 %v5038
        %5065 = vmatprep.subr.mxu0 0.0
        %5066 = vmatpush1.msra.mxu0 0.0
        %5067 = vmatprep.subr.mxu0 0.0
        %5068 = vmatpush1.msra.mxu0 0.0
        %5069 = vmatprep.subr.mxu0 0.0
        %5070 = vmatpush1.msra.mxu0 0.0
        %5071 = vmatprep.subr.mxu0 0.0
        %5072 = vmatpush1.msra.mxu0 0.0
        %5073 = vmatprep.subr.mxu0 0.0
        %5074 = vmatpush1.msra.mxu0 0.0
        %5075 = vmatprep.subr.mxu0 0.0
        %5076 = vmatpush1.msra.mxu0 0.0
        %5077 = vmatprep.subr.mxu0 0.0
        %5078 = vmatpush1.msra.mxu0 0.0
        %5079 = vmatprep.subr.mxu0 0.0
        %5080 = vmatpush1.msra.mxu0 0.0
        %5081 = vmatprep.subr.mxu0 0.0
        %5082 = vmatpush1.msra.mxu0 0.0
        %5083 = vmatprep.subr.mxu0 0.0
        %5084 = vmatpush1.msra.mxu0 0.0
        %5085 = vmatprep.subr.mxu0 0.0
        %5086 = vmatpush1.msra.mxu0 0.0
        %5087 = vmatprep.subr.mxu0 0.0
        %5088 = vmatpush1.msra.mxu0 0.0
        %5089 = vmatprep.subr.mxu0 0.0
        %5090 = vmatpush1.msra.mxu0 0.0
        %5091 = vmatprep.subr.mxu0 0.0
        %5092 = vmatpush1.msra.mxu0 0.0
        %5093 = vmatprep.subr.mxu0 0.0
        %5094 = vmatpush1.msra.mxu0 0.0
        %5095 = vmatprep.subr.mxu0 0.0
        %5096 = vmatpush1.msra.mxu0 0.0
        %5097 = vmatprep.subr.mxu0 0.0
        %5098 = vmatpush1.msra.mxu0 0.0
        %5099 = vmatprep.subr.mxu0 0.0
        %5100 = vmatpush1.msra.mxu0 0.0
        %5101 = vmatprep.subr.mxu0 0.0
        %5102 = vmatpush1.msra.mxu0 0.0
        %5103 = vmatprep.subr.mxu0 0.0
        %5104 = vmatpush1.msra.mxu0 0.0
        %5105 = vmatprep.subr.mxu0 0.0
        %5106 = vmatpush1.msra.mxu0 0.0
        %5107 = vmatprep.subr.mxu0 0.0
        %5108 = vmatpush1.msra.mxu0 0.0
        %5109 = vmatprep.subr.mxu0 0.0
        %5110 = vmatpush1.msra.mxu0 0.0
        %5111 = vmatprep.subr.mxu0 0.0
        %5112 = vmatpush1.msra.mxu0 0.0
        %5113 = vmatprep.subr.mxu0 0.0
        %5114 = vmatpush1.msra.mxu0 0.0
        %5115 = vmatprep.subr.mxu0 0.0
        %5116 = vmatpush1.msra.mxu0 0.0
        %5117 = vmatprep.subr.mxu0 0.0
        %5118 = vmatpush1.msra.mxu0 0.0
        %5119 = vmatprep.subr.mxu0 0.0
        %5120 = vmatpush1.msra.mxu0 0.0
        %5121 = vmatprep.mubr.f32.mxu0 0.0
        %5122 = vmatmul.mubr.f32.gmra.mrb[0].mxu0 %v5046
        %v5123 = vpop.f32.mrb[0].mxu0
        %v5124 = vadd.f32 0.0, %v5123
        %v5125 = vpop.f32.mrb[0].mxu0
        %v5126 = vadd.f32 0.0, %v5125
        %5127 = vmatprep.mubr.f32.mxu0 0.0
        %5128 = vmatmul.mubr.f32.gmra.mrb[0].mxu0 %v5049
        %v5129 = vpop.f32.mrb[0].mxu0
        %v5130 = vadd.f32 0.0, %v5129
        %v5131 = vpop.f32.mrb[0].mxu0
        %v5132 = vadd.f32 0.0, %v5131
        %5133 = vmatprep.mubr.f32.mxu0 0.0
        %5134 = vmatmul.mubr.f32.gmra.mrb[0].mxu0 %v5052
        %v5135 = vpop.f32.mrb[0].mxu0
        %v5136 = vadd.f32 0.0, %v5135
        %v5137 = vpop.f32.mrb[0].mxu0
        %v5138 = vadd.f32 0.0, %v5137
        %5139 = vmatprep.mubr.f32.mxu0 0.0
        %5140 = vmatmul.mubr.f32.gmra.mrb[0].mxu0 %v5055
        %v5141 = vpop.f32.mrb[0].mxu0
        %v5142 = vadd.f32 0.0, %v5141
        %v5143 = vpop.f32.mrb[0].mxu0
        %v5144 = vadd.f32 0.0, %v5143
        %5145 = vdwg.mxu0
        %v5146 = vadd.f32 %v5000, %v5124
        %v5147 = vadd.f32 %v5001, %v5126
        %v5148 = vadd.f32 %v5002, %v5130
        %v5149 = vadd.f32 %v5003, %v5132
        %v5150 = vadd.f32 %v5004, %v5136
        %v5151 = vadd.f32 %v5005, %v5138
        %v5152 = vadd.f32 %v5006, %v5142
        %v5153 = vadd.f32 %v5007, %v5144
        %5154 = vrot.lane.b32.xlu0 %v4026, 111
        %v5155 = vpop.permute.xlu0 %5154
        %5156 = vrot.lane.b32.xlu0 %v4028, 111
        %v5157 = vpop.permute.xlu0 %5156
        %5158 = vrot.lane.b32.xlu0 %v4030, 111
        %v5159 = vpop.permute.xlu0 %5158
        %5160 = vrot.lane.b32.xlu0 %v4032, 111
        %v5161 = vpop.permute.xlu0 %5160
        %5162 = vrot.lane.b32.xlu0 %v4027, 111
        %v5163 = vpop.permute.xlu0 %5162
        %5164 = vrot.lane.b32.xlu0 %v4029, 111
        %v5165 = vpop.permute.xlu0 %5164
        %5166 = vrot.lane.b32.xlu0 %v4031, 111
        %v5167 = vpop.permute.xlu0 %5166
        %5168 = vrot.lane.b32.xlu0 %v4033, 111
        %v5169 = vpop.permute.xlu0 %5168
        %v5170 = vsel %vm1698, %v5155, %v5163
        %v5171 = vsel %vm1698, %v5157, %v5165
        %v5172 = vsel %vm1698, %v5159, %v5167
        %v5173 = vsel %vm1698, %v5161, %v5169
        %v5174 = vsel %vm1698, %v5163, %v5155
        %v5175 = vsel %vm1698, %v5165, %v5157
        %v5176 = vsel %vm1698, %v5167, %v5159
        %v5177 = vsel %vm1698, %v5169, %v5161
        %v5178 = vmul.f32 %v5170, %v1708
        %v5179 = vmul.f32 %v5174, %v1709
        %v5180 = vmul.f32 %v5171, %v1710
        %v5181 = vmul.f32 %v5175, %v1711
        %v5182 = vmul.f32 %v5172, %v1712
        %v5183 = vmul.f32 %v5176, %v1713
        %v5184 = vmul.f32 %v5173, %v1714
        %v5185 = vmul.f32 %v5177, %v1715
        %s5186 = scalar_lea.vmem [#allocation5], 544
        %v5187 = vld [vmem:[%s5186] sm:$0xff]
        %v5188 = vld [vmem:[%s5186 + $0x8] sm:$0xff]
        %v5189 = vld [vmem:[%s5186 + $0x10] sm:$0xff]
        %v5190 = vld [vmem:[%s5186 + $0x18] sm:$0xff]
        %v5192 = vsel %vm543, %v5187, 0
        %v5195 = vsel %vm543, %v5188, 0
        %v5198 = vsel %vm543, %v5189, 0
        %v5201 = vsel %vm543, %v5190, 0
        %5203 = vmatprep.subr.mxu0 %v5179
        %5204 = vmatpush1.msra.mxu0 %v5178
        %5205 = vmatprep.subr.mxu0 %v5181
        %5206 = vmatpush1.msra.mxu0 %v5180
        %5207 = vmatprep.subr.mxu0 %v5183
        %5208 = vmatpush1.msra.mxu0 %v5182
        %5209 = vmatprep.subr.mxu0 %v5185
        %5210 = vmatpush1.msra.mxu0 %v5184
        %5211 = vmatprep.subr.mxu0 0.0
        %5212 = vmatpush1.msra.mxu0 0.0
        %5213 = vmatprep.subr.mxu0 0.0
        %5214 = vmatpush1.msra.mxu0 0.0
        %5215 = vmatprep.subr.mxu0 0.0
        %5216 = vmatpush1.msra.mxu0 0.0
        %5217 = vmatprep.subr.mxu0 0.0
        %5218 = vmatpush1.msra.mxu0 0.0
        %5219 = vmatprep.subr.mxu0 0.0
        %5220 = vmatpush1.msra.mxu0 0.0
        %5221 = vmatprep.subr.mxu0 0.0
        %5222 = vmatpush1.msra.mxu0 0.0
        %5223 = vmatprep.subr.mxu0 0.0
        %5224 = vmatpush1.msra.mxu0 0.0
        %5225 = vmatprep.subr.mxu0 0.0
        %5226 = vmatpush1.msra.mxu0 0.0
        %5227 = vmatprep.subr.mxu0 0.0
        %5228 = vmatpush1.msra.mxu0 0.0
        %5229 = vmatprep.subr.mxu0 0.0
        %5230 = vmatpush1.msra.mxu0 0.0
        %5231 = vmatprep.subr.mxu0 0.0
        %5232 = vmatpush1.msra.mxu0 0.0
        %5233 = vmatprep.subr.mxu0 0.0
        %5234 = vmatpush1.msra.mxu0 0.0
        %5235 = vmatprep.subr.mxu0 0.0
        %5236 = vmatpush1.msra.mxu0 0.0
        %5237 = vmatprep.subr.mxu0 0.0
        %5238 = vmatpush1.msra.mxu0 0.0
        %5239 = vmatprep.subr.mxu0 0.0
        %5240 = vmatpush1.msra.mxu0 0.0
        %5241 = vmatprep.subr.mxu0 0.0
        %5242 = vmatpush1.msra.mxu0 0.0
        %5243 = vmatprep.subr.mxu0 0.0
        %5244 = vmatpush1.msra.mxu0 0.0
        %5245 = vmatprep.subr.mxu0 0.0
        %5246 = vmatpush1.msra.mxu0 0.0
        %5247 = vmatprep.subr.mxu0 0.0
        %5248 = vmatpush1.msra.mxu0 0.0
        %5249 = vmatprep.subr.mxu0 0.0
        %5250 = vmatpush1.msra.mxu0 0.0
        %5251 = vmatprep.subr.mxu0 0.0
        %5252 = vmatpush1.msra.mxu0 0.0
        %5253 = vmatprep.subr.mxu0 0.0
        %5254 = vmatpush1.msra.mxu0 0.0
        %5255 = vmatprep.subr.mxu0 0.0
        %5256 = vmatpush1.msra.mxu0 0.0
        %5257 = vmatprep.subr.mxu0 0.0
        %5258 = vmatpush1.msra.mxu0 0.0
        %5259 = vmatprep.subr.mxu0 0.0
        %5260 = vmatpush1.msra.mxu0 0.0
        %5261 = vmatprep.subr.mxu0 0.0
        %5262 = vmatpush1.msra.mxu0 0.0
        %5263 = vmatprep.subr.mxu0 0.0
        %5264 = vmatpush1.msra.mxu0 0.0
        %5265 = vmatprep.subr.mxu0 0.0
        %5266 = vmatpush1.msra.mxu0 0.0
        %5267 = vmatprep.mubr.f32.mxu0 0.0
        %5268 = vmatmul.mubr.f32.gmra.mrb[0].mxu0 %v5192
        %v5269 = vpop.f32.mrb[0].mxu0
        %v5270 = vadd.f32 0.0, %v5269
        %v5271 = vpop.f32.mrb[0].mxu0
        %v5272 = vadd.f32 0.0, %v5271
        %5273 = vmatprep.mubr.f32.mxu0 0.0
        %5274 = vmatmul.mubr.f32.gmra.mrb[0].mxu0 %v5195
        %v5275 = vpop.f32.mrb[0].mxu0
        %v5276 = vadd.f32 0.0, %v5275
        %v5277 = vpop.f32.mrb[0].mxu0
        %v5278 = vadd.f32 0.0, %v5277
        %5279 = vmatprep.mubr.f32.mxu0 0.0
        %5280 = vmatmul.mubr.f32.gmra.mrb[0].mxu0 %v5198
        %v5281 = vpop.f32.mrb[0].mxu0
        %v5282 = vadd.f32 0.0, %v5281
        %v5283 = vpop.f32.mrb[0].mxu0
        %v5284 = vadd.f32 0.0, %v5283
        %5285 = vmatprep.mubr.f32.mxu0 0.0
        %5286 = vmatmul.mubr.f32.gmra.mrb[0].mxu0 %v5201
        %v5287 = vpop.f32.mrb[0].mxu0
        %v5288 = vadd.f32 0.0, %v5287
        %v5289 = vpop.f32.mrb[0].mxu0
        %v5290 = vadd.f32 0.0, %v5289
        %5291 = vdwg.mxu0
        %v5292 = vadd.f32 %v5146, %v5270
        %v5293 = vadd.f32 %v5147, %v5272
        %v5294 = vadd.f32 %v5148, %v5276
        %v5295 = vadd.f32 %v5149, %v5278
        %v5296 = vadd.f32 %v5150, %v5282
        %v5297 = vadd.f32 %v5151, %v5284
        %v5298 = vadd.f32 %v5152, %v5288
        %v5299 = vadd.f32 %v5153, %v5290
        %s5300 = scalar_lea.vmem %s5, 32
        %v5301 = vld [vmem:[%s5300] sm:$0xff]
        %v5302 = vld [vmem:[%s5300 + $0x8] sm:$0xff]
        %v5303 = vld [vmem:[%s5300 + $0x10] sm:$0xff]
        %v5304 = vld [vmem:[%s5300 + $0x18] sm:$0xff]
        %5306 = vset.pattern.permute.xlu0 0
        %5307 = vperm.xlu0 %5306, %v5301
        %v5308 = vpop.permute.xlu0 %5307
        %5311 = vset.pattern.permute.xlu0 0
        %5312 = vperm.xlu0 %5311, %v5302
        %v5313 = vpop.permute.xlu0 %5312
        %5316 = vset.pattern.permute.xlu0 0
        %5317 = vperm.xlu0 %5316, %v5303
        %v5318 = vpop.permute.xlu0 %5317
        %5321 = vset.pattern.permute.xlu0 0
        %5322 = vperm.xlu0 %5321, %v5304
        %v5323 = vpop.permute.xlu0 %5322
        %v5325 = vmul.f32 %v5292, %v5308
        %v5326 = vmul.f32 %v5293, %v5308
        %v5327 = vmul.f32 %v5294, %v5313
        %v5328 = vmul.f32 %v5295, %v5313
        %v5329 = vmul.f32 %v5296, %v5318
        %v5330 = vmul.f32 %v5297, %v5318
        %v5331 = vmul.f32 %v5298, %v5323
        %v5332 = vmul.f32 %v5299, %v5323
        %s5333 = scalar_lea.vmem %s6, 32
        %v5334 = vld [vmem:[%s5333] sm:$0xff]
        %v5335 = vld [vmem:[%s5333 + $0x8] sm:$0xff]
        %v5336 = vld [vmem:[%s5333 + $0x10] sm:$0xff]
        %v5337 = vld [vmem:[%s5333 + $0x18] sm:$0xff]
        %5339 = vset.pattern.permute.xlu0 0
        %5340 = vperm.xlu0 %5339, %v5334
        %v5341 = vpop.permute.xlu0 %5340
        %5344 = vset.pattern.permute.xlu0 0
        %5345 = vperm.xlu0 %5344, %v5335
        %v5346 = vpop.permute.xlu0 %5345
        %5349 = vset.pattern.permute.xlu0 0
        %5350 = vperm.xlu0 %5349, %v5336
        %v5351 = vpop.permute.xlu0 %5350
        %5354 = vset.pattern.permute.xlu0 0
        %5355 = vperm.xlu0 %5354, %v5337
        %v5356 = vpop.permute.xlu0 %5355
        %v5358 = vadd.f32 %v5325, %v5341
        %v5359 = vadd.f32 %v5326, %v5341
        %v5360 = vadd.f32 %v5327, %v5346
        %v5361 = vadd.f32 %v5328, %v5346
        %v5362 = vadd.f32 %v5329, %v5351
        %v5363 = vadd.f32 %v5330, %v5351
        %v5364 = vadd.f32 %v5331, %v5356
        %v5365 = vadd.f32 %v5332, %v5356
        %v5366 = vmax.f32 %v5358, 0.0
        %v5367 = vmax.f32 %v5359, 0.0
        %v5368 = vmax.f32 %v5360, 0.0
        %v5369 = vmax.f32 %v5361, 0.0
        %v5370 = vmax.f32 %v5362, 0.0
        %v5371 = vmax.f32 %v5363, 0.0
        %v5372 = vmax.f32 %v5364, 0.0
        %v5373 = vmax.f32 %v5365, 0.0
        %s5374 = scalar_lea.vmem [#allocation7], 416
        %v5375 = vld [vmem:[%s5374] sm:$0xff]
        %v5376 = vld [vmem:[%s5374 + $0x8] sm:$0xff]
        %v5377 = vld [vmem:[%s5374 + $0x10] sm:$0xff]
        %v5378 = vld [vmem:[%s5374 + $0x18] sm:$0xff]
        %5379 = vrot.lane.b32.xlu0 %v5366, 17
        %v5380 = vpop.permute.xlu0 %5379
        %5381 = vrot.lane.b32.xlu0 %v5368, 17
        %v5382 = vpop.permute.xlu0 %5381
        %5383 = vrot.lane.b32.xlu0 %v5370, 17
        %v5384 = vpop.permute.xlu0 %5383
        %5385 = vrot.lane.b32.xlu0 %v5372, 17
        %v5386 = vpop.permute.xlu0 %5385
        %5387 = vrot.lane.b32.xlu0 %v5367, 17
        %v5388 = vpop.permute.xlu0 %5387
        %5389 = vrot.lane.b32.xlu0 %v5369, 17
        %v5390 = vpop.permute.xlu0 %5389
        %5391 = vrot.lane.b32.xlu0 %v5371, 17
        %v5392 = vpop.permute.xlu0 %5391
        %5393 = vrot.lane.b32.xlu0 %v5373, 17
        %v5394 = vpop.permute.xlu0 %5393
        %v5395 = vsel %vm514, %v5380, %v5388
        %v5396 = vsel %vm514, %v5382, %v5390
        %v5397 = vsel %vm514, %v5384, %v5392
        %v5398 = vsel %vm514, %v5386, %v5394
        %v5399 = vsel %vm514, %v5388, %v5380
        %v5400 = vsel %vm514, %v5390, %v5382
        %v5401 = vsel %vm514, %v5392, %v5384
        %v5402 = vsel %vm514, %v5394, %v5386
        %v5403 = vmul.f32 %v5399, %v523
        %v5404 = vmul.f32 %v5395, %v524
        %v5405 = vmul.f32 %v5400, %v525
        %v5406 = vmul.f32 %v5396, %v526
        %v5407 = vmul.f32 %v5401, %v527
        %v5408 = vmul.f32 %v5397, %v528
        %v5409 = vmul.f32 %v5402, %v529
        %v5410 = vmul.f32 %v5398, %v530
        %s5411 = scalar_lea.vmem [#allocation7], 288
        %v5412 = vld [vmem:[%s5411] sm:$0xff]
        %v5413 = vld [vmem:[%s5411 + $0x8] sm:$0xff]
        %v5414 = vld [vmem:[%s5411 + $0x10] sm:$0xff]
        %v5415 = vld [vmem:[%s5411 + $0x18] sm:$0xff]
        %v5417 = vsel %vm543, %v5412, 0
        %v5420 = vsel %vm543, %v5413, 0
        %v5423 = vsel %vm543, %v5414, 0
        %v5426 = vsel %vm543, %v5415, 0
        %5428 = vmatprep.subr.mxu0 %v5404
        %5429 = vmatpush1.msra.mxu0 %v5403
        %5430 = vmatprep.subr.mxu0 %v5406
        %5431 = vmatpush1.msra.mxu0 %v5405
        %5432 = vmatprep.subr.mxu0 %v5408
        %5433 = vmatpush1.msra.mxu0 %v5407
        %5434 = vmatprep.subr.mxu0 %v5410
        %5435 = vmatpush1.msra.mxu0 %v5409
        %5436 = vmatprep.subr.mxu0 0.0
        %5437 = vmatpush1.msra.mxu0 0.0
        %5438 = vmatprep.subr.mxu0 0.0
        %5439 = vmatpush1.msra.mxu0 0.0
        %5440 = vmatprep.subr.mxu0 0.0
        %5441 = vmatpush1.msra.mxu0 0.0
        %5442 = vmatprep.subr.mxu0 0.0
        %5443 = vmatpush1.msra.mxu0 0.0
        %5444 = vmatprep.subr.mxu0 0.0
        %5445 = vmatpush1.msra.mxu0 0.0
        %5446 = vmatprep.subr.mxu0 0.0
        %5447 = vmatpush1.msra.mxu0 0.0
        %5448 = vmatprep.subr.mxu0 0.0
        %5449 = vmatpush1.msra.mxu0 0.0
        %5450 = vmatprep.subr.mxu0 0.0
        %5451 = vmatpush1.msra.mxu0 0.0
        %5452 = vmatprep.subr.mxu0 0.0
        %5453 = vmatpush1.msra.mxu0 0.0
        %5454 = vmatprep.subr.mxu0 0.0
        %5455 = vmatpush1.msra.mxu0 0.0
        %5456 = vmatprep.subr.mxu0 0.0
        %5457 = vmatpush1.msra.mxu0 0.0
        %5458 = vmatprep.subr.mxu0 0.0
        %5459 = vmatpush1.msra.mxu0 0.0
        %5460 = vmatprep.subr.mxu0 0.0
        %5461 = vmatpush1.msra.mxu0 0.0
        %5462 = vmatprep.subr.mxu0 0.0
        %5463 = vmatpush1.msra.mxu0 0.0
        %5464 = vmatprep.subr.mxu0 0.0
        %5465 = vmatpush1.msra.mxu0 0.0
        %5466 = vmatprep.subr.mxu0 0.0
        %5467 = vmatpush1.msra.mxu0 0.0
        %5468 = vmatprep.subr.mxu0 0.0
        %5469 = vmatpush1.msra.mxu0 0.0
        %5470 = vmatprep.subr.mxu0 0.0
        %5471 = vmatpush1.msra.mxu0 0.0
        %5472 = vmatprep.subr.mxu0 0.0
        %5473 = vmatpush1.msra.mxu0 0.0
        %5474 = vmatprep.subr.mxu0 0.0
        %5475 = vmatpush1.msra.mxu0 0.0
        %5476 = vmatprep.subr.mxu0 0.0
        %5477 = vmatpush1.msra.mxu0 0.0
        %5478 = vmatprep.subr.mxu0 0.0
        %5479 = vmatpush1.msra.mxu0 0.0
        %5480 = vmatprep.subr.mxu0 0.0
        %5481 = vmatpush1.msra.mxu0 0.0
        %5482 = vmatprep.subr.mxu0 0.0
        %5483 = vmatpush1.msra.mxu0 0.0
        %5484 = vmatprep.subr.mxu0 0.0
        %5485 = vmatpush1.msra.mxu0 0.0
        %5486 = vmatprep.subr.mxu0 0.0
        %5487 = vmatpush1.msra.mxu0 0.0
        %5488 = vmatprep.subr.mxu0 0.0
        %5489 = vmatpush1.msra.mxu0 0.0
        %5490 = vmatprep.subr.mxu0 0.0
        %5491 = vmatpush1.msra.mxu0 0.0
        %5492 = vmatprep.mubr.f32.mxu0 0.0
        %5493 = vmatmul.mubr.f32.gmra.mrb[0].mxu0 %v5417
        %v5494 = vpop.f32.mrb[0].mxu0
        %v5495 = vadd.f32 0.0, %v5494
        %v5496 = vpop.f32.mrb[0].mxu0
        %v5497 = vadd.f32 0.0, %v5496
        %5498 = vmatprep.mubr.f32.mxu0 0.0
        %5499 = vmatmul.mubr.f32.gmra.mrb[0].mxu0 %v5420
        %v5500 = vpop.f32.mrb[0].mxu0
        %v5501 = vadd.f32 0.0, %v5500
        %v5502 = vpop.f32.mrb[0].mxu0
        %v5503 = vadd.f32 0.0, %v5502
        %5504 = vmatprep.mubr.f32.mxu0 0.0
        %5505 = vmatmul.mubr.f32.gmra.mrb[0].mxu0 %v5423
        %v5506 = vpop.f32.mrb[0].mxu0
        %v5507 = vadd.f32 0.0, %v5506
        %v5508 = vpop.f32.mrb[0].mxu0
        %v5509 = vadd.f32 0.0, %v5508
        %5510 = vmatprep.mubr.f32.mxu0 0.0
        %5511 = vmatmul.mubr.f32.gmra.mrb[0].mxu0 %v5426
        %v5512 = vpop.f32.mrb[0].mxu0
        %v5513 = vadd.f32 0.0, %v5512
        %v5514 = vpop.f32.mrb[0].mxu0
        %v5515 = vadd.f32 0.0, %v5514
        %5516 = vdwg.mxu0
        %v5518 = vsel %vm543, %v5375, 0
        %v5521 = vsel %vm543, %v5376, 0
        %v5524 = vsel %vm543, %v5377, 0
        %v5527 = vsel %vm543, %v5378, 0
        %5529 = vmatprep.subr.mxu0 %v5367
        %5530 = vmatpush1.msra.mxu0 %v5366
        %5531 = vmatprep.subr.mxu0 %v5369
        %5532 = vmatpush1.msra.mxu0 %v5368
        %5533 = vmatprep.subr.mxu0 %v5371
        %5534 = vmatpush1.msra.mxu0 %v5370
        %5535 = vmatprep.subr.mxu0 %v5373
        %5536 = vmatpush1.msra.mxu0 %v5372
        %5537 = vmatprep.subr.mxu0 0.0
        %5538 = vmatpush1.msra.mxu0 0.0
        %5539 = vmatprep.subr.mxu0 0.0
        %5540 = vmatpush1.msra.mxu0 0.0
        %5541 = vmatprep.subr.mxu0 0.0
        %5542 = vmatpush1.msra.mxu0 0.0
        %5543 = vmatprep.subr.mxu0 0.0
        %5544 = vmatpush1.msra.mxu0 0.0
        %5545 = vmatprep.subr.mxu0 0.0
        %5546 = vmatpush1.msra.mxu0 0.0
        %5547 = vmatprep.subr.mxu0 0.0
        %5548 = vmatpush1.msra.mxu0 0.0
        %5549 = vmatprep.subr.mxu0 0.0
        %5550 = vmatpush1.msra.mxu0 0.0
        %5551 = vmatprep.subr.mxu0 0.0
        %5552 = vmatpush1.msra.mxu0 0.0
        %5553 = vmatprep.subr.mxu0 0.0
        %5554 = vmatpush1.msra.mxu0 0.0
        %5555 = vmatprep.subr.mxu0 0.0
        %5556 = vmatpush1.msra.mxu0 0.0
        %5557 = vmatprep.subr.mxu0 0.0
        %5558 = vmatpush1.msra.mxu0 0.0
        %5559 = vmatprep.subr.mxu0 0.0
        %5560 = vmatpush1.msra.mxu0 0.0
        %5561 = vmatprep.subr.mxu0 0.0
        %5562 = vmatpush1.msra.mxu0 0.0
        %5563 = vmatprep.subr.mxu0 0.0
        %5564 = vmatpush1.msra.mxu0 0.0
        %5565 = vmatprep.subr.mxu0 0.0
        %5566 = vmatpush1.msra.mxu0 0.0
        %5567 = vmatprep.subr.mxu0 0.0
        %5568 = vmatpush1.msra.mxu0 0.0
        %5569 = vmatprep.subr.mxu0 0.0
        %5570 = vmatpush1.msra.mxu0 0.0
        %5571 = vmatprep.subr.mxu0 0.0
        %5572 = vmatpush1.msra.mxu0 0.0
        %5573 = vmatprep.subr.mxu0 0.0
        %5574 = vmatpush1.msra.mxu0 0.0
        %5575 = vmatprep.subr.mxu0 0.0
        %5576 = vmatpush1.msra.mxu0 0.0
        %5577 = vmatprep.subr.mxu0 0.0
        %5578 = vmatpush1.msra.mxu0 0.0
        %5579 = vmatprep.subr.mxu0 0.0
        %5580 = vmatpush1.msra.mxu0 0.0
        %5581 = vmatprep.subr.mxu0 0.0
        %5582 = vmatpush1.msra.mxu0 0.0
        %5583 = vmatprep.subr.mxu0 0.0
        %5584 = vmatpush1.msra.mxu0 0.0
        %5585 = vmatprep.subr.mxu0 0.0
        %5586 = vmatpush1.msra.mxu0 0.0
        %5587 = vmatprep.subr.mxu0 0.0
        %5588 = vmatpush1.msra.mxu0 0.0
        %5589 = vmatprep.subr.mxu0 0.0
        %5590 = vmatpush1.msra.mxu0 0.0
        %5591 = vmatprep.subr.mxu0 0.0
        %5592 = vmatpush1.msra.mxu0 0.0
        %5593 = vmatprep.mubr.f32.mxu0 0.0
        %5594 = vmatmul.mubr.f32.gmra.mrb[0].mxu0 %v5518
        %v5595 = vpop.f32.mrb[0].mxu0
        %v5596 = vadd.f32 %v5495, %v5595
        %v5597 = vpop.f32.mrb[0].mxu0
        %v5598 = vadd.f32 %v5497, %v5597
        %5599 = vmatprep.mubr.f32.mxu0 0.0
        %5600 = vmatmul.mubr.f32.gmra.mrb[0].mxu0 %v5521
        %v5601 = vpop.f32.mrb[0].mxu0
        %v5602 = vadd.f32 %v5501, %v5601
        %v5603 = vpop.f32.mrb[0].mxu0
        %v5604 = vadd.f32 %v5503, %v5603
        %5605 = vmatprep.mubr.f32.mxu0 0.0
        %5606 = vmatmul.mubr.f32.gmra.mrb[0].mxu0 %v5524
        %v5607 = vpop.f32.mrb[0].mxu0
        %v5608 = vadd.f32 %v5507, %v5607
        %v5609 = vpop.f32.mrb[0].mxu0
        %v5610 = vadd.f32 %v5509, %v5609
        %5611 = vmatprep.mubr.f32.mxu0 0.0
        %5612 = vmatmul.mubr.f32.gmra.mrb[0].mxu0 %v5527
        %v5613 = vpop.f32.mrb[0].mxu0
        %v5614 = vadd.f32 %v5513, %v5613
        %v5615 = vpop.f32.mrb[0].mxu0
        %v5616 = vadd.f32 %v5515, %v5615
        %5617 = vdwg.mxu0
        %5618 = vrot.lane.b32.xlu0 %v5366, 16
        %v5619 = vpop.permute.xlu0 %5618
        %5620 = vrot.lane.b32.xlu0 %v5368, 16
        %v5621 = vpop.permute.xlu0 %5620
        %5622 = vrot.lane.b32.xlu0 %v5370, 16
        %v5623 = vpop.permute.xlu0 %5622
        %5624 = vrot.lane.b32.xlu0 %v5372, 16
        %v5625 = vpop.permute.xlu0 %5624
        %5626 = vrot.lane.b32.xlu0 %v5367, 16
        %v5627 = vpop.permute.xlu0 %5626
        %5628 = vrot.lane.b32.xlu0 %v5369, 16
        %v5629 = vpop.permute.xlu0 %5628
        %5630 = vrot.lane.b32.xlu0 %v5371, 16
        %v5631 = vpop.permute.xlu0 %5630
        %5632 = vrot.lane.b32.xlu0 %v5373, 16
        %v5633 = vpop.permute.xlu0 %5632
        %v5634 = vsel %vm762, %v5619, %v5627
        %v5635 = vsel %vm762, %v5621, %v5629
        %v5636 = vsel %vm762, %v5623, %v5631
        %v5637 = vsel %vm762, %v5625, %v5633
        %v5638 = vsel %vm762, %v5627, %v5619
        %v5639 = vsel %vm762, %v5629, %v5621
        %v5640 = vsel %vm762, %v5631, %v5623
        %v5641 = vsel %vm762, %v5633, %v5625
        %v5642 = vmul.f32 %v5638, %v772
        %v5643 = vmul.f32 %v5634, %v773
        %v5644 = vmul.f32 %v5639, %v774
        %v5645 = vmul.f32 %v5635, %v775
        %v5646 = vmul.f32 %v5640, %v776
        %v5647 = vmul.f32 %v5636, %v777
        %v5648 = vmul.f32 %v5641, %v778
        %v5649 = vmul.f32 %v5637, %v779
        %s5650 = scalar_lea.vmem [#allocation7], 320
        %v5651 = vld [vmem:[%s5650] sm:$0xff]
        %v5652 = vld [vmem:[%s5650 + $0x8] sm:$0xff]
        %v5653 = vld [vmem:[%s5650 + $0x10] sm:$0xff]
        %v5654 = vld [vmem:[%s5650 + $0x18] sm:$0xff]
        %v5656 = vsel %vm543, %v5651, 0
        %v5659 = vsel %vm543, %v5652, 0
        %v5662 = vsel %vm543, %v5653, 0
        %v5665 = vsel %vm543, %v5654, 0
        %5667 = vmatprep.subr.mxu0 %v5643
        %5668 = vmatpush1.msra.mxu0 %v5642
        %5669 = vmatprep.subr.mxu0 %v5645
        %5670 = vmatpush1.msra.mxu0 %v5644
        %5671 = vmatprep.subr.mxu0 %v5647
        %5672 = vmatpush1.msra.mxu0 %v5646
        %5673 = vmatprep.subr.mxu0 %v5649
        %5674 = vmatpush1.msra.mxu0 %v5648
        %5675 = vmatprep.subr.mxu0 0.0
        %5676 = vmatpush1.msra.mxu0 0.0
        %5677 = vmatprep.subr.mxu0 0.0
        %5678 = vmatpush1.msra.mxu0 0.0
        %5679 = vmatprep.subr.mxu0 0.0
        %5680 = vmatpush1.msra.mxu0 0.0
        %5681 = vmatprep.subr.mxu0 0.0
        %5682 = vmatpush1.msra.mxu0 0.0
        %5683 = vmatprep.subr.mxu0 0.0
        %5684 = vmatpush1.msra.mxu0 0.0
        %5685 = vmatprep.subr.mxu0 0.0
        %5686 = vmatpush1.msra.mxu0 0.0
        %5687 = vmatprep.subr.mxu0 0.0
        %5688 = vmatpush1.msra.mxu0 0.0
        %5689 = vmatprep.subr.mxu0 0.0
        %5690 = vmatpush1.msra.mxu0 0.0
        %5691 = vmatprep.subr.mxu0 0.0
        %5692 = vmatpush1.msra.mxu0 0.0
        %5693 = vmatprep.subr.mxu0 0.0
        %5694 = vmatpush1.msra.mxu0 0.0
        %5695 = vmatprep.subr.mxu0 0.0
        %5696 = vmatpush1.msra.mxu0 0.0
        %5697 = vmatprep.subr.mxu0 0.0
        %5698 = vmatpush1.msra.mxu0 0.0
        %5699 = vmatprep.subr.mxu0 0.0
        %5700 = vmatpush1.msra.mxu0 0.0
        %5701 = vmatprep.subr.mxu0 0.0
        %5702 = vmatpush1.msra.mxu0 0.0
        %5703 = vmatprep.subr.mxu0 0.0
        %5704 = vmatpush1.msra.mxu0 0.0
        %5705 = vmatprep.subr.mxu0 0.0
        %5706 = vmatpush1.msra.mxu0 0.0
        %5707 = vmatprep.subr.mxu0 0.0
        %5708 = vmatpush1.msra.mxu0 0.0
        %5709 = vmatprep.subr.mxu0 0.0
        %5710 = vmatpush1.msra.mxu0 0.0
        %5711 = vmatprep.subr.mxu0 0.0
        %5712 = vmatpush1.msra.mxu0 0.0
        %5713 = vmatprep.subr.mxu0 0.0
        %5714 = vmatpush1.msra.mxu0 0.0
        %5715 = vmatprep.subr.mxu0 0.0
        %5716 = vmatpush1.msra.mxu0 0.0
        %5717 = vmatprep.subr.mxu0 0.0
        %5718 = vmatpush1.msra.mxu0 0.0
        %5719 = vmatprep.subr.mxu0 0.0
        %5720 = vmatpush1.msra.mxu0 0.0
        %5721 = vmatprep.subr.mxu0 0.0
        %5722 = vmatpush1.msra.mxu0 0.0
        %5723 = vmatprep.subr.mxu0 0.0
        %5724 = vmatpush1.msra.mxu0 0.0
        %5725 = vmatprep.subr.mxu0 0.0
        %5726 = vmatpush1.msra.mxu0 0.0
        %5727 = vmatprep.subr.mxu0 0.0
        %5728 = vmatpush1.msra.mxu0 0.0
        %5729 = vmatprep.subr.mxu0 0.0
        %5730 = vmatpush1.msra.mxu0 0.0
        %5731 = vmatprep.mubr.f32.mxu0 0.0
        %5732 = vmatmul.mubr.f32.gmra.mrb[0].mxu0 %v5656
        %v5733 = vpop.f32.mrb[0].mxu0
        %v5734 = vadd.f32 0.0, %v5733
        %v5735 = vpop.f32.mrb[0].mxu0
        %v5736 = vadd.f32 0.0, %v5735
        %5737 = vmatprep.mubr.f32.mxu0 0.0
        %5738 = vmatmul.mubr.f32.gmra.mrb[0].mxu0 %v5659
        %v5739 = vpop.f32.mrb[0].mxu0
        %v5740 = vadd.f32 0.0, %v5739
        %v5741 = vpop.f32.mrb[0].mxu0
        %v5742 = vadd.f32 0.0, %v5741
        %5743 = vmatprep.mubr.f32.mxu0 0.0
        %5744 = vmatmul.mubr.f32.gmra.mrb[0].mxu0 %v5662
        %v5745 = vpop.f32.mrb[0].mxu0
        %v5746 = vadd.f32 0.0, %v5745
        %v5747 = vpop.f32.mrb[0].mxu0
        %v5748 = vadd.f32 0.0, %v5747
        %5749 = vmatprep.mubr.f32.mxu0 0.0
        %5750 = vmatmul.mubr.f32.gmra.mrb[0].mxu0 %v5665
        %v5751 = vpop.f32.mrb[0].mxu0
        %v5752 = vadd.f32 0.0, %v5751
        %v5753 = vpop.f32.mrb[0].mxu0
        %v5754 = vadd.f32 0.0, %v5753
        %5755 = vdwg.mxu0
        %v5756 = vadd.f32 %v5596, %v5734
        %v5757 = vadd.f32 %v5598, %v5736
        %v5758 = vadd.f32 %v5602, %v5740
        %v5759 = vadd.f32 %v5604, %v5742
        %v5760 = vadd.f32 %v5608, %v5746
        %v5761 = vadd.f32 %v5610, %v5748
        %v5762 = vadd.f32 %v5614, %v5752
        %v5763 = vadd.f32 %v5616, %v5754
        %5764 = vrot.lane.b32.xlu0 %v5366, 15
        %v5765 = vpop.permute.xlu0 %5764
        %5766 = vrot.lane.b32.xlu0 %v5368, 15
        %v5767 = vpop.permute.xlu0 %5766
        %5768 = vrot.lane.b32.xlu0 %v5370, 15
        %v5769 = vpop.permute.xlu0 %5768
        %5770 = vrot.lane.b32.xlu0 %v5372, 15
        %v5771 = vpop.permute.xlu0 %5770
        %5772 = vrot.lane.b32.xlu0 %v5367, 15
        %v5773 = vpop.permute.xlu0 %5772
        %5774 = vrot.lane.b32.xlu0 %v5369, 15
        %v5775 = vpop.permute.xlu0 %5774
        %5776 = vrot.lane.b32.xlu0 %v5371, 15
        %v5777 = vpop.permute.xlu0 %5776
        %5778 = vrot.lane.b32.xlu0 %v5373, 15
        %v5779 = vpop.permute.xlu0 %5778
        %v5780 = vsel %vm918, %v5765, %v5773
        %v5781 = vsel %vm918, %v5767, %v5775
        %v5782 = vsel %vm918, %v5769, %v5777
        %v5783 = vsel %vm918, %v5771, %v5779
        %v5784 = vsel %vm918, %v5773, %v5765
        %v5785 = vsel %vm918, %v5775, %v5767
        %v5786 = vsel %vm918, %v5777, %v5769
        %v5787 = vsel %vm918, %v5779, %v5771
        %v5788 = vmul.f32 %v5784, %v928
        %v5789 = vmul.f32 %v5780, %v929
        %v5790 = vmul.f32 %v5785, %v930
        %v5791 = vmul.f32 %v5781, %v931
        %v5792 = vmul.f32 %v5786, %v932
        %v5793 = vmul.f32 %v5782, %v933
        %v5794 = vmul.f32 %v5787, %v934
        %v5795 = vmul.f32 %v5783, %v935
        %s5796 = scalar_lea.vmem [#allocation7], 352
        %v5797 = vld [vmem:[%s5796] sm:$0xff]
        %v5798 = vld [vmem:[%s5796 + $0x8] sm:$0xff]
        %v5799 = vld [vmem:[%s5796 + $0x10] sm:$0xff]
        %v5800 = vld [vmem:[%s5796 + $0x18] sm:$0xff]
        %v5802 = vsel %vm543, %v5797, 0
        %v5805 = vsel %vm543, %v5798, 0
        %v5808 = vsel %vm543, %v5799, 0
        %v5811 = vsel %vm543, %v5800, 0
        %5813 = vmatprep.subr.mxu0 %v5789
        %5814 = vmatpush1.msra.mxu0 %v5788
        %5815 = vmatprep.subr.mxu0 %v5791
        %5816 = vmatpush1.msra.mxu0 %v5790
        %5817 = vmatprep.subr.mxu0 %v5793
        %5818 = vmatpush1.msra.mxu0 %v5792
        %5819 = vmatprep.subr.mxu0 %v5795
        %5820 = vmatpush1.msra.mxu0 %v5794
        %5821 = vmatprep.subr.mxu0 0.0
        %5822 = vmatpush1.msra.mxu0 0.0
        %5823 = vmatprep.subr.mxu0 0.0
        %5824 = vmatpush1.msra.mxu0 0.0
        %5825 = vmatprep.subr.mxu0 0.0
        %5826 = vmatpush1.msra.mxu0 0.0
        %5827 = vmatprep.subr.mxu0 0.0
        %5828 = vmatpush1.msra.mxu0 0.0
        %5829 = vmatprep.subr.mxu0 0.0
        %5830 = vmatpush1.msra.mxu0 0.0
        %5831 = vmatprep.subr.mxu0 0.0
        %5832 = vmatpush1.msra.mxu0 0.0
        %5833 = vmatprep.subr.mxu0 0.0
        %5834 = vmatpush1.msra.mxu0 0.0
        %5835 = vmatprep.subr.mxu0 0.0
        %5836 = vmatpush1.msra.mxu0 0.0
        %5837 = vmatprep.subr.mxu0 0.0
        %5838 = vmatpush1.msra.mxu0 0.0
        %5839 = vmatprep.subr.mxu0 0.0
        %5840 = vmatpush1.msra.mxu0 0.0
        %5841 = vmatprep.subr.mxu0 0.0
        %5842 = vmatpush1.msra.mxu0 0.0
        %5843 = vmatprep.subr.mxu0 0.0
        %5844 = vmatpush1.msra.mxu0 0.0
        %5845 = vmatprep.subr.mxu0 0.0
        %5846 = vmatpush1.msra.mxu0 0.0
        %5847 = vmatprep.subr.mxu0 0.0
        %5848 = vmatpush1.msra.mxu0 0.0
        %5849 = vmatprep.subr.mxu0 0.0
        %5850 = vmatpush1.msra.mxu0 0.0
        %5851 = vmatprep.subr.mxu0 0.0
        %5852 = vmatpush1.msra.mxu0 0.0
        %5853 = vmatprep.subr.mxu0 0.0
        %5854 = vmatpush1.msra.mxu0 0.0
        %5855 = vmatprep.subr.mxu0 0.0
        %5856 = vmatpush1.msra.mxu0 0.0
        %5857 = vmatprep.subr.mxu0 0.0
        %5858 = vmatpush1.msra.mxu0 0.0
        %5859 = vmatprep.subr.mxu0 0.0
        %5860 = vmatpush1.msra.mxu0 0.0
        %5861 = vmatprep.subr.mxu0 0.0
        %5862 = vmatpush1.msra.mxu0 0.0
        %5863 = vmatprep.subr.mxu0 0.0
        %5864 = vmatpush1.msra.mxu0 0.0
        %5865 = vmatprep.subr.mxu0 0.0
        %5866 = vmatpush1.msra.mxu0 0.0
        %5867 = vmatprep.subr.mxu0 0.0
        %5868 = vmatpush1.msra.mxu0 0.0
        %5869 = vmatprep.subr.mxu0 0.0
        %5870 = vmatpush1.msra.mxu0 0.0
        %5871 = vmatprep.subr.mxu0 0.0
        %5872 = vmatpush1.msra.mxu0 0.0
        %5873 = vmatprep.subr.mxu0 0.0
        %5874 = vmatpush1.msra.mxu0 0.0
        %5875 = vmatprep.subr.mxu0 0.0
        %5876 = vmatpush1.msra.mxu0 0.0
        %5877 = vmatprep.mubr.f32.mxu0 0.0
        %5878 = vmatmul.mubr.f32.gmra.mrb[0].mxu0 %v5802
        %v5879 = vpop.f32.mrb[0].mxu0
        %v5880 = vadd.f32 0.0, %v5879
        %v5881 = vpop.f32.mrb[0].mxu0
        %v5882 = vadd.f32 0.0, %v5881
        %5883 = vmatprep.mubr.f32.mxu0 0.0
        %5884 = vmatmul.mubr.f32.gmra.mrb[0].mxu0 %v5805
        %v5885 = vpop.f32.mrb[0].mxu0
        %v5886 = vadd.f32 0.0, %v5885
        %v5887 = vpop.f32.mrb[0].mxu0
        %v5888 = vadd.f32 0.0, %v5887
        %5889 = vmatprep.mubr.f32.mxu0 0.0
        %5890 = vmatmul.mubr.f32.gmra.mrb[0].mxu0 %v5808
        %v5891 = vpop.f32.mrb[0].mxu0
        %v5892 = vadd.f32 0.0, %v5891
        %v5893 = vpop.f32.mrb[0].mxu0
        %v5894 = vadd.f32 0.0, %v5893
        %5895 = vmatprep.mubr.f32.mxu0 0.0
        %5896 = vmatmul.mubr.f32.gmra.mrb[0].mxu0 %v5811
        %v5897 = vpop.f32.mrb[0].mxu0
        %v5898 = vadd.f32 0.0, %v5897
        %v5899 = vpop.f32.mrb[0].mxu0
        %v5900 = vadd.f32 0.0, %v5899
        %5901 = vdwg.mxu0
        %v5902 = vadd.f32 %v5756, %v5880
        %v5903 = vadd.f32 %v5757, %v5882
        %v5904 = vadd.f32 %v5758, %v5886
        %v5905 = vadd.f32 %v5759, %v5888
        %v5906 = vadd.f32 %v5760, %v5892
        %v5907 = vadd.f32 %v5761, %v5894
        %v5908 = vadd.f32 %v5762, %v5898
        %v5909 = vadd.f32 %v5763, %v5900
        %5910 = vrot.lane.b32.xlu0 %v5366, 1
        %v5911 = vpop.permute.xlu0 %5910
        %5912 = vrot.lane.b32.xlu0 %v5368, 1
        %v5913 = vpop.permute.xlu0 %5912
        %5914 = vrot.lane.b32.xlu0 %v5370, 1
        %v5915 = vpop.permute.xlu0 %5914
        %5916 = vrot.lane.b32.xlu0 %v5372, 1
        %v5917 = vpop.permute.xlu0 %5916
        %5918 = vrot.lane.b32.xlu0 %v5367, 1
        %v5919 = vpop.permute.xlu0 %5918
        %5920 = vrot.lane.b32.xlu0 %v5369, 1
        %v5921 = vpop.permute.xlu0 %5920
        %5922 = vrot.lane.b32.xlu0 %v5371, 1
        %v5923 = vpop.permute.xlu0 %5922
        %5924 = vrot.lane.b32.xlu0 %v5373, 1
        %v5925 = vpop.permute.xlu0 %5924
        %v5926 = vsel %vm1074, %v5911, %v5919
        %v5927 = vsel %vm1074, %v5913, %v5921
        %v5928 = vsel %vm1074, %v5915, %v5923
        %v5929 = vsel %vm1074, %v5917, %v5925
        %v5930 = vsel %vm1074, %v5919, %v5911
        %v5931 = vsel %vm1074, %v5921, %v5913
        %v5932 = vsel %vm1074, %v5923, %v5915
        %v5933 = vsel %vm1074, %v5925, %v5917
        %v5934 = vmul.f32 %v5930, %v1084
        %v5935 = vmul.f32 %v5926, %v1085
        %v5936 = vmul.f32 %v5931, %v1086
        %v5937 = vmul.f32 %v5927, %v1087
        %v5938 = vmul.f32 %v5932, %v1088
        %v5939 = vmul.f32 %v5928, %v1089
        %v5940 = vmul.f32 %v5933, %v1090
        %v5941 = vmul.f32 %v5929, %v1091
        %s5942 = scalar_lea.vmem [#allocation7], 384
        %v5943 = vld [vmem:[%s5942] sm:$0xff]
        %v5944 = vld [vmem:[%s5942 + $0x8] sm:$0xff]
        %v5945 = vld [vmem:[%s5942 + $0x10] sm:$0xff]
        %v5946 = vld [vmem:[%s5942 + $0x18] sm:$0xff]
        %v5948 = vsel %vm543, %v5943, 0
        %v5951 = vsel %vm543, %v5944, 0
        %v5954 = vsel %vm543, %v5945, 0
        %v5957 = vsel %vm543, %v5946, 0
        %5959 = vmatprep.subr.mxu0 %v5935
        %5960 = vmatpush1.msra.mxu0 %v5934
        %5961 = vmatprep.subr.mxu0 %v5937
        %5962 = vmatpush1.msra.mxu0 %v5936
        %5963 = vmatprep.subr.mxu0 %v5939
        %5964 = vmatpush1.msra.mxu0 %v5938
        %5965 = vmatprep.subr.mxu0 %v5941
        %5966 = vmatpush1.msra.mxu0 %v5940
        %5967 = vmatprep.subr.mxu0 0.0
        %5968 = vmatpush1.msra.mxu0 0.0
        %5969 = vmatprep.subr.mxu0 0.0
        %5970 = vmatpush1.msra.mxu0 0.0
        %5971 = vmatprep.subr.mxu0 0.0
        %5972 = vmatpush1.msra.mxu0 0.0
        %5973 = vmatprep.subr.mxu0 0.0
        %5974 = vmatpush1.msra.mxu0 0.0
        %5975 = vmatprep.subr.mxu0 0.0
        %5976 = vmatpush1.msra.mxu0 0.0
        %5977 = vmatprep.subr.mxu0 0.0
        %5978 = vmatpush1.msra.mxu0 0.0
        %5979 = vmatprep.subr.mxu0 0.0
        %5980 = vmatpush1.msra.mxu0 0.0
        %5981 = vmatprep.subr.mxu0 0.0
        %5982 = vmatpush1.msra.mxu0 0.0
        %5983 = vmatprep.subr.mxu0 0.0
        %5984 = vmatpush1.msra.mxu0 0.0
        %5985 = vmatprep.subr.mxu0 0.0
        %5986 = vmatpush1.msra.mxu0 0.0
        %5987 = vmatprep.subr.mxu0 0.0
        %5988 = vmatpush1.msra.mxu0 0.0
        %5989 = vmatprep.subr.mxu0 0.0
        %5990 = vmatpush1.msra.mxu0 0.0
        %5991 = vmatprep.subr.mxu0 0.0
        %5992 = vmatpush1.msra.mxu0 0.0
        %5993 = vmatprep.subr.mxu0 0.0
        %5994 = vmatpush1.msra.mxu0 0.0
        %5995 = vmatprep.subr.mxu0 0.0
        %5996 = vmatpush1.msra.mxu0 0.0
        %5997 = vmatprep.subr.mxu0 0.0
        %5998 = vmatpush1.msra.mxu0 0.0
        %5999 = vmatprep.subr.mxu0 0.0
        %6000 = vmatpush1.msra.mxu0 0.0
        %6001 = vmatprep.subr.mxu0 0.0
        %6002 = vmatpush1.msra.mxu0 0.0
        %6003 = vmatprep.subr.mxu0 0.0
        %6004 = vmatpush1.msra.mxu0 0.0
        %6005 = vmatprep.subr.mxu0 0.0
        %6006 = vmatpush1.msra.mxu0 0.0
        %6007 = vmatprep.subr.mxu0 0.0
        %6008 = vmatpush1.msra.mxu0 0.0
        %6009 = vmatprep.subr.mxu0 0.0
        %6010 = vmatpush1.msra.mxu0 0.0
        %6011 = vmatprep.subr.mxu0 0.0
        %6012 = vmatpush1.msra.mxu0 0.0
        %6013 = vmatprep.subr.mxu0 0.0
        %6014 = vmatpush1.msra.mxu0 0.0
        %6015 = vmatprep.subr.mxu0 0.0
        %6016 = vmatpush1.msra.mxu0 0.0
        %6017 = vmatprep.subr.mxu0 0.0
        %6018 = vmatpush1.msra.mxu0 0.0
        %6019 = vmatprep.subr.mxu0 0.0
        %6020 = vmatpush1.msra.mxu0 0.0
        %6021 = vmatprep.subr.mxu0 0.0
        %6022 = vmatpush1.msra.mxu0 0.0
        %6023 = vmatprep.mubr.f32.mxu0 0.0
        %6024 = vmatmul.mubr.f32.gmra.mrb[0].mxu0 %v5948
        %v6025 = vpop.f32.mrb[0].mxu0
        %v6026 = vadd.f32 0.0, %v6025
        %v6027 = vpop.f32.mrb[0].mxu0
        %v6028 = vadd.f32 0.0, %v6027
        %6029 = vmatprep.mubr.f32.mxu0 0.0
        %6030 = vmatmul.mubr.f32.gmra.mrb[0].mxu0 %v5951
        %v6031 = vpop.f32.mrb[0].mxu0
        %v6032 = vadd.f32 0.0, %v6031
        %v6033 = vpop.f32.mrb[0].mxu0
        %v6034 = vadd.f32 0.0, %v6033
        %6035 = vmatprep.mubr.f32.mxu0 0.0
        %6036 = vmatmul.mubr.f32.gmra.mrb[0].mxu0 %v5954
        %v6037 = vpop.f32.mrb[0].mxu0
        %v6038 = vadd.f32 0.0, %v6037
        %v6039 = vpop.f32.mrb[0].mxu0
        %v6040 = vadd.f32 0.0, %v6039
        %6041 = vmatprep.mubr.f32.mxu0 0.0
        %6042 = vmatmul.mubr.f32.gmra.mrb[0].mxu0 %v5957
        %v6043 = vpop.f32.mrb[0].mxu0
        %v6044 = vadd.f32 0.0, %v6043
        %v6045 = vpop.f32.mrb[0].mxu0
        %v6046 = vadd.f32 0.0, %v6045
        %6047 = vdwg.mxu0
        %v6048 = vadd.f32 %v5902, %v6026
        %v6049 = vadd.f32 %v5903, %v6028
        %v6050 = vadd.f32 %v5904, %v6032
        %v6051 = vadd.f32 %v5905, %v6034
        %v6052 = vadd.f32 %v5906, %v6038
        %v6053 = vadd.f32 %v5907, %v6040
        %v6054 = vadd.f32 %v5908, %v6044
        %v6055 = vadd.f32 %v5909, %v6046
        %6056 = vrot.lane.b32.xlu0 %v5366, 127
        %v6057 = vpop.permute.xlu0 %6056
        %6058 = vrot.lane.b32.xlu0 %v5368, 127
        %v6059 = vpop.permute.xlu0 %6058
        %6060 = vrot.lane.b32.xlu0 %v5370, 127
        %v6061 = vpop.permute.xlu0 %6060
        %6062 = vrot.lane.b32.xlu0 %v5372, 127
        %v6063 = vpop.permute.xlu0 %6062
        %6064 = vrot.lane.b32.xlu0 %v5367, 127
        %v6065 = vpop.permute.xlu0 %6064
        %6066 = vrot.lane.b32.xlu0 %v5369, 127
        %v6067 = vpop.permute.xlu0 %6066
        %6068 = vrot.lane.b32.xlu0 %v5371, 127
        %v6069 = vpop.permute.xlu0 %6068
        %6070 = vrot.lane.b32.xlu0 %v5373, 127
        %v6071 = vpop.permute.xlu0 %6070
        %v6072 = vsel %vm1230, %v6057, %v6065
        %v6073 = vsel %vm1230, %v6059, %v6067
        %v6074 = vsel %vm1230, %v6061, %v6069
        %v6075 = vsel %vm1230, %v6063, %v6071
        %v6076 = vsel %vm1230, %v6065, %v6057
        %v6077 = vsel %vm1230, %v6067, %v6059
        %v6078 = vsel %vm1230, %v6069, %v6061
        %v6079 = vsel %vm1230, %v6071, %v6063
        %v6080 = vmul.f32 %v6072, %v1240
        %v6081 = vmul.f32 %v6076, %v1241
        %v6082 = vmul.f32 %v6073, %v1242
        %v6083 = vmul.f32 %v6077, %v1243
        %v6084 = vmul.f32 %v6074, %v1244
        %v6085 = vmul.f32 %v6078, %v1245
        %v6086 = vmul.f32 %v6075, %v1246
        %v6087 = vmul.f32 %v6079, %v1247
        %s6088 = scalar_lea.vmem [#allocation7], 448
        %v6089 = vld [vmem:[%s6088] sm:$0xff]
        %v6090 = vld [vmem:[%s6088 + $0x8] sm:$0xff]
        %v6091 = vld [vmem:[%s6088 + $0x10] sm:$0xff]
        %v6092 = vld [vmem:[%s6088 + $0x18] sm:$0xff]
        %v6094 = vsel %vm543, %v6089, 0
        %v6097 = vsel %vm543, %v6090, 0
        %v6100 = vsel %vm543, %v6091, 0
        %v6103 = vsel %vm543, %v6092, 0
        %6105 = vmatprep.subr.mxu0 %v6081
        %6106 = vmatpush1.msra.mxu0 %v6080
        %6107 = vmatprep.subr.mxu0 %v6083
        %6108 = vmatpush1.msra.mxu0 %v6082
        %6109 = vmatprep.subr.mxu0 %v6085
        %6110 = vmatpush1.msra.mxu0 %v6084
        %6111 = vmatprep.subr.mxu0 %v6087
        %6112 = vmatpush1.msra.mxu0 %v6086
        %6113 = vmatprep.subr.mxu0 0.0
        %6114 = vmatpush1.msra.mxu0 0.0
        %6115 = vmatprep.subr.mxu0 0.0
        %6116 = vmatpush1.msra.mxu0 0.0
        %6117 = vmatprep.subr.mxu0 0.0
        %6118 = vmatpush1.msra.mxu0 0.0
        %6119 = vmatprep.subr.mxu0 0.0
        %6120 = vmatpush1.msra.mxu0 0.0
        %6121 = vmatprep.subr.mxu0 0.0
        %6122 = vmatpush1.msra.mxu0 0.0
        %6123 = vmatprep.subr.mxu0 0.0
        %6124 = vmatpush1.msra.mxu0 0.0
        %6125 = vmatprep.subr.mxu0 0.0
        %6126 = vmatpush1.msra.mxu0 0.0
        %6127 = vmatprep.subr.mxu0 0.0
        %6128 = vmatpush1.msra.mxu0 0.0
        %6129 = vmatprep.subr.mxu0 0.0
        %6130 = vmatpush1.msra.mxu0 0.0
        %6131 = vmatprep.subr.mxu0 0.0
        %6132 = vmatpush1.msra.mxu0 0.0
        %6133 = vmatprep.subr.mxu0 0.0
        %6134 = vmatpush1.msra.mxu0 0.0
        %6135 = vmatprep.subr.mxu0 0.0
        %6136 = vmatpush1.msra.mxu0 0.0
        %6137 = vmatprep.subr.mxu0 0.0
        %6138 = vmatpush1.msra.mxu0 0.0
        %6139 = vmatprep.subr.mxu0 0.0
        %6140 = vmatpush1.msra.mxu0 0.0
        %6141 = vmatprep.subr.mxu0 0.0
        %6142 = vmatpush1.msra.mxu0 0.0
        %6143 = vmatprep.subr.mxu0 0.0
        %6144 = vmatpush1.msra.mxu0 0.0
        %6145 = vmatprep.subr.mxu0 0.0
        %6146 = vmatpush1.msra.mxu0 0.0
        %6147 = vmatprep.subr.mxu0 0.0
        %6148 = vmatpush1.msra.mxu0 0.0
        %6149 = vmatprep.subr.mxu0 0.0
        %6150 = vmatpush1.msra.mxu0 0.0
        %6151 = vmatprep.subr.mxu0 0.0
        %6152 = vmatpush1.msra.mxu0 0.0
        %6153 = vmatprep.subr.mxu0 0.0
        %6154 = vmatpush1.msra.mxu0 0.0
        %6155 = vmatprep.subr.mxu0 0.0
        %6156 = vmatpush1.msra.mxu0 0.0
        %6157 = vmatprep.subr.mxu0 0.0
        %6158 = vmatpush1.msra.mxu0 0.0
        %6159 = vmatprep.subr.mxu0 0.0
        %6160 = vmatpush1.msra.mxu0 0.0
        %6161 = vmatprep.subr.mxu0 0.0
        %6162 = vmatpush1.msra.mxu0 0.0
        %6163 = vmatprep.subr.mxu0 0.0
        %6164 = vmatpush1.msra.mxu0 0.0
        %6165 = vmatprep.subr.mxu0 0.0
        %6166 = vmatpush1.msra.mxu0 0.0
        %6167 = vmatprep.subr.mxu0 0.0
        %6168 = vmatpush1.msra.mxu0 0.0
        %6169 = vmatprep.mubr.f32.mxu0 0.0
        %6170 = vmatmul.mubr.f32.gmra.mrb[0].mxu0 %v6094
        %v6171 = vpop.f32.mrb[0].mxu0
        %v6172 = vadd.f32 0.0, %v6171
        %v6173 = vpop.f32.mrb[0].mxu0
        %v6174 = vadd.f32 0.0, %v6173
        %6175 = vmatprep.mubr.f32.mxu0 0.0
        %6176 = vmatmul.mubr.f32.gmra.mrb[0].mxu0 %v6097
        %v6177 = vpop.f32.mrb[0].mxu0
        %v6178 = vadd.f32 0.0, %v6177
        %v6179 = vpop.f32.mrb[0].mxu0
        %v6180 = vadd.f32 0.0, %v6179
        %6181 = vmatprep.mubr.f32.mxu0 0.0
        %6182 = vmatmul.mubr.f32.gmra.mrb[0].mxu0 %v6100
        %v6183 = vpop.f32.mrb[0].mxu0
        %v6184 = vadd.f32 0.0, %v6183
        %v6185 = vpop.f32.mrb[0].mxu0
        %v6186 = vadd.f32 0.0, %v6185
        %6187 = vmatprep.mubr.f32.mxu0 0.0
        %6188 = vmatmul.mubr.f32.gmra.mrb[0].mxu0 %v6103
        %v6189 = vpop.f32.mrb[0].mxu0
        %v6190 = vadd.f32 0.0, %v6189
        %v6191 = vpop.f32.mrb[0].mxu0
        %v6192 = vadd.f32 0.0, %v6191
        %6193 = vdwg.mxu0
        %v6194 = vadd.f32 %v6048, %v6172
        %v6195 = vadd.f32 %v6049, %v6174
        %v6196 = vadd.f32 %v6050, %v6178
        %v6197 = vadd.f32 %v6051, %v6180
        %v6198 = vadd.f32 %v6052, %v6184
        %v6199 = vadd.f32 %v6053, %v6186
        %v6200 = vadd.f32 %v6054, %v6190
        %v6201 = vadd.f32 %v6055, %v6192
        %6202 = vrot.lane.b32.xlu0 %v5366, 113
        %v6203 = vpop.permute.xlu0 %6202
        %6204 = vrot.lane.b32.xlu0 %v5368, 113
        %v6205 = vpop.permute.xlu0 %6204
        %6206 = vrot.lane.b32.xlu0 %v5370, 113
        %v6207 = vpop.permute.xlu0 %6206
        %6208 = vrot.lane.b32.xlu0 %v5372, 113
        %v6209 = vpop.permute.xlu0 %6208
        %6210 = vrot.lane.b32.xlu0 %v5367, 113
        %v6211 = vpop.permute.xlu0 %6210
        %6212 = vrot.lane.b32.xlu0 %v5369, 113
        %v6213 = vpop.permute.xlu0 %6212
        %6214 = vrot.lane.b32.xlu0 %v5371, 113
        %v6215 = vpop.permute.xlu0 %6214
        %6216 = vrot.lane.b32.xlu0 %v5373, 113
        %v6217 = vpop.permute.xlu0 %6216
        %v6218 = vsel %vm1386, %v6203, %v6211
        %v6219 = vsel %vm1386, %v6205, %v6213
        %v6220 = vsel %vm1386, %v6207, %v6215
        %v6221 = vsel %vm1386, %v6209, %v6217
        %v6222 = vsel %vm1386, %v6211, %v6203
        %v6223 = vsel %vm1386, %v6213, %v6205
        %v6224 = vsel %vm1386, %v6215, %v6207
        %v6225 = vsel %vm1386, %v6217, %v6209
        %v6226 = vmul.f32 %v6218, %v1396
        %v6227 = vmul.f32 %v6222, %v1397
        %v6228 = vmul.f32 %v6219, %v1398
        %v6229 = vmul.f32 %v6223, %v1399
        %v6230 = vmul.f32 %v6220, %v1400
        %v6231 = vmul.f32 %v6224, %v1401
        %v6232 = vmul.f32 %v6221, %v1402
        %v6233 = vmul.f32 %v6225, %v1403
        %s6234 = scalar_lea.vmem [#allocation7], 480
        %v6235 = vld [vmem:[%s6234] sm:$0xff]
        %v6236 = vld [vmem:[%s6234 + $0x8] sm:$0xff]
        %v6237 = vld [vmem:[%s6234 + $0x10] sm:$0xff]
        %v6238 = vld [vmem:[%s6234 + $0x18] sm:$0xff]
        %v6240 = vsel %vm543, %v6235, 0
        %v6243 = vsel %vm543, %v6236, 0
        %v6246 = vsel %vm543, %v6237, 0
        %v6249 = vsel %vm543, %v6238, 0
        %6251 = vmatprep.subr.mxu0 %v6227
        %6252 = vmatpush1.msra.mxu0 %v6226
        %6253 = vmatprep.subr.mxu0 %v6229
        %6254 = vmatpush1.msra.mxu0 %v6228
        %6255 = vmatprep.subr.mxu0 %v6231
        %6256 = vmatpush1.msra.mxu0 %v6230
        %6257 = vmatprep.subr.mxu0 %v6233
        %6258 = vmatpush1.msra.mxu0 %v6232
        %6259 = vmatprep.subr.mxu0 0.0
        %6260 = vmatpush1.msra.mxu0 0.0
        %6261 = vmatprep.subr.mxu0 0.0
        %6262 = vmatpush1.msra.mxu0 0.0
        %6263 = vmatprep.subr.mxu0 0.0
        %6264 = vmatpush1.msra.mxu0 0.0
        %6265 = vmatprep.subr.mxu0 0.0
        %6266 = vmatpush1.msra.mxu0 0.0
        %6267 = vmatprep.subr.mxu0 0.0
        %6268 = vmatpush1.msra.mxu0 0.0
        %6269 = vmatprep.subr.mxu0 0.0
        %6270 = vmatpush1.msra.mxu0 0.0
        %6271 = vmatprep.subr.mxu0 0.0
        %6272 = vmatpush1.msra.mxu0 0.0
        %6273 = vmatprep.subr.mxu0 0.0
        %6274 = vmatpush1.msra.mxu0 0.0
        %6275 = vmatprep.subr.mxu0 0.0
        %6276 = vmatpush1.msra.mxu0 0.0
        %6277 = vmatprep.subr.mxu0 0.0
        %6278 = vmatpush1.msra.mxu0 0.0
        %6279 = vmatprep.subr.mxu0 0.0
        %6280 = vmatpush1.msra.mxu0 0.0
        %6281 = vmatprep.subr.mxu0 0.0
        %6282 = vmatpush1.msra.mxu0 0.0
        %6283 = vmatprep.subr.mxu0 0.0
        %6284 = vmatpush1.msra.mxu0 0.0
        %6285 = vmatprep.subr.mxu0 0.0
        %6286 = vmatpush1.msra.mxu0 0.0
        %6287 = vmatprep.subr.mxu0 0.0
        %6288 = vmatpush1.msra.mxu0 0.0
        %6289 = vmatprep.subr.mxu0 0.0
        %6290 = vmatpush1.msra.mxu0 0.0
        %6291 = vmatprep.subr.mxu0 0.0
        %6292 = vmatpush1.msra.mxu0 0.0
        %6293 = vmatprep.subr.mxu0 0.0
        %6294 = vmatpush1.msra.mxu0 0.0
        %6295 = vmatprep.subr.mxu0 0.0
        %6296 = vmatpush1.msra.mxu0 0.0
        %6297 = vmatprep.subr.mxu0 0.0
        %6298 = vmatpush1.msra.mxu0 0.0
        %6299 = vmatprep.subr.mxu0 0.0
        %6300 = vmatpush1.msra.mxu0 0.0
        %6301 = vmatprep.subr.mxu0 0.0
        %6302 = vmatpush1.msra.mxu0 0.0
        %6303 = vmatprep.subr.mxu0 0.0
        %6304 = vmatpush1.msra.mxu0 0.0
        %6305 = vmatprep.subr.mxu0 0.0
        %6306 = vmatpush1.msra.mxu0 0.0
        %6307 = vmatprep.subr.mxu0 0.0
        %6308 = vmatpush1.msra.mxu0 0.0
        %6309 = vmatprep.subr.mxu0 0.0
        %6310 = vmatpush1.msra.mxu0 0.0
        %6311 = vmatprep.subr.mxu0 0.0
        %6312 = vmatpush1.msra.mxu0 0.0
        %6313 = vmatprep.subr.mxu0 0.0
        %6314 = vmatpush1.msra.mxu0 0.0
        %6315 = vmatprep.mubr.f32.mxu0 0.0
        %6316 = vmatmul.mubr.f32.gmra.mrb[0].mxu0 %v6240
        %v6317 = vpop.f32.mrb[0].mxu0
        %v6318 = vadd.f32 0.0, %v6317
        %v6319 = vpop.f32.mrb[0].mxu0
        %v6320 = vadd.f32 0.0, %v6319
        %6321 = vmatprep.mubr.f32.mxu0 0.0
        %6322 = vmatmul.mubr.f32.gmra.mrb[0].mxu0 %v6243
        %v6323 = vpop.f32.mrb[0].mxu0
        %v6324 = vadd.f32 0.0, %v6323
        %v6325 = vpop.f32.mrb[0].mxu0
        %v6326 = vadd.f32 0.0, %v6325
        %6327 = vmatprep.mubr.f32.mxu0 0.0
        %6328 = vmatmul.mubr.f32.gmra.mrb[0].mxu0 %v6246
        %v6329 = vpop.f32.mrb[0].mxu0
        %v6330 = vadd.f32 0.0, %v6329
        %v6331 = vpop.f32.mrb[0].mxu0
        %v6332 = vadd.f32 0.0, %v6331
        %6333 = vmatprep.mubr.f32.mxu0 0.0
        %6334 = vmatmul.mubr.f32.gmra.mrb[0].mxu0 %v6249
        %v6335 = vpop.f32.mrb[0].mxu0
        %v6336 = vadd.f32 0.0, %v6335
        %v6337 = vpop.f32.mrb[0].mxu0
        %v6338 = vadd.f32 0.0, %v6337
        %6339 = vdwg.mxu0
        %v6340 = vadd.f32 %v6194, %v6318
        %v6341 = vadd.f32 %v6195, %v6320
        %v6342 = vadd.f32 %v6196, %v6324
        %v6343 = vadd.f32 %v6197, %v6326
        %v6344 = vadd.f32 %v6198, %v6330
        %v6345 = vadd.f32 %v6199, %v6332
        %v6346 = vadd.f32 %v6200, %v6336
        %v6347 = vadd.f32 %v6201, %v6338
        %6348 = vrot.lane.b32.xlu0 %v5366, 112
        %v6349 = vpop.permute.xlu0 %6348
        %6350 = vrot.lane.b32.xlu0 %v5368, 112
        %v6351 = vpop.permute.xlu0 %6350
        %6352 = vrot.lane.b32.xlu0 %v5370, 112
        %v6353 = vpop.permute.xlu0 %6352
        %6354 = vrot.lane.b32.xlu0 %v5372, 112
        %v6355 = vpop.permute.xlu0 %6354
        %6356 = vrot.lane.b32.xlu0 %v5367, 112
        %v6357 = vpop.permute.xlu0 %6356
        %6358 = vrot.lane.b32.xlu0 %v5369, 112
        %v6359 = vpop.permute.xlu0 %6358
        %6360 = vrot.lane.b32.xlu0 %v5371, 112
        %v6361 = vpop.permute.xlu0 %6360
        %6362 = vrot.lane.b32.xlu0 %v5373, 112
        %v6363 = vpop.permute.xlu0 %6362
        %v6364 = vsel %vm1542, %v6349, %v6357
        %v6365 = vsel %vm1542, %v6351, %v6359
        %v6366 = vsel %vm1542, %v6353, %v6361
        %v6367 = vsel %vm1542, %v6355, %v6363
        %v6368 = vsel %vm1542, %v6357, %v6349
        %v6369 = vsel %vm1542, %v6359, %v6351
        %v6370 = vsel %vm1542, %v6361, %v6353
        %v6371 = vsel %vm1542, %v6363, %v6355
        %v6372 = vmul.f32 %v6364, %v1552
        %v6373 = vmul.f32 %v6368, %v1553
        %v6374 = vmul.f32 %v6365, %v1554
        %v6375 = vmul.f32 %v6369, %v1555
        %v6376 = vmul.f32 %v6366, %v1556
        %v6377 = vmul.f32 %v6370, %v1557
        %v6378 = vmul.f32 %v6367, %v1558
        %v6379 = vmul.f32 %v6371, %v1559
        %s6380 = scalar_lea.vmem [#allocation7], 512
        %v6381 = vld [vmem:[%s6380] sm:$0xff]
        %v6382 = vld [vmem:[%s6380 + $0x8] sm:$0xff]
        %v6383 = vld [vmem:[%s6380 + $0x10] sm:$0xff]
        %v6384 = vld [vmem:[%s6380 + $0x18] sm:$0xff]
        %v6386 = vsel %vm543, %v6381, 0
        %v6389 = vsel %vm543, %v6382, 0
        %v6392 = vsel %vm543, %v6383, 0
        %v6395 = vsel %vm543, %v6384, 0
        %6397 = vmatprep.subr.mxu0 %v6373
        %6398 = vmatpush1.msra.mxu0 %v6372
        %6399 = vmatprep.subr.mxu0 %v6375
        %6400 = vmatpush1.msra.mxu0 %v6374
        %6401 = vmatprep.subr.mxu0 %v6377
        %6402 = vmatpush1.msra.mxu0 %v6376
        %6403 = vmatprep.subr.mxu0 %v6379
        %6404 = vmatpush1.msra.mxu0 %v6378
        %6405 = vmatprep.subr.mxu0 0.0
        %6406 = vmatpush1.msra.mxu0 0.0
        %6407 = vmatprep.subr.mxu0 0.0
        %6408 = vmatpush1.msra.mxu0 0.0
        %6409 = vmatprep.subr.mxu0 0.0
        %6410 = vmatpush1.msra.mxu0 0.0
        %6411 = vmatprep.subr.mxu0 0.0
        %6412 = vmatpush1.msra.mxu0 0.0
        %6413 = vmatprep.subr.mxu0 0.0
        %6414 = vmatpush1.msra.mxu0 0.0
        %6415 = vmatprep.subr.mxu0 0.0
        %6416 = vmatpush1.msra.mxu0 0.0
        %6417 = vmatprep.subr.mxu0 0.0
        %6418 = vmatpush1.msra.mxu0 0.0
        %6419 = vmatprep.subr.mxu0 0.0
        %6420 = vmatpush1.msra.mxu0 0.0
        %6421 = vmatprep.subr.mxu0 0.0
        %6422 = vmatpush1.msra.mxu0 0.0
        %6423 = vmatprep.subr.mxu0 0.0
        %6424 = vmatpush1.msra.mxu0 0.0
        %6425 = vmatprep.subr.mxu0 0.0
        %6426 = vmatpush1.msra.mxu0 0.0
        %6427 = vmatprep.subr.mxu0 0.0
        %6428 = vmatpush1.msra.mxu0 0.0
        %6429 = vmatprep.subr.mxu0 0.0
        %6430 = vmatpush1.msra.mxu0 0.0
        %6431 = vmatprep.subr.mxu0 0.0
        %6432 = vmatpush1.msra.mxu0 0.0
        %6433 = vmatprep.subr.mxu0 0.0
        %6434 = vmatpush1.msra.mxu0 0.0
        %6435 = vmatprep.subr.mxu0 0.0
        %6436 = vmatpush1.msra.mxu0 0.0
        %6437 = vmatprep.subr.mxu0 0.0
        %6438 = vmatpush1.msra.mxu0 0.0
        %6439 = vmatprep.subr.mxu0 0.0
        %6440 = vmatpush1.msra.mxu0 0.0
        %6441 = vmatprep.subr.mxu0 0.0
        %6442 = vmatpush1.msra.mxu0 0.0
        %6443 = vmatprep.subr.mxu0 0.0
        %6444 = vmatpush1.msra.mxu0 0.0
        %6445 = vmatprep.subr.mxu0 0.0
        %6446 = vmatpush1.msra.mxu0 0.0
        %6447 = vmatprep.subr.mxu0 0.0
        %6448 = vmatpush1.msra.mxu0 0.0
        %6449 = vmatprep.subr.mxu0 0.0
        %6450 = vmatpush1.msra.mxu0 0.0
        %6451 = vmatprep.subr.mxu0 0.0
        %6452 = vmatpush1.msra.mxu0 0.0
        %6453 = vmatprep.subr.mxu0 0.0
        %6454 = vmatpush1.msra.mxu0 0.0
        %6455 = vmatprep.subr.mxu0 0.0
        %6456 = vmatpush1.msra.mxu0 0.0
        %6457 = vmatprep.subr.mxu0 0.0
        %6458 = vmatpush1.msra.mxu0 0.0
        %6459 = vmatprep.subr.mxu0 0.0
        %6460 = vmatpush1.msra.mxu0 0.0
        %6461 = vmatprep.mubr.f32.mxu0 0.0
        %6462 = vmatmul.mubr.f32.gmra.mrb[0].mxu0 %v6386
        %v6463 = vpop.f32.mrb[0].mxu0
        %v6464 = vadd.f32 0.0, %v6463
        %v6465 = vpop.f32.mrb[0].mxu0
        %v6466 = vadd.f32 0.0, %v6465
        %6467 = vmatprep.mubr.f32.mxu0 0.0
        %6468 = vmatmul.mubr.f32.gmra.mrb[0].mxu0 %v6389
        %v6469 = vpop.f32.mrb[0].mxu0
        %v6470 = vadd.f32 0.0, %v6469
        %v6471 = vpop.f32.mrb[0].mxu0
        %v6472 = vadd.f32 0.0, %v6471
        %6473 = vmatprep.mubr.f32.mxu0 0.0
        %6474 = vmatmul.mubr.f32.gmra.mrb[0].mxu0 %v6392
        %v6475 = vpop.f32.mrb[0].mxu0
        %v6476 = vadd.f32 0.0, %v6475
        %v6477 = vpop.f32.mrb[0].mxu0
        %v6478 = vadd.f32 0.0, %v6477
        %6479 = vmatprep.mubr.f32.mxu0 0.0
        %6480 = vmatmul.mubr.f32.gmra.mrb[0].mxu0 %v6395
        %v6481 = vpop.f32.mrb[0].mxu0
        %v6482 = vadd.f32 0.0, %v6481
        %v6483 = vpop.f32.mrb[0].mxu0
        %v6484 = vadd.f32 0.0, %v6483
        %6485 = vdwg.mxu0
        %v6486 = vadd.f32 %v6340, %v6464
        %v6487 = vadd.f32 %v6341, %v6466
        %v6488 = vadd.f32 %v6342, %v6470
        %v6489 = vadd.f32 %v6343, %v6472
        %v6490 = vadd.f32 %v6344, %v6476
        %v6491 = vadd.f32 %v6345, %v6478
        %v6492 = vadd.f32 %v6346, %v6482
        %v6493 = vadd.f32 %v6347, %v6484
        %6494 = vrot.lane.b32.xlu0 %v5366, 111
        %v6495 = vpop.permute.xlu0 %6494
        %6496 = vrot.lane.b32.xlu0 %v5368, 111
        %v6497 = vpop.permute.xlu0 %6496
        %6498 = vrot.lane.b32.xlu0 %v5370, 111
        %v6499 = vpop.permute.xlu0 %6498
        %6500 = vrot.lane.b32.xlu0 %v5372, 111
        %v6501 = vpop.permute.xlu0 %6500
        %6502 = vrot.lane.b32.xlu0 %v5367, 111
        %v6503 = vpop.permute.xlu0 %6502
        %6504 = vrot.lane.b32.xlu0 %v5369, 111
        %v6505 = vpop.permute.xlu0 %6504
        %6506 = vrot.lane.b32.xlu0 %v5371, 111
        %v6507 = vpop.permute.xlu0 %6506
        %6508 = vrot.lane.b32.xlu0 %v5373, 111
        %v6509 = vpop.permute.xlu0 %6508
        %v6510 = vsel %vm1698, %v6495, %v6503
        %v6511 = vsel %vm1698, %v6497, %v6505
        %v6512 = vsel %vm1698, %v6499, %v6507
        %v6513 = vsel %vm1698, %v6501, %v6509
        %v6514 = vsel %vm1698, %v6503, %v6495
        %v6515 = vsel %vm1698, %v6505, %v6497
        %v6516 = vsel %vm1698, %v6507, %v6499
        %v6517 = vsel %vm1698, %v6509, %v6501
        %v6518 = vmul.f32 %v6510, %v1708
        %v6519 = vmul.f32 %v6514, %v1709
        %v6520 = vmul.f32 %v6511, %v1710
        %v6521 = vmul.f32 %v6515, %v1711
        %v6522 = vmul.f32 %v6512, %v1712
        %v6523 = vmul.f32 %v6516, %v1713
        %v6524 = vmul.f32 %v6513, %v1714
        %v6525 = vmul.f32 %v6517, %v1715
        %s6526 = scalar_lea.vmem [#allocation7], 544
        %v6527 = vld [vmem:[%s6526] sm:$0xff]
        %v6528 = vld [vmem:[%s6526 + $0x8] sm:$0xff]
        %v6529 = vld [vmem:[%s6526 + $0x10] sm:$0xff]
        %v6530 = vld [vmem:[%s6526 + $0x18] sm:$0xff]
        %v6532 = vsel %vm543, %v6527, 0
        %v6535 = vsel %vm543, %v6528, 0
        %v6538 = vsel %vm543, %v6529, 0
        %v6541 = vsel %vm543, %v6530, 0
        %6543 = vmatprep.subr.mxu0 %v6519
        %6544 = vmatpush1.msra.mxu0 %v6518
        %6545 = vmatprep.subr.mxu0 %v6521
        %6546 = vmatpush1.msra.mxu0 %v6520
        %6547 = vmatprep.subr.mxu0 %v6523
        %6548 = vmatpush1.msra.mxu0 %v6522
        %6549 = vmatprep.subr.mxu0 %v6525
        %6550 = vmatpush1.msra.mxu0 %v6524
        %6551 = vmatprep.subr.mxu0 0.0
        %6552 = vmatpush1.msra.mxu0 0.0
        %6553 = vmatprep.subr.mxu0 0.0
        %6554 = vmatpush1.msra.mxu0 0.0
        %6555 = vmatprep.subr.mxu0 0.0
        %6556 = vmatpush1.msra.mxu0 0.0
        %6557 = vmatprep.subr.mxu0 0.0
        %6558 = vmatpush1.msra.mxu0 0.0
        %6559 = vmatprep.subr.mxu0 0.0
        %6560 = vmatpush1.msra.mxu0 0.0
        %6561 = vmatprep.subr.mxu0 0.0
        %6562 = vmatpush1.msra.mxu0 0.0
        %6563 = vmatprep.subr.mxu0 0.0
        %6564 = vmatpush1.msra.mxu0 0.0
        %6565 = vmatprep.subr.mxu0 0.0
        %6566 = vmatpush1.msra.mxu0 0.0
        %6567 = vmatprep.subr.mxu0 0.0
        %6568 = vmatpush1.msra.mxu0 0.0
        %6569 = vmatprep.subr.mxu0 0.0
        %6570 = vmatpush1.msra.mxu0 0.0
        %6571 = vmatprep.subr.mxu0 0.0
        %6572 = vmatpush1.msra.mxu0 0.0
        %6573 = vmatprep.subr.mxu0 0.0
        %6574 = vmatpush1.msra.mxu0 0.0
        %6575 = vmatprep.subr.mxu0 0.0
        %6576 = vmatpush1.msra.mxu0 0.0
        %6577 = vmatprep.subr.mxu0 0.0
        %6578 = vmatpush1.msra.mxu0 0.0
        %6579 = vmatprep.subr.mxu0 0.0
        %6580 = vmatpush1.msra.mxu0 0.0
        %6581 = vmatprep.subr.mxu0 0.0
        %6582 = vmatpush1.msra.mxu0 0.0
        %6583 = vmatprep.subr.mxu0 0.0
        %6584 = vmatpush1.msra.mxu0 0.0
        %6585 = vmatprep.subr.mxu0 0.0
        %6586 = vmatpush1.msra.mxu0 0.0
        %6587 = vmatprep.subr.mxu0 0.0
        %6588 = vmatpush1.msra.mxu0 0.0
        %6589 = vmatprep.subr.mxu0 0.0
        %6590 = vmatpush1.msra.mxu0 0.0
        %6591 = vmatprep.subr.mxu0 0.0
        %6592 = vmatpush1.msra.mxu0 0.0
        %6593 = vmatprep.subr.mxu0 0.0
        %6594 = vmatpush1.msra.mxu0 0.0
        %6595 = vmatprep.subr.mxu0 0.0
        %6596 = vmatpush1.msra.mxu0 0.0
        %6597 = vmatprep.subr.mxu0 0.0
        %6598 = vmatpush1.msra.mxu0 0.0
        %6599 = vmatprep.subr.mxu0 0.0
        %6600 = vmatpush1.msra.mxu0 0.0
        %6601 = vmatprep.subr.mxu0 0.0
        %6602 = vmatpush1.msra.mxu0 0.0
        %6603 = vmatprep.subr.mxu0 0.0
        %6604 = vmatpush1.msra.mxu0 0.0
        %6605 = vmatprep.subr.mxu0 0.0
        %6606 = vmatpush1.msra.mxu0 0.0
        %6607 = vmatprep.mubr.f32.mxu0 0.0
        %6608 = vmatmul.mubr.f32.gmra.mrb[0].mxu0 %v6532
        %v6609 = vpop.f32.mrb[0].mxu0
        %v6610 = vadd.f32 0.0, %v6609
        %v6611 = vpop.f32.mrb[0].mxu0
        %v6612 = vadd.f32 0.0, %v6611
        %6613 = vmatprep.mubr.f32.mxu0 0.0
        %6614 = vmatmul.mubr.f32.gmra.mrb[0].mxu0 %v6535
        %v6615 = vpop.f32.mrb[0].mxu0
        %v6616 = vadd.f32 0.0, %v6615
        %v6617 = vpop.f32.mrb[0].mxu0
        %v6618 = vadd.f32 0.0, %v6617
        %6619 = vmatprep.mubr.f32.mxu0 0.0
        %6620 = vmatmul.mubr.f32.gmra.mrb[0].mxu0 %v6538
        %v6621 = vpop.f32.mrb[0].mxu0
        %v6622 = vadd.f32 0.0, %v6621
        %v6623 = vpop.f32.mrb[0].mxu0
        %v6624 = vadd.f32 0.0, %v6623
        %6625 = vmatprep.mubr.f32.mxu0 0.0
        %6626 = vmatmul.mubr.f32.gmra.mrb[0].mxu0 %v6541
        %v6627 = vpop.f32.mrb[0].mxu0
        %v6628 = vadd.f32 0.0, %v6627
        %v6629 = vpop.f32.mrb[0].mxu0
        %v6630 = vadd.f32 0.0, %v6629
        %6631 = vdwg.mxu0
        %v6632 = vadd.f32 %v6486, %v6610
        %v6633 = vadd.f32 %v6487, %v6612
        %v6634 = vadd.f32 %v6488, %v6616
        %v6635 = vadd.f32 %v6489, %v6618
        %v6636 = vadd.f32 %v6490, %v6622
        %v6637 = vadd.f32 %v6491, %v6624
        %v6638 = vadd.f32 %v6492, %v6628
        %v6639 = vadd.f32 %v6493, %v6630
        %s6640 = scalar_lea.vmem %s8, 32
        %v6641 = vld [vmem:[%s6640] sm:$0xff]
        %v6642 = vld [vmem:[%s6640 + $0x8] sm:$0xff]
        %v6643 = vld [vmem:[%s6640 + $0x10] sm:$0xff]
        %v6644 = vld [vmem:[%s6640 + $0x18] sm:$0xff]
        %6646 = vset.pattern.permute.xlu0 0
        %6647 = vperm.xlu0 %6646, %v6641
        %v6648 = vpop.permute.xlu0 %6647
        %6651 = vset.pattern.permute.xlu0 0
        %6652 = vperm.xlu0 %6651, %v6642
        %v6653 = vpop.permute.xlu0 %6652
        %6656 = vset.pattern.permute.xlu0 0
        %6657 = vperm.xlu0 %6656, %v6643
        %v6658 = vpop.permute.xlu0 %6657
        %6661 = vset.pattern.permute.xlu0 0
        %6662 = vperm.xlu0 %6661, %v6644
        %v6663 = vpop.permute.xlu0 %6662
        %v6665 = vmul.f32 %v6632, %v6648
        %v6666 = vmul.f32 %v6633, %v6648
        %v6667 = vmul.f32 %v6634, %v6653
        %v6668 = vmul.f32 %v6635, %v6653
        %v6669 = vmul.f32 %v6636, %v6658
        %v6670 = vmul.f32 %v6637, %v6658
        %v6671 = vmul.f32 %v6638, %v6663
        %v6672 = vmul.f32 %v6639, %v6663
        %s6673 = scalar_lea.vmem %s9, 32
        %v6674 = vld [vmem:[%s6673] sm:$0xff]
        %v6675 = vld [vmem:[%s6673 + $0x8] sm:$0xff]
        %v6676 = vld [vmem:[%s6673 + $0x10] sm:$0xff]
        %v6677 = vld [vmem:[%s6673 + $0x18] sm:$0xff]
        %6679 = vset.pattern.permute.xlu0 0
        %6680 = vperm.xlu0 %6679, %v6674
        %v6681 = vpop.permute.xlu0 %6680
        %6684 = vset.pattern.permute.xlu0 0
        %6685 = vperm.xlu0 %6684, %v6675
        %v6686 = vpop.permute.xlu0 %6685
        %6689 = vset.pattern.permute.xlu0 0
        %6690 = vperm.xlu0 %6689, %v6676
        %v6691 = vpop.permute.xlu0 %6690
        %6694 = vset.pattern.permute.xlu0 0
        %6695 = vperm.xlu0 %6694, %v6677
        %v6696 = vpop.permute.xlu0 %6695
        %v6698 = vadd.f32 %v6665, %v6681
        %v6699 = vadd.f32 %v6666, %v6681
        %v6700 = vadd.f32 %v6667, %v6686
        %v6701 = vadd.f32 %v6668, %v6686
        %v6702 = vadd.f32 %v6669, %v6691
        %v6703 = vadd.f32 %v6670, %v6691
        %v6704 = vadd.f32 %v6671, %v6696
        %v6705 = vadd.f32 %v6672, %v6696
        %v6706 = vadd.f32 %v6698, %v6699
        %6707 = vadd.xlane.f32.xlu0 %v6706
        %v6708 = vpop.xlane.xlu0 %6707
        %v6709 = vadd.f32 %v6700, %v6701
        %6710 = vadd.xlane.f32.xlu0 %v6709
        %v6711 = vpop.xlane.xlu0 %6710
        %v6712 = vadd.f32 %v6702, %v6703
        %6713 = vadd.xlane.f32.xlu0 %v6712
        %v6714 = vpop.xlane.xlu0 %6713
        %v6715 = vadd.f32 %v6704, %v6705
        %6716 = vadd.xlane.f32.xlu0 %v6715
        %v6717 = vpop.xlane.xlu0 %6716
        %v6718 = vmul.f32 %v6708, %v3251
        %v6719 = vmul.f32 %v6711, %v3251
        %v6720 = vmul.f32 %v6714, %v3251
        %v6721 = vmul.f32 %v6717, %v3251
        %v6722 = vmax.f32 %v6698, %v6699
        %6723 = vmax.xlane.f32.xlu0 %v6722
        %v6724 = vpop.xlane.xlu0 %6723
        %v6725 = vmax.f32 %v6700, %v6701
        %6726 = vmax.xlane.f32.xlu0 %v6725
        %v6727 = vpop.xlane.xlu0 %6726
        %v6728 = vmax.f32 %v6702, %v6703
        %6729 = vmax.xlane.f32.xlu0 %v6728
        %v6730 = vpop.xlane.xlu0 %6729
        %v6731 = vmax.f32 %v6704, %v6705
        %6732 = vmax.xlane.f32.xlu0 %v6731
        %v6733 = vpop.xlane.xlu0 %6732
        %v6734 = vsel %vm3268, %v6718, %v6724
        %v6735 = vsel %vm3268, %v6719, %v6727
        %v6736 = vsel %vm3268, %v6720, %v6730
        %v6737 = vsel %vm3268, %v6721, %v6733
        %s6738 = scalar_lea.vmem %s10, 2
        %v6739 = vld [vmem:[%s6738] sm:$0x3]
        %v6741 = vsel %vm543, %v6739, 0
        %6743 = vmatprep.subr.mxu0 0.0
        %6744 = vmatpush1.msra.mxu0 %v6734
        %6745 = vmatprep.subr.mxu0 0.0
        %6746 = vmatpush1.msra.mxu0 %v6735
        %6747 = vmatprep.subr.mxu0 0.0
        %6748 = vmatpush1.msra.mxu0 %v6736
        %6749 = vmatprep.subr.mxu0 0.0
        %6750 = vmatpush1.msra.mxu0 %v6737
        %6751 = vmatprep.subr.mxu0 0.0
        %6752 = vmatpush1.msra.mxu0 0.0
        %6753 = vmatprep.subr.mxu0 0.0
        %6754 = vmatpush1.msra.mxu0 0.0
        %6755 = vmatprep.subr.mxu0 0.0
        %6756 = vmatpush1.msra.mxu0 0.0
        %6757 = vmatprep.subr.mxu0 0.0
        %6758 = vmatpush1.msra.mxu0 0.0
        %6759 = vmatprep.subr.mxu0 0.0
        %6760 = vmatpush1.msra.mxu0 0.0
        %6761 = vmatprep.subr.mxu0 0.0
        %6762 = vmatpush1.msra.mxu0 0.0
        %6763 = vmatprep.subr.mxu0 0.0
        %6764 = vmatpush1.msra.mxu0 0.0
        %6765 = vmatprep.subr.mxu0 0.0
        %6766 = vmatpush1.msra.mxu0 0.0
        %6767 = vmatprep.subr.mxu0 0.0
        %6768 = vmatpush1.msra.mxu0 0.0
        %6769 = vmatprep.subr.mxu0 0.0
        %6770 = vmatpush1.msra.mxu0 0.0
        %6771 = vmatprep.subr.mxu0 0.0
        %6772 = vmatpush1.msra.mxu0 0.0
        %6773 = vmatprep.subr.mxu0 0.0
        %6774 = vmatpush1.msra.mxu0 0.0
        %6775 = vmatprep.subr.mxu0 0.0
        %6776 = vmatpush1.msra.mxu0 0.0
        %6777 = vmatprep.subr.mxu0 0.0
        %6778 = vmatpush1.msra.mxu0 0.0
        %6779 = vmatprep.subr.mxu0 0.0
        %6780 = vmatpush1.msra.mxu0 0.0
        %6781 = vmatprep.subr.mxu0 0.0
        %6782 = vmatpush1.msra.mxu0 0.0
        %6783 = vmatprep.subr.mxu0 0.0
        %6784 = vmatpush1.msra.mxu0 0.0
        %6785 = vmatprep.subr.mxu0 0.0
        %6786 = vmatpush1.msra.mxu0 0.0
        %6787 = vmatprep.subr.mxu0 0.0
        %6788 = vmatpush1.msra.mxu0 0.0
        %6789 = vmatprep.subr.mxu0 0.0
        %6790 = vmatpush1.msra.mxu0 0.0
        %6791 = vmatprep.subr.mxu0 0.0
        %6792 = vmatpush1.msra.mxu0 0.0
        %6793 = vmatprep.subr.mxu0 0.0
        %6794 = vmatpush1.msra.mxu0 0.0
        %6795 = vmatprep.subr.mxu0 0.0
        %6796 = vmatpush1.msra.mxu0 0.0
        %6797 = vmatprep.subr.mxu0 0.0
        %6798 = vmatpush1.msra.mxu0 0.0
        %6799 = vmatprep.subr.mxu0 0.0
        %6800 = vmatpush1.msra.mxu0 0.0
        %6801 = vmatprep.subr.mxu0 0.0
        %6802 = vmatpush1.msra.mxu0 0.0
        %6803 = vmatprep.subr.mxu0 0.0
        %6804 = vmatpush1.msra.mxu0 0.0
        %6805 = vmatprep.subr.mxu0 0.0
        %6806 = vmatpush1.msra.mxu0 0.0
        %6807 = vmatprep.mubr.f32.mxu0 0.0
        %6808 = vmatmul.mubr.f32.gmra.mrb[0].mxu0 %v6741
        %v6809 = vpop.f32.mrb[0].mxu0
        %v6810 = vadd.f32 0.0, %v6809
        %v6811 = vpop.f32.mrb[0].mxu0
        %6812 = vdwg.mxu0
        %v6813 = vmax.f32 %v6810, 0.0
        %s6814 = scalar_lea.vmem %s11, 32
        %v6815 = vld [vmem:[%s6814] sm:$0xff]
        %v6816 = vld [vmem:[%s6814 + $0x8] sm:$0xff]
        %v6817 = vld [vmem:[%s6814 + $0x10] sm:$0xff]
        %v6818 = vld [vmem:[%s6814 + $0x18] sm:$0xff]
        %v6820 = vsel %vm3352, %v6815, 0
        %v6823 = vsel %vm3352, %v6816, 0
        %v6826 = vsel %vm3352, %v6817, 0
        %v6829 = vsel %vm3352, %v6818, 0
        %v6832 = vsel %vm3365, %v6813, 0
        %6834 = vmatprep.subr.mxu0 0.0
        %6835 = vmatpush1.msra.mxu0 %v6832
        %6836 = vmatprep.subr.mxu0 0.0
        %6837 = vmatpush1.msra.mxu0 0.0
        %6838 = vmatprep.subr.mxu0 0.0
        %6839 = vmatpush1.msra.mxu0 0.0
        %6840 = vmatprep.subr.mxu0 0.0
        %6841 = vmatpush1.msra.mxu0 0.0
        %6842 = vmatprep.subr.mxu0 0.0
        %6843 = vmatpush1.msra.mxu0 0.0
        %6844 = vmatprep.subr.mxu0 0.0
        %6845 = vmatpush1.msra.mxu0 0.0
        %6846 = vmatprep.subr.mxu0 0.0
        %6847 = vmatpush1.msra.mxu0 0.0
        %6848 = vmatprep.subr.mxu0 0.0
        %6849 = vmatpush1.msra.mxu0 0.0
        %6850 = vmatprep.subr.mxu0 0.0
        %6851 = vmatpush1.msra.mxu0 0.0
        %6852 = vmatprep.subr.mxu0 0.0
        %6853 = vmatpush1.msra.mxu0 0.0
        %6854 = vmatprep.subr.mxu0 0.0
        %6855 = vmatpush1.msra.mxu0 0.0
        %6856 = vmatprep.subr.mxu0 0.0
        %6857 = vmatpush1.msra.mxu0 0.0
        %6858 = vmatprep.subr.mxu0 0.0
        %6859 = vmatpush1.msra.mxu0 0.0
        %6860 = vmatprep.subr.mxu0 0.0
        %6861 = vmatpush1.msra.mxu0 0.0
        %6862 = vmatprep.subr.mxu0 0.0
        %6863 = vmatpush1.msra.mxu0 0.0
        %6864 = vmatprep.subr.mxu0 0.0
        %6865 = vmatpush1.msra.mxu0 0.0
        %6866 = vmatprep.subr.mxu0 0.0
        %6867 = vmatpush1.msra.mxu0 0.0
        %6868 = vmatprep.subr.mxu0 0.0
        %6869 = vmatpush1.msra.mxu0 0.0
        %6870 = vmatprep.subr.mxu0 0.0
        %6871 = vmatpush1.msra.mxu0 0.0
        %6872 = vmatprep.subr.mxu0 0.0
        %6873 = vmatpush1.msra.mxu0 0.0
        %6874 = vmatprep.subr.mxu0 0.0
        %6875 = vmatpush1.msra.mxu0 0.0
        %6876 = vmatprep.subr.mxu0 0.0
        %6877 = vmatpush1.msra.mxu0 0.0
        %6878 = vmatprep.subr.mxu0 0.0
        %6879 = vmatpush1.msra.mxu0 0.0
        %6880 = vmatprep.subr.mxu0 0.0
        %6881 = vmatpush1.msra.mxu0 0.0
        %6882 = vmatprep.subr.mxu0 0.0
        %6883 = vmatpush1.msra.mxu0 0.0
        %6884 = vmatprep.subr.mxu0 0.0
        %6885 = vmatpush1.msra.mxu0 0.0
        %6886 = vmatprep.subr.mxu0 0.0
        %6887 = vmatpush1.msra.mxu0 0.0
        %6888 = vmatprep.subr.mxu0 0.0
        %6889 = vmatpush1.msra.mxu0 0.0
        %6890 = vmatprep.subr.mxu0 0.0
        %6891 = vmatpush1.msra.mxu0 0.0
        %6892 = vmatprep.subr.mxu0 0.0
        %6893 = vmatpush1.msra.mxu0 0.0
        %6894 = vmatprep.subr.mxu0 0.0
        %6895 = vmatpush1.msra.mxu0 0.0
        %6896 = vmatprep.subr.mxu0 0.0
        %6897 = vmatpush1.msra.mxu0 0.0
        %6898 = vmatprep.mubr.f32.mxu0 0.0
        %6899 = vmatmul.mubr.f32.gmra.mrb[0].mxu0 %v6820
        %v6900 = vpop.f32.mrb[0].mxu0
        %v6901 = vadd.f32 0.0, %v6900
        %v6902 = vpop.f32.mrb[0].mxu0
        %6903 = vmatprep.mubr.f32.mxu0 0.0
        %6904 = vmatmul.mubr.f32.gmra.mrb[0].mxu0 %v6823
        %v6905 = vpop.f32.mrb[0].mxu0
        %v6906 = vadd.f32 0.0, %v6905
        %v6907 = vpop.f32.mrb[0].mxu0
        %6908 = vmatprep.mubr.f32.mxu0 0.0
        %6909 = vmatmul.mubr.f32.gmra.mrb[0].mxu0 %v6826
        %v6910 = vpop.f32.mrb[0].mxu0
        %v6911 = vadd.f32 0.0, %v6910
        %v6912 = vpop.f32.mrb[0].mxu0
        %6913 = vmatprep.mubr.f32.mxu0 0.0
        %6914 = vmatmul.mubr.f32.gmra.mrb[0].mxu0 %v6829
        %v6915 = vpop.f32.mrb[0].mxu0
        %v6916 = vadd.f32 0.0, %v6915
        %v6917 = vpop.f32.mrb[0].mxu0
        %6918 = vdwg.mxu0
        %6923 = vrot.lane.b32.xlu0 %v6901, 127
        %v6924 = vpop.permute.xlu0 %6923
        %6925 = vrot.lane.b32.xlu0 %v6906, 127
        %v6926 = vpop.permute.xlu0 %6925
        %6927 = vrot.lane.b32.xlu0 %v6911, 127
        %v6928 = vpop.permute.xlu0 %6927
        %6929 = vrot.lane.b32.xlu0 %v6916, 127
        %v6930 = vpop.permute.xlu0 %6929
        %v6935 = vadd.f32 %v6901, %v6924
        %v6936 = vadd.f32 %v6906, %v6926
        %v6937 = vadd.f32 %v6911, %v6928
        %v6938 = vadd.f32 %v6916, %v6930
        %v6939 = vxor.u32 %v6935, 2147483648
        %v6940 = vxor.u32 %v6936, 2147483648
        %v6941 = vxor.u32 %v6937, 2147483648
        %v6942 = vxor.u32 %v6938, 2147483648
        %v6943 = vmul.f32 %v6939, 1.442695
        %v6944 = vpow.pop %v6943
        %v6945 = vmul.f32 %v6940, 1.442695
        %v6946 = vpow.pop %v6945
        %v6947 = vmul.f32 %v6941, 1.442695
        %v6948 = vpow.pop %v6947
        %v6949 = vmul.f32 %v6942, 1.442695
        %v6950 = vpow.pop %v6949
        %v6951 = vadd.f32 %v6944, 1.0
        %v6952 = vadd.f32 %v6946, 1.0
        %v6953 = vadd.f32 %v6948, 1.0
        %v6954 = vadd.f32 %v6950, 1.0
        %v6955 = vrcp.pop %v6951
        %v6956 = vmul.f32 1.0, %v6955
        %v6957 = vrcp.pop %v6952
        %v6958 = vmul.f32 1.0, %v6957
        %v6959 = vrcp.pop %v6953
        %v6960 = vmul.f32 1.0, %v6959
        %v6961 = vrcp.pop %v6954
        %v6962 = vmul.f32 1.0, %v6961
        %6964 = vset.pattern.permute.xlu0 0
        %6965 = vperm.xlu0 %6964, %v6956
        %v6966 = vpop.permute.xlu0 %6965
        %6969 = vset.pattern.permute.xlu0 0
        %6970 = vperm.xlu0 %6969, %v6958
        %v6971 = vpop.permute.xlu0 %6970
        %6974 = vset.pattern.permute.xlu0 0
        %6975 = vperm.xlu0 %6974, %v6960
        %v6976 = vpop.permute.xlu0 %6975
        %6979 = vset.pattern.permute.xlu0 0
        %6980 = vperm.xlu0 %6979, %v6962
        %v6981 = vpop.permute.xlu0 %6980
        %v6983 = vmul.f32 %v6698, %v6966
        %v6984 = vmul.f32 %v6699, %v6966
        %v6985 = vmul.f32 %v6700, %v6971
        %v6986 = vmul.f32 %v6701, %v6971
        %v6987 = vmul.f32 %v6702, %v6976
        %v6988 = vmul.f32 %v6703, %v6976
        %v6989 = vmul.f32 %v6704, %v6981
        %v6990 = vmul.f32 %v6705, %v6981
        %v6991 = vadd.f32 %v6983, %v6985
        %v6992 = vadd.f32 %v6991, %v6987
        %v6993 = vadd.f32 %v6992, %v6989
        %v6994 = vrot.slane %v6993, 4
        %v6995 = vadd.f32 %v6993, %v6994
        %v6996 = vrot.slane %v6995, 2
        %v6997 = vadd.f32 %v6995, %v6996
        %v6998 = vrot.slane %v6997, 1
        %v6999 = vadd.f32 %v6997, %v6998
        %v7000 = vadd.f32 %v6984, %v6986
        %v7001 = vadd.f32 %v7000, %v6988
        %v7002 = vadd.f32 %v7001, %v6990
        %v7003 = vrot.slane %v7002, 4
        %v7004 = vadd.f32 %v7002, %v7003
        %v7005 = vrot.slane %v7004, 2
        %v7006 = vadd.f32 %v7004, %v7005
        %v7007 = vrot.slane %v7006, 1
        %v7008 = vadd.f32 %v7006, %v7007
        %v7009 = vmul.f32 %v6999, %v3544
        %v7010 = vmul.f32 %v7008, %v3544
        %v7011 = vmax.f32 %v6983, %v6987
        %v7012 = vmax.f32 %v6985, %v6989
        %v7013 = vmax.f32 %v7011, %v7012
        %v7014 = vrot.slane %v7013, 4
        %v7015 = vmax.f32 %v7013, %v7014
        %v7016 = vrot.slane %v7015, 2
        %v7017 = vmax.f32 %v7015, %v7016
        %v7018 = vrot.slane %v7017, 1
        %v7019 = vmax.f32 %v7017, %v7018
        %v7020 = vmax.f32 %v6984, %v6988
        %v7021 = vmax.f32 %v6986, %v6990
        %v7022 = vmax.f32 %v7020, %v7021
        %v7023 = vrot.slane %v7022, 4
        %v7024 = vmax.f32 %v7022, %v7023
        %v7025 = vrot.slane %v7024, 2
        %v7026 = vmax.f32 %v7024, %v7025
        %v7027 = vrot.slane %v7026, 1
        %v7028 = vmax.f32 %v7026, %v7027
        %7029 = vrot.lane.b32.xlu0 %v7009, 48
        %v7030 = vpop.permute.xlu0 %7029
        %7031 = vrot.lane.b32.xlu0 %v7010, 48
        %v7032 = vpop.permute.xlu0 %7031
        %v7033 = vsel %vm3569, %v7030, %v7032
        %v7034 = vsel %vm3569, %v7032, %v7030
        %7035 = vrot.lane.b32.xlu0 %v7009, 32
        %v7036 = vpop.permute.xlu0 %7035
        %7037 = vrot.lane.b32.xlu0 %v7010, 32
        %v7038 = vpop.permute.xlu0 %7037
        %v7039 = vsel %vm3576, %v7036, %v7038
        %v7040 = vsel %vm3576, %v7038, %v7036
        %7041 = vrot.lane.b32.xlu0 %v7009, 16
        %v7042 = vpop.permute.xlu0 %7041
        %7043 = vrot.lane.b32.xlu0 %v7010, 16
        %v7044 = vpop.permute.xlu0 %7043
        %v7045 = vsel %vm762, %v7042, %v7044
        %v7046 = vsel %vm762, %v7044, %v7042
        %7047 = vrot.lane.b32.xlu0 %v7009, 112
        %v7048 = vpop.permute.xlu0 %7047
        %7049 = vrot.lane.b32.xlu0 %v7010, 112
        %v7050 = vpop.permute.xlu0 %7049
        %v7051 = vsel %vm1542, %v7048, %v7050
        %v7052 = vsel %vm1542, %v7050, %v7048
        %7053 = vrot.lane.b32.xlu0 %v7009, 96
        %v7054 = vpop.permute.xlu0 %7053
        %7055 = vrot.lane.b32.xlu0 %v7010, 96
        %v7056 = vpop.permute.xlu0 %7055
        %v7057 = vsel %vm3595, %v7054, %v7056
        %v7058 = vsel %vm3595, %v7056, %v7054
        %7059 = vrot.lane.b32.xlu0 %v7009, 80
        %v7060 = vpop.permute.xlu0 %7059
        %7061 = vrot.lane.b32.xlu0 %v7010, 80
        %v7062 = vpop.permute.xlu0 %7061
        %v7063 = vsel %vm3602, %v7060, %v7062
        %v7064 = vsel %vm3602, %v7062, %v7060
        %7065 = vrot.lane.b32.xlu0 %v7019, 48
        %v7066 = vpop.permute.xlu0 %7065
        %7067 = vrot.lane.b32.xlu0 %v7028, 48
        %v7068 = vpop.permute.xlu0 %7067
        %v7069 = vsel %vm3569, %v7066, %v7068
        %v7070 = vsel %vm3569, %v7068, %v7066
        %7071 = vrot.lane.b32.xlu0 %v7019, 32
        %v7072 = vpop.permute.xlu0 %7071
        %7073 = vrot.lane.b32.xlu0 %v7028, 32
        %v7074 = vpop.permute.xlu0 %7073
        %v7075 = vsel %vm3576, %v7072, %v7074
        %v7076 = vsel %vm3576, %v7074, %v7072
        %7077 = vrot.lane.b32.xlu0 %v7019, 16
        %v7078 = vpop.permute.xlu0 %7077
        %7079 = vrot.lane.b32.xlu0 %v7028, 16
        %v7080 = vpop.permute.xlu0 %7079
        %v7081 = vsel %vm762, %v7078, %v7080
        %v7082 = vsel %vm762, %v7080, %v7078
        %7083 = vrot.lane.b32.xlu0 %v7019, 112
        %v7084 = vpop.permute.xlu0 %7083
        %7085 = vrot.lane.b32.xlu0 %v7028, 112
        %v7086 = vpop.permute.xlu0 %7085
        %v7087 = vsel %vm1542, %v7084, %v7086
        %v7088 = vsel %vm1542, %v7086, %v7084
        %7089 = vrot.lane.b32.xlu0 %v7019, 96
        %v7090 = vpop.permute.xlu0 %7089
        %7091 = vrot.lane.b32.xlu0 %v7028, 96
        %v7092 = vpop.permute.xlu0 %7091
        %v7093 = vsel %vm3595, %v7090, %v7092
        %v7094 = vsel %vm3595, %v7092, %v7090
        %7095 = vrot.lane.b32.xlu0 %v7019, 80
        %v7096 = vpop.permute.xlu0 %7095
        %7097 = vrot.lane.b32.xlu0 %v7028, 80
        %v7098 = vpop.permute.xlu0 %7097
        %v7099 = vsel %vm3602, %v7096, %v7098
        %v7100 = vsel %vm3602, %v7098, %v7096
        %v7103 = vrot.slane %v7040, 7
        %v7104 = vrot.slane %v7039, 7
        %v7109 = vrot.slane %v7046, 6
        %v7110 = vrot.slane %v7045, 6
        %v7115 = vrot.slane %v7051, 4
        %v7116 = vrot.slane %v7052, 4
        %v7121 = vrot.slane %v7057, 3
        %v7122 = vrot.slane %v7058, 3
        %v7127 = vrot.slane %v7063, 2
        %v7128 = vrot.slane %v7064, 2
        %v7133 = vrot.slane %v7076, 7
        %v7134 = vrot.slane %v7075, 7
        %v7139 = vrot.slane %v7082, 6
        %v7140 = vrot.slane %v7081, 6
        %v7145 = vrot.slane %v7087, 4
        %v7146 = vrot.slane %v7088, 4
        %v7151 = vrot.slane %v7093, 3
        %v7152 = vrot.slane %v7094, 3
        %v7157 = vrot.slane %v7099, 2
        %v7158 = vrot.slane %v7100, 2
        %v7161 = vsel %vm3701, %v7034, %v7103
        %v7162 = vsel %vm3701, %v7033, %v7104
        %v7163 = vsel %vm3365, %v7161, %v7109
        %v7164 = vsel %vm3365, %v7162, %v7110
        %v7165 = vsel %vm3706, %v7163, %v7009
        %v7166 = vsel %vm3706, %v7164, %v7010
        %v7167 = vsel %vm3709, %v7165, %v7115
        %v7168 = vsel %vm3709, %v7166, %v7116
        %v7169 = vsel %vm3712, %v7167, %v7121
        %v7170 = vsel %vm3712, %v7168, %v7122
        %v7171 = vsel %vm3715, %v7169, %v7127
        %v7172 = vsel %vm3715, %v7170, %v7128
        %v7173 = vsel %vm3718, %v7171, 0.0
        %v7174 = vsel %vm3718, %v7172, 0.0
        %v7175 = vsel %vm3701, %v7070, %v7133
        %v7176 = vsel %vm3701, %v7069, %v7134
        %v7177 = vsel %vm3365, %v7175, %v7139
        %v7178 = vsel %vm3365, %v7176, %v7140
        %v7179 = vsel %vm3706, %v7177, %v7019
        %v7180 = vsel %vm3706, %v7178, %v7028
        %v7181 = vsel %vm3709, %v7179, %v7145
        %v7182 = vsel %vm3709, %v7180, %v7146
        %v7183 = vsel %vm3712, %v7181, %v7151
        %v7184 = vsel %vm3712, %v7182, %v7152
        %v7185 = vsel %vm3715, %v7183, %v7157
        %v7186 = vsel %vm3715, %v7184, %v7158
        %v7187 = vsel %vm3718, %v7185, 0.0
        %v7188 = vsel %vm3718, %v7186, 0.0
        %v7189 = vmul.f32 %v7173, %v3735
        %v7190 = vmul.f32 %v7174, %v3736
        %v7191 = vmul.f32 %v7187, %v3737
        %v7192 = vmul.f32 %v7188, %v3738
        %s7193 = scalar_lea.vmem %s12, 16
        %v7194 = vld [vmem:[%s7193] sm:$0xff]
        %v7195 = vld [vmem:[%s7193 + $0x8] sm:$0xff]
        %7197 = vset.pattern.permute.xlu0 3
        %7198 = vperm.xlu0 %7197, %v7194
        %v7199 = vpop.permute.xlu0 %7198
        %7202 = vset.pattern.permute.xlu0 3
        %7203 = vperm.xlu0 %7202, %v7195
        %v7204 = vpop.permute.xlu0 %7203
        %v7206 = vmul.f32 %v7189, %v7199
        %v7207 = vmul.f32 %v7190, %v7199
        %v7208 = vmul.f32 %v7191, %v7204
        %v7209 = vmul.f32 %v7192, %v7204
        %7210 = vrot.lane.b32.xlu0 %v7189, 3
        %v7211 = vpop.permute.xlu0 %7210
        %7212 = vrot.lane.b32.xlu0 %v7191, 3
        %v7213 = vpop.permute.xlu0 %7212
        %7214 = vrot.lane.b32.xlu0 %v7190, 3
        %v7215 = vpop.permute.xlu0 %7214
        %7216 = vrot.lane.b32.xlu0 %v7192, 3
        %v7217 = vpop.permute.xlu0 %7216
        %v7218 = vsel %vm3767, %v7211, %v7215
        %v7219 = vsel %vm3767, %v7213, %v7217
        %v7220 = vsel %vm3767, %v7215, %v7211
        %v7221 = vsel %vm3767, %v7217, %v7213
        %7222 = vset.pattern.permute.xlu0 0
        %7223 = vperm.xlu0 %7222, %v7194
        %v7224 = vpop.permute.xlu0 %7223
        %7226 = vset.pattern.permute.xlu0 0
        %7227 = vperm.xlu0 %7226, %v7195
        %v7228 = vpop.permute.xlu0 %7227
        %v7230 = vmul.f32 %v7220, %v7224
        %v7231 = vmul.f32 %v7218, %v7224
        %v7232 = vmul.f32 %v7221, %v7228
        %v7233 = vmul.f32 %v7219, %v7228
        %v7234 = vmul.f32 %v7230, %v3784
        %v7235 = vmul.f32 %v7231, %v3785
        %v7236 = vmul.f32 %v7232, %v3786
        %v7237 = vmul.f32 %v7233, %v3787
        %v7238 = vadd.f32 %v7206, %v7234
        %v7239 = vadd.f32 %v7207, %v7235
        %v7240 = vadd.f32 %v7208, %v7236
        %v7241 = vadd.f32 %v7209, %v7237
        %7242 = vrot.lane.b32.xlu0 %v7189, 2
        %v7243 = vpop.permute.xlu0 %7242
        %7244 = vrot.lane.b32.xlu0 %v7191, 2
        %v7245 = vpop.permute.xlu0 %7244
        %7246 = vrot.lane.b32.xlu0 %v7190, 2
        %v7247 = vpop.permute.xlu0 %7246
        %7248 = vrot.lane.b32.xlu0 %v7192, 2
        %v7249 = vpop.permute.xlu0 %7248
        %v7250 = vsel %vm3804, %v7243, %v7247
        %v7251 = vsel %vm3804, %v7245, %v7249
        %v7252 = vsel %vm3804, %v7247, %v7243
        %v7253 = vsel %vm3804, %v7249, %v7245
        %7254 = vset.pattern.permute.xlu0 1
        %7255 = vperm.xlu0 %7254, %v7194
        %v7256 = vpop.permute.xlu0 %7255
        %7258 = vset.pattern.permute.xlu0 1
        %7259 = vperm.xlu0 %7258, %v7195
        %v7260 = vpop.permute.xlu0 %7259
        %v7262 = vmul.f32 %v7252, %v7256
        %v7263 = vmul.f32 %v7250, %v7256
        %v7264 = vmul.f32 %v7253, %v7260
        %v7265 = vmul.f32 %v7251, %v7260
        %v7266 = vmul.f32 %v7262, %v3822
        %v7267 = vmul.f32 %v7263, %v3823
        %v7268 = vmul.f32 %v7264, %v3824
        %v7269 = vmul.f32 %v7265, %v3825
        %v7270 = vadd.f32 %v7238, %v7266
        %v7271 = vadd.f32 %v7239, %v7267
        %v7272 = vadd.f32 %v7240, %v7268
        %v7273 = vadd.f32 %v7241, %v7269
        %7274 = vrot.lane.b32.xlu0 %v7189, 1
        %v7275 = vpop.permute.xlu0 %7274
        %7276 = vrot.lane.b32.xlu0 %v7191, 1
        %v7277 = vpop.permute.xlu0 %7276
        %7278 = vrot.lane.b32.xlu0 %v7190, 1
        %v7279 = vpop.permute.xlu0 %7278
        %7280 = vrot.lane.b32.xlu0 %v7192, 1
        %v7281 = vpop.permute.xlu0 %7280
        %v7282 = vsel %vm1074, %v7275, %v7279
        %v7283 = vsel %vm1074, %v7277, %v7281
        %v7284 = vsel %vm1074, %v7279, %v7275
        %v7285 = vsel %vm1074, %v7281, %v7277
        %7286 = vset.pattern.permute.xlu0 2
        %7287 = vperm.xlu0 %7286, %v7194
        %v7288 = vpop.permute.xlu0 %7287
        %7290 = vset.pattern.permute.xlu0 2
        %7291 = vperm.xlu0 %7290, %v7195
        %v7292 = vpop.permute.xlu0 %7291
        %v7294 = vmul.f32 %v7284, %v7288
        %v7295 = vmul.f32 %v7282, %v7288
        %v7296 = vmul.f32 %v7285, %v7292
        %v7297 = vmul.f32 %v7283, %v7292
        %v7298 = vmul.f32 %v7294, %v3859
        %v7299 = vmul.f32 %v7295, %v3860
        %v7300 = vmul.f32 %v7296, %v3861
        %v7301 = vmul.f32 %v7297, %v3862
        %v7302 = vadd.f32 %v7270, %v7298
        %v7303 = vadd.f32 %v7271, %v7299
        %v7304 = vadd.f32 %v7272, %v7300
        %v7305 = vadd.f32 %v7273, %v7301
        %7306 = vrot.lane.b32.xlu0 %v7189, 127
        %v7307 = vpop.permute.xlu0 %7306
        %7308 = vrot.lane.b32.xlu0 %v7191, 127
        %v7309 = vpop.permute.xlu0 %7308
        %7310 = vrot.lane.b32.xlu0 %v7190, 127
        %v7311 = vpop.permute.xlu0 %7310
        %7312 = vrot.lane.b32.xlu0 %v7192, 127
        %v7313 = vpop.permute.xlu0 %7312
        %v7314 = vsel %vm1230, %v7307, %v7311
        %v7315 = vsel %vm1230, %v7309, %v7313
        %v7316 = vsel %vm1230, %v7311, %v7307
        %v7317 = vsel %vm1230, %v7313, %v7309
        %7318 = vset.pattern.permute.xlu0 4
        %7319 = vperm.xlu0 %7318, %v7194
        %v7320 = vpop.permute.xlu0 %7319
        %7322 = vset.pattern.permute.xlu0 4
        %7323 = vperm.xlu0 %7322, %v7195
        %v7324 = vpop.permute.xlu0 %7323
        %v7326 = vmul.f32 %v7314, %v7320
        %v7327 = vmul.f32 %v7316, %v7320
        %v7328 = vmul.f32 %v7315, %v7324
        %v7329 = vmul.f32 %v7317, %v7324
        %v7330 = vmul.f32 %v7326, %v3896
        %v7331 = vmul.f32 %v7327, %v3897
        %v7332 = vmul.f32 %v7328, %v3898
        %v7333 = vmul.f32 %v7329, %v3899
        %v7334 = vadd.f32 %v7302, %v7330
        %v7335 = vadd.f32 %v7303, %v7331
        %v7336 = vadd.f32 %v7304, %v7332
        %v7337 = vadd.f32 %v7305, %v7333
        %7338 = vrot.lane.b32.xlu0 %v7189, 126
        %v7339 = vpop.permute.xlu0 %7338
        %7340 = vrot.lane.b32.xlu0 %v7191, 126
        %v7341 = vpop.permute.xlu0 %7340
        %7342 = vrot.lane.b32.xlu0 %v7190, 126
        %v7343 = vpop.permute.xlu0 %7342
        %7344 = vrot.lane.b32.xlu0 %v7192, 126
        %v7345 = vpop.permute.xlu0 %7344
        %v7346 = vsel %vm3916, %v7339, %v7343
        %v7347 = vsel %vm3916, %v7341, %v7345
        %v7348 = vsel %vm3916, %v7343, %v7339
        %v7349 = vsel %vm3916, %v7345, %v7341
        %7350 = vset.pattern.permute.xlu0 5
        %7351 = vperm.xlu0 %7350, %v7194
        %v7352 = vpop.permute.xlu0 %7351
        %7354 = vset.pattern.permute.xlu0 5
        %7355 = vperm.xlu0 %7354, %v7195
        %v7356 = vpop.permute.xlu0 %7355
        %v7358 = vmul.f32 %v7346, %v7352
        %v7359 = vmul.f32 %v7348, %v7352
        %v7360 = vmul.f32 %v7347, %v7356
        %v7361 = vmul.f32 %v7349, %v7356
        %v7362 = vmul.f32 %v7358, %v3934
        %v7363 = vmul.f32 %v7359, %v3935
        %v7364 = vmul.f32 %v7360, %v3936
        %v7365 = vmul.f32 %v7361, %v3937
        %v7366 = vadd.f32 %v7334, %v7362
        %v7367 = vadd.f32 %v7335, %v7363
        %v7368 = vadd.f32 %v7336, %v7364
        %v7369 = vadd.f32 %v7337, %v7365
        %7370 = vrot.lane.b32.xlu0 %v7189, 125
        %v7371 = vpop.permute.xlu0 %7370
        %7372 = vrot.lane.b32.xlu0 %v7191, 125
        %v7373 = vpop.permute.xlu0 %7372
        %7374 = vrot.lane.b32.xlu0 %v7190, 125
        %v7375 = vpop.permute.xlu0 %7374
        %7376 = vrot.lane.b32.xlu0 %v7192, 125
        %v7377 = vpop.permute.xlu0 %7376
        %v7378 = vsel %vm3954, %v7371, %v7375
        %v7379 = vsel %vm3954, %v7373, %v7377
        %v7380 = vsel %vm3954, %v7375, %v7371
        %v7381 = vsel %vm3954, %v7377, %v7373
        %7382 = vset.pattern.permute.xlu0 6
        %7383 = vperm.xlu0 %7382, %v7194
        %v7384 = vpop.permute.xlu0 %7383
        %7386 = vset.pattern.permute.xlu0 6
        %7387 = vperm.xlu0 %7386, %v7195
        %v7388 = vpop.permute.xlu0 %7387
        %v7390 = vmul.f32 %v7378, %v7384
        %v7391 = vmul.f32 %v7380, %v7384
        %v7392 = vmul.f32 %v7379, %v7388
        %v7393 = vmul.f32 %v7381, %v7388
        %v7394 = vmul.f32 %v7390, %v3972
        %v7395 = vmul.f32 %v7391, %v3973
        %v7396 = vmul.f32 %v7392, %v3974
        %v7397 = vmul.f32 %v7393, %v3975
        %v7398 = vadd.f32 %v7366, %v7394
        %v7399 = vadd.f32 %v7367, %v7395
        %v7400 = vadd.f32 %v7368, %v7396
        %v7401 = vadd.f32 %v7369, %v7397
        %v7402 = vadd.f32 %v7398, %v7400
        %v7403 = vrot.slane %v7402, 4
        %v7404 = vadd.f32 %v7402, %v7403
        %v7405 = vrot.slane %v7404, 2
        %v7406 = vadd.f32 %v7404, %v7405
        %v7407 = vrot.slane %v7406, 1
        %v7408 = vadd.f32 %v7406, %v7407
        %v7409 = vadd.f32 %v7399, %v7401
        %v7410 = vrot.slane %v7409, 4
        %v7411 = vadd.f32 %v7409, %v7410
        %v7412 = vrot.slane %v7411, 2
        %v7413 = vadd.f32 %v7411, %v7412
        %v7414 = vrot.slane %v7413, 1
        %v7415 = vadd.f32 %v7413, %v7414
        %v7416 = vxor.u32 %v7408, 2147483648
        %v7417 = vxor.u32 %v7415, 2147483648
        %v7418 = vmul.f32 %v7416, 1.442695
        %v7419 = vpow.pop %v7418
        %v7420 = vmul.f32 %v7417, 1.442695
        %v7421 = vpow.pop %v7420
        %v7422 = vadd.f32 %v7419, 1.0
        %v7423 = vadd.f32 %v7421, 1.0
        %v7424 = vrcp.pop %v7422
        %v7425 = vmul.f32 1.0, %v7424
        %v7426 = vrcp.pop %v7423
        %v7427 = vmul.f32 1.0, %v7426
        %v7428 = vmul.f32 %v6983, %v7425
        %v7429 = vmul.f32 %v6984, %v7427
        %v7430 = vmul.f32 %v6985, %v7425
        %v7431 = vmul.f32 %v6986, %v7427
        %v7432 = vmul.f32 %v6987, %v7425
        %v7433 = vmul.f32 %v6988, %v7427
        %v7434 = vmul.f32 %v6989, %v7425
        %v7435 = vmul.f32 %v6990, %v7427
        %v7436 = vadd.f32 %v7428, %v4026
        %v7437 = vadd.f32 %v7429, %v4027
        %v7438 = vadd.f32 %v7430, %v4028
        %v7439 = vadd.f32 %v7431, %v4029
        %v7440 = vadd.f32 %v7432, %v4030
        %v7441 = vadd.f32 %v7433, %v4031
        %v7442 = vadd.f32 %v7434, %v4032
        %v7443 = vadd.f32 %v7435, %v4033
        %v7444 = vmax.f32 %v7436, 0.0
        %v7445 = vmax.f32 %v7437, 0.0
        %v7446 = vmax.f32 %v7438, 0.0
        %v7447 = vmax.f32 %v7439, 0.0
        %v7448 = vmax.f32 %v7440, 0.0
        %v7449 = vmax.f32 %v7441, 0.0
        %v7450 = vmax.f32 %v7442, 0.0
        %v7451 = vmax.f32 %v7443, 0.0
        %7452 = vst [vmem:[%s477] sm:$0xff] %v7444
        %7453 = vst [vmem:[%s477 + $0x8] sm:$0xff] %v7445
        %7454 = vst [vmem:[%s477 + $0x10] sm:$0xff] %v7446
        %7455 = vst [vmem:[%s477 + $0x18] sm:$0xff] %v7447
        %7456 = vst [vmem:[%s477 + $0x20] sm:$0xff] %v7448
        %7457 = vst [vmem:[%s477 + $0x28] sm:$0xff] %v7449
        %7458 = vst [vmem:[%s477 + $0x30] sm:$0xff] %v7450
        %7459 = vst [vmem:[%s477 + $0x38] sm:$0xff] %v7451
        %s7460 = sand.u32 %s315, 1
        %s7461 = scalar_lea.sflag [#allocation4], %s7460
        %s7462 = sand.u32 %s315, 1
        %s7463 = smul.addr %s7462, 64
        %s7464 = scalar_lea.vmem [#allocation8], %s7463
        // Predicated region
        $region85: #{tpu_custom_call.1} parent=71 // pred_check
          %p7465 = pneg %p325
        $region86: #{tpu_custom_call.1} parent=71 // pred_check_branch
          %7467 = sbr.rel (%p7465) target = $region88
        $region87: #{tpu_custom_call.1} parent=71 // pred_region
          %s7469 = ssub.s32 1024, 1024
          %7470 = vsyncadd %s7461, %s7469
          %s7471 = smul.addr %s29, 8
          %s7472 = smul.addr %s7471, 128
          %s7473 = scalar_lea.hbm %s13, %s7472
          %s7474 = sshll.u32 %s7464, 4
          %s7475 = int_to_ptr.vmem [resolvable:$true] %s7474
          %7480 = dma.vmem_to_hbm [thread:$0]  %s7475, 1024, %s7473, %s7461, 256, 256, 16
        $region88: #{tpu_custom_call.1} parent=71 // pred_fallthru
          _
      $region72: #{tpu_custom_call.1} parent=5 // pred_fallthru
        _
      %p7481 = scmp.le.s32.totalorder 2, %s24
      // Predicated region
      $region89: #{tpu_custom_call.1} parent=5 // pred_check
        %p7482 = pneg %p7481
      $region90: #{tpu_custom_call.1} parent=5 // pred_check_branch
        %7484 = sbr.rel (%p7482) target = $region92
      $region91: #{tpu_custom_call.1} parent=5 // pred_region
        %s7485 = ssub.s32 %s24, 2
        // Predicated region
        $region93: #{tpu_custom_call.1} parent=91 // pred_check
          %p7486 = pneg %p331
        $region94: #{tpu_custom_call.1} parent=91 // pred_check_branch
          %7488 = sbr.rel (%p7486) target = $region96
        $region95: #{tpu_custom_call.1} parent=91 // pred_region
          %s7489 = sand.u32 %s316, 1
          %s7490 = scalar_lea.sflag [#allocation4], %s7489
          %s7491 = sand.u32 %s316, 1
          %s7492 = smul.addr %s7491, 64
          %s7493 = scalar_lea.vmem [#allocation8], %s7492
          %7494 = dma.done %s7490, 1024
        $region96: #{tpu_custom_call.1} parent=91 // pred_fallthru
          _
      $region92: #{tpu_custom_call.1} parent=5 // pred_fallthru
        _
    $region6: #{tpu_custom_call.1} parent=1 // loop_footer
      %s28 = sadd.s32 1, %s24
    $region7: #{tpu_custom_call.1} parent=1 // loop_footer_branch
      %23 = sbr.rel target = $region3
    $region8: #{tpu_custom_call.1} parent=1 // loop_exit
      _
    %7495 = vsyncpa [#allocation3], 1
    %s7496 = scalar_lea.sflag [#allocation3], 1
    %7497 = vsyncpa %s7496, 1
    %7498 = vsyncpa [#allocation6], 1
    %7499 = vsyncpa [#allocation4], 1
    %s7500 = scalar_lea.sflag [#allocation4], 1
    %7501 = vsyncpa %s7500, 1

</llo_original>
